<compile_context>
chip_gen: v7x
topology: tpu7x:2x2x1
jax: 0.10.0
libtpu: 0.0.40
codegen_flags: <defaults>
</compile_context>

<pallas_src>
import functools

import jax
import jax.numpy as jnp
import numpy as np
from jax.experimental import pallas as pl
from jax.experimental.pallas import tpu as pltpu

_EPS = 1e-5  # PyTorch BatchNorm2d default


def _aspp_kernel(x_ref, w_ref, t_ref, o_ref, xs_ref, slab_ref, *,
                 H, W, Cin, ox_list, taps, taps_per_group):
    """Fused ASPP forward for one batch element.

    x_ref:    (Hp, Wp, Cin)        bf16  zero-padded NHWC image
    w_ref:    (n_tap*Cin, Cpad)    bf16  im2col weight, BN scale folded,
                                         branch columns at disjoint slots
    t_ref:    (1, Cpad)            f32   folded conv-bias + BN shift
    o_ref:    (H*W, Cpad)          bf16  lane-dense output tile
    xs_ref:   (n_ox, Hp, W, Cin)   bf16  scratch: hoisted W-shifted windows
    slab_ref: (H*W, n_tap*Cin)     bf16  scratch: im2col slab
    """
    n_tap = len(taps)

    # 1) Hoist the distinct W-axis shifts once.  This is the only
    #    sublane-unaligned slice; everything below indexes leading dims only.
    for xi, ox in enumerate(ox_list):
        xs_ref[xi] = x_ref[:, ox:ox + W, :]

    ox_index = {ox: i for i, ox in enumerate(ox_list)}

    # 2) Build the im2col slab (K = n_tap*Cin).  Taps are packed in groups that
    #    fill whole 128-lane tiles so the slab stores are unmasked/lane-dense.
    for g0 in range(0, n_tap, taps_per_group):
        parts = []
        for t in range(g0, min(g0 + taps_per_group, n_tap)):
            oy, ox = taps[t]
            win = xs_ref[ox_index[ox], oy:oy + H]           # (H, W, Cin), free
            parts.append(win.reshape(H * W, Cin))
        strip = parts[0] if len(parts) == 1 else jnp.concatenate(parts, axis=-1)
        slab_ref[:, g0 * Cin:g0 * Cin + strip.shape[-1]] = strip

    # 3) One big MXU matmul replaces 36 K=Cin dots; f32 shift + ReLU epilogue,
    #    bf16 lane-dense store.
    acc = jnp.dot(slab_ref[...], w_ref[...], preferred_element_type=jnp.float32)
    o_ref[...] = jnp.maximum(acc + t_ref[...], 0.0).astype(o_ref.dtype)


def _prepare_weights(params, in_ch, c_out, dilations, c_pad, eps=_EPS):
    """Fold inference BN into the im2col matmul weight / per-channel shift."""
    nb = len(dilations)
    w_all = jnp.zeros((nb * 9, in_ch, c_pad), jnp.float32)
    shift = jnp.zeros((1, c_pad), jnp.float32)
    for b in range(nb):
        w = params[f"w{b}"]                       # (Cout, Cin, 3, 3)
        bias = params[f"b{b}"]
        gamma, beta, mean, var = params[f"bn{b}"]
        scale = gamma / jnp.sqrt(var + eps)       # (Cout,)
        sh = (bias - mean) * scale + beta         # (Cout,)
        wsc = w * scale[:, None, None, None]      # fold BN scale into weights
        # (Cout, Cin, ky, kx) -> (ky, kx, Cin, Cout) -> (9, Cin, Cout)
        wt = jnp.transpose(wsc, (2, 3, 1, 0)).reshape(9, in_ch, c_out)
        w_all = w_all.at[b * 9:(b + 1) * 9, :, b * c_out:(b + 1) * c_out].set(wt)
        shift = shift.at[0, b * c_out:(b + 1) * c_out].set(sh)
    # (n_tap, Cin, Cpad) -> (n_tap*Cin, Cpad): K index = tap*Cin + cin, exactly
    # matching the in-kernel im2col column order.
    w_flat = w_all.reshape(nb * 9 * in_ch, c_pad).astype(jnp.bfloat16)
    return w_flat, shift


@functools.partial(jax.jit, static_argnames=("dilations", "reduction"))
def aspp_forward(x_nchw, params, *, dilations, reduction=4):
    """ASPP forward. x_nchw: (N, Cin, H, W) -> (N, 4*Cin//reduction, H, W)."""
    N, Cin, H, W = x_nchw.shape
    Cout = Cin // reduction
    nb = len(dilations)
    C_total = nb * Cout
    Cpad = ((C_total + 127) // 128) * 128         # lane-dense output width
    d_max = max(dilations)
    Hp, Wp = H + 2 * d_max, W + 2 * d_max
    n_tap = nb * 9

    # Perf sweet spots (not correctness requirements): W % 8 == 0 keeps the
    # in-kernel (H,W,Cin)->(H*W,Cin) reshape a free relayout; Cin % 8 == 0
    # keeps the weight/slab tiles clean.

    # Static tap table: t = b*9 + ky*3 + kx -> (oy, ox) offsets in the padded
    # image; the weight's flattened K dim uses the same ordering.
    taps = []
    for d in dilations:
        for ky in range(3):
            for kx in range(3):
                taps.append((d_max + (ky - 1) * d, d_max + (kx - 1) * d))
    taps = tuple(taps)
    ox_list = tuple(sorted({ox for _, ox in taps}))
    taps_per_group = 128 // Cin if (Cin <= 128 and 128 % Cin == 0) else 1

    w_flat, shift = _prepare_weights(params, Cin, Cout, dilations, Cpad)

    # NCHW -> NHWC, cast to bf16 for the MXU, zero-pad spatially by d_max.
    x_nhwc = jnp.transpose(x_nchw, (0, 2, 3, 1)).astype(jnp.bfloat16)
    x_pad = jnp.pad(x_nhwc, ((0, 0), (d_max, d_max), (d_max, d_max), (0, 0)))

    kernel = functools.partial(_aspp_kernel, H=H, W=W, Cin=Cin,
                               ox_list=ox_list, taps=taps,
                               taps_per_group=taps_per_group)

    grid_spec = pltpu.PrefetchScalarGridSpec(
        num_scalar_prefetch=0,
        grid=(N,),
        in_specs=[
            # one padded image per grid step (batch dim squeezed)
            pl.BlockSpec((None, Hp, Wp, Cin), lambda n: (n, 0, 0, 0)),
            # weights / shift: constant index_map -> resident across steps
            pl.BlockSpec((n_tap * Cin, Cpad), lambda n: (0, 0)),
            pl.BlockSpec((1, Cpad), lambda n: (0, 0)),
        ],
        out_specs=pl.BlockSpec((None, H * W, Cpad), lambda n: (n, 0, 0)),
        scratch_shapes=[
            pltpu.VMEM((len(ox_list), Hp, W, Cin), jnp.bfloat16),  # shifted windows
            pltpu.VMEM((H * W, n_tap * Cin), jnp.bfloat16),        # im2col slab
        ],
    )

    out_flat = pl.pallas_call(
        kernel,
        out_shape=jax.ShapeDtypeStruct((N, H * W, Cpad), jnp.bfloat16),
        grid_spec=grid_spec,
        compiler_params=pltpu.CompilerParams(
            dimension_semantics=("parallel",),
        ),
    )(x_pad, w_flat, shift)

    # (N, H*W, Cpad) bf16 -> (N, C_total, H, W) f32 (branch-concat order kept)
    out = out_flat[:, :, :C_total].reshape(N, H, W, C_total)
    return jnp.transpose(out, (0, 3, 1, 2)).astype(jnp.float32)


def init_params(key, in_ch, reduction, n_branches=4):
    """Deterministic synthetic ASPP parameters (PyTorch conv layout OIHW)."""
    c_out = in_ch // reduction
    ks = jax.random.split(key, n_branches)
    params = {}
    for b in range(n_branches):
        k1, k2, k3, k4, k5, k6 = jax.random.split(ks[b], 6)
        params[f"w{b}"] = 0.05 * jax.random.normal(k1, (c_out, in_ch, 3, 3),
                                                   jnp.float32)
        params[f"b{b}"] = 0.01 * jax.random.normal(k2, (c_out,), jnp.float32)
        gamma = 1.0 + 0.1 * jax.random.normal(k3, (c_out,), jnp.float32)
        beta = 0.1 * jax.random.normal(k4, (c_out,), jnp.float32)
        mean = 0.1 * jax.random.normal(k5, (c_out,), jnp.float32)
        var = jax.random.uniform(k6, (c_out,), jnp.float32,
                                 minval=0.5, maxval=1.5)
        params[f"bn{b}"] = (gamma, beta, mean, var)
    return params


def _reference_forward(x_nchw, params, dilations, eps=_EPS):
    """Plain-JAX (f32) reference of the same inference-mode ASPP forward."""
    outs = []
    for b, d in enumerate(dilations):
        w = params[f"w{b}"]
        bias = params[f"b{b}"]
        gamma, beta, mean, var = params[f"bn{b}"]
        y = jax.lax.conv_general_dilated(
            x_nchw, w, window_strides=(1, 1), padding=((d, d), (d, d)),
            rhs_dilation=(d, d),
            dimension_numbers=("NCHW", "OIHW", "NCHW"))
        y = y + bias[None, :, None, None]
        y = ((y - mean[None, :, None, None])
             / jnp.sqrt(var[None, :, None, None] + eps)
             * gamma[None, :, None, None] + beta[None, :, None, None])
        outs.append(jax.nn.relu(y))
    return jnp.concatenate(outs, axis=1)


if __name__ == "__main__":
    # ASPP(in_ch=32, d1..d4 = 1,2,3,4, reduction=4) on a small feature map.
    N, IN_CH, H, W = 2, 32, 16, 16
    REDUCTION = 4
    DILATIONS = (1, 2, 3, 4)

    key = jax.random.PRNGKey(0)
    kx, kp = jax.random.split(key)
    x = jax.random.normal(kx, (N, IN_CH, H, W), jnp.float32)
    params = init_params(kp, IN_CH, REDUCTION, n_branches=len(DILATIONS))

    out = aspp_forward(x, params, dilations=DILATIONS, reduction=REDUCTION)
    out = jax.block_until_ready(out)

    ref = jax.block_until_ready(_reference_forward(x, params, DILATIONS))
    assert out.shape == (N, len(DILATIONS) * (IN_CH // REDUCTION), H, W)
    # bf16 MXU operands + bf16 output store (f32 accumulation) -> loosened
    # tolerance vs the f32 reference.
    np.testing.assert_allclose(np.asarray(out), np.asarray(ref),
                               rtol=5e-2, atol=5e-2)

    print("KERNEL_OK")
</pallas_src>

<mosaic_0001>
module attributes {stable_mosaic.version = 11 : i64} {
  func.func @_aspp_kernel(%arg0: i32, %arg1: memref<1x24x24x32xbf16, #tpu.memory_space<vmem>>, %arg2: memref<1152x128xbf16, #tpu.memory_space<vmem>>, %arg3: memref<1x128xf32, #tpu.memory_space<vmem>>, %arg4: memref<1x256x128xbf16, #tpu.memory_space<vmem>>, %arg5: memref<9x24x16x32xbf16, #tpu.memory_space<vmem>>, %arg6: memref<256x1152xbf16, #tpu.memory_space<vmem>>) attributes {dimension_semantics = [#tpu.dimension_semantics<parallel>], iteration_bounds = array<i64: 2>, scalar_prefetch = 0 : i64, scratch_operands = 2 : i64, tpu.core_type = #tpu.core_type<tc>, window_params = [{transform_indices = @transform_0, window_bounds = array<i64: 1, 24, 24, 32>}, {pipeline_mode = #tpu.pipeline_mode<synchronous>, transform_indices = @transform_1, window_bounds = array<i64: 1152, 128>}, {pipeline_mode = #tpu.pipeline_mode<synchronous>, transform_indices = @transform_2, window_bounds = array<i64: 1, 128>}, {transform_indices = @transform_3, window_bounds = array<i64: 1, 256, 128>}]} {
    %c0 = arith.constant 0 : index
    %c0_0 = arith.constant 0 : index
    %c0_1 = arith.constant 0 : index
    %c0_2 = arith.constant 0 : index
    %0 = vector.load %arg1[%c0, %c0_0, %c0_1, %c0_2] : memref<1x24x24x32xbf16, #tpu.memory_space<vmem>>, vector<1x24x16x32xbf16>
    %1 = vector.shape_cast %0 : vector<1x24x16x32xbf16> to vector<24x16x32xbf16>
    %c0_3 = arith.constant 0 : index
    %c0_4 = arith.constant 0 : index
    %c0_5 = arith.constant 0 : index
    %c0_6 = arith.constant 0 : index
    %2 = vector.load %arg5[%c0_3, %c0_4, %c0_5, %c0_6] : memref<9x24x16x32xbf16, #tpu.memory_space<vmem>>, vector<1x24x16x32xbf16>
    %3 = vector.shape_cast %2 : vector<1x24x16x32xbf16> to vector<24x16x32xbf16>
    %4 = vector.shape_cast %1 : vector<24x16x32xbf16> to vector<1x24x16x32xbf16>
    tpu.vector_store %arg5[%c0_3, %c0_4, %c0_5, %c0_6], %4 {strides = array<i32>} : memref<9x24x16x32xbf16, #tpu.memory_space<vmem>>, vector<1x24x16x32xbf16>,
    %c0_7 = arith.constant 0 : index
    %c0_8 = arith.constant 0 : index
    %c1 = arith.constant 1 : index
    %c0_9 = arith.constant 0 : index
    %5 = vector.load %arg1[%c0_7, %c0_8, %c1, %c0_9] : memref<1x24x24x32xbf16, #tpu.memory_space<vmem>>, vector<1x24x16x32xbf16>
    %6 = vector.shape_cast %5 : vector<1x24x16x32xbf16> to vector<24x16x32xbf16>
    %c1_10 = arith.constant 1 : index
    %c0_11 = arith.constant 0 : index
    %c0_12 = arith.constant 0 : index
    %c0_13 = arith.constant 0 : index
    %7 = vector.load %arg5[%c1_10, %c0_11, %c0_12, %c0_13] : memref<9x24x16x32xbf16, #tpu.memory_space<vmem>>, vector<1x24x16x32xbf16>
    %8 = vector.shape_cast %7 : vector<1x24x16x32xbf16> to vector<24x16x32xbf16>
    %9 = vector.shape_cast %6 : vector<24x16x32xbf16> to vector<1x24x16x32xbf16>
    tpu.vector_store %arg5[%c1_10, %c0_11, %c0_12, %c0_13], %9 {strides = array<i32>} : memref<9x24x16x32xbf16, #tpu.memory_space<vmem>>, vector<1x24x16x32xbf16>,
    %c0_14 = arith.constant 0 : index
    %c0_15 = arith.constant 0 : index
    %c2 = arith.constant 2 : index
    %c0_16 = arith.constant 0 : index
    %10 = vector.load %arg1[%c0_14, %c0_15, %c2, %c0_16] : memref<1x24x24x32xbf16, #tpu.memory_space<vmem>>, vector<1x24x16x32xbf16>
    %11 = vector.shape_cast %10 : vector<1x24x16x32xbf16> to vector<24x16x32xbf16>
    %c2_17 = arith.constant 2 : index
    %c0_18 = arith.constant 0 : index
    %c0_19 = arith.constant 0 : index
    %c0_20 = arith.constant 0 : index
    %12 = vector.load %arg5[%c2_17, %c0_18, %c0_19, %c0_20] : memref<9x24x16x32xbf16, #tpu.memory_space<vmem>>, vector<1x24x16x32xbf16>
    %13 = vector.shape_cast %12 : vector<1x24x16x32xbf16> to vector<24x16x32xbf16>
    %14 = vector.shape_cast %11 : vector<24x16x32xbf16> to vector<1x24x16x32xbf16>
    tpu.vector_store %arg5[%c2_17, %c0_18, %c0_19, %c0_20], %14 {strides = array<i32>} : memref<9x24x16x32xbf16, #tpu.memory_space<vmem>>, vector<1x24x16x32xbf16>,
    %c0_21 = arith.constant 0 : index
    %c0_22 = arith.constant 0 : index
    %c3 = arith.constant 3 : index
    %c0_23 = arith.constant 0 : index
    %15 = vector.load %arg1[%c0_21, %c0_22, %c3, %c0_23] : memref<1x24x24x32xbf16, #tpu.memory_space<vmem>>, vector<1x24x16x32xbf16>
    %16 = vector.shape_cast %15 : vector<1x24x16x32xbf16> to vector<24x16x32xbf16>
    %c3_24 = arith.constant 3 : index
    %c0_25 = arith.constant 0 : index
    %c0_26 = arith.constant 0 : index
    %c0_27 = arith.constant 0 : index
    %17 = vector.load %arg5[%c3_24, %c0_25, %c0_26, %c0_27] : memref<9x24x16x32xbf16, #tpu.memory_space<vmem>>, vector<1x24x16x32xbf16>
    %18 = vector.shape_cast %17 : vector<1x24x16x32xbf16> to vector<24x16x32xbf16>
    %19 = vector.shape_cast %16 : vector<24x16x32xbf16> to vector<1x24x16x32xbf16>
    tpu.vector_store %arg5[%c3_24, %c0_25, %c0_26, %c0_27], %19 {strides = array<i32>} : memref<9x24x16x32xbf16, #tpu.memory_space<vmem>>, vector<1x24x16x32xbf16>,
    %c0_28 = arith.constant 0 : index
    %c0_29 = arith.constant 0 : index
    %c4 = arith.constant 4 : index
    %c0_30 = arith.constant 0 : index
    %20 = vector.load %arg1[%c0_28, %c0_29, %c4, %c0_30] : memref<1x24x24x32xbf16, #tpu.memory_space<vmem>>, vector<1x24x16x32xbf16>
    %21 = vector.shape_cast %20 : vector<1x24x16x32xbf16> to vector<24x16x32xbf16>
    %c4_31 = arith.constant 4 : index
    %c0_32 = arith.constant 0 : index
    %c0_33 = arith.constant 0 : index
    %c0_34 = arith.constant 0 : index
    %22 = vector.load %arg5[%c4_31, %c0_32, %c0_33, %c0_34] : memref<9x24x16x32xbf16, #tpu.memory_space<vmem>>, vector<1x24x16x32xbf16>
    %23 = vector.shape_cast %22 : vector<1x24x16x32xbf16> to vector<24x16x32xbf16>
    %24 = vector.shape_cast %21 : vector<24x16x32xbf16> to vector<1x24x16x32xbf16>
    tpu.vector_store %arg5[%c4_31, %c0_32, %c0_33, %c0_34], %24 {strides = array<i32>} : memref<9x24x16x32xbf16, #tpu.memory_space<vmem>>, vector<1x24x16x32xbf16>,
    %c0_35 = arith.constant 0 : index
    %c0_36 = arith.constant 0 : index
    %c5 = arith.constant 5 : index
    %c0_37 = arith.constant 0 : index
    %25 = vector.load %arg1[%c0_35, %c0_36, %c5, %c0_37] : memref<1x24x24x32xbf16, #tpu.memory_space<vmem>>, vector<1x24x16x32xbf16>
    %26 = vector.shape_cast %25 : vector<1x24x16x32xbf16> to vector<24x16x32xbf16>
    %c5_38 = arith.constant 5 : index
    %c0_39 = arith.constant 0 : index
    %c0_40 = arith.constant 0 : index
    %c0_41 = arith.constant 0 : index
    %27 = vector.load %arg5[%c5_38, %c0_39, %c0_40, %c0_41] : memref<9x24x16x32xbf16, #tpu.memory_space<vmem>>, vector<1x24x16x32xbf16>
    %28 = vector.shape_cast %27 : vector<1x24x16x32xbf16> to vector<24x16x32xbf16>
    %29 = vector.shape_cast %26 : vector<24x16x32xbf16> to vector<1x24x16x32xbf16>
    tpu.vector_store %arg5[%c5_38, %c0_39, %c0_40, %c0_41], %29 {strides = array<i32>} : memref<9x24x16x32xbf16, #tpu.memory_space<vmem>>, vector<1x24x16x32xbf16>,
    %c0_42 = arith.constant 0 : index
    %c0_43 = arith.constant 0 : index
    %c6 = arith.constant 6 : index
    %c0_44 = arith.constant 0 : index
    %30 = vector.load %arg1[%c0_42, %c0_43, %c6, %c0_44] : memref<1x24x24x32xbf16, #tpu.memory_space<vmem>>, vector<1x24x16x32xbf16>
    %31 = vector.shape_cast %30 : vector<1x24x16x32xbf16> to vector<24x16x32xbf16>
    %c6_45 = arith.constant 6 : index
    %c0_46 = arith.constant 0 : index
    %c0_47 = arith.constant 0 : index
    %c0_48 = arith.constant 0 : index
    %32 = vector.load %arg5[%c6_45, %c0_46, %c0_47, %c0_48] : memref<9x24x16x32xbf16, #tpu.memory_space<vmem>>, vector<1x24x16x32xbf16>
    %33 = vector.shape_cast %32 : vector<1x24x16x32xbf16> to vector<24x16x32xbf16>
    %34 = vector.shape_cast %31 : vector<24x16x32xbf16> to vector<1x24x16x32xbf16>
    tpu.vector_store %arg5[%c6_45, %c0_46, %c0_47, %c0_48], %34 {strides = array<i32>} : memref<9x24x16x32xbf16, #tpu.memory_space<vmem>>, vector<1x24x16x32xbf16>,
    %c0_49 = arith.constant 0 : index
    %c0_50 = arith.constant 0 : index
    %c7 = arith.constant 7 : index
    %c0_51 = arith.constant 0 : index
    %35 = vector.load %arg1[%c0_49, %c0_50, %c7, %c0_51] : memref<1x24x24x32xbf16, #tpu.memory_space<vmem>>, vector<1x24x16x32xbf16>
    %36 = vector.shape_cast %35 : vector<1x24x16x32xbf16> to vector<24x16x32xbf16>
    %c7_52 = arith.constant 7 : index
    %c0_53 = arith.constant 0 : index
    %c0_54 = arith.constant 0 : index
    %c0_55 = arith.constant 0 : index
    %37 = vector.load %arg5[%c7_52, %c0_53, %c0_54, %c0_55] : memref<9x24x16x32xbf16, #tpu.memory_space<vmem>>, vector<1x24x16x32xbf16>
    %38 = vector.shape_cast %37 : vector<1x24x16x32xbf16> to vector<24x16x32xbf16>
    %39 = vector.shape_cast %36 : vector<24x16x32xbf16> to vector<1x24x16x32xbf16>
    tpu.vector_store %arg5[%c7_52, %c0_53, %c0_54, %c0_55], %39 {strides = array<i32>} : memref<9x24x16x32xbf16, #tpu.memory_space<vmem>>, vector<1x24x16x32xbf16>,
    %c0_56 = arith.constant 0 : index
    %c0_57 = arith.constant 0 : index
    %c8 = arith.constant 8 : index
    %c0_58 = arith.constant 0 : index
    %40 = vector.load %arg1[%c0_56, %c0_57, %c8, %c0_58] : memref<1x24x24x32xbf16, #tpu.memory_space<vmem>>, vector<1x24x16x32xbf16>
    %41 = vector.shape_cast %40 : vector<1x24x16x32xbf16> to vector<24x16x32xbf16>
    %c8_59 = arith.constant 8 : index
    %c0_60 = arith.constant 0 : index
    %c0_61 = arith.constant 0 : index
    %c0_62 = arith.constant 0 : index
    %42 = vector.load %arg5[%c8_59, %c0_60, %c0_61, %c0_62] : memref<9x24x16x32xbf16, #tpu.memory_space<vmem>>, vector<1x24x16x32xbf16>
    %43 = vector.shape_cast %42 : vector<1x24x16x32xbf16> to vector<24x16x32xbf16>
    %44 = vector.shape_cast %41 : vector<24x16x32xbf16> to vector<1x24x16x32xbf16>
    tpu.vector_store %arg5[%c8_59, %c0_60, %c0_61, %c0_62], %44 {strides = array<i32>} : memref<9x24x16x32xbf16, #tpu.memory_space<vmem>>, vector<1x24x16x32xbf16>,
    %c3_63 = arith.constant 3 : index
    %c3_64 = arith.constant 3 : index
    %c0_65 = arith.constant 0 : index
    %c0_66 = arith.constant 0 : index
    %45 = vector.load %arg5[%c3_63, %c3_64, %c0_65, %c0_66] : memref<9x24x16x32xbf16, #tpu.memory_space<vmem>>, vector<1x16x16x32xbf16>
    %46 = vector.shape_cast %45 : vector<1x16x16x32xbf16> to vector<16x16x32xbf16>
    %47 = vector.shape_cast %46 : vector<16x16x32xbf16> to vector<256x32xbf16>
    %c4_67 = arith.constant 4 : index
    %c3_68 = arith.constant 3 : index
    %c0_69 = arith.constant 0 : index
    %c0_70 = arith.constant 0 : index
    %48 = vector.load %arg5[%c4_67, %c3_68, %c0_69, %c0_70] : memref<9x24x16x32xbf16, #tpu.memory_space<vmem>>, vector<1x16x16x32xbf16>
    %49 = vector.shape_cast %48 : vector<1x16x16x32xbf16> to vector<16x16x32xbf16>
    %50 = vector.shape_cast %49 : vector<16x16x32xbf16> to vector<256x32xbf16>
    %c5_71 = arith.constant 5 : index
    %c3_72 = arith.constant 3 : index
    %c0_73 = arith.constant 0 : index
    %c0_74 = arith.constant 0 : index
    %51 = vector.load %arg5[%c5_71, %c3_72, %c0_73, %c0_74] : memref<9x24x16x32xbf16, #tpu.memory_space<vmem>>, vector<1x16x16x32xbf16>
    %52 = vector.shape_cast %51 : vector<1x16x16x32xbf16> to vector<16x16x32xbf16>
    %53 = vector.shape_cast %52 : vector<16x16x32xbf16> to vector<256x32xbf16>
    %c3_75 = arith.constant 3 : index
    %c4_76 = arith.constant 4 : index
    %c0_77 = arith.constant 0 : index
    %c0_78 = arith.constant 0 : index
    %54 = vector.load %arg5[%c3_75, %c4_76, %c0_77, %c0_78] : memref<9x24x16x32xbf16, #tpu.memory_space<vmem>>, vector<1x16x16x32xbf16>
    %55 = vector.shape_cast %54 : vector<1x16x16x32xbf16> to vector<16x16x32xbf16>
    %56 = vector.shape_cast %55 : vector<16x16x32xbf16> to vector<256x32xbf16>
    %57 = tpu.concatenate %47, %50, %53, %56 in 1 : vector<256x32xbf16>, vector<256x32xbf16>, vector<256x32xbf16>, vector<256x32xbf16> -> vector<256x128xbf16>
    %c0_79 = arith.constant 0 : index
    %c0_80 = arith.constant 0 : index
    %58 = vector.load %arg6[%c0_79, %c0_80] : memref<256x1152xbf16, #tpu.memory_space<vmem>>, vector<256x128xbf16>
    tpu.vector_store %arg6[%c0_79, %c0_80], %57 {strides = array<i32>} : memref<256x1152xbf16, #tpu.memory_space<vmem>>, vector<256x128xbf16>,
    %c4_81 = arith.constant 4 : index
    %c4_82 = arith.constant 4 : index
    %c0_83 = arith.constant 0 : index
    %c0_84 = arith.constant 0 : index
    %59 = vector.load %arg5[%c4_81, %c4_82, %c0_83, %c0_84] : memref<9x24x16x32xbf16, #tpu.memory_space<vmem>>, vector<1x16x16x32xbf16>
    %60 = vector.shape_cast %59 : vector<1x16x16x32xbf16> to vector<16x16x32xbf16>
    %61 = vector.shape_cast %60 : vector<16x16x32xbf16> to vector<256x32xbf16>
    %c5_85 = arith.constant 5 : index
    %c4_86 = arith.constant 4 : index
    %c0_87 = arith.constant 0 : index
    %c0_88 = arith.constant 0 : index
    %62 = vector.load %arg5[%c5_85, %c4_86, %c0_87, %c0_88] : memref<9x24x16x32xbf16, #tpu.memory_space<vmem>>, vector<1x16x16x32xbf16>
    %63 = vector.shape_cast %62 : vector<1x16x16x32xbf16> to vector<16x16x32xbf16>
    %64 = vector.shape_cast %63 : vector<16x16x32xbf16> to vector<256x32xbf16>
    %c3_89 = arith.constant 3 : index
    %c5_90 = arith.constant 5 : index
    %c0_91 = arith.constant 0 : index
    %c0_92 = arith.constant 0 : index
    %65 = vector.load %arg5[%c3_89, %c5_90, %c0_91, %c0_92] : memref<9x24x16x32xbf16, #tpu.memory_space<vmem>>, vector<1x16x16x32xbf16>
    %66 = vector.shape_cast %65 : vector<1x16x16x32xbf16> to vector<16x16x32xbf16>
    %67 = vector.shape_cast %66 : vector<16x16x32xbf16> to vector<256x32xbf16>
    %c4_93 = arith.constant 4 : index
    %c5_94 = arith.constant 5 : index
    %c0_95 = arith.constant 0 : index
    %c0_96 = arith.constant 0 : index
    %68 = vector.load %arg5[%c4_93, %c5_94, %c0_95, %c0_96] : memref<9x24x16x32xbf16, #tpu.memory_space<vmem>>, vector<1x16x16x32xbf16>
    %69 = vector.shape_cast %68 : vector<1x16x16x32xbf16> to vector<16x16x32xbf16>
    %70 = vector.shape_cast %69 : vector<16x16x32xbf16> to vector<256x32xbf16>
    %71 = tpu.concatenate %61, %64, %67, %70 in 1 : vector<256x32xbf16>, vector<256x32xbf16>, vector<256x32xbf16>, vector<256x32xbf16> -> vector<256x128xbf16>
    %c0_97 = arith.constant 0 : index
    %c128 = arith.constant 128 : index
    %72 = vector.load %arg6[%c0_97, %c128] : memref<256x1152xbf16, #tpu.memory_space<vmem>>, vector<256x128xbf16>
    tpu.vector_store %arg6[%c0_97, %c128], %71 {strides = array<i32>} : memref<256x1152xbf16, #tpu.memory_space<vmem>>, vector<256x128xbf16>,
    %c5_98 = arith.constant 5 : index
    %c5_99 = arith.constant 5 : index
    %c0_100 = arith.constant 0 : index
    %c0_101 = arith.constant 0 : index
    %73 = vector.load %arg5[%c5_98, %c5_99, %c0_100, %c0_101] : memref<9x24x16x32xbf16, #tpu.memory_space<vmem>>, vector<1x16x16x32xbf16>
    %74 = vector.shape_cast %73 : vector<1x16x16x32xbf16> to vector<16x16x32xbf16>
    %75 = vector.shape_cast %74 : vector<16x16x32xbf16> to vector<256x32xbf16>
    %c2_102 = arith.constant 2 : index
    %c2_103 = arith.constant 2 : index
    %c0_104 = arith.constant 0 : index
    %c0_105 = arith.constant 0 : index
    %76 = vector.load %arg5[%c2_102, %c2_103, %c0_104, %c0_105] : memref<9x24x16x32xbf16, #tpu.memory_space<vmem>>, vector<1x16x16x32xbf16>
    %77 = vector.shape_cast %76 : vector<1x16x16x32xbf16> to vector<16x16x32xbf16>
    %78 = vector.shape_cast %77 : vector<16x16x32xbf16> to vector<256x32xbf16>
    %c4_106 = arith.constant 4 : index
    %c2_107 = arith.constant 2 : index
    %c0_108 = arith.constant 0 : index
    %c0_109 = arith.constant 0 : index
    %79 = vector.load %arg5[%c4_106, %c2_107, %c0_108, %c0_109] : memref<9x24x16x32xbf16, #tpu.memory_space<vmem>>, vector<1x16x16x32xbf16>
    %80 = vector.shape_cast %79 : vector<1x16x16x32xbf16> to vector<16x16x32xbf16>
    %81 = vector.shape_cast %80 : vector<16x16x32xbf16> to vector<256x32xbf16>
    %c6_110 = arith.constant 6 : index
    %c2_111 = arith.constant 2 : index
    %c0_112 = arith.constant 0 : index
    %c0_113 = arith.constant 0 : index
    %82 = vector.load %arg5[%c6_110, %c2_111, %c0_112, %c0_113] : memref<9x24x16x32xbf16, #tpu.memory_space<vmem>>, vector<1x16x16x32xbf16>
    %83 = vector.shape_cast %82 : vector<1x16x16x32xbf16> to vector<16x16x32xbf16>
    %84 = vector.shape_cast %83 : vector<16x16x32xbf16> to vector<256x32xbf16>
    %85 = tpu.concatenate %75, %78, %81, %84 in 1 : vector<256x32xbf16>, vector<256x32xbf16>, vector<256x32xbf16>, vector<256x32xbf16> -> vector<256x128xbf16>
    %c0_114 = arith.constant 0 : index
    %c256 = arith.constant 256 : index
    %86 = vector.load %arg6[%c0_114, %c256] : memref<256x1152xbf16, #tpu.memory_space<vmem>>, vector<256x128xbf16>
    tpu.vector_store %arg6[%c0_114, %c256], %85 {strides = array<i32>} : memref<256x1152xbf16, #tpu.memory_space<vmem>>, vector<256x128xbf16>,
    %c2_115 = arith.constant 2 : index
    %c4_116 = arith.constant 4 : index
    %c0_117 = arith.constant 0 : index
    %c0_118 = arith.constant 0 : index
    %87 = vector.load %arg5[%c2_115, %c4_116, %c0_117, %c0_118] : memref<9x24x16x32xbf16, #tpu.memory_space<vmem>>, vector<1x16x16x32xbf16>
    %88 = vector.shape_cast %87 : vector<1x16x16x32xbf16> to vector<16x16x32xbf16>
    %89 = vector.shape_cast %88 : vector<16x16x32xbf16> to vector<256x32xbf16>
    %c4_119 = arith.constant 4 : index
    %c4_120 = arith.constant 4 : index
    %c0_121 = arith.constant 0 : index
    %c0_122 = arith.constant 0 : index
    %90 = vector.load %arg5[%c4_119, %c4_120, %c0_121, %c0_122] : memref<9x24x16x32xbf16, #tpu.memory_space<vmem>>, vector<1x16x16x32xbf16>
    %91 = vector.shape_cast %90 : vector<1x16x16x32xbf16> to vector<16x16x32xbf16>
    %92 = vector.shape_cast %91 : vector<16x16x32xbf16> to vector<256x32xbf16>
    %c6_123 = arith.constant 6 : index
    %c4_124 = arith.constant 4 : index
    %c0_125 = arith.constant 0 : index
    %c0_126 = arith.constant 0 : index
    %93 = vector.load %arg5[%c6_123, %c4_124, %c0_125, %c0_126] : memref<9x24x16x32xbf16, #tpu.memory_space<vmem>>, vector<1x16x16x32xbf16>
    %94 = vector.shape_cast %93 : vector<1x16x16x32xbf16> to vector<16x16x32xbf16>
    %95 = vector.shape_cast %94 : vector<16x16x32xbf16> to vector<256x32xbf16>
    %c2_127 = arith.constant 2 : index
    %c6_128 = arith.constant 6 : index
    %c0_129 = arith.constant 0 : index
    %c0_130 = arith.constant 0 : index
    %96 = vector.load %arg5[%c2_127, %c6_128, %c0_129, %c0_130] : memref<9x24x16x32xbf16, #tpu.memory_space<vmem>>, vector<1x16x16x32xbf16>
    %97 = vector.shape_cast %96 : vector<1x16x16x32xbf16> to vector<16x16x32xbf16>
    %98 = vector.shape_cast %97 : vector<16x16x32xbf16> to vector<256x32xbf16>
    %99 = tpu.concatenate %89, %92, %95, %98 in 1 : vector<256x32xbf16>, vector<256x32xbf16>, vector<256x32xbf16>, vector<256x32xbf16> -> vector<256x128xbf16>
    %c0_131 = arith.constant 0 : index
    %c384 = arith.constant 384 : index
    %100 = vector.load %arg6[%c0_131, %c384] : memref<256x1152xbf16, #tpu.memory_space<vmem>>, vector<256x128xbf16>
    tpu.vector_store %arg6[%c0_131, %c384], %99 {strides = array<i32>} : memref<256x1152xbf16, #tpu.memory_space<vmem>>, vector<256x128xbf16>,
    %c4_132 = arith.constant 4 : index
    %c6_133 = arith.constant 6 : index
    %c0_134 = arith.constant 0 : index
    %c0_135 = arith.constant 0 : index
    %101 = vector.load %arg5[%c4_132, %c6_133, %c0_134, %c0_135] : memref<9x24x16x32xbf16, #tpu.memory_space<vmem>>, vector<1x16x16x32xbf16>
    %102 = vector.shape_cast %101 : vector<1x16x16x32xbf16> to vector<16x16x32xbf16>
    %103 = vector.shape_cast %102 : vector<16x16x32xbf16> to vector<256x32xbf16>
    %c6_136 = arith.constant 6 : index
    %c6_137 = arith.constant 6 : index
    %c0_138 = arith.constant 0 : index
    %c0_139 = arith.constant 0 : index
    %104 = vector.load %arg5[%c6_136, %c6_137, %c0_138, %c0_139] : memref<9x24x16x32xbf16, #tpu.memory_space<vmem>>, vector<1x16x16x32xbf16>
    %105 = vector.shape_cast %104 : vector<1x16x16x32xbf16> to vector<16x16x32xbf16>
    %106 = vector.shape_cast %105 : vector<16x16x32xbf16> to vector<256x32xbf16>
    %c1_140 = arith.constant 1 : index
    %c1_141 = arith.constant 1 : index
    %c0_142 = arith.constant 0 : index
    %c0_143 = arith.constant 0 : index
    %107 = vector.load %arg5[%c1_140, %c1_141, %c0_142, %c0_143] : memref<9x24x16x32xbf16, #tpu.memory_space<vmem>>, vector<1x16x16x32xbf16>
    %108 = vector.shape_cast %107 : vector<1x16x16x32xbf16> to vector<16x16x32xbf16>
    %109 = vector.shape_cast %108 : vector<16x16x32xbf16> to vector<256x32xbf16>
    %c4_144 = arith.constant 4 : index
    %c1_145 = arith.constant 1 : index
    %c0_146 = arith.constant 0 : index
    %c0_147 = arith.constant 0 : index
    %110 = vector.load %arg5[%c4_144, %c1_145, %c0_146, %c0_147] : memref<9x24x16x32xbf16, #tpu.memory_space<vmem>>, vector<1x16x16x32xbf16>
    %111 = vector.shape_cast %110 : vector<1x16x16x32xbf16> to vector<16x16x32xbf16>
    %112 = vector.shape_cast %111 : vector<16x16x32xbf16> to vector<256x32xbf16>
    %113 = tpu.concatenate %103, %106, %109, %112 in 1 : vector<256x32xbf16>, vector<256x32xbf16>, vector<256x32xbf16>, vector<256x32xbf16> -> vector<256x128xbf16>
    %c0_148 = arith.constant 0 : index
    %c512 = arith.constant 512 : index
    %114 = vector.load %arg6[%c0_148, %c512] : memref<256x1152xbf16, #tpu.memory_space<vmem>>, vector<256x128xbf16>
    tpu.vector_store %arg6[%c0_148, %c512], %113 {strides = array<i32>} : memref<256x1152xbf16, #tpu.memory_space<vmem>>, vector<256x128xbf16>,
    %c7_149 = arith.constant 7 : index
    %c1_150 = arith.constant 1 : index
    %c0_151 = arith.constant 0 : index
    %c0_152 = arith.constant 0 : index
    %115 = vector.load %arg5[%c7_149, %c1_150, %c0_151, %c0_152] : memref<9x24x16x32xbf16, #tpu.memory_space<vmem>>, vector<1x16x16x32xbf16>
    %116 = vector.shape_cast %115 : vector<1x16x16x32xbf16> to vector<16x16x32xbf16>
    %117 = vector.shape_cast %116 : vector<16x16x32xbf16> to vector<256x32xbf16>
    %c1_153 = arith.constant 1 : index
    %c4_154 = arith.constant 4 : index
    %c0_155 = arith.constant 0 : index
    %c0_156 = arith.constant 0 : index
    %118 = vector.load %arg5[%c1_153, %c4_154, %c0_155, %c0_156] : memref<9x24x16x32xbf16, #tpu.memory_space<vmem>>, vector<1x16x16x32xbf16>
    %119 = vector.shape_cast %118 : vector<1x16x16x32xbf16> to vector<16x16x32xbf16>
    %120 = vector.shape_cast %119 : vector<16x16x32xbf16> to vector<256x32xbf16>
    %c4_157 = arith.constant 4 : index
    %c4_158 = arith.constant 4 : index
    %c0_159 = arith.constant 0 : index
    %c0_160 = arith.constant 0 : index
    %121 = vector.load %arg5[%c4_157, %c4_158, %c0_159, %c0_160] : memref<9x24x16x32xbf16, #tpu.memory_space<vmem>>, vector<1x16x16x32xbf16>
    %122 = vector.shape_cast %121 : vector<1x16x16x32xbf16> to vector<16x16x32xbf16>
    %123 = vector.shape_cast %122 : vector<16x16x32xbf16> to vector<256x32xbf16>
    %c7_161 = arith.constant 7 : index
    %c4_162 = arith.constant 4 : index
    %c0_163 = arith.constant 0 : index
    %c0_164 = arith.constant 0 : index
    %124 = vector.load %arg5[%c7_161, %c4_162, %c0_163, %c0_164] : memref<9x24x16x32xbf16, #tpu.memory_space<vmem>>, vector<1x16x16x32xbf16>
    %125 = vector.shape_cast %124 : vector<1x16x16x32xbf16> to vector<16x16x32xbf16>
    %126 = vector.shape_cast %125 : vector<16x16x32xbf16> to vector<256x32xbf16>
    %127 = tpu.concatenate %117, %120, %123, %126 in 1 : vector<256x32xbf16>, vector<256x32xbf16>, vector<256x32xbf16>, vector<256x32xbf16> -> vector<256x128xbf16>
    %c0_165 = arith.constant 0 : index
    %c640 = arith.constant 640 : index
    %128 = vector.load %arg6[%c0_165, %c640] : memref<256x1152xbf16, #tpu.memory_space<vmem>>, vector<256x128xbf16>
    tpu.vector_store %arg6[%c0_165, %c640], %127 {strides = array<i32>} : memref<256x1152xbf16, #tpu.memory_space<vmem>>, vector<256x128xbf16>,
    %c1_166 = arith.constant 1 : index
    %c7_167 = arith.constant 7 : index
    %c0_168 = arith.constant 0 : index
    %c0_169 = arith.constant 0 : index
    %129 = vector.load %arg5[%c1_166, %c7_167, %c0_168, %c0_169] : memref<9x24x16x32xbf16, #tpu.memory_space<vmem>>, vector<1x16x16x32xbf16>
    %130 = vector.shape_cast %129 : vector<1x16x16x32xbf16> to vector<16x16x32xbf16>
    %131 = vector.shape_cast %130 : vector<16x16x32xbf16> to vector<256x32xbf16>
    %c4_170 = arith.constant 4 : index
    %c7_171 = arith.constant 7 : index
    %c0_172 = arith.constant 0 : index
    %c0_173 = arith.constant 0 : index
    %132 = vector.load %arg5[%c4_170, %c7_171, %c0_172, %c0_173] : memref<9x24x16x32xbf16, #tpu.memory_space<vmem>>, vector<1x16x16x32xbf16>
    %133 = vector.shape_cast %132 : vector<1x16x16x32xbf16> to vector<16x16x32xbf16>
    %134 = vector.shape_cast %133 : vector<16x16x32xbf16> to vector<256x32xbf16>
    %c7_174 = arith.constant 7 : index
    %c7_175 = arith.constant 7 : index
    %c0_176 = arith.constant 0 : index
    %c0_177 = arith.constant 0 : index
    %135 = vector.load %arg5[%c7_174, %c7_175, %c0_176, %c0_177] : memref<9x24x16x32xbf16, #tpu.memory_space<vmem>>, vector<1x16x16x32xbf16>
    %136 = vector.shape_cast %135 : vector<1x16x16x32xbf16> to vector<16x16x32xbf16>
    %137 = vector.shape_cast %136 : vector<16x16x32xbf16> to vector<256x32xbf16>
    %c0_178 = arith.constant 0 : index
    %c0_179 = arith.constant 0 : index
    %c0_180 = arith.constant 0 : index
    %c0_181 = arith.constant 0 : index
    %138 = vector.load %arg5[%c0_178, %c0_179, %c0_180, %c0_181] : memref<9x24x16x32xbf16, #tpu.memory_space<vmem>>, vector<1x16x16x32xbf16>
    %139 = vector.shape_cast %138 : vector<1x16x16x32xbf16> to vector<16x16x32xbf16>
    %140 = vector.shape_cast %139 : vector<16x16x32xbf16> to vector<256x32xbf16>
    %141 = tpu.concatenate %131, %134, %137, %140 in 1 : vector<256x32xbf16>, vector<256x32xbf16>, vector<256x32xbf16>, vector<256x32xbf16> -> vector<256x128xbf16>
    %c0_182 = arith.constant 0 : index
    %c768 = arith.constant 768 : index
    %142 = vector.load %arg6[%c0_182, %c768] : memref<256x1152xbf16, #tpu.memory_space<vmem>>, vector<256x128xbf16>
    tpu.vector_store %arg6[%c0_182, %c768], %141 {strides = array<i32>} : memref<256x1152xbf16, #tpu.memory_space<vmem>>, vector<256x128xbf16>,
    %c4_183 = arith.constant 4 : index
    %c0_184 = arith.constant 0 : index
    %c0_185 = arith.constant 0 : index
    %c0_186 = arith.constant 0 : index
    %143 = vector.load %arg5[%c4_183, %c0_184, %c0_185, %c0_186] : memref<9x24x16x32xbf16, #tpu.memory_space<vmem>>, vector<1x16x16x32xbf16>
    %144 = vector.shape_cast %143 : vector<1x16x16x32xbf16> to vector<16x16x32xbf16>
    %145 = vector.shape_cast %144 : vector<16x16x32xbf16> to vector<256x32xbf16>
    %c8_187 = arith.constant 8 : index
    %c0_188 = arith.constant 0 : index
    %c0_189 = arith.constant 0 : index
    %c0_190 = arith.constant 0 : index
    %146 = vector.load %arg5[%c8_187, %c0_188, %c0_189, %c0_190] : memref<9x24x16x32xbf16, #tpu.memory_space<vmem>>, vector<1x16x16x32xbf16>
    %147 = vector.shape_cast %146 : vector<1x16x16x32xbf16> to vector<16x16x32xbf16>
    %148 = vector.shape_cast %147 : vector<16x16x32xbf16> to vector<256x32xbf16>
    %c0_191 = arith.constant 0 : index
    %c4_192 = arith.constant 4 : index
    %c0_193 = arith.constant 0 : index
    %c0_194 = arith.constant 0 : index
    %149 = vector.load %arg5[%c0_191, %c4_192, %c0_193, %c0_194] : memref<9x24x16x32xbf16, #tpu.memory_space<vmem>>, vector<1x16x16x32xbf16>
    %150 = vector.shape_cast %149 : vector<1x16x16x32xbf16> to vector<16x16x32xbf16>
    %151 = vector.shape_cast %150 : vector<16x16x32xbf16> to vector<256x32xbf16>
    %c4_195 = arith.constant 4 : index
    %c4_196 = arith.constant 4 : index
    %c0_197 = arith.constant 0 : index
    %c0_198 = arith.constant 0 : index
    %152 = vector.load %arg5[%c4_195, %c4_196, %c0_197, %c0_198] : memref<9x24x16x32xbf16, #tpu.memory_space<vmem>>, vector<1x16x16x32xbf16>
    %153 = vector.shape_cast %152 : vector<1x16x16x32xbf16> to vector<16x16x32xbf16>
    %154 = vector.shape_cast %153 : vector<16x16x32xbf16> to vector<256x32xbf16>
    %155 = tpu.concatenate %145, %148, %151, %154 in 1 : vector<256x32xbf16>, vector<256x32xbf16>, vector<256x32xbf16>, vector<256x32xbf16> -> vector<256x128xbf16>
    %c0_199 = arith.constant 0 : index
    %c896 = arith.constant 896 : index
    %156 = vector.load %arg6[%c0_199, %c896] : memref<256x1152xbf16, #tpu.memory_space<vmem>>, vector<256x128xbf16>
    tpu.vector_store %arg6[%c0_199, %c896], %155 {strides = array<i32>} : memref<256x1152xbf16, #tpu.memory_space<vmem>>, vector<256x128xbf16>,
    %c8_200 = arith.constant 8 : index
    %c4_201 = arith.constant 4 : index
    %c0_202 = arith.constant 0 : index
    %c0_203 = arith.constant 0 : index
    %157 = vector.load %arg5[%c8_200, %c4_201, %c0_202, %c0_203] : memref<9x24x16x32xbf16, #tpu.memory_space<vmem>>, vector<1x16x16x32xbf16>
    %158 = vector.shape_cast %157 : vector<1x16x16x32xbf16> to vector<16x16x32xbf16>
    %159 = vector.shape_cast %158 : vector<16x16x32xbf16> to vector<256x32xbf16>
    %c0_204 = arith.constant 0 : index
    %c8_205 = arith.constant 8 : index
    %c0_206 = arith.constant 0 : index
    %c0_207 = arith.constant 0 : index
    %160 = vector.load %arg5[%c0_204, %c8_205, %c0_206, %c0_207] : memref<9x24x16x32xbf16, #tpu.memory_space<vmem>>, vector<1x16x16x32xbf16>
    %161 = vector.shape_cast %160 : vector<1x16x16x32xbf16> to vector<16x16x32xbf16>
    %162 = vector.shape_cast %161 : vector<16x16x32xbf16> to vector<256x32xbf16>
    %c4_208 = arith.constant 4 : index
    %c8_209 = arith.constant 8 : index
    %c0_210 = arith.constant 0 : index
    %c0_211 = arith.constant 0 : index
    %163 = vector.load %arg5[%c4_208, %c8_209, %c0_210, %c0_211] : memref<9x24x16x32xbf16, #tpu.memory_space<vmem>>, vector<1x16x16x32xbf16>
    %164 = vector.shape_cast %163 : vector<1x16x16x32xbf16> to vector<16x16x32xbf16>
    %165 = vector.shape_cast %164 : vector<16x16x32xbf16> to vector<256x32xbf16>
    %c8_212 = arith.constant 8 : index
    %c8_213 = arith.constant 8 : index
    %c0_214 = arith.constant 0 : index
    %c0_215 = arith.constant 0 : index
    %166 = vector.load %arg5[%c8_212, %c8_213, %c0_214, %c0_215] : memref<9x24x16x32xbf16, #tpu.memory_space<vmem>>, vector<1x16x16x32xbf16>
    %167 = vector.shape_cast %166 : vector<1x16x16x32xbf16> to vector<16x16x32xbf16>
    %168 = vector.shape_cast %167 : vector<16x16x32xbf16> to vector<256x32xbf16>
    %169 = tpu.concatenate %159, %162, %165, %168 in 1 : vector<256x32xbf16>, vector<256x32xbf16>, vector<256x32xbf16>, vector<256x32xbf16> -> vector<256x128xbf16>
    %c0_216 = arith.constant 0 : index
    %c1024 = arith.constant 1024 : index
    %170 = vector.load %arg6[%c0_216, %c1024] : memref<256x1152xbf16, #tpu.memory_space<vmem>>, vector<256x128xbf16>
    tpu.vector_store %arg6[%c0_216, %c1024], %169 {strides = array<i32>} : memref<256x1152xbf16, #tpu.memory_space<vmem>>, vector<256x128xbf16>,
    %c0_217 = arith.constant 0 : index
    %c0_218 = arith.constant 0 : index
    %171 = vector.load %arg6[%c0_217, %c0_218] : memref<256x1152xbf16, #tpu.memory_space<vmem>>, vector<256x1152xbf16>
    %c0_219 = arith.constant 0 : index
    %c0_220 = arith.constant 0 : index
    %172 = vector.load %arg2[%c0_219, %c0_220] : memref<1152x128xbf16, #tpu.memory_space<vmem>>, vector<1152x128xbf16>
    %cst = arith.constant dense<0.000000e+00> : vector<256x128xf32>
    %173 = tpu.matmul %171, %172, %cst {dimension_numbers = #tpu.dot_dimension_numbers<[1], [0], [0], [1], [0, 0, 1, 1], [], []>} : vector<256x1152xbf16>, vector<1152x128xbf16>, vector<256x128xf32> -> vector<256x128xf32>
    %c0_221 = arith.constant 0 : index
    %c0_222 = arith.constant 0 : index
    %174 = vector.load %arg3[%c0_221, %c0_222] : memref<1x128xf32, #tpu.memory_space<vmem>>, vector<1x128xf32>
    %175 = vector.broadcast %174 : vector<1x128xf32> to vector<256x128xf32>
    %176 = arith.addf %173, %175 : vector<256x128xf32>
    %cst_223 = arith.constant 0.000000e+00 : f32
    %177 = vector.broadcast %cst_223 : f32 to vector<256x128xf32>
    %178 = arith.maximumf %176, %177 : vector<256x128xf32>
    %179 = arith.truncf %178 : vector<256x128xf32> to vector<256x128xbf16>
    %c0_224 = arith.constant 0 : index
    %c0_225 = arith.constant 0 : index
    %c0_226 = arith.constant 0 : index
    %180 = vector.load %arg4[%c0_224, %c0_225, %c0_226] : memref<1x256x128xbf16, #tpu.memory_space<vmem>>, vector<1x256x128xbf16>
    %181 = vector.shape_cast %180 : vector<1x256x128xbf16> to vector<256x128xbf16>
    %182 = vector.shape_cast %179 : vector<256x128xbf16> to vector<1x256x128xbf16>
    tpu.vector_store %arg4[%c0_224, %c0_225, %c0_226], %182 {strides = array<i32>} : memref<1x256x128xbf16, #tpu.memory_space<vmem>>, vector<1x256x128xbf16>,
    return
  }
  func.func @transform_0(%arg0: i32) -> (i32, i32, i32, i32) {
    %c0_i32 = arith.constant 0 : i32
    %c0_i32_0 = arith.constant 0 : i32
    %c0_i32_1 = arith.constant 0 : i32
    %c0_i32_2 = arith.constant 0 : i32
    return %arg0, %c0_i32, %c0_i32_0, %c0_i32_1 : i32, i32, i32, i32
  }
  func.func @transform_1(%arg0: i32) -> (i32, i32) {
    %c0_i32 = arith.constant 0 : i32
    %c0_i32_0 = arith.constant 0 : i32
    %c0_i32_1 = arith.constant 0 : i32
    return %c0_i32, %c0_i32_0 : i32, i32
  }
  func.func @transform_2(%arg0: i32) -> (i32, i32) {
    %c0_i32 = arith.constant 0 : i32
    %c0_i32_0 = arith.constant 0 : i32
    %c0_i32_1 = arith.constant 0 : i32
    return %c0_i32, %c0_i32_0 : i32, i32
  }
  func.func @transform_3(%arg0: i32) -> (i32, i32, i32) {
    %c0_i32 = arith.constant 0 : i32
    %c0_i32_0 = arith.constant 0 : i32
    %c0_i32_1 = arith.constant 0 : i32
    return %arg0, %c0_i32, %c0_i32_0 : i32, i32, i32
  }
}

</mosaic_0001>

<llo_original>
// kernel: aspp_forward.1
$region0: #{aspp_forward.1}
  #allocation0 [shape = 'u32[]', space=smem, size = 0x4, offset = 0x4, fixed_abs, tag = 'smem constant byte address 0x4 - core index']
  #allocation1 [shape = 'u32[144,128]{1,0:T(1,128)}', space=vmem, size = 0x12000, scoped, tag = 'internal scratch']
  #allocation2 [shape = 'bf16[9,24,16,32]{3,2,1,0:T(16,128)(2,1)}', space=vmem, size = 0xd8000, scoped, tag = 'scratch operand']
  #allocation3 [shape = 'bf16[256,1152]{1,0:T(16,128)(2,1)}', space=vmem, size = 0x90000, scoped, tag = 'scratch operand']
  %s0 = inlined_call_operand.vmem [shape: bf16[2,24,24,32], index: 0, kind: input, shape index: {}]
  %s1 = inlined_call_operand.vmem [shape: bf16[1152,128], index: 1, kind: input, shape index: {}]
  %s2 = inlined_call_operand.vmem [shape: f32[1,128], index: 2, kind: input, shape index: {}]
  %s3 = inlined_call_operand.vmem [shape: bf16[2,256,128], index: 3, kind: output, shape index: {}]
  %s4 = sld [smem:[#allocation0]]
  $region45: #{aspp_forward.1} parent=0
    _
  %s6 = ssub.s32 1, %s4
  %s7 = scalar_select 0, %s6, %s4
  loop: start=0, step=1, limit=4
  $region2: #{aspp_forward.1} parent=0 // loop_pre_header
    _
  $region3: #{aspp_forward.1} parent=0 // loop_header
    %s9 = sphi 0, %s13
    %p10 = scmp.ge.s32.totalorder %s9, 4
    %s19 = sphi 0, %s21
    %s22 = sphi 0, %s19
    %s23 = sphi 0, %s22
    %s39 = sphi 0, %s23
    %s43 = sphi 0, %s43
    %s45 = sphi 0, %s43
    %s46 = sphi 0, %s45
    %s60 = sphi 0, %s46
    %s64 = sphi 0, %s64
    %s66 = sphi 0, %s64
    %s67 = sphi 0, %s66
    %s81 = sphi 0, %s67
    %s87 = sphi 0, %s89
    %s90 = sphi 0, %s87
    %s91 = sphi 0, %s90
    %s107 = sphi 0, %s91
  $region4: #{aspp_forward.1} parent=0 // loop_header_branch
    %12 = sbr.rel (%p10) target = $region8
  $region5: #{aspp_forward.1} parent=0 // loop_body
    %s14 = ssub.s32 %s9, 1
    %s15 = ssub.s32 %s9, 2
    %s16 = sadd.s32 %s9, 1
    %s17 = ssub.s32 %s9, %s16
    %p18 = scmp.eq.s32.totalorder %s17, 0
    %s20 = sadd.s32 %s19, 1
    %s21 = scalar_select %p18, %s19, %s20
    %p24 = pneg %p18
    %p25 = scmp.eq.s32.totalorder %s9, 1
    %p26 = por %p24, %p25
    %p27 = scmp.ne.s32.totalorder %s19, %s22
    %p28 = scmp.eq.s32.totalorder %s9, 0
    %p29 = por %p27, %p28
    %p30 = scmp.ne.s32.totalorder %s19, %s22
    %p31 = scmp.eq.s32.totalorder %s14, 1
    %p32 = por %p30, %p31
    %p33 = scmp.ne.s32.totalorder %s22, %s23
    %p34 = scmp.eq.s32.totalorder %s14, 0
    %p35 = por %p33, %p34
    %p36 = scmp.ne.s32.totalorder %s22, %s23
    %p37 = scmp.eq.s32.totalorder %s15, 1
    %p38 = por %p36, %p37
    %p40 = scmp.ne.s32.totalorder %s23, %s39
    %p41 = scmp.eq.s32.totalorder %s15, 0
    %p42 = por %p40, %p41
    %s44 = sadd.s32 %s43, 1
    %p47 = scmp.eq.s32.totalorder %s9, 1
    %p48 = scmp.ne.s32.totalorder %s43, %s45
    %p49 = scmp.eq.s32.totalorder %s9, 0
    %p50 = por %p48, %p49
    %p51 = scmp.ne.s32.totalorder %s43, %s45
    %p52 = scmp.eq.s32.totalorder %s14, 1
    %p53 = por %p51, %p52
    %p54 = scmp.ne.s32.totalorder %s45, %s46
    %p55 = scmp.eq.s32.totalorder %s14, 0
    %p56 = por %p54, %p55
    %p57 = scmp.ne.s32.totalorder %s45, %s46
    %p58 = scmp.eq.s32.totalorder %s15, 1
    %p59 = por %p57, %p58
    %p61 = scmp.ne.s32.totalorder %s46, %s60
    %p62 = scmp.eq.s32.totalorder %s15, 0
    %p63 = por %p61, %p62
    %s65 = sadd.s32 %s64, 1
    %p68 = scmp.eq.s32.totalorder %s9, 1
    %p69 = scmp.ne.s32.totalorder %s64, %s66
    %p70 = scmp.eq.s32.totalorder %s9, 0
    %p71 = por %p69, %p70
    %p72 = scmp.ne.s32.totalorder %s64, %s66
    %p73 = scmp.eq.s32.totalorder %s14, 1
    %p74 = por %p72, %p73
    %p75 = scmp.ne.s32.totalorder %s66, %s67
    %p76 = scmp.eq.s32.totalorder %s14, 0
    %p77 = por %p75, %p76
    %p78 = scmp.ne.s32.totalorder %s66, %s67
    %p79 = scmp.eq.s32.totalorder %s15, 1
    %p80 = por %p78, %p79
    %p82 = scmp.ne.s32.totalorder %s67, %s81
    %p83 = scmp.eq.s32.totalorder %s15, 0
    %p84 = por %p82, %p83
    %s85 = ssub.s32 %s9, %s16
    %p86 = scmp.eq.s32.totalorder %s85, 0
    %s88 = sadd.s32 %s87, 1
    %s89 = scalar_select %p86, %s87, %s88
    %p92 = pneg %p86
    %p93 = scmp.eq.s32.totalorder %s9, 1
    %p94 = por %p92, %p93
    %p95 = scmp.ne.s32.totalorder %s87, %s90
    %p96 = scmp.eq.s32.totalorder %s9, 0
    %p97 = por %p95, %p96
    %p98 = scmp.ne.s32.totalorder %s87, %s90
    %p99 = scmp.eq.s32.totalorder %s14, 1
    %p100 = por %p98, %p99
    %p101 = scmp.ne.s32.totalorder %s90, %s91
    %p102 = scmp.eq.s32.totalorder %s14, 0
    %p103 = por %p101, %p102
    %p104 = scmp.ne.s32.totalorder %s90, %s91
    %p105 = scmp.eq.s32.totalorder %s15, 1
    %p106 = por %p104, %p105
    %p108 = scmp.ne.s32.totalorder %s91, %s107
    %p109 = scmp.eq.s32.totalorder %s15, 0
    %p110 = por %p108, %p109
    %p111 = scmp.le.s32.totalorder 1, %s9
    %p112 = scmp.lt.s32.totalorder %s9, 3
    %p113 = pnand %p111, %p112
    %p114 = pneg %p113
    // Predicated region
    $region9: #{aspp_forward.1} parent=5 // pred_check
      _
    $region10: #{aspp_forward.1} parent=5 // pred_check_branch
      %116 = sbr.rel (%p113) target = $region12
    $region11: #{aspp_forward.1} parent=5 // pred_region
      %s117 = ssub.s32 %s9, 1
      // Predicated region
      $region13: #{aspp_forward.1} parent=11 // pred_check
        %p118 = pneg %p56
      $region14: #{aspp_forward.1} parent=11 // pred_check_branch
        %120 = sbr.rel (%p118) target = $region16
      $region15: #{aspp_forward.1} parent=11 // pred_region
        _
      $region16: #{aspp_forward.1} parent=11 // pred_fallthru
        _
      // Predicated region
      $region17: #{aspp_forward.1} parent=11 // pred_check
        %p121 = pneg %p77
      $region18: #{aspp_forward.1} parent=11 // pred_check_branch
        %123 = sbr.rel (%p121) target = $region20
      $region19: #{aspp_forward.1} parent=11 // pred_region
        _
      $region20: #{aspp_forward.1} parent=11 // pred_fallthru
        _
    $region12: #{aspp_forward.1} parent=5 // pred_fallthru
      _
    %p124 = scmp.lt.s32.totalorder %s9, 2
    // Predicated region
    $region21: #{aspp_forward.1} parent=5 // pred_check
      %p125 = pneg %p124
    $region22: #{aspp_forward.1} parent=5 // pred_check_branch
      %127 = sbr.rel (%p125) target = $region24
    $region23: #{aspp_forward.1} parent=5 // pred_region
      // Predicated region
      $region25: #{aspp_forward.1} parent=23 // pred_check
        %p128 = pneg %p29
      $region26: #{aspp_forward.1} parent=23 // pred_check_branch
        %130 = sbr.rel (%p128) target = $region28
      $region27: #{aspp_forward.1} parent=23 // pred_region
        %p131 = scmp.lt.s32.totalorder %s9, 1
        %s132 = scalar_select %p131, %s9, 1
        %s133 = smul.addr %s132, 72
        %s134 = smul.addr %s133, 4
        %s135 = scalar_lea.vmem %s0, %s134
      $region28: #{aspp_forward.1} parent=23 // pred_fallthru
        _
    $region24: #{aspp_forward.1} parent=5 // pred_fallthru
      _
    %p136 = scmp.le.s32.totalorder 1, %s9
    %p137 = scmp.lt.s32.totalorder %s9, 3
    %p138 = pnand %p136, %p137
    %p139 = pneg %p138
    // Predicated region
    $region29: #{aspp_forward.1} parent=5 // pred_check
      _
    $region30: #{aspp_forward.1} parent=5 // pred_check_branch
      %141 = sbr.rel (%p138) target = $region32
    $region31: #{aspp_forward.1} parent=5 // pred_region
      %s142 = ssub.s32 %s9, 1
      %p143 = scmp.lt.s32.totalorder %s14, 1
      %s144 = scalar_select %p143, %s14, 1
      %s145 = smul.addr %s144, 72
      %s146 = smul.addr %s145, 4
      %s147 = scalar_lea.vmem %s0, %s146
      %p148 = pneg %p35
      %p149 = pneg %p32
      %p150 = pneg %p56
      %p151 = pneg %p53
      %p152 = pneg %p77
      %p153 = pneg %p74
      %p154 = pneg %p103
      %p155 = pneg %p100
      %p156 = scmp.lt.s32.totalorder %s14, 1
      %s157 = scalar_select %p156, %s14, 1
      %s158 = smul.addr %s157, 32
      %s159 = smul.addr %s158, 4
      %s160 = scalar_lea.vmem %s3, %s159
      %p161 = scmp.lt.s32.totalorder %s14, 1
      %s162 = scalar_select %p161, %s14, 1
      %s163 = smul.addr %s162, 72
      %s164 = smul.addr %s163, 4
      %s165 = scalar_lea.vmem %s0, %s164
      %p166 = scmp.lt.s32.totalorder %s14, 1
      %s167 = scalar_select %p166, %s14, 1
      %s168 = smul.addr %s167, 32
      %s169 = smul.addr %s168, 4
      %s170 = scalar_lea.vmem %s3, %s169
      %v172 = vld [vmem:[%s165] sm:$0xf]
      %v173 = vld [vmem:[%s165 + $0x4] sm:$0xf]
      %v174 = vld [vmem:[%s165 + $0xc] sm:$0xf]
      %v175 = vld [vmem:[%s165 + $0x10] sm:$0xf]
      %v176 = vld [vmem:[%s165 + $0x18] sm:$0xf]
      %v177 = vld [vmem:[%s165 + $0x1c] sm:$0xf]
      %v178 = vld [vmem:[%s165 + $0x24] sm:$0xf]
      %v179 = vld [vmem:[%s165 + $0x28] sm:$0xf]
      %v180 = vld [vmem:[%s165 + $0x30] sm:$0xf]
      %v181 = vld [vmem:[%s165 + $0x34] sm:$0xf]
      %v182 = vld [vmem:[%s165 + $0x3c] sm:$0xf]
      %v183 = vld [vmem:[%s165 + $0x40] sm:$0xf]
      %v184 = vld [vmem:[%s165 + $0x48] sm:$0xf]
      %v185 = vld [vmem:[%s165 + $0x4c] sm:$0xf]
      %v186 = vld [vmem:[%s165 + $0x54] sm:$0xf]
      %v187 = vld [vmem:[%s165 + $0x58] sm:$0xf]
      %v188 = vld [vmem:[%s165 + $0x60] sm:$0xf]
      %v189 = vld [vmem:[%s165 + $0x64] sm:$0xf]
      %v190 = vld [vmem:[%s165 + $0x6c] sm:$0xf]
      %v191 = vld [vmem:[%s165 + $0x70] sm:$0xf]
      %v192 = vld [vmem:[%s165 + $0x78] sm:$0xf]
      %v193 = vld [vmem:[%s165 + $0x7c] sm:$0xf]
      %v194 = vld [vmem:[%s165 + $0x84] sm:$0xf]
      %v195 = vld [vmem:[%s165 + $0x88] sm:$0xf]
      %v196 = vld [vmem:[%s165 + $0x90] sm:$0xf]
      %v197 = vld [vmem:[%s165 + $0x94] sm:$0xf]
      %v198 = vld [vmem:[%s165 + $0x9c] sm:$0xf]
      %v199 = vld [vmem:[%s165 + $0xa0] sm:$0xf]
      %v200 = vld [vmem:[%s165 + $0xa8] sm:$0xf]
      %v201 = vld [vmem:[%s165 + $0xac] sm:$0xf]
      %v202 = vld [vmem:[%s165 + $0xb4] sm:$0xf]
      %v203 = vld [vmem:[%s165 + $0xb8] sm:$0xf]
      %v204 = vld [vmem:[%s165 + $0xc0] sm:$0xf]
      %v205 = vld [vmem:[%s165 + $0xc4] sm:$0xf]
      %v206 = vld [vmem:[%s165 + $0xcc] sm:$0xf]
      %v207 = vld [vmem:[%s165 + $0xd0] sm:$0xf]
      %v208 = vld [vmem:[%s165 + $0xd8] sm:$0xf]
      %v209 = vld [vmem:[%s165 + $0xdc] sm:$0xf]
      %v210 = vld [vmem:[%s165 + $0xe4] sm:$0xf]
      %v211 = vld [vmem:[%s165 + $0xe8] sm:$0xf]
      %v212 = vld [vmem:[%s165 + $0xf0] sm:$0xf]
      %v213 = vld [vmem:[%s165 + $0xf4] sm:$0xf]
      %v214 = vld [vmem:[%s165 + $0xfc] sm:$0xf]
      %v215 = vld [vmem:[%s165 + $0x100] sm:$0xf]
      %v216 = vld [vmem:[%s165 + $0x108] sm:$0xf]
      %v217 = vld [vmem:[%s165 + $0x10c] sm:$0xf]
      %v218 = vld [vmem:[%s165 + $0x114] sm:$0xf]
      %v219 = vld [vmem:[%s165 + $0x118] sm:$0xf]
      %v268 = vunpack.c.l.b16 %v172
      %v269 = vunpack.c.l.b16 %v173
      %v270 = vunpack.c.l.b16 %v174
      %v271 = vunpack.c.l.b16 %v175
      %v272 = vunpack.c.l.b16 %v176
      %v273 = vunpack.c.l.b16 %v177
      %v274 = vunpack.c.l.b16 %v178
      %v275 = vunpack.c.l.b16 %v179
      %v276 = vunpack.c.l.b16 %v180
      %v277 = vunpack.c.l.b16 %v181
      %v278 = vunpack.c.l.b16 %v182
      %v279 = vunpack.c.l.b16 %v183
      %v280 = vunpack.c.l.b16 %v184
      %v281 = vunpack.c.l.b16 %v185
      %v282 = vunpack.c.l.b16 %v186
      %v283 = vunpack.c.l.b16 %v187
      %v284 = vunpack.c.l.b16 %v188
      %v285 = vunpack.c.l.b16 %v189
      %v286 = vunpack.c.l.b16 %v190
      %v287 = vunpack.c.l.b16 %v191
      %v288 = vunpack.c.l.b16 %v192
      %v289 = vunpack.c.l.b16 %v193
      %v290 = vunpack.c.l.b16 %v194
      %v291 = vunpack.c.l.b16 %v195
      %v292 = vunpack.c.l.b16 %v196
      %v293 = vunpack.c.l.b16 %v197
      %v294 = vunpack.c.l.b16 %v198
      %v295 = vunpack.c.l.b16 %v199
      %v296 = vunpack.c.l.b16 %v200
      %v297 = vunpack.c.l.b16 %v201
      %v298 = vunpack.c.l.b16 %v202
      %v299 = vunpack.c.l.b16 %v203
      %v300 = vunpack.c.l.b16 %v204
      %v301 = vunpack.c.l.b16 %v205
      %v302 = vunpack.c.l.b16 %v206
      %v303 = vunpack.c.l.b16 %v207
      %v304 = vunpack.c.l.b16 %v208
      %v305 = vunpack.c.l.b16 %v209
      %v306 = vunpack.c.l.b16 %v210
      %v307 = vunpack.c.l.b16 %v211
      %v308 = vunpack.c.l.b16 %v212
      %v309 = vunpack.c.l.b16 %v213
      %v310 = vunpack.c.l.b16 %v214
      %v311 = vunpack.c.l.b16 %v215
      %v312 = vunpack.c.l.b16 %v216
      %v313 = vunpack.c.l.b16 %v217
      %v314 = vunpack.c.l.b16 %v218
      %v315 = vunpack.c.l.b16 %v219
      %v316 = vpack.c.b16 %v269, %v268
      %v317 = vpack.c.b16 %v271, %v270
      %v318 = vpack.c.b16 %v273, %v272
      %v319 = vpack.c.b16 %v275, %v274
      %v320 = vpack.c.b16 %v277, %v276
      %v321 = vpack.c.b16 %v279, %v278
      %v322 = vpack.c.b16 %v281, %v280
      %v323 = vpack.c.b16 %v283, %v282
      %v324 = vpack.c.b16 %v285, %v284
      %v325 = vpack.c.b16 %v287, %v286
      %v326 = vpack.c.b16 %v289, %v288
      %v327 = vpack.c.b16 %v291, %v290
      %v328 = vpack.c.b16 %v293, %v292
      %v329 = vpack.c.b16 %v295, %v294
      %v330 = vpack.c.b16 %v297, %v296
      %v331 = vpack.c.b16 %v299, %v298
      %v332 = vpack.c.b16 %v301, %v300
      %v333 = vpack.c.b16 %v303, %v302
      %v334 = vpack.c.b16 %v305, %v304
      %v335 = vpack.c.b16 %v307, %v306
      %v336 = vpack.c.b16 %v309, %v308
      %v337 = vpack.c.b16 %v311, %v310
      %v338 = vpack.c.b16 %v313, %v312
      %v339 = vpack.c.b16 %v315, %v314
      %vm364 = vcmask 261120
      %365 = vst.msk [vmem:[#allocation2] sm:$0xff] %vm364, %v316
      %366 = vst.msk [vmem:[#allocation2 + $0x8] sm:$0xff] %vm364, %v317
      %367 = vst.msk [vmem:[#allocation2 + $0x10] sm:$0xff] %vm364, %v318
      %368 = vst.msk [vmem:[#allocation2 + $0x18] sm:$0xff] %vm364, %v319
      %369 = vst.msk [vmem:[#allocation2 + $0x20] sm:$0xff] %vm364, %v320
      %370 = vst.msk [vmem:[#allocation2 + $0x28] sm:$0xff] %vm364, %v321
      %371 = vst.msk [vmem:[#allocation2 + $0x30] sm:$0xff] %vm364, %v322
      %372 = vst.msk [vmem:[#allocation2 + $0x38] sm:$0xff] %vm364, %v323
      %373 = vst.msk [vmem:[#allocation2 + $0x40] sm:$0xff] %vm364, %v324
      %374 = vst.msk [vmem:[#allocation2 + $0x48] sm:$0xff] %vm364, %v325
      %375 = vst.msk [vmem:[#allocation2 + $0x50] sm:$0xff] %vm364, %v326
      %376 = vst.msk [vmem:[#allocation2 + $0x58] sm:$0xff] %vm364, %v327
      %377 = vst.msk [vmem:[#allocation2 + $0x60] sm:$0xff] %vm364, %v328
      %378 = vst.msk [vmem:[#allocation2 + $0x68] sm:$0xff] %vm364, %v329
      %379 = vst.msk [vmem:[#allocation2 + $0x70] sm:$0xff] %vm364, %v330
      %380 = vst.msk [vmem:[#allocation2 + $0x78] sm:$0xff] %vm364, %v331
      %381 = vst.msk [vmem:[#allocation2 + $0x80] sm:$0xff] %vm364, %v332
      %382 = vst.msk [vmem:[#allocation2 + $0x88] sm:$0xff] %vm364, %v333
      %383 = vst.msk [vmem:[#allocation2 + $0x90] sm:$0xff] %vm364, %v334
      %384 = vst.msk [vmem:[#allocation2 + $0x98] sm:$0xff] %vm364, %v335
      %385 = vst.msk [vmem:[#allocation2 + $0xa0] sm:$0xff] %vm364, %v336
      %386 = vst.msk [vmem:[#allocation2 + $0xa8] sm:$0xff] %vm364, %v337
      %387 = vst.msk [vmem:[#allocation2 + $0xb0] sm:$0xff] %vm364, %v338
      %388 = vst.msk [vmem:[#allocation2 + $0xb8] sm:$0xff] %vm364, %v339
      %v389 = vld [vmem:[%s165] sm:$0xf]
      %v390 = vld [vmem:[%s165 + $0x4] sm:$0xf]
      %v391 = vld [vmem:[%s165 + $0x8] sm:$0x1]
      %v392 = vld [vmem:[%s165 + $0xc] sm:$0xf]
      %v393 = vld [vmem:[%s165 + $0x10] sm:$0xf]
      %v394 = vld [vmem:[%s165 + $0x14] sm:$0x1]
      %v395 = vld [vmem:[%s165 + $0x18] sm:$0xf]
      %v396 = vld [vmem:[%s165 + $0x1c] sm:$0xf]
      %v397 = vld [vmem:[%s165 + $0x20] sm:$0x1]
      %v398 = vld [vmem:[%s165 + $0x24] sm:$0xf]
      %v399 = vld [vmem:[%s165 + $0x28] sm:$0xf]
      %v400 = vld [vmem:[%s165 + $0x2c] sm:$0x1]
      %v401 = vld [vmem:[%s165 + $0x30] sm:$0xf]
      %v402 = vld [vmem:[%s165 + $0x34] sm:$0xf]
      %v403 = vld [vmem:[%s165 + $0x38] sm:$0x1]
      %v404 = vld [vmem:[%s165 + $0x3c] sm:$0xf]
      %v405 = vld [vmem:[%s165 + $0x40] sm:$0xf]
      %v406 = vld [vmem:[%s165 + $0x44] sm:$0x1]
      %v407 = vld [vmem:[%s165 + $0x48] sm:$0xf]
      %v408 = vld [vmem:[%s165 + $0x4c] sm:$0xf]
      %v409 = vld [vmem:[%s165 + $0x50] sm:$0x1]
      %v410 = vld [vmem:[%s165 + $0x54] sm:$0xf]
      %v411 = vld [vmem:[%s165 + $0x58] sm:$0xf]
      %v412 = vld [vmem:[%s165 + $0x5c] sm:$0x1]
      %v413 = vld [vmem:[%s165 + $0x60] sm:$0xf]
      %v414 = vld [vmem:[%s165 + $0x64] sm:$0xf]
      %v415 = vld [vmem:[%s165 + $0x68] sm:$0x1]
      %v416 = vld [vmem:[%s165 + $0x6c] sm:$0xf]
      %v417 = vld [vmem:[%s165 + $0x70] sm:$0xf]
      %v418 = vld [vmem:[%s165 + $0x74] sm:$0x1]
      %v419 = vld [vmem:[%s165 + $0x78] sm:$0xf]
      %v420 = vld [vmem:[%s165 + $0x7c] sm:$0xf]
      %v421 = vld [vmem:[%s165 + $0x80] sm:$0x1]
      %v422 = vld [vmem:[%s165 + $0x84] sm:$0xf]
      %v423 = vld [vmem:[%s165 + $0x88] sm:$0xf]
      %v424 = vld [vmem:[%s165 + $0x8c] sm:$0x1]
      %v425 = vld [vmem:[%s165 + $0x90] sm:$0xf]
      %v426 = vld [vmem:[%s165 + $0x94] sm:$0xf]
      %v427 = vld [vmem:[%s165 + $0x98] sm:$0x1]
      %v428 = vld [vmem:[%s165 + $0x9c] sm:$0xf]
      %v429 = vld [vmem:[%s165 + $0xa0] sm:$0xf]
      %v430 = vld [vmem:[%s165 + $0xa4] sm:$0x1]
      %v431 = vld [vmem:[%s165 + $0xa8] sm:$0xf]
      %v432 = vld [vmem:[%s165 + $0xac] sm:$0xf]
      %v433 = vld [vmem:[%s165 + $0xb0] sm:$0x1]
      %v434 = vld [vmem:[%s165 + $0xb4] sm:$0xf]
      %v435 = vld [vmem:[%s165 + $0xb8] sm:$0xf]
      %v436 = vld [vmem:[%s165 + $0xbc] sm:$0x1]
      %v437 = vld [vmem:[%s165 + $0xc0] sm:$0xf]
      %v438 = vld [vmem:[%s165 + $0xc4] sm:$0xf]
      %v439 = vld [vmem:[%s165 + $0xc8] sm:$0x1]
      %v440 = vld [vmem:[%s165 + $0xcc] sm:$0xf]
      %v441 = vld [vmem:[%s165 + $0xd0] sm:$0xf]
      %v442 = vld [vmem:[%s165 + $0xd4] sm:$0x1]
      %v443 = vld [vmem:[%s165 + $0xd8] sm:$0xf]
      %v444 = vld [vmem:[%s165 + $0xdc] sm:$0xf]
      %v445 = vld [vmem:[%s165 + $0xe0] sm:$0x1]
      %v446 = vld [vmem:[%s165 + $0xe4] sm:$0xf]
      %v447 = vld [vmem:[%s165 + $0xe8] sm:$0xf]
      %v448 = vld [vmem:[%s165 + $0xec] sm:$0x1]
      %v449 = vld [vmem:[%s165 + $0xf0] sm:$0xf]
      %v450 = vld [vmem:[%s165 + $0xf4] sm:$0xf]
      %v451 = vld [vmem:[%s165 + $0xf8] sm:$0x1]
      %v452 = vld [vmem:[%s165 + $0xfc] sm:$0xf]
      %v453 = vld [vmem:[%s165 + $0x100] sm:$0xf]
      %v454 = vld [vmem:[%s165 + $0x104] sm:$0x1]
      %v455 = vld [vmem:[%s165 + $0x108] sm:$0xf]
      %v456 = vld [vmem:[%s165 + $0x10c] sm:$0xf]
      %v457 = vld [vmem:[%s165 + $0x110] sm:$0x1]
      %v458 = vld [vmem:[%s165 + $0x114] sm:$0xf]
      %v459 = vld [vmem:[%s165 + $0x118] sm:$0xf]
      %v460 = vld [vmem:[%s165 + $0x11c] sm:$0x1]
      %v533 = vunpack.c.l.b16 %v389
      %v534 = vunpack.c.l.b16 %v390
      %v535 = vunpack.c.l.b16 %v391
      %v536 = vunpack.c.l.b16 %v392
      %v537 = vunpack.c.l.b16 %v393
      %v538 = vunpack.c.l.b16 %v394
      %v539 = vunpack.c.l.b16 %v395
      %v540 = vunpack.c.l.b16 %v396
      %v541 = vunpack.c.l.b16 %v397
      %v542 = vunpack.c.l.b16 %v398
      %v543 = vunpack.c.l.b16 %v399
      %v544 = vunpack.c.l.b16 %v400
      %v545 = vunpack.c.l.b16 %v401
      %v546 = vunpack.c.l.b16 %v402
      %v547 = vunpack.c.l.b16 %v403
      %v548 = vunpack.c.l.b16 %v404
      %v549 = vunpack.c.l.b16 %v405
      %v550 = vunpack.c.l.b16 %v406
      %v551 = vunpack.c.l.b16 %v407
      %v552 = vunpack.c.l.b16 %v408
      %v553 = vunpack.c.l.b16 %v409
      %v554 = vunpack.c.l.b16 %v410
      %v555 = vunpack.c.l.b16 %v411
      %v556 = vunpack.c.l.b16 %v412
      %v557 = vunpack.c.l.b16 %v413
      %v558 = vunpack.c.l.b16 %v414
      %v559 = vunpack.c.l.b16 %v415
      %v560 = vunpack.c.l.b16 %v416
      %v561 = vunpack.c.l.b16 %v417
      %v562 = vunpack.c.l.b16 %v418
      %v563 = vunpack.c.l.b16 %v419
      %v564 = vunpack.c.l.b16 %v420
      %v565 = vunpack.c.l.b16 %v421
      %v566 = vunpack.c.l.b16 %v422
      %v567 = vunpack.c.l.b16 %v423
      %v568 = vunpack.c.l.b16 %v424
      %v569 = vunpack.c.l.b16 %v425
      %v570 = vunpack.c.l.b16 %v426
      %v571 = vunpack.c.l.b16 %v427
      %v572 = vunpack.c.l.b16 %v428
      %v573 = vunpack.c.l.b16 %v429
      %v574 = vunpack.c.l.b16 %v430
      %v575 = vunpack.c.l.b16 %v431
      %v576 = vunpack.c.l.b16 %v432
      %v577 = vunpack.c.l.b16 %v433
      %v578 = vunpack.c.l.b16 %v434
      %v579 = vunpack.c.l.b16 %v435
      %v580 = vunpack.c.l.b16 %v436
      %v581 = vunpack.c.l.b16 %v437
      %v582 = vunpack.c.l.b16 %v438
      %v583 = vunpack.c.l.b16 %v439
      %v584 = vunpack.c.l.b16 %v440
      %v585 = vunpack.c.l.b16 %v441
      %v586 = vunpack.c.l.b16 %v442
      %v587 = vunpack.c.l.b16 %v443
      %v588 = vunpack.c.l.b16 %v444
      %v589 = vunpack.c.l.b16 %v445
      %v590 = vunpack.c.l.b16 %v446
      %v591 = vunpack.c.l.b16 %v447
      %v592 = vunpack.c.l.b16 %v448
      %v593 = vunpack.c.l.b16 %v449
      %v594 = vunpack.c.l.b16 %v450
      %v595 = vunpack.c.l.b16 %v451
      %v596 = vunpack.c.l.b16 %v452
      %v597 = vunpack.c.l.b16 %v453
      %v598 = vunpack.c.l.b16 %v454
      %v599 = vunpack.c.l.b16 %v455
      %v600 = vunpack.c.l.b16 %v456
      %v601 = vunpack.c.l.b16 %v457
      %v602 = vunpack.c.l.b16 %v458
      %v603 = vunpack.c.l.b16 %v459
      %v604 = vunpack.c.l.b16 %v460
      %v605 = vpack.c.b16 %v534, %v533
      %v606 = vpack.c.b16 %v535, %v535
      %v607 = vpack.c.b16 %v537, %v536
      %v608 = vpack.c.b16 %v538, %v538
      %v609 = vpack.c.b16 %v540, %v539
      %v610 = vpack.c.b16 %v541, %v541
      %v611 = vpack.c.b16 %v543, %v542
      %v612 = vpack.c.b16 %v544, %v544
      %v613 = vpack.c.b16 %v546, %v545
      %v614 = vpack.c.b16 %v547, %v547
      %v615 = vpack.c.b16 %v549, %v548
      %v616 = vpack.c.b16 %v550, %v550
      %v617 = vpack.c.b16 %v552, %v551
      %v618 = vpack.c.b16 %v553, %v553
      %v619 = vpack.c.b16 %v555, %v554
      %v620 = vpack.c.b16 %v556, %v556
      %v621 = vpack.c.b16 %v558, %v557
      %v622 = vpack.c.b16 %v559, %v559
      %v623 = vpack.c.b16 %v561, %v560
      %v624 = vpack.c.b16 %v562, %v562
      %v625 = vpack.c.b16 %v564, %v563
      %v626 = vpack.c.b16 %v565, %v565
      %v627 = vpack.c.b16 %v567, %v566
      %v628 = vpack.c.b16 %v568, %v568
      %v629 = vpack.c.b16 %v570, %v569
      %v630 = vpack.c.b16 %v571, %v571
      %v631 = vpack.c.b16 %v573, %v572
      %v632 = vpack.c.b16 %v574, %v574
      %v633 = vpack.c.b16 %v576, %v575
      %v634 = vpack.c.b16 %v577, %v577
      %v635 = vpack.c.b16 %v579, %v578
      %v636 = vpack.c.b16 %v580, %v580
      %v637 = vpack.c.b16 %v582, %v581
      %v638 = vpack.c.b16 %v583, %v583
      %v639 = vpack.c.b16 %v585, %v584
      %v640 = vpack.c.b16 %v586, %v586
      %v641 = vpack.c.b16 %v588, %v587
      %v642 = vpack.c.b16 %v589, %v589
      %v643 = vpack.c.b16 %v591, %v590
      %v644 = vpack.c.b16 %v592, %v592
      %v645 = vpack.c.b16 %v594, %v593
      %v646 = vpack.c.b16 %v595, %v595
      %v647 = vpack.c.b16 %v597, %v596
      %v648 = vpack.c.b16 %v598, %v598
      %v649 = vpack.c.b16 %v600, %v599
      %v650 = vpack.c.b16 %v601, %v601
      %v651 = vpack.c.b16 %v603, %v602
      %v652 = vpack.c.b16 %v604, %v604
      %vm653 = vsmask.f32 7424
      %v655 = vshrl.u32 %v605, 16
      %v657 = vshll.u32 %v605, 16
      %v659 = vrot.slane %v657, 1
      %v660 = vor.u32 %v655, %v659
      %v662 = vshll.u32 %v606, 16
      %v664 = vrot.slane %v662, 1
      %v665 = vsel %vm653, %v660, %v664
      %v667 = vshrl.u32 %v607, 16
      %v669 = vshll.u32 %v607, 16
      %v671 = vrot.slane %v669, 1
      %v672 = vor.u32 %v667, %v671
      %v674 = vshll.u32 %v608, 16
      %v676 = vrot.slane %v674, 1
      %v677 = vsel %vm653, %v672, %v676
      %v679 = vshrl.u32 %v609, 16
      %v681 = vshll.u32 %v609, 16
      %v683 = vrot.slane %v681, 1
      %v684 = vor.u32 %v679, %v683
      %v686 = vshll.u32 %v610, 16
      %v688 = vrot.slane %v686, 1
      %v689 = vsel %vm653, %v684, %v688
      %v691 = vshrl.u32 %v611, 16
      %v693 = vshll.u32 %v611, 16
      %v695 = vrot.slane %v693, 1
      %v696 = vor.u32 %v691, %v695
      %v698 = vshll.u32 %v612, 16
      %v700 = vrot.slane %v698, 1
      %v701 = vsel %vm653, %v696, %v700
      %v703 = vshrl.u32 %v613, 16
      %v705 = vshll.u32 %v613, 16
      %v707 = vrot.slane %v705, 1
      %v708 = vor.u32 %v703, %v707
      %v710 = vshll.u32 %v614, 16
      %v712 = vrot.slane %v710, 1
      %v713 = vsel %vm653, %v708, %v712
      %v715 = vshrl.u32 %v615, 16
      %v717 = vshll.u32 %v615, 16
      %v719 = vrot.slane %v717, 1
      %v720 = vor.u32 %v715, %v719
      %v722 = vshll.u32 %v616, 16
      %v724 = vrot.slane %v722, 1
      %v725 = vsel %vm653, %v720, %v724
      %v727 = vshrl.u32 %v617, 16
      %v729 = vshll.u32 %v617, 16
      %v731 = vrot.slane %v729, 1
      %v732 = vor.u32 %v727, %v731
      %v734 = vshll.u32 %v618, 16
      %v736 = vrot.slane %v734, 1
      %v737 = vsel %vm653, %v732, %v736
      %v739 = vshrl.u32 %v619, 16
      %v741 = vshll.u32 %v619, 16
      %v743 = vrot.slane %v741, 1
      %v744 = vor.u32 %v739, %v743
      %v746 = vshll.u32 %v620, 16
      %v748 = vrot.slane %v746, 1
      %v749 = vsel %vm653, %v744, %v748
      %v751 = vshrl.u32 %v621, 16
      %v753 = vshll.u32 %v621, 16
      %v755 = vrot.slane %v753, 1
      %v756 = vor.u32 %v751, %v755
      %v758 = vshll.u32 %v622, 16
      %v760 = vrot.slane %v758, 1
      %v761 = vsel %vm653, %v756, %v760
      %v763 = vshrl.u32 %v623, 16
      %v765 = vshll.u32 %v623, 16
      %v767 = vrot.slane %v765, 1
      %v768 = vor.u32 %v763, %v767
      %v770 = vshll.u32 %v624, 16
      %v772 = vrot.slane %v770, 1
      %v773 = vsel %vm653, %v768, %v772
      %v775 = vshrl.u32 %v625, 16
      %v777 = vshll.u32 %v625, 16
      %v779 = vrot.slane %v777, 1
      %v780 = vor.u32 %v775, %v779
      %v782 = vshll.u32 %v626, 16
      %v784 = vrot.slane %v782, 1
      %v785 = vsel %vm653, %v780, %v784
      %v787 = vshrl.u32 %v627, 16
      %v789 = vshll.u32 %v627, 16
      %v791 = vrot.slane %v789, 1
      %v792 = vor.u32 %v787, %v791
      %v794 = vshll.u32 %v628, 16
      %v796 = vrot.slane %v794, 1
      %v797 = vsel %vm653, %v792, %v796
      %v799 = vshrl.u32 %v629, 16
      %v801 = vshll.u32 %v629, 16
      %v803 = vrot.slane %v801, 1
      %v804 = vor.u32 %v799, %v803
      %v806 = vshll.u32 %v630, 16
      %v808 = vrot.slane %v806, 1
      %v809 = vsel %vm653, %v804, %v808
      %v811 = vshrl.u32 %v631, 16
      %v813 = vshll.u32 %v631, 16
      %v815 = vrot.slane %v813, 1
      %v816 = vor.u32 %v811, %v815
      %v818 = vshll.u32 %v632, 16
      %v820 = vrot.slane %v818, 1
      %v821 = vsel %vm653, %v816, %v820
      %v823 = vshrl.u32 %v633, 16
      %v825 = vshll.u32 %v633, 16
      %v827 = vrot.slane %v825, 1
      %v828 = vor.u32 %v823, %v827
      %v830 = vshll.u32 %v634, 16
      %v832 = vrot.slane %v830, 1
      %v833 = vsel %vm653, %v828, %v832
      %v835 = vshrl.u32 %v635, 16
      %v837 = vshll.u32 %v635, 16
      %v839 = vrot.slane %v837, 1
      %v840 = vor.u32 %v835, %v839
      %v842 = vshll.u32 %v636, 16
      %v844 = vrot.slane %v842, 1
      %v845 = vsel %vm653, %v840, %v844
      %v847 = vshrl.u32 %v637, 16
      %v849 = vshll.u32 %v637, 16
      %v851 = vrot.slane %v849, 1
      %v852 = vor.u32 %v847, %v851
      %v854 = vshll.u32 %v638, 16
      %v856 = vrot.slane %v854, 1
      %v857 = vsel %vm653, %v852, %v856
      %v859 = vshrl.u32 %v639, 16
      %v861 = vshll.u32 %v639, 16
      %v863 = vrot.slane %v861, 1
      %v864 = vor.u32 %v859, %v863
      %v866 = vshll.u32 %v640, 16
      %v868 = vrot.slane %v866, 1
      %v869 = vsel %vm653, %v864, %v868
      %v871 = vshrl.u32 %v641, 16
      %v873 = vshll.u32 %v641, 16
      %v875 = vrot.slane %v873, 1
      %v876 = vor.u32 %v871, %v875
      %v878 = vshll.u32 %v642, 16
      %v880 = vrot.slane %v878, 1
      %v881 = vsel %vm653, %v876, %v880
      %v883 = vshrl.u32 %v643, 16
      %v885 = vshll.u32 %v643, 16
      %v887 = vrot.slane %v885, 1
      %v888 = vor.u32 %v883, %v887
      %v890 = vshll.u32 %v644, 16
      %v892 = vrot.slane %v890, 1
      %v893 = vsel %vm653, %v888, %v892
      %v895 = vshrl.u32 %v645, 16
      %v897 = vshll.u32 %v645, 16
      %v899 = vrot.slane %v897, 1
      %v900 = vor.u32 %v895, %v899
      %v902 = vshll.u32 %v646, 16
      %v904 = vrot.slane %v902, 1
      %v905 = vsel %vm653, %v900, %v904
      %v907 = vshrl.u32 %v647, 16
      %v909 = vshll.u32 %v647, 16
      %v911 = vrot.slane %v909, 1
      %v912 = vor.u32 %v907, %v911
      %v914 = vshll.u32 %v648, 16
      %v916 = vrot.slane %v914, 1
      %v917 = vsel %vm653, %v912, %v916
      %v919 = vshrl.u32 %v649, 16
      %v921 = vshll.u32 %v649, 16
      %v923 = vrot.slane %v921, 1
      %v924 = vor.u32 %v919, %v923
      %v926 = vshll.u32 %v650, 16
      %v928 = vrot.slane %v926, 1
      %v929 = vsel %vm653, %v924, %v928
      %v931 = vshrl.u32 %v651, 16
      %v933 = vshll.u32 %v651, 16
      %v935 = vrot.slane %v933, 1
      %v936 = vor.u32 %v931, %v935
      %v938 = vshll.u32 %v652, 16
      %v940 = vrot.slane %v938, 1
      %v941 = vsel %vm653, %v936, %v940
      %s966 = scalar_lea.vmem [#allocation2], 192
      %967 = vst.msk [vmem:[%s966] sm:$0xff] %vm364, %v665
      %968 = vst.msk [vmem:[%s966 + $0x8] sm:$0xff] %vm364, %v677
      %969 = vst.msk [vmem:[%s966 + $0x10] sm:$0xff] %vm364, %v689
      %970 = vst.msk [vmem:[%s966 + $0x18] sm:$0xff] %vm364, %v701
      %971 = vst.msk [vmem:[%s966 + $0x20] sm:$0xff] %vm364, %v713
      %972 = vst.msk [vmem:[%s966 + $0x28] sm:$0xff] %vm364, %v725
      %973 = vst.msk [vmem:[%s966 + $0x30] sm:$0xff] %vm364, %v737
      %974 = vst.msk [vmem:[%s966 + $0x38] sm:$0xff] %vm364, %v749
      %975 = vst.msk [vmem:[%s966 + $0x40] sm:$0xff] %vm364, %v761
      %976 = vst.msk [vmem:[%s966 + $0x48] sm:$0xff] %vm364, %v773
      %977 = vst.msk [vmem:[%s966 + $0x50] sm:$0xff] %vm364, %v785
      %978 = vst.msk [vmem:[%s966 + $0x58] sm:$0xff] %vm364, %v797
      %979 = vst.msk [vmem:[%s966 + $0x60] sm:$0xff] %vm364, %v809
      %980 = vst.msk [vmem:[%s966 + $0x68] sm:$0xff] %vm364, %v821
      %981 = vst.msk [vmem:[%s966 + $0x70] sm:$0xff] %vm364, %v833
      %982 = vst.msk [vmem:[%s966 + $0x78] sm:$0xff] %vm364, %v845
      %983 = vst.msk [vmem:[%s966 + $0x80] sm:$0xff] %vm364, %v857
      %984 = vst.msk [vmem:[%s966 + $0x88] sm:$0xff] %vm364, %v869
      %985 = vst.msk [vmem:[%s966 + $0x90] sm:$0xff] %vm364, %v881
      %986 = vst.msk [vmem:[%s966 + $0x98] sm:$0xff] %vm364, %v893
      %987 = vst.msk [vmem:[%s966 + $0xa0] sm:$0xff] %vm364, %v905
      %988 = vst.msk [vmem:[%s966 + $0xa8] sm:$0xff] %vm364, %v917
      %989 = vst.msk [vmem:[%s966 + $0xb0] sm:$0xff] %vm364, %v929
      %990 = vst.msk [vmem:[%s966 + $0xb8] sm:$0xff] %vm364, %v941
      %v991 = vld [vmem:[%s165] sm:$0xe]
      %v992 = vld [vmem:[%s165 + $0x4] sm:$0xf]
      %v993 = vld [vmem:[%s165 + $0x8] sm:$0x1]
      %v994 = vld [vmem:[%s165 + $0xc] sm:$0xe]
      %v995 = vld [vmem:[%s165 + $0x10] sm:$0xf]
      %v996 = vld [vmem:[%s165 + $0x14] sm:$0x1]
      %v997 = vld [vmem:[%s165 + $0x18] sm:$0xe]
      %v998 = vld [vmem:[%s165 + $0x1c] sm:$0xf]
      %v999 = vld [vmem:[%s165 + $0x20] sm:$0x1]
      %v1000 = vld [vmem:[%s165 + $0x24] sm:$0xe]
      %v1001 = vld [vmem:[%s165 + $0x28] sm:$0xf]
      %v1002 = vld [vmem:[%s165 + $0x2c] sm:$0x1]
      %v1003 = vld [vmem:[%s165 + $0x30] sm:$0xe]
      %v1004 = vld [vmem:[%s165 + $0x34] sm:$0xf]
      %v1005 = vld [vmem:[%s165 + $0x38] sm:$0x1]
      %v1006 = vld [vmem:[%s165 + $0x3c] sm:$0xe]
      %v1007 = vld [vmem:[%s165 + $0x40] sm:$0xf]
      %v1008 = vld [vmem:[%s165 + $0x44] sm:$0x1]
      %v1009 = vld [vmem:[%s165 + $0x48] sm:$0xe]
      %v1010 = vld [vmem:[%s165 + $0x4c] sm:$0xf]
      %v1011 = vld [vmem:[%s165 + $0x50] sm:$0x1]
      %v1012 = vld [vmem:[%s165 + $0x54] sm:$0xe]
      %v1013 = vld [vmem:[%s165 + $0x58] sm:$0xf]
      %v1014 = vld [vmem:[%s165 + $0x5c] sm:$0x1]
      %v1015 = vld [vmem:[%s165 + $0x60] sm:$0xe]
      %v1016 = vld [vmem:[%s165 + $0x64] sm:$0xf]
      %v1017 = vld [vmem:[%s165 + $0x68] sm:$0x1]
      %v1018 = vld [vmem:[%s165 + $0x6c] sm:$0xe]
      %v1019 = vld [vmem:[%s165 + $0x70] sm:$0xf]
      %v1020 = vld [vmem:[%s165 + $0x74] sm:$0x1]
      %v1021 = vld [vmem:[%s165 + $0x78] sm:$0xe]
      %v1022 = vld [vmem:[%s165 + $0x7c] sm:$0xf]
      %v1023 = vld [vmem:[%s165 + $0x80] sm:$0x1]
      %v1024 = vld [vmem:[%s165 + $0x84] sm:$0xe]
      %v1025 = vld [vmem:[%s165 + $0x88] sm:$0xf]
      %v1026 = vld [vmem:[%s165 + $0x8c] sm:$0x1]
      %v1027 = vld [vmem:[%s165 + $0x90] sm:$0xe]
      %v1028 = vld [vmem:[%s165 + $0x94] sm:$0xf]
      %v1029 = vld [vmem:[%s165 + $0x98] sm:$0x1]
      %v1030 = vld [vmem:[%s165 + $0x9c] sm:$0xe]
      %v1031 = vld [vmem:[%s165 + $0xa0] sm:$0xf]
      %v1032 = vld [vmem:[%s165 + $0xa4] sm:$0x1]
      %v1033 = vld [vmem:[%s165 + $0xa8] sm:$0xe]
      %v1034 = vld [vmem:[%s165 + $0xac] sm:$0xf]
      %v1035 = vld [vmem:[%s165 + $0xb0] sm:$0x1]
      %v1036 = vld [vmem:[%s165 + $0xb4] sm:$0xe]
      %v1037 = vld [vmem:[%s165 + $0xb8] sm:$0xf]
      %v1038 = vld [vmem:[%s165 + $0xbc] sm:$0x1]
      %v1039 = vld [vmem:[%s165 + $0xc0] sm:$0xe]
      %v1040 = vld [vmem:[%s165 + $0xc4] sm:$0xf]
      %v1041 = vld [vmem:[%s165 + $0xc8] sm:$0x1]
      %v1042 = vld [vmem:[%s165 + $0xcc] sm:$0xe]
      %v1043 = vld [vmem:[%s165 + $0xd0] sm:$0xf]
      %v1044 = vld [vmem:[%s165 + $0xd4] sm:$0x1]
      %v1045 = vld [vmem:[%s165 + $0xd8] sm:$0xe]
      %v1046 = vld [vmem:[%s165 + $0xdc] sm:$0xf]
      %v1047 = vld [vmem:[%s165 + $0xe0] sm:$0x1]
      %v1048 = vld [vmem:[%s165 + $0xe4] sm:$0xe]
      %v1049 = vld [vmem:[%s165 + $0xe8] sm:$0xf]
      %v1050 = vld [vmem:[%s165 + $0xec] sm:$0x1]
      %v1051 = vld [vmem:[%s165 + $0xf0] sm:$0xe]
      %v1052 = vld [vmem:[%s165 + $0xf4] sm:$0xf]
      %v1053 = vld [vmem:[%s165 + $0xf8] sm:$0x1]
      %v1054 = vld [vmem:[%s165 + $0xfc] sm:$0xe]
      %v1055 = vld [vmem:[%s165 + $0x100] sm:$0xf]
      %v1056 = vld [vmem:[%s165 + $0x104] sm:$0x1]
      %v1057 = vld [vmem:[%s165 + $0x108] sm:$0xe]
      %v1058 = vld [vmem:[%s165 + $0x10c] sm:$0xf]
      %v1059 = vld [vmem:[%s165 + $0x110] sm:$0x1]
      %v1060 = vld [vmem:[%s165 + $0x114] sm:$0xe]
      %v1061 = vld [vmem:[%s165 + $0x118] sm:$0xf]
      %v1062 = vld [vmem:[%s165 + $0x11c] sm:$0x1]
      %v1135 = vunpack.c.l.b16 %v991
      %v1136 = vunpack.c.l.b16 %v992
      %v1137 = vunpack.c.l.b16 %v993
      %v1138 = vunpack.c.l.b16 %v994
      %v1139 = vunpack.c.l.b16 %v995
      %v1140 = vunpack.c.l.b16 %v996
      %v1141 = vunpack.c.l.b16 %v997
      %v1142 = vunpack.c.l.b16 %v998
      %v1143 = vunpack.c.l.b16 %v999
      %v1144 = vunpack.c.l.b16 %v1000
      %v1145 = vunpack.c.l.b16 %v1001
      %v1146 = vunpack.c.l.b16 %v1002
      %v1147 = vunpack.c.l.b16 %v1003
      %v1148 = vunpack.c.l.b16 %v1004
      %v1149 = vunpack.c.l.b16 %v1005
      %v1150 = vunpack.c.l.b16 %v1006
      %v1151 = vunpack.c.l.b16 %v1007
      %v1152 = vunpack.c.l.b16 %v1008
      %v1153 = vunpack.c.l.b16 %v1009
      %v1154 = vunpack.c.l.b16 %v1010
      %v1155 = vunpack.c.l.b16 %v1011
      %v1156 = vunpack.c.l.b16 %v1012
      %v1157 = vunpack.c.l.b16 %v1013
      %v1158 = vunpack.c.l.b16 %v1014
      %v1159 = vunpack.c.l.b16 %v1015
      %v1160 = vunpack.c.l.b16 %v1016
      %v1161 = vunpack.c.l.b16 %v1017
      %v1162 = vunpack.c.l.b16 %v1018
      %v1163 = vunpack.c.l.b16 %v1019
      %v1164 = vunpack.c.l.b16 %v1020
      %v1165 = vunpack.c.l.b16 %v1021
      %v1166 = vunpack.c.l.b16 %v1022
      %v1167 = vunpack.c.l.b16 %v1023
      %v1168 = vunpack.c.l.b16 %v1024
      %v1169 = vunpack.c.l.b16 %v1025
      %v1170 = vunpack.c.l.b16 %v1026
      %v1171 = vunpack.c.l.b16 %v1027
      %v1172 = vunpack.c.l.b16 %v1028
      %v1173 = vunpack.c.l.b16 %v1029
      %v1174 = vunpack.c.l.b16 %v1030
      %v1175 = vunpack.c.l.b16 %v1031
      %v1176 = vunpack.c.l.b16 %v1032
      %v1177 = vunpack.c.l.b16 %v1033
      %v1178 = vunpack.c.l.b16 %v1034
      %v1179 = vunpack.c.l.b16 %v1035
      %v1180 = vunpack.c.l.b16 %v1036
      %v1181 = vunpack.c.l.b16 %v1037
      %v1182 = vunpack.c.l.b16 %v1038
      %v1183 = vunpack.c.l.b16 %v1039
      %v1184 = vunpack.c.l.b16 %v1040
      %v1185 = vunpack.c.l.b16 %v1041
      %v1186 = vunpack.c.l.b16 %v1042
      %v1187 = vunpack.c.l.b16 %v1043
      %v1188 = vunpack.c.l.b16 %v1044
      %v1189 = vunpack.c.l.b16 %v1045
      %v1190 = vunpack.c.l.b16 %v1046
      %v1191 = vunpack.c.l.b16 %v1047
      %v1192 = vunpack.c.l.b16 %v1048
      %v1193 = vunpack.c.l.b16 %v1049
      %v1194 = vunpack.c.l.b16 %v1050
      %v1195 = vunpack.c.l.b16 %v1051
      %v1196 = vunpack.c.l.b16 %v1052
      %v1197 = vunpack.c.l.b16 %v1053
      %v1198 = vunpack.c.l.b16 %v1054
      %v1199 = vunpack.c.l.b16 %v1055
      %v1200 = vunpack.c.l.b16 %v1056
      %v1201 = vunpack.c.l.b16 %v1057
      %v1202 = vunpack.c.l.b16 %v1058
      %v1203 = vunpack.c.l.b16 %v1059
      %v1204 = vunpack.c.l.b16 %v1060
      %v1205 = vunpack.c.l.b16 %v1061
      %v1206 = vunpack.c.l.b16 %v1062
      %v1207 = vpack.c.b16 %v1136, %v1135
      %v1208 = vpack.c.b16 %v1137, %v1137
      %v1209 = vpack.c.b16 %v1139, %v1138
      %v1210 = vpack.c.b16 %v1140, %v1140
      %v1211 = vpack.c.b16 %v1142, %v1141
      %v1212 = vpack.c.b16 %v1143, %v1143
      %v1213 = vpack.c.b16 %v1145, %v1144
      %v1214 = vpack.c.b16 %v1146, %v1146
      %v1215 = vpack.c.b16 %v1148, %v1147
      %v1216 = vpack.c.b16 %v1149, %v1149
      %v1217 = vpack.c.b16 %v1151, %v1150
      %v1218 = vpack.c.b16 %v1152, %v1152
      %v1219 = vpack.c.b16 %v1154, %v1153
      %v1220 = vpack.c.b16 %v1155, %v1155
      %v1221 = vpack.c.b16 %v1157, %v1156
      %v1222 = vpack.c.b16 %v1158, %v1158
      %v1223 = vpack.c.b16 %v1160, %v1159
      %v1224 = vpack.c.b16 %v1161, %v1161
      %v1225 = vpack.c.b16 %v1163, %v1162
      %v1226 = vpack.c.b16 %v1164, %v1164
      %v1227 = vpack.c.b16 %v1166, %v1165
      %v1228 = vpack.c.b16 %v1167, %v1167
      %v1229 = vpack.c.b16 %v1169, %v1168
      %v1230 = vpack.c.b16 %v1170, %v1170
      %v1231 = vpack.c.b16 %v1172, %v1171
      %v1232 = vpack.c.b16 %v1173, %v1173
      %v1233 = vpack.c.b16 %v1175, %v1174
      %v1234 = vpack.c.b16 %v1176, %v1176
      %v1235 = vpack.c.b16 %v1178, %v1177
      %v1236 = vpack.c.b16 %v1179, %v1179
      %v1237 = vpack.c.b16 %v1181, %v1180
      %v1238 = vpack.c.b16 %v1182, %v1182
      %v1239 = vpack.c.b16 %v1184, %v1183
      %v1240 = vpack.c.b16 %v1185, %v1185
      %v1241 = vpack.c.b16 %v1187, %v1186
      %v1242 = vpack.c.b16 %v1188, %v1188
      %v1243 = vpack.c.b16 %v1190, %v1189
      %v1244 = vpack.c.b16 %v1191, %v1191
      %v1245 = vpack.c.b16 %v1193, %v1192
      %v1246 = vpack.c.b16 %v1194, %v1194
      %v1247 = vpack.c.b16 %v1196, %v1195
      %v1248 = vpack.c.b16 %v1197, %v1197
      %v1249 = vpack.c.b16 %v1199, %v1198
      %v1250 = vpack.c.b16 %v1200, %v1200
      %v1251 = vpack.c.b16 %v1202, %v1201
      %v1252 = vpack.c.b16 %v1203, %v1203
      %v1253 = vpack.c.b16 %v1205, %v1204
      %v1254 = vpack.c.b16 %v1206, %v1206
      %vm1255 = vcmask 1046528
      %v1256 = vrot.slane %v1207, 1
      %v1257 = vrot.slane %v1208, 1
      %v1258 = vsel %vm1255, %v1256, %v1257
      %v1259 = vrot.slane %v1209, 1
      %v1260 = vrot.slane %v1210, 1
      %v1261 = vsel %vm1255, %v1259, %v1260
      %v1262 = vrot.slane %v1211, 1
      %v1263 = vrot.slane %v1212, 1
      %v1264 = vsel %vm1255, %v1262, %v1263
      %v1265 = vrot.slane %v1213, 1
      %v1266 = vrot.slane %v1214, 1
      %v1267 = vsel %vm1255, %v1265, %v1266
      %v1268 = vrot.slane %v1215, 1
      %v1269 = vrot.slane %v1216, 1
      %v1270 = vsel %vm1255, %v1268, %v1269
      %v1271 = vrot.slane %v1217, 1
      %v1272 = vrot.slane %v1218, 1
      %v1273 = vsel %vm1255, %v1271, %v1272
      %v1274 = vrot.slane %v1219, 1
      %v1275 = vrot.slane %v1220, 1
      %v1276 = vsel %vm1255, %v1274, %v1275
      %v1277 = vrot.slane %v1221, 1
      %v1278 = vrot.slane %v1222, 1
      %v1279 = vsel %vm1255, %v1277, %v1278
      %v1280 = vrot.slane %v1223, 1
      %v1281 = vrot.slane %v1224, 1
      %v1282 = vsel %vm1255, %v1280, %v1281
      %v1283 = vrot.slane %v1225, 1
      %v1284 = vrot.slane %v1226, 1
      %v1285 = vsel %vm1255, %v1283, %v1284
      %v1286 = vrot.slane %v1227, 1
      %v1287 = vrot.slane %v1228, 1
      %v1288 = vsel %vm1255, %v1286, %v1287
      %v1289 = vrot.slane %v1229, 1
      %v1290 = vrot.slane %v1230, 1
      %v1291 = vsel %vm1255, %v1289, %v1290
      %v1292 = vrot.slane %v1231, 1
      %v1293 = vrot.slane %v1232, 1
      %v1294 = vsel %vm1255, %v1292, %v1293
      %v1295 = vrot.slane %v1233, 1
      %v1296 = vrot.slane %v1234, 1
      %v1297 = vsel %vm1255, %v1295, %v1296
      %v1298 = vrot.slane %v1235, 1
      %v1299 = vrot.slane %v1236, 1
      %v1300 = vsel %vm1255, %v1298, %v1299
      %v1301 = vrot.slane %v1237, 1
      %v1302 = vrot.slane %v1238, 1
      %v1303 = vsel %vm1255, %v1301, %v1302
      %v1304 = vrot.slane %v1239, 1
      %v1305 = vrot.slane %v1240, 1
      %v1306 = vsel %vm1255, %v1304, %v1305
      %v1307 = vrot.slane %v1241, 1
      %v1308 = vrot.slane %v1242, 1
      %v1309 = vsel %vm1255, %v1307, %v1308
      %v1310 = vrot.slane %v1243, 1
      %v1311 = vrot.slane %v1244, 1
      %v1312 = vsel %vm1255, %v1310, %v1311
      %v1313 = vrot.slane %v1245, 1
      %v1314 = vrot.slane %v1246, 1
      %v1315 = vsel %vm1255, %v1313, %v1314
      %v1316 = vrot.slane %v1247, 1
      %v1317 = vrot.slane %v1248, 1
      %v1318 = vsel %vm1255, %v1316, %v1317
      %v1319 = vrot.slane %v1249, 1
      %v1320 = vrot.slane %v1250, 1
      %v1321 = vsel %vm1255, %v1319, %v1320
      %v1322 = vrot.slane %v1251, 1
      %v1323 = vrot.slane %v1252, 1
      %v1324 = vsel %vm1255, %v1322, %v1323
      %v1325 = vrot.slane %v1253, 1
      %v1326 = vrot.slane %v1254, 1
      %v1327 = vsel %vm1255, %v1325, %v1326
      %s1352 = scalar_lea.vmem [#allocation2], 384
      %1353 = vst.msk [vmem:[%s1352] sm:$0xff] %vm364, %v1258
      %1354 = vst.msk [vmem:[%s1352 + $0x8] sm:$0xff] %vm364, %v1261
      %1355 = vst.msk [vmem:[%s1352 + $0x10] sm:$0xff] %vm364, %v1264
      %1356 = vst.msk [vmem:[%s1352 + $0x18] sm:$0xff] %vm364, %v1267
      %1357 = vst.msk [vmem:[%s1352 + $0x20] sm:$0xff] %vm364, %v1270
      %1358 = vst.msk [vmem:[%s1352 + $0x28] sm:$0xff] %vm364, %v1273
      %1359 = vst.msk [vmem:[%s1352 + $0x30] sm:$0xff] %vm364, %v1276
      %1360 = vst.msk [vmem:[%s1352 + $0x38] sm:$0xff] %vm364, %v1279
      %1361 = vst.msk [vmem:[%s1352 + $0x40] sm:$0xff] %vm364, %v1282
      %1362 = vst.msk [vmem:[%s1352 + $0x48] sm:$0xff] %vm364, %v1285
      %1363 = vst.msk [vmem:[%s1352 + $0x50] sm:$0xff] %vm364, %v1288
      %1364 = vst.msk [vmem:[%s1352 + $0x58] sm:$0xff] %vm364, %v1291
      %1365 = vst.msk [vmem:[%s1352 + $0x60] sm:$0xff] %vm364, %v1294
      %1366 = vst.msk [vmem:[%s1352 + $0x68] sm:$0xff] %vm364, %v1297
      %1367 = vst.msk [vmem:[%s1352 + $0x70] sm:$0xff] %vm364, %v1300
      %1368 = vst.msk [vmem:[%s1352 + $0x78] sm:$0xff] %vm364, %v1303
      %1369 = vst.msk [vmem:[%s1352 + $0x80] sm:$0xff] %vm364, %v1306
      %1370 = vst.msk [vmem:[%s1352 + $0x88] sm:$0xff] %vm364, %v1309
      %1371 = vst.msk [vmem:[%s1352 + $0x90] sm:$0xff] %vm364, %v1312
      %1372 = vst.msk [vmem:[%s1352 + $0x98] sm:$0xff] %vm364, %v1315
      %1373 = vst.msk [vmem:[%s1352 + $0xa0] sm:$0xff] %vm364, %v1318
      %1374 = vst.msk [vmem:[%s1352 + $0xa8] sm:$0xff] %vm364, %v1321
      %1375 = vst.msk [vmem:[%s1352 + $0xb0] sm:$0xff] %vm364, %v1324
      %1376 = vst.msk [vmem:[%s1352 + $0xb8] sm:$0xff] %vm364, %v1327
      %v1377 = vld [vmem:[%s165] sm:$0xe]
      %v1378 = vld [vmem:[%s165 + $0x4] sm:$0xf]
      %v1379 = vld [vmem:[%s165 + $0x8] sm:$0x3]
      %v1380 = vld [vmem:[%s165 + $0xc] sm:$0xe]
      %v1381 = vld [vmem:[%s165 + $0x10] sm:$0xf]
      %v1382 = vld [vmem:[%s165 + $0x14] sm:$0x3]
      %v1383 = vld [vmem:[%s165 + $0x18] sm:$0xe]
      %v1384 = vld [vmem:[%s165 + $0x1c] sm:$0xf]
      %v1385 = vld [vmem:[%s165 + $0x20] sm:$0x3]
      %v1386 = vld [vmem:[%s165 + $0x24] sm:$0xe]
      %v1387 = vld [vmem:[%s165 + $0x28] sm:$0xf]
      %v1388 = vld [vmem:[%s165 + $0x2c] sm:$0x3]
      %v1389 = vld [vmem:[%s165 + $0x30] sm:$0xe]
      %v1390 = vld [vmem:[%s165 + $0x34] sm:$0xf]
      %v1391 = vld [vmem:[%s165 + $0x38] sm:$0x3]
      %v1392 = vld [vmem:[%s165 + $0x3c] sm:$0xe]
      %v1393 = vld [vmem:[%s165 + $0x40] sm:$0xf]
      %v1394 = vld [vmem:[%s165 + $0x44] sm:$0x3]
      %v1395 = vld [vmem:[%s165 + $0x48] sm:$0xe]
      %v1396 = vld [vmem:[%s165 + $0x4c] sm:$0xf]
      %v1397 = vld [vmem:[%s165 + $0x50] sm:$0x3]
      %v1398 = vld [vmem:[%s165 + $0x54] sm:$0xe]
      %v1399 = vld [vmem:[%s165 + $0x58] sm:$0xf]
      %v1400 = vld [vmem:[%s165 + $0x5c] sm:$0x3]
      %v1401 = vld [vmem:[%s165 + $0x60] sm:$0xe]
      %v1402 = vld [vmem:[%s165 + $0x64] sm:$0xf]
      %v1403 = vld [vmem:[%s165 + $0x68] sm:$0x3]
      %v1404 = vld [vmem:[%s165 + $0x6c] sm:$0xe]
      %v1405 = vld [vmem:[%s165 + $0x70] sm:$0xf]
      %v1406 = vld [vmem:[%s165 + $0x74] sm:$0x3]
      %v1407 = vld [vmem:[%s165 + $0x78] sm:$0xe]
      %v1408 = vld [vmem:[%s165 + $0x7c] sm:$0xf]
      %v1409 = vld [vmem:[%s165 + $0x80] sm:$0x3]
      %v1410 = vld [vmem:[%s165 + $0x84] sm:$0xe]
      %v1411 = vld [vmem:[%s165 + $0x88] sm:$0xf]
      %v1412 = vld [vmem:[%s165 + $0x8c] sm:$0x3]
      %v1413 = vld [vmem:[%s165 + $0x90] sm:$0xe]
      %v1414 = vld [vmem:[%s165 + $0x94] sm:$0xf]
      %v1415 = vld [vmem:[%s165 + $0x98] sm:$0x3]
      %v1416 = vld [vmem:[%s165 + $0x9c] sm:$0xe]
      %v1417 = vld [vmem:[%s165 + $0xa0] sm:$0xf]
      %v1418 = vld [vmem:[%s165 + $0xa4] sm:$0x3]
      %v1419 = vld [vmem:[%s165 + $0xa8] sm:$0xe]
      %v1420 = vld [vmem:[%s165 + $0xac] sm:$0xf]
      %v1421 = vld [vmem:[%s165 + $0xb0] sm:$0x3]
      %v1422 = vld [vmem:[%s165 + $0xb4] sm:$0xe]
      %v1423 = vld [vmem:[%s165 + $0xb8] sm:$0xf]
      %v1424 = vld [vmem:[%s165 + $0xbc] sm:$0x3]
      %v1425 = vld [vmem:[%s165 + $0xc0] sm:$0xe]
      %v1426 = vld [vmem:[%s165 + $0xc4] sm:$0xf]
      %v1427 = vld [vmem:[%s165 + $0xc8] sm:$0x3]
      %v1428 = vld [vmem:[%s165 + $0xcc] sm:$0xe]
      %v1429 = vld [vmem:[%s165 + $0xd0] sm:$0xf]
      %v1430 = vld [vmem:[%s165 + $0xd4] sm:$0x3]
      %v1431 = vld [vmem:[%s165 + $0xd8] sm:$0xe]
      %v1432 = vld [vmem:[%s165 + $0xdc] sm:$0xf]
      %v1433 = vld [vmem:[%s165 + $0xe0] sm:$0x3]
      %v1434 = vld [vmem:[%s165 + $0xe4] sm:$0xe]
      %v1435 = vld [vmem:[%s165 + $0xe8] sm:$0xf]
      %v1436 = vld [vmem:[%s165 + $0xec] sm:$0x3]
      %v1437 = vld [vmem:[%s165 + $0xf0] sm:$0xe]
      %v1438 = vld [vmem:[%s165 + $0xf4] sm:$0xf]
      %v1439 = vld [vmem:[%s165 + $0xf8] sm:$0x3]
      %v1440 = vld [vmem:[%s165 + $0xfc] sm:$0xe]
      %v1441 = vld [vmem:[%s165 + $0x100] sm:$0xf]
      %v1442 = vld [vmem:[%s165 + $0x104] sm:$0x3]
      %v1443 = vld [vmem:[%s165 + $0x108] sm:$0xe]
      %v1444 = vld [vmem:[%s165 + $0x10c] sm:$0xf]
      %v1445 = vld [vmem:[%s165 + $0x110] sm:$0x3]
      %v1446 = vld [vmem:[%s165 + $0x114] sm:$0xe]
      %v1447 = vld [vmem:[%s165 + $0x118] sm:$0xf]
      %v1448 = vld [vmem:[%s165 + $0x11c] sm:$0x3]
      %v1521 = vunpack.c.l.b16 %v1377
      %v1522 = vunpack.c.l.b16 %v1378
      %v1523 = vunpack.c.l.b16 %v1379
      %v1524 = vunpack.c.l.b16 %v1380
      %v1525 = vunpack.c.l.b16 %v1381
      %v1526 = vunpack.c.l.b16 %v1382
      %v1527 = vunpack.c.l.b16 %v1383
      %v1528 = vunpack.c.l.b16 %v1384
      %v1529 = vunpack.c.l.b16 %v1385
      %v1530 = vunpack.c.l.b16 %v1386
      %v1531 = vunpack.c.l.b16 %v1387
      %v1532 = vunpack.c.l.b16 %v1388
      %v1533 = vunpack.c.l.b16 %v1389
      %v1534 = vunpack.c.l.b16 %v1390
      %v1535 = vunpack.c.l.b16 %v1391
      %v1536 = vunpack.c.l.b16 %v1392
      %v1537 = vunpack.c.l.b16 %v1393
      %v1538 = vunpack.c.l.b16 %v1394
      %v1539 = vunpack.c.l.b16 %v1395
      %v1540 = vunpack.c.l.b16 %v1396
      %v1541 = vunpack.c.l.b16 %v1397
      %v1542 = vunpack.c.l.b16 %v1398
      %v1543 = vunpack.c.l.b16 %v1399
      %v1544 = vunpack.c.l.b16 %v1400
      %v1545 = vunpack.c.l.b16 %v1401
      %v1546 = vunpack.c.l.b16 %v1402
      %v1547 = vunpack.c.l.b16 %v1403
      %v1548 = vunpack.c.l.b16 %v1404
      %v1549 = vunpack.c.l.b16 %v1405
      %v1550 = vunpack.c.l.b16 %v1406
      %v1551 = vunpack.c.l.b16 %v1407
      %v1552 = vunpack.c.l.b16 %v1408
      %v1553 = vunpack.c.l.b16 %v1409
      %v1554 = vunpack.c.l.b16 %v1410
      %v1555 = vunpack.c.l.b16 %v1411
      %v1556 = vunpack.c.l.b16 %v1412
      %v1557 = vunpack.c.l.b16 %v1413
      %v1558 = vunpack.c.l.b16 %v1414
      %v1559 = vunpack.c.l.b16 %v1415
      %v1560 = vunpack.c.l.b16 %v1416
      %v1561 = vunpack.c.l.b16 %v1417
      %v1562 = vunpack.c.l.b16 %v1418
      %v1563 = vunpack.c.l.b16 %v1419
      %v1564 = vunpack.c.l.b16 %v1420
      %v1565 = vunpack.c.l.b16 %v1421
      %v1566 = vunpack.c.l.b16 %v1422
      %v1567 = vunpack.c.l.b16 %v1423
      %v1568 = vunpack.c.l.b16 %v1424
      %v1569 = vunpack.c.l.b16 %v1425
      %v1570 = vunpack.c.l.b16 %v1426
      %v1571 = vunpack.c.l.b16 %v1427
      %v1572 = vunpack.c.l.b16 %v1428
      %v1573 = vunpack.c.l.b16 %v1429
      %v1574 = vunpack.c.l.b16 %v1430
      %v1575 = vunpack.c.l.b16 %v1431
      %v1576 = vunpack.c.l.b16 %v1432
      %v1577 = vunpack.c.l.b16 %v1433
      %v1578 = vunpack.c.l.b16 %v1434
      %v1579 = vunpack.c.l.b16 %v1435
      %v1580 = vunpack.c.l.b16 %v1436
      %v1581 = vunpack.c.l.b16 %v1437
      %v1582 = vunpack.c.l.b16 %v1438
      %v1583 = vunpack.c.l.b16 %v1439
      %v1584 = vunpack.c.l.b16 %v1440
      %v1585 = vunpack.c.l.b16 %v1441
      %v1586 = vunpack.c.l.b16 %v1442
      %v1587 = vunpack.c.l.b16 %v1443
      %v1588 = vunpack.c.l.b16 %v1444
      %v1589 = vunpack.c.l.b16 %v1445
      %v1590 = vunpack.c.l.b16 %v1446
      %v1591 = vunpack.c.l.b16 %v1447
      %v1592 = vunpack.c.l.b16 %v1448
      %v1593 = vpack.c.b16 %v1522, %v1521
      %v1594 = vpack.c.b16 %v1523, %v1523
      %v1595 = vpack.c.b16 %v1525, %v1524
      %v1596 = vpack.c.b16 %v1526, %v1526
      %v1597 = vpack.c.b16 %v1528, %v1527
      %v1598 = vpack.c.b16 %v1529, %v1529
      %v1599 = vpack.c.b16 %v1531, %v1530
      %v1600 = vpack.c.b16 %v1532, %v1532
      %v1601 = vpack.c.b16 %v1534, %v1533
      %v1602 = vpack.c.b16 %v1535, %v1535
      %v1603 = vpack.c.b16 %v1537, %v1536
      %v1604 = vpack.c.b16 %v1538, %v1538
      %v1605 = vpack.c.b16 %v1540, %v1539
      %v1606 = vpack.c.b16 %v1541, %v1541
      %v1607 = vpack.c.b16 %v1543, %v1542
      %v1608 = vpack.c.b16 %v1544, %v1544
      %v1609 = vpack.c.b16 %v1546, %v1545
      %v1610 = vpack.c.b16 %v1547, %v1547
      %v1611 = vpack.c.b16 %v1549, %v1548
      %v1612 = vpack.c.b16 %v1550, %v1550
      %v1613 = vpack.c.b16 %v1552, %v1551
      %v1614 = vpack.c.b16 %v1553, %v1553
      %v1615 = vpack.c.b16 %v1555, %v1554
      %v1616 = vpack.c.b16 %v1556, %v1556
      %v1617 = vpack.c.b16 %v1558, %v1557
      %v1618 = vpack.c.b16 %v1559, %v1559
      %v1619 = vpack.c.b16 %v1561, %v1560
      %v1620 = vpack.c.b16 %v1562, %v1562
      %v1621 = vpack.c.b16 %v1564, %v1563
      %v1622 = vpack.c.b16 %v1565, %v1565
      %v1623 = vpack.c.b16 %v1567, %v1566
      %v1624 = vpack.c.b16 %v1568, %v1568
      %v1625 = vpack.c.b16 %v1570, %v1569
      %v1626 = vpack.c.b16 %v1571, %v1571
      %v1627 = vpack.c.b16 %v1573, %v1572
      %v1628 = vpack.c.b16 %v1574, %v1574
      %v1629 = vpack.c.b16 %v1576, %v1575
      %v1630 = vpack.c.b16 %v1577, %v1577
      %v1631 = vpack.c.b16 %v1579, %v1578
      %v1632 = vpack.c.b16 %v1580, %v1580
      %v1633 = vpack.c.b16 %v1582, %v1581
      %v1634 = vpack.c.b16 %v1583, %v1583
      %v1635 = vpack.c.b16 %v1585, %v1584
      %v1636 = vpack.c.b16 %v1586, %v1586
      %v1637 = vpack.c.b16 %v1588, %v1587
      %v1638 = vpack.c.b16 %v1589, %v1589
      %v1639 = vpack.c.b16 %v1591, %v1590
      %v1640 = vpack.c.b16 %v1592, %v1592
      %vm1641 = vsmask.f32 6400
      %v1643 = vshrl.u32 %v1593, 16
      %v1645 = vrot.slane %v1643, 1
      %v1646 = vshll.u32 %v1593, 16
      %v1648 = vrot.slane %v1646, 2
      %v1649 = vor.u32 %v1645, %v1648
      %v1651 = vshrl.u32 %v1594, 16
      %v1653 = vrot.slane %v1651, 1
      %v1654 = vshll.u32 %v1594, 16
      %v1656 = vrot.slane %v1654, 2
      %v1657 = vor.u32 %v1653, %v1656
      %v1658 = vsel %vm1641, %v1649, %v1657
      %v1660 = vshrl.u32 %v1595, 16
      %v1662 = vrot.slane %v1660, 1
      %v1663 = vshll.u32 %v1595, 16
      %v1665 = vrot.slane %v1663, 2
      %v1666 = vor.u32 %v1662, %v1665
      %v1668 = vshrl.u32 %v1596, 16
      %v1670 = vrot.slane %v1668, 1
      %v1671 = vshll.u32 %v1596, 16
      %v1673 = vrot.slane %v1671, 2
      %v1674 = vor.u32 %v1670, %v1673
      %v1675 = vsel %vm1641, %v1666, %v1674
      %v1677 = vshrl.u32 %v1597, 16
      %v1679 = vrot.slane %v1677, 1
      %v1680 = vshll.u32 %v1597, 16
      %v1682 = vrot.slane %v1680, 2
      %v1683 = vor.u32 %v1679, %v1682
      %v1685 = vshrl.u32 %v1598, 16
      %v1687 = vrot.slane %v1685, 1
      %v1688 = vshll.u32 %v1598, 16
      %v1690 = vrot.slane %v1688, 2
      %v1691 = vor.u32 %v1687, %v1690
      %v1692 = vsel %vm1641, %v1683, %v1691
      %v1694 = vshrl.u32 %v1599, 16
      %v1696 = vrot.slane %v1694, 1
      %v1697 = vshll.u32 %v1599, 16
      %v1699 = vrot.slane %v1697, 2
      %v1700 = vor.u32 %v1696, %v1699
      %v1702 = vshrl.u32 %v1600, 16
      %v1704 = vrot.slane %v1702, 1
      %v1705 = vshll.u32 %v1600, 16
      %v1707 = vrot.slane %v1705, 2
      %v1708 = vor.u32 %v1704, %v1707
      %v1709 = vsel %vm1641, %v1700, %v1708
      %v1711 = vshrl.u32 %v1601, 16
      %v1713 = vrot.slane %v1711, 1
      %v1714 = vshll.u32 %v1601, 16
      %v1716 = vrot.slane %v1714, 2
      %v1717 = vor.u32 %v1713, %v1716
      %v1719 = vshrl.u32 %v1602, 16
      %v1721 = vrot.slane %v1719, 1
      %v1722 = vshll.u32 %v1602, 16
      %v1724 = vrot.slane %v1722, 2
      %v1725 = vor.u32 %v1721, %v1724
      %v1726 = vsel %vm1641, %v1717, %v1725
      %v1728 = vshrl.u32 %v1603, 16
      %v1730 = vrot.slane %v1728, 1
      %v1731 = vshll.u32 %v1603, 16
      %v1733 = vrot.slane %v1731, 2
      %v1734 = vor.u32 %v1730, %v1733
      %v1736 = vshrl.u32 %v1604, 16
      %v1738 = vrot.slane %v1736, 1
      %v1739 = vshll.u32 %v1604, 16
      %v1741 = vrot.slane %v1739, 2
      %v1742 = vor.u32 %v1738, %v1741
      %v1743 = vsel %vm1641, %v1734, %v1742
      %v1745 = vshrl.u32 %v1605, 16
      %v1747 = vrot.slane %v1745, 1
      %v1748 = vshll.u32 %v1605, 16
      %v1750 = vrot.slane %v1748, 2
      %v1751 = vor.u32 %v1747, %v1750
      %v1753 = vshrl.u32 %v1606, 16
      %v1755 = vrot.slane %v1753, 1
      %v1756 = vshll.u32 %v1606, 16
      %v1758 = vrot.slane %v1756, 2
      %v1759 = vor.u32 %v1755, %v1758
      %v1760 = vsel %vm1641, %v1751, %v1759
      %v1762 = vshrl.u32 %v1607, 16
      %v1764 = vrot.slane %v1762, 1
      %v1765 = vshll.u32 %v1607, 16
      %v1767 = vrot.slane %v1765, 2
      %v1768 = vor.u32 %v1764, %v1767
      %v1770 = vshrl.u32 %v1608, 16
      %v1772 = vrot.slane %v1770, 1
      %v1773 = vshll.u32 %v1608, 16
      %v1775 = vrot.slane %v1773, 2
      %v1776 = vor.u32 %v1772, %v1775
      %v1777 = vsel %vm1641, %v1768, %v1776
      %v1779 = vshrl.u32 %v1609, 16
      %v1781 = vrot.slane %v1779, 1
      %v1782 = vshll.u32 %v1609, 16
      %v1784 = vrot.slane %v1782, 2
      %v1785 = vor.u32 %v1781, %v1784
      %v1787 = vshrl.u32 %v1610, 16
      %v1789 = vrot.slane %v1787, 1
      %v1790 = vshll.u32 %v1610, 16
      %v1792 = vrot.slane %v1790, 2
      %v1793 = vor.u32 %v1789, %v1792
      %v1794 = vsel %vm1641, %v1785, %v1793
      %v1796 = vshrl.u32 %v1611, 16
      %v1798 = vrot.slane %v1796, 1
      %v1799 = vshll.u32 %v1611, 16
      %v1801 = vrot.slane %v1799, 2
      %v1802 = vor.u32 %v1798, %v1801
      %v1804 = vshrl.u32 %v1612, 16
      %v1806 = vrot.slane %v1804, 1
      %v1807 = vshll.u32 %v1612, 16
      %v1809 = vrot.slane %v1807, 2
      %v1810 = vor.u32 %v1806, %v1809
      %v1811 = vsel %vm1641, %v1802, %v1810
      %v1813 = vshrl.u32 %v1613, 16
      %v1815 = vrot.slane %v1813, 1
      %v1816 = vshll.u32 %v1613, 16
      %v1818 = vrot.slane %v1816, 2
      %v1819 = vor.u32 %v1815, %v1818
      %v1821 = vshrl.u32 %v1614, 16
      %v1823 = vrot.slane %v1821, 1
      %v1824 = vshll.u32 %v1614, 16
      %v1826 = vrot.slane %v1824, 2
      %v1827 = vor.u32 %v1823, %v1826
      %v1828 = vsel %vm1641, %v1819, %v1827
      %v1830 = vshrl.u32 %v1615, 16
      %v1832 = vrot.slane %v1830, 1
      %v1833 = vshll.u32 %v1615, 16
      %v1835 = vrot.slane %v1833, 2
      %v1836 = vor.u32 %v1832, %v1835
      %v1838 = vshrl.u32 %v1616, 16
      %v1840 = vrot.slane %v1838, 1
      %v1841 = vshll.u32 %v1616, 16
      %v1843 = vrot.slane %v1841, 2
      %v1844 = vor.u32 %v1840, %v1843
      %v1845 = vsel %vm1641, %v1836, %v1844
      %v1847 = vshrl.u32 %v1617, 16
      %v1849 = vrot.slane %v1847, 1
      %v1850 = vshll.u32 %v1617, 16
      %v1852 = vrot.slane %v1850, 2
      %v1853 = vor.u32 %v1849, %v1852
      %v1855 = vshrl.u32 %v1618, 16
      %v1857 = vrot.slane %v1855, 1
      %v1858 = vshll.u32 %v1618, 16
      %v1860 = vrot.slane %v1858, 2
      %v1861 = vor.u32 %v1857, %v1860
      %v1862 = vsel %vm1641, %v1853, %v1861
      %v1864 = vshrl.u32 %v1619, 16
      %v1866 = vrot.slane %v1864, 1
      %v1867 = vshll.u32 %v1619, 16
      %v1869 = vrot.slane %v1867, 2
      %v1870 = vor.u32 %v1866, %v1869
      %v1872 = vshrl.u32 %v1620, 16
      %v1874 = vrot.slane %v1872, 1
      %v1875 = vshll.u32 %v1620, 16
      %v1877 = vrot.slane %v1875, 2
      %v1878 = vor.u32 %v1874, %v1877
      %v1879 = vsel %vm1641, %v1870, %v1878
      %v1881 = vshrl.u32 %v1621, 16
      %v1883 = vrot.slane %v1881, 1
      %v1884 = vshll.u32 %v1621, 16
      %v1886 = vrot.slane %v1884, 2
      %v1887 = vor.u32 %v1883, %v1886
      %v1889 = vshrl.u32 %v1622, 16
      %v1891 = vrot.slane %v1889, 1
      %v1892 = vshll.u32 %v1622, 16
      %v1894 = vrot.slane %v1892, 2
      %v1895 = vor.u32 %v1891, %v1894
      %v1896 = vsel %vm1641, %v1887, %v1895
      %v1898 = vshrl.u32 %v1623, 16
      %v1900 = vrot.slane %v1898, 1
      %v1901 = vshll.u32 %v1623, 16
      %v1903 = vrot.slane %v1901, 2
      %v1904 = vor.u32 %v1900, %v1903
      %v1906 = vshrl.u32 %v1624, 16
      %v1908 = vrot.slane %v1906, 1
      %v1909 = vshll.u32 %v1624, 16
      %v1911 = vrot.slane %v1909, 2
      %v1912 = vor.u32 %v1908, %v1911
      %v1913 = vsel %vm1641, %v1904, %v1912
      %v1915 = vshrl.u32 %v1625, 16
      %v1917 = vrot.slane %v1915, 1
      %v1918 = vshll.u32 %v1625, 16
      %v1920 = vrot.slane %v1918, 2
      %v1921 = vor.u32 %v1917, %v1920
      %v1923 = vshrl.u32 %v1626, 16
      %v1925 = vrot.slane %v1923, 1
      %v1926 = vshll.u32 %v1626, 16
      %v1928 = vrot.slane %v1926, 2
      %v1929 = vor.u32 %v1925, %v1928
      %v1930 = vsel %vm1641, %v1921, %v1929
      %v1932 = vshrl.u32 %v1627, 16
      %v1934 = vrot.slane %v1932, 1
      %v1935 = vshll.u32 %v1627, 16
      %v1937 = vrot.slane %v1935, 2
      %v1938 = vor.u32 %v1934, %v1937
      %v1940 = vshrl.u32 %v1628, 16
      %v1942 = vrot.slane %v1940, 1
      %v1943 = vshll.u32 %v1628, 16
      %v1945 = vrot.slane %v1943, 2
      %v1946 = vor.u32 %v1942, %v1945
      %v1947 = vsel %vm1641, %v1938, %v1946
      %v1949 = vshrl.u32 %v1629, 16
      %v1951 = vrot.slane %v1949, 1
      %v1952 = vshll.u32 %v1629, 16
      %v1954 = vrot.slane %v1952, 2
      %v1955 = vor.u32 %v1951, %v1954
      %v1957 = vshrl.u32 %v1630, 16
      %v1959 = vrot.slane %v1957, 1
      %v1960 = vshll.u32 %v1630, 16
      %v1962 = vrot.slane %v1960, 2
      %v1963 = vor.u32 %v1959, %v1962
      %v1964 = vsel %vm1641, %v1955, %v1963
      %v1966 = vshrl.u32 %v1631, 16
      %v1968 = vrot.slane %v1966, 1
      %v1969 = vshll.u32 %v1631, 16
      %v1971 = vrot.slane %v1969, 2
      %v1972 = vor.u32 %v1968, %v1971
      %v1974 = vshrl.u32 %v1632, 16
      %v1976 = vrot.slane %v1974, 1
      %v1977 = vshll.u32 %v1632, 16
      %v1979 = vrot.slane %v1977, 2
      %v1980 = vor.u32 %v1976, %v1979
      %v1981 = vsel %vm1641, %v1972, %v1980
      %v1983 = vshrl.u32 %v1633, 16
      %v1985 = vrot.slane %v1983, 1
      %v1986 = vshll.u32 %v1633, 16
      %v1988 = vrot.slane %v1986, 2
      %v1989 = vor.u32 %v1985, %v1988
      %v1991 = vshrl.u32 %v1634, 16
      %v1993 = vrot.slane %v1991, 1
      %v1994 = vshll.u32 %v1634, 16
      %v1996 = vrot.slane %v1994, 2
      %v1997 = vor.u32 %v1993, %v1996
      %v1998 = vsel %vm1641, %v1989, %v1997
      %v2000 = vshrl.u32 %v1635, 16
      %v2002 = vrot.slane %v2000, 1
      %v2003 = vshll.u32 %v1635, 16
      %v2005 = vrot.slane %v2003, 2
      %v2006 = vor.u32 %v2002, %v2005
      %v2008 = vshrl.u32 %v1636, 16
      %v2010 = vrot.slane %v2008, 1
      %v2011 = vshll.u32 %v1636, 16
      %v2013 = vrot.slane %v2011, 2
      %v2014 = vor.u32 %v2010, %v2013
      %v2015 = vsel %vm1641, %v2006, %v2014
      %v2017 = vshrl.u32 %v1637, 16
      %v2019 = vrot.slane %v2017, 1
      %v2020 = vshll.u32 %v1637, 16
      %v2022 = vrot.slane %v2020, 2
      %v2023 = vor.u32 %v2019, %v2022
      %v2025 = vshrl.u32 %v1638, 16
      %v2027 = vrot.slane %v2025, 1
      %v2028 = vshll.u32 %v1638, 16
      %v2030 = vrot.slane %v2028, 2
      %v2031 = vor.u32 %v2027, %v2030
      %v2032 = vsel %vm1641, %v2023, %v2031
      %v2034 = vshrl.u32 %v1639, 16
      %v2036 = vrot.slane %v2034, 1
      %v2037 = vshll.u32 %v1639, 16
      %v2039 = vrot.slane %v2037, 2
      %v2040 = vor.u32 %v2036, %v2039
      %v2042 = vshrl.u32 %v1640, 16
      %v2044 = vrot.slane %v2042, 1
      %v2045 = vshll.u32 %v1640, 16
      %v2047 = vrot.slane %v2045, 2
      %v2048 = vor.u32 %v2044, %v2047
      %v2049 = vsel %vm1641, %v2040, %v2048
      %s2074 = scalar_lea.vmem [#allocation2], 576
      %2075 = vst.msk [vmem:[%s2074] sm:$0xff] %vm364, %v1658
      %2076 = vst.msk [vmem:[%s2074 + $0x8] sm:$0xff] %vm364, %v1675
      %2077 = vst.msk [vmem:[%s2074 + $0x10] sm:$0xff] %vm364, %v1692
      %2078 = vst.msk [vmem:[%s2074 + $0x18] sm:$0xff] %vm364, %v1709
      %2079 = vst.msk [vmem:[%s2074 + $0x20] sm:$0xff] %vm364, %v1726
      %2080 = vst.msk [vmem:[%s2074 + $0x28] sm:$0xff] %vm364, %v1743
      %2081 = vst.msk [vmem:[%s2074 + $0x30] sm:$0xff] %vm364, %v1760
      %2082 = vst.msk [vmem:[%s2074 + $0x38] sm:$0xff] %vm364, %v1777
      %2083 = vst.msk [vmem:[%s2074 + $0x40] sm:$0xff] %vm364, %v1794
      %2084 = vst.msk [vmem:[%s2074 + $0x48] sm:$0xff] %vm364, %v1811
      %2085 = vst.msk [vmem:[%s2074 + $0x50] sm:$0xff] %vm364, %v1828
      %2086 = vst.msk [vmem:[%s2074 + $0x58] sm:$0xff] %vm364, %v1845
      %2087 = vst.msk [vmem:[%s2074 + $0x60] sm:$0xff] %vm364, %v1862
      %2088 = vst.msk [vmem:[%s2074 + $0x68] sm:$0xff] %vm364, %v1879
      %2089 = vst.msk [vmem:[%s2074 + $0x70] sm:$0xff] %vm364, %v1896
      %2090 = vst.msk [vmem:[%s2074 + $0x78] sm:$0xff] %vm364, %v1913
      %2091 = vst.msk [vmem:[%s2074 + $0x80] sm:$0xff] %vm364, %v1930
      %2092 = vst.msk [vmem:[%s2074 + $0x88] sm:$0xff] %vm364, %v1947
      %2093 = vst.msk [vmem:[%s2074 + $0x90] sm:$0xff] %vm364, %v1964
      %2094 = vst.msk [vmem:[%s2074 + $0x98] sm:$0xff] %vm364, %v1981
      %2095 = vst.msk [vmem:[%s2074 + $0xa0] sm:$0xff] %vm364, %v1998
      %2096 = vst.msk [vmem:[%s2074 + $0xa8] sm:$0xff] %vm364, %v2015
      %2097 = vst.msk [vmem:[%s2074 + $0xb0] sm:$0xff] %vm364, %v2032
      %2098 = vst.msk [vmem:[%s2074 + $0xb8] sm:$0xff] %vm364, %v2049
      %v2099 = vld [vmem:[%s165] sm:$0xc]
      %v2100 = vld [vmem:[%s165 + $0x4] sm:$0xf]
      %v2101 = vld [vmem:[%s165 + $0x8] sm:$0x3]
      %v2102 = vld [vmem:[%s165 + $0xc] sm:$0xc]
      %v2103 = vld [vmem:[%s165 + $0x10] sm:$0xf]
      %v2104 = vld [vmem:[%s165 + $0x14] sm:$0x3]
      %v2105 = vld [vmem:[%s165 + $0x18] sm:$0xc]
      %v2106 = vld [vmem:[%s165 + $0x1c] sm:$0xf]
      %v2107 = vld [vmem:[%s165 + $0x20] sm:$0x3]
      %v2108 = vld [vmem:[%s165 + $0x24] sm:$0xc]
      %v2109 = vld [vmem:[%s165 + $0x28] sm:$0xf]
      %v2110 = vld [vmem:[%s165 + $0x2c] sm:$0x3]
      %v2111 = vld [vmem:[%s165 + $0x30] sm:$0xc]
      %v2112 = vld [vmem:[%s165 + $0x34] sm:$0xf]
      %v2113 = vld [vmem:[%s165 + $0x38] sm:$0x3]
      %v2114 = vld [vmem:[%s165 + $0x3c] sm:$0xc]
      %v2115 = vld [vmem:[%s165 + $0x40] sm:$0xf]
      %v2116 = vld [vmem:[%s165 + $0x44] sm:$0x3]
      %v2117 = vld [vmem:[%s165 + $0x48] sm:$0xc]
      %v2118 = vld [vmem:[%s165 + $0x4c] sm:$0xf]
      %v2119 = vld [vmem:[%s165 + $0x50] sm:$0x3]
      %v2120 = vld [vmem:[%s165 + $0x54] sm:$0xc]
      %v2121 = vld [vmem:[%s165 + $0x58] sm:$0xf]
      %v2122 = vld [vmem:[%s165 + $0x5c] sm:$0x3]
      %v2123 = vld [vmem:[%s165 + $0x60] sm:$0xc]
      %v2124 = vld [vmem:[%s165 + $0x64] sm:$0xf]
      %v2125 = vld [vmem:[%s165 + $0x68] sm:$0x3]
      %v2126 = vld [vmem:[%s165 + $0x6c] sm:$0xc]
      %v2127 = vld [vmem:[%s165 + $0x70] sm:$0xf]
      %v2128 = vld [vmem:[%s165 + $0x74] sm:$0x3]
      %v2129 = vld [vmem:[%s165 + $0x78] sm:$0xc]
      %v2130 = vld [vmem:[%s165 + $0x7c] sm:$0xf]
      %v2131 = vld [vmem:[%s165 + $0x80] sm:$0x3]
      %v2132 = vld [vmem:[%s165 + $0x84] sm:$0xc]
      %v2133 = vld [vmem:[%s165 + $0x88] sm:$0xf]
      %v2134 = vld [vmem:[%s165 + $0x8c] sm:$0x3]
      %v2135 = vld [vmem:[%s165 + $0x90] sm:$0xc]
      %v2136 = vld [vmem:[%s165 + $0x94] sm:$0xf]
      %v2137 = vld [vmem:[%s165 + $0x98] sm:$0x3]
      %v2138 = vld [vmem:[%s165 + $0x9c] sm:$0xc]
      %v2139 = vld [vmem:[%s165 + $0xa0] sm:$0xf]
      %v2140 = vld [vmem:[%s165 + $0xa4] sm:$0x3]
      %v2141 = vld [vmem:[%s165 + $0xa8] sm:$0xc]
      %v2142 = vld [vmem:[%s165 + $0xac] sm:$0xf]
      %v2143 = vld [vmem:[%s165 + $0xb0] sm:$0x3]
      %v2144 = vld [vmem:[%s165 + $0xb4] sm:$0xc]
      %v2145 = vld [vmem:[%s165 + $0xb8] sm:$0xf]
      %v2146 = vld [vmem:[%s165 + $0xbc] sm:$0x3]
      %v2147 = vld [vmem:[%s165 + $0xc0] sm:$0xc]
      %v2148 = vld [vmem:[%s165 + $0xc4] sm:$0xf]
      %v2149 = vld [vmem:[%s165 + $0xc8] sm:$0x3]
      %v2150 = vld [vmem:[%s165 + $0xcc] sm:$0xc]
      %v2151 = vld [vmem:[%s165 + $0xd0] sm:$0xf]
      %v2152 = vld [vmem:[%s165 + $0xd4] sm:$0x3]
      %v2153 = vld [vmem:[%s165 + $0xd8] sm:$0xc]
      %v2154 = vld [vmem:[%s165 + $0xdc] sm:$0xf]
      %v2155 = vld [vmem:[%s165 + $0xe0] sm:$0x3]
      %v2156 = vld [vmem:[%s165 + $0xe4] sm:$0xc]
      %v2157 = vld [vmem:[%s165 + $0xe8] sm:$0xf]
      %v2158 = vld [vmem:[%s165 + $0xec] sm:$0x3]
      %v2159 = vld [vmem:[%s165 + $0xf0] sm:$0xc]
      %v2160 = vld [vmem:[%s165 + $0xf4] sm:$0xf]
      %v2161 = vld [vmem:[%s165 + $0xf8] sm:$0x3]
      %v2162 = vld [vmem:[%s165 + $0xfc] sm:$0xc]
      %v2163 = vld [vmem:[%s165 + $0x100] sm:$0xf]
      %v2164 = vld [vmem:[%s165 + $0x104] sm:$0x3]
      %v2165 = vld [vmem:[%s165 + $0x108] sm:$0xc]
      %v2166 = vld [vmem:[%s165 + $0x10c] sm:$0xf]
      %v2167 = vld [vmem:[%s165 + $0x110] sm:$0x3]
      %v2168 = vld [vmem:[%s165 + $0x114] sm:$0xc]
      %v2169 = vld [vmem:[%s165 + $0x118] sm:$0xf]
      %v2170 = vld [vmem:[%s165 + $0x11c] sm:$0x3]
      %v2243 = vunpack.c.l.b16 %v2099
      %v2244 = vunpack.c.l.b16 %v2100
      %v2245 = vunpack.c.l.b16 %v2101
      %v2246 = vunpack.c.l.b16 %v2102
      %v2247 = vunpack.c.l.b16 %v2103
      %v2248 = vunpack.c.l.b16 %v2104
      %v2249 = vunpack.c.l.b16 %v2105
      %v2250 = vunpack.c.l.b16 %v2106
      %v2251 = vunpack.c.l.b16 %v2107
      %v2252 = vunpack.c.l.b16 %v2108
      %v2253 = vunpack.c.l.b16 %v2109
      %v2254 = vunpack.c.l.b16 %v2110
      %v2255 = vunpack.c.l.b16 %v2111
      %v2256 = vunpack.c.l.b16 %v2112
      %v2257 = vunpack.c.l.b16 %v2113
      %v2258 = vunpack.c.l.b16 %v2114
      %v2259 = vunpack.c.l.b16 %v2115
      %v2260 = vunpack.c.l.b16 %v2116
      %v2261 = vunpack.c.l.b16 %v2117
      %v2262 = vunpack.c.l.b16 %v2118
      %v2263 = vunpack.c.l.b16 %v2119
      %v2264 = vunpack.c.l.b16 %v2120
      %v2265 = vunpack.c.l.b16 %v2121
      %v2266 = vunpack.c.l.b16 %v2122
      %v2267 = vunpack.c.l.b16 %v2123
      %v2268 = vunpack.c.l.b16 %v2124
      %v2269 = vunpack.c.l.b16 %v2125
      %v2270 = vunpack.c.l.b16 %v2126
      %v2271 = vunpack.c.l.b16 %v2127
      %v2272 = vunpack.c.l.b16 %v2128
      %v2273 = vunpack.c.l.b16 %v2129
      %v2274 = vunpack.c.l.b16 %v2130
      %v2275 = vunpack.c.l.b16 %v2131
      %v2276 = vunpack.c.l.b16 %v2132
      %v2277 = vunpack.c.l.b16 %v2133
      %v2278 = vunpack.c.l.b16 %v2134
      %v2279 = vunpack.c.l.b16 %v2135
      %v2280 = vunpack.c.l.b16 %v2136
      %v2281 = vunpack.c.l.b16 %v2137
      %v2282 = vunpack.c.l.b16 %v2138
      %v2283 = vunpack.c.l.b16 %v2139
      %v2284 = vunpack.c.l.b16 %v2140
      %v2285 = vunpack.c.l.b16 %v2141
      %v2286 = vunpack.c.l.b16 %v2142
      %v2287 = vunpack.c.l.b16 %v2143
      %v2288 = vunpack.c.l.b16 %v2144
      %v2289 = vunpack.c.l.b16 %v2145
      %v2290 = vunpack.c.l.b16 %v2146
      %v2291 = vunpack.c.l.b16 %v2147
      %v2292 = vunpack.c.l.b16 %v2148
      %v2293 = vunpack.c.l.b16 %v2149
      %v2294 = vunpack.c.l.b16 %v2150
      %v2295 = vunpack.c.l.b16 %v2151
      %v2296 = vunpack.c.l.b16 %v2152
      %v2297 = vunpack.c.l.b16 %v2153
      %v2298 = vunpack.c.l.b16 %v2154
      %v2299 = vunpack.c.l.b16 %v2155
      %v2300 = vunpack.c.l.b16 %v2156
      %v2301 = vunpack.c.l.b16 %v2157
      %v2302 = vunpack.c.l.b16 %v2158
      %v2303 = vunpack.c.l.b16 %v2159
      %v2304 = vunpack.c.l.b16 %v2160
      %v2305 = vunpack.c.l.b16 %v2161
      %v2306 = vunpack.c.l.b16 %v2162
      %v2307 = vunpack.c.l.b16 %v2163
      %v2308 = vunpack.c.l.b16 %v2164
      %v2309 = vunpack.c.l.b16 %v2165
      %v2310 = vunpack.c.l.b16 %v2166
      %v2311 = vunpack.c.l.b16 %v2167
      %v2312 = vunpack.c.l.b16 %v2168
      %v2313 = vunpack.c.l.b16 %v2169
      %v2314 = vunpack.c.l.b16 %v2170
      %v2315 = vpack.c.b16 %v2244, %v2243
      %v2316 = vpack.c.b16 %v2245, %v2245
      %v2317 = vpack.c.b16 %v2247, %v2246
      %v2318 = vpack.c.b16 %v2248, %v2248
      %v2319 = vpack.c.b16 %v2250, %v2249
      %v2320 = vpack.c.b16 %v2251, %v2251
      %v2321 = vpack.c.b16 %v2253, %v2252
      %v2322 = vpack.c.b16 %v2254, %v2254
      %v2323 = vpack.c.b16 %v2256, %v2255
      %v2324 = vpack.c.b16 %v2257, %v2257
      %v2325 = vpack.c.b16 %v2259, %v2258
      %v2326 = vpack.c.b16 %v2260, %v2260
      %v2327 = vpack.c.b16 %v2262, %v2261
      %v2328 = vpack.c.b16 %v2263, %v2263
      %v2329 = vpack.c.b16 %v2265, %v2264
      %v2330 = vpack.c.b16 %v2266, %v2266
      %v2331 = vpack.c.b16 %v2268, %v2267
      %v2332 = vpack.c.b16 %v2269, %v2269
      %v2333 = vpack.c.b16 %v2271, %v2270
      %v2334 = vpack.c.b16 %v2272, %v2272
      %v2335 = vpack.c.b16 %v2274, %v2273
      %v2336 = vpack.c.b16 %v2275, %v2275
      %v2337 = vpack.c.b16 %v2277, %v2276
      %v2338 = vpack.c.b16 %v2278, %v2278
      %v2339 = vpack.c.b16 %v2280, %v2279
      %v2340 = vpack.c.b16 %v2281, %v2281
      %v2341 = vpack.c.b16 %v2283, %v2282
      %v2342 = vpack.c.b16 %v2284, %v2284
      %v2343 = vpack.c.b16 %v2286, %v2285
      %v2344 = vpack.c.b16 %v2287, %v2287
      %v2345 = vpack.c.b16 %v2289, %v2288
      %v2346 = vpack.c.b16 %v2290, %v2290
      %v2347 = vpack.c.b16 %v2292, %v2291
      %v2348 = vpack.c.b16 %v2293, %v2293
      %v2349 = vpack.c.b16 %v2295, %v2294
      %v2350 = vpack.c.b16 %v2296, %v2296
      %v2351 = vpack.c.b16 %v2298, %v2297
      %v2352 = vpack.c.b16 %v2299, %v2299
      %v2353 = vpack.c.b16 %v2301, %v2300
      %v2354 = vpack.c.b16 %v2302, %v2302
      %v2355 = vpack.c.b16 %v2304, %v2303
      %v2356 = vpack.c.b16 %v2305, %v2305
      %v2357 = vpack.c.b16 %v2307, %v2306
      %v2358 = vpack.c.b16 %v2308, %v2308
      %v2359 = vpack.c.b16 %v2310, %v2309
      %v2360 = vpack.c.b16 %v2311, %v2311
      %v2361 = vpack.c.b16 %v2313, %v2312
      %v2362 = vpack.c.b16 %v2314, %v2314
      %vm2363 = vcmask 1045504
      %v2364 = vrot.slane %v2315, 2
      %v2365 = vrot.slane %v2316, 2
      %v2366 = vsel %vm2363, %v2364, %v2365
      %v2367 = vrot.slane %v2317, 2
      %v2368 = vrot.slane %v2318, 2
      %v2369 = vsel %vm2363, %v2367, %v2368
      %v2370 = vrot.slane %v2319, 2
      %v2371 = vrot.slane %v2320, 2
      %v2372 = vsel %vm2363, %v2370, %v2371
      %v2373 = vrot.slane %v2321, 2
      %v2374 = vrot.slane %v2322, 2
      %v2375 = vsel %vm2363, %v2373, %v2374
      %v2376 = vrot.slane %v2323, 2
      %v2377 = vrot.slane %v2324, 2
      %v2378 = vsel %vm2363, %v2376, %v2377
      %v2379 = vrot.slane %v2325, 2
      %v2380 = vrot.slane %v2326, 2
      %v2381 = vsel %vm2363, %v2379, %v2380
      %v2382 = vrot.slane %v2327, 2
      %v2383 = vrot.slane %v2328, 2
      %v2384 = vsel %vm2363, %v2382, %v2383
      %v2385 = vrot.slane %v2329, 2
      %v2386 = vrot.slane %v2330, 2
      %v2387 = vsel %vm2363, %v2385, %v2386
      %v2388 = vrot.slane %v2331, 2
      %v2389 = vrot.slane %v2332, 2
      %v2390 = vsel %vm2363, %v2388, %v2389
      %v2391 = vrot.slane %v2333, 2
      %v2392 = vrot.slane %v2334, 2
      %v2393 = vsel %vm2363, %v2391, %v2392
      %v2394 = vrot.slane %v2335, 2
      %v2395 = vrot.slane %v2336, 2
      %v2396 = vsel %vm2363, %v2394, %v2395
      %v2397 = vrot.slane %v2337, 2
      %v2398 = vrot.slane %v2338, 2
      %v2399 = vsel %vm2363, %v2397, %v2398
      %v2400 = vrot.slane %v2339, 2
      %v2401 = vrot.slane %v2340, 2
      %v2402 = vsel %vm2363, %v2400, %v2401
      %v2403 = vrot.slane %v2341, 2
      %v2404 = vrot.slane %v2342, 2
      %v2405 = vsel %vm2363, %v2403, %v2404
      %v2406 = vrot.slane %v2343, 2
      %v2407 = vrot.slane %v2344, 2
      %v2408 = vsel %vm2363, %v2406, %v2407
      %v2409 = vrot.slane %v2345, 2
      %v2410 = vrot.slane %v2346, 2
      %v2411 = vsel %vm2363, %v2409, %v2410
      %v2412 = vrot.slane %v2347, 2
      %v2413 = vrot.slane %v2348, 2
      %v2414 = vsel %vm2363, %v2412, %v2413
      %v2415 = vrot.slane %v2349, 2
      %v2416 = vrot.slane %v2350, 2
      %v2417 = vsel %vm2363, %v2415, %v2416
      %v2418 = vrot.slane %v2351, 2
      %v2419 = vrot.slane %v2352, 2
      %v2420 = vsel %vm2363, %v2418, %v2419
      %v2421 = vrot.slane %v2353, 2
      %v2422 = vrot.slane %v2354, 2
      %v2423 = vsel %vm2363, %v2421, %v2422
      %v2424 = vrot.slane %v2355, 2
      %v2425 = vrot.slane %v2356, 2
      %v2426 = vsel %vm2363, %v2424, %v2425
      %v2427 = vrot.slane %v2357, 2
      %v2428 = vrot.slane %v2358, 2
      %v2429 = vsel %vm2363, %v2427, %v2428
      %v2430 = vrot.slane %v2359, 2
      %v2431 = vrot.slane %v2360, 2
      %v2432 = vsel %vm2363, %v2430, %v2431
      %v2433 = vrot.slane %v2361, 2
      %v2434 = vrot.slane %v2362, 2
      %v2435 = vsel %vm2363, %v2433, %v2434
      %s2460 = scalar_lea.vmem [#allocation2], 768
      %2461 = vst.msk [vmem:[%s2460] sm:$0xff] %vm364, %v2366
      %2462 = vst.msk [vmem:[%s2460 + $0x8] sm:$0xff] %vm364, %v2369
      %2463 = vst.msk [vmem:[%s2460 + $0x10] sm:$0xff] %vm364, %v2372
      %2464 = vst.msk [vmem:[%s2460 + $0x18] sm:$0xff] %vm364, %v2375
      %2465 = vst.msk [vmem:[%s2460 + $0x20] sm:$0xff] %vm364, %v2378
      %2466 = vst.msk [vmem:[%s2460 + $0x28] sm:$0xff] %vm364, %v2381
      %2467 = vst.msk [vmem:[%s2460 + $0x30] sm:$0xff] %vm364, %v2384
      %2468 = vst.msk [vmem:[%s2460 + $0x38] sm:$0xff] %vm364, %v2387
      %2469 = vst.msk [vmem:[%s2460 + $0x40] sm:$0xff] %vm364, %v2390
      %2470 = vst.msk [vmem:[%s2460 + $0x48] sm:$0xff] %vm364, %v2393
      %2471 = vst.msk [vmem:[%s2460 + $0x50] sm:$0xff] %vm364, %v2396
      %2472 = vst.msk [vmem:[%s2460 + $0x58] sm:$0xff] %vm364, %v2399
      %2473 = vst.msk [vmem:[%s2460 + $0x60] sm:$0xff] %vm364, %v2402
      %2474 = vst.msk [vmem:[%s2460 + $0x68] sm:$0xff] %vm364, %v2405
      %2475 = vst.msk [vmem:[%s2460 + $0x70] sm:$0xff] %vm364, %v2408
      %2476 = vst.msk [vmem:[%s2460 + $0x78] sm:$0xff] %vm364, %v2411
      %2477 = vst.msk [vmem:[%s2460 + $0x80] sm:$0xff] %vm364, %v2414
      %2478 = vst.msk [vmem:[%s2460 + $0x88] sm:$0xff] %vm364, %v2417
      %2479 = vst.msk [vmem:[%s2460 + $0x90] sm:$0xff] %vm364, %v2420
      %2480 = vst.msk [vmem:[%s2460 + $0x98] sm:$0xff] %vm364, %v2423
      %2481 = vst.msk [vmem:[%s2460 + $0xa0] sm:$0xff] %vm364, %v2426
      %2482 = vst.msk [vmem:[%s2460 + $0xa8] sm:$0xff] %vm364, %v2429
      %2483 = vst.msk [vmem:[%s2460 + $0xb0] sm:$0xff] %vm364, %v2432
      %2484 = vst.msk [vmem:[%s2460 + $0xb8] sm:$0xff] %vm364, %v2435
      %v2485 = vld [vmem:[%s165] sm:$0xc]
      %v2486 = vld [vmem:[%s165 + $0x4] sm:$0xf]
      %v2487 = vld [vmem:[%s165 + $0x8] sm:$0x7]
      %v2488 = vld [vmem:[%s165 + $0xc] sm:$0xc]
      %v2489 = vld [vmem:[%s165 + $0x10] sm:$0xf]
      %v2490 = vld [vmem:[%s165 + $0x14] sm:$0x7]
      %v2491 = vld [vmem:[%s165 + $0x18] sm:$0xc]
      %v2492 = vld [vmem:[%s165 + $0x1c] sm:$0xf]
      %v2493 = vld [vmem:[%s165 + $0x20] sm:$0x7]
      %v2494 = vld [vmem:[%s165 + $0x24] sm:$0xc]
      %v2495 = vld [vmem:[%s165 + $0x28] sm:$0xf]
      %v2496 = vld [vmem:[%s165 + $0x2c] sm:$0x7]
      %v2497 = vld [vmem:[%s165 + $0x30] sm:$0xc]
      %v2498 = vld [vmem:[%s165 + $0x34] sm:$0xf]
      %v2499 = vld [vmem:[%s165 + $0x38] sm:$0x7]
      %v2500 = vld [vmem:[%s165 + $0x3c] sm:$0xc]
      %v2501 = vld [vmem:[%s165 + $0x40] sm:$0xf]
      %v2502 = vld [vmem:[%s165 + $0x44] sm:$0x7]
      %v2503 = vld [vmem:[%s165 + $0x48] sm:$0xc]
      %v2504 = vld [vmem:[%s165 + $0x4c] sm:$0xf]
      %v2505 = vld [vmem:[%s165 + $0x50] sm:$0x7]
      %v2506 = vld [vmem:[%s165 + $0x54] sm:$0xc]
      %v2507 = vld [vmem:[%s165 + $0x58] sm:$0xf]
      %v2508 = vld [vmem:[%s165 + $0x5c] sm:$0x7]
      %v2509 = vld [vmem:[%s165 + $0x60] sm:$0xc]
      %v2510 = vld [vmem:[%s165 + $0x64] sm:$0xf]
      %v2511 = vld [vmem:[%s165 + $0x68] sm:$0x7]
      %v2512 = vld [vmem:[%s165 + $0x6c] sm:$0xc]
      %v2513 = vld [vmem:[%s165 + $0x70] sm:$0xf]
      %v2514 = vld [vmem:[%s165 + $0x74] sm:$0x7]
      %v2515 = vld [vmem:[%s165 + $0x78] sm:$0xc]
      %v2516 = vld [vmem:[%s165 + $0x7c] sm:$0xf]
      %v2517 = vld [vmem:[%s165 + $0x80] sm:$0x7]
      %v2518 = vld [vmem:[%s165 + $0x84] sm:$0xc]
      %v2519 = vld [vmem:[%s165 + $0x88] sm:$0xf]
      %v2520 = vld [vmem:[%s165 + $0x8c] sm:$0x7]
      %v2521 = vld [vmem:[%s165 + $0x90] sm:$0xc]
      %v2522 = vld [vmem:[%s165 + $0x94] sm:$0xf]
      %v2523 = vld [vmem:[%s165 + $0x98] sm:$0x7]
      %v2524 = vld [vmem:[%s165 + $0x9c] sm:$0xc]
      %v2525 = vld [vmem:[%s165 + $0xa0] sm:$0xf]
      %v2526 = vld [vmem:[%s165 + $0xa4] sm:$0x7]
      %v2527 = vld [vmem:[%s165 + $0xa8] sm:$0xc]
      %v2528 = vld [vmem:[%s165 + $0xac] sm:$0xf]
      %v2529 = vld [vmem:[%s165 + $0xb0] sm:$0x7]
      %v2530 = vld [vmem:[%s165 + $0xb4] sm:$0xc]
      %v2531 = vld [vmem:[%s165 + $0xb8] sm:$0xf]
      %v2532 = vld [vmem:[%s165 + $0xbc] sm:$0x7]
      %v2533 = vld [vmem:[%s165 + $0xc0] sm:$0xc]
      %v2534 = vld [vmem:[%s165 + $0xc4] sm:$0xf]
      %v2535 = vld [vmem:[%s165 + $0xc8] sm:$0x7]
      %v2536 = vld [vmem:[%s165 + $0xcc] sm:$0xc]
      %v2537 = vld [vmem:[%s165 + $0xd0] sm:$0xf]
      %v2538 = vld [vmem:[%s165 + $0xd4] sm:$0x7]
      %v2539 = vld [vmem:[%s165 + $0xd8] sm:$0xc]
      %v2540 = vld [vmem:[%s165 + $0xdc] sm:$0xf]
      %v2541 = vld [vmem:[%s165 + $0xe0] sm:$0x7]
      %v2542 = vld [vmem:[%s165 + $0xe4] sm:$0xc]
      %v2543 = vld [vmem:[%s165 + $0xe8] sm:$0xf]
      %v2544 = vld [vmem:[%s165 + $0xec] sm:$0x7]
      %v2545 = vld [vmem:[%s165 + $0xf0] sm:$0xc]
      %v2546 = vld [vmem:[%s165 + $0xf4] sm:$0xf]
      %v2547 = vld [vmem:[%s165 + $0xf8] sm:$0x7]
      %v2548 = vld [vmem:[%s165 + $0xfc] sm:$0xc]
      %v2549 = vld [vmem:[%s165 + $0x100] sm:$0xf]
      %v2550 = vld [vmem:[%s165 + $0x104] sm:$0x7]
      %v2551 = vld [vmem:[%s165 + $0x108] sm:$0xc]
      %v2552 = vld [vmem:[%s165 + $0x10c] sm:$0xf]
      %v2553 = vld [vmem:[%s165 + $0x110] sm:$0x7]
      %v2554 = vld [vmem:[%s165 + $0x114] sm:$0xc]
      %v2555 = vld [vmem:[%s165 + $0x118] sm:$0xf]
      %v2556 = vld [vmem:[%s165 + $0x11c] sm:$0x7]
      %v2629 = vunpack.c.l.b16 %v2485
      %v2630 = vunpack.c.l.b16 %v2486
      %v2631 = vunpack.c.l.b16 %v2487
      %v2632 = vunpack.c.l.b16 %v2488
      %v2633 = vunpack.c.l.b16 %v2489
      %v2634 = vunpack.c.l.b16 %v2490
      %v2635 = vunpack.c.l.b16 %v2491
      %v2636 = vunpack.c.l.b16 %v2492
      %v2637 = vunpack.c.l.b16 %v2493
      %v2638 = vunpack.c.l.b16 %v2494
      %v2639 = vunpack.c.l.b16 %v2495
      %v2640 = vunpack.c.l.b16 %v2496
      %v2641 = vunpack.c.l.b16 %v2497
      %v2642 = vunpack.c.l.b16 %v2498
      %v2643 = vunpack.c.l.b16 %v2499
      %v2644 = vunpack.c.l.b16 %v2500
      %v2645 = vunpack.c.l.b16 %v2501
      %v2646 = vunpack.c.l.b16 %v2502
      %v2647 = vunpack.c.l.b16 %v2503
      %v2648 = vunpack.c.l.b16 %v2504
      %v2649 = vunpack.c.l.b16 %v2505
      %v2650 = vunpack.c.l.b16 %v2506
      %v2651 = vunpack.c.l.b16 %v2507
      %v2652 = vunpack.c.l.b16 %v2508
      %v2653 = vunpack.c.l.b16 %v2509
      %v2654 = vunpack.c.l.b16 %v2510
      %v2655 = vunpack.c.l.b16 %v2511
      %v2656 = vunpack.c.l.b16 %v2512
      %v2657 = vunpack.c.l.b16 %v2513
      %v2658 = vunpack.c.l.b16 %v2514
      %v2659 = vunpack.c.l.b16 %v2515
      %v2660 = vunpack.c.l.b16 %v2516
      %v2661 = vunpack.c.l.b16 %v2517
      %v2662 = vunpack.c.l.b16 %v2518
      %v2663 = vunpack.c.l.b16 %v2519
      %v2664 = vunpack.c.l.b16 %v2520
      %v2665 = vunpack.c.l.b16 %v2521
      %v2666 = vunpack.c.l.b16 %v2522
      %v2667 = vunpack.c.l.b16 %v2523
      %v2668 = vunpack.c.l.b16 %v2524
      %v2669 = vunpack.c.l.b16 %v2525
      %v2670 = vunpack.c.l.b16 %v2526
      %v2671 = vunpack.c.l.b16 %v2527
      %v2672 = vunpack.c.l.b16 %v2528
      %v2673 = vunpack.c.l.b16 %v2529
      %v2674 = vunpack.c.l.b16 %v2530
      %v2675 = vunpack.c.l.b16 %v2531
      %v2676 = vunpack.c.l.b16 %v2532
      %v2677 = vunpack.c.l.b16 %v2533
      %v2678 = vunpack.c.l.b16 %v2534
      %v2679 = vunpack.c.l.b16 %v2535
      %v2680 = vunpack.c.l.b16 %v2536
      %v2681 = vunpack.c.l.b16 %v2537
      %v2682 = vunpack.c.l.b16 %v2538
      %v2683 = vunpack.c.l.b16 %v2539
      %v2684 = vunpack.c.l.b16 %v2540
      %v2685 = vunpack.c.l.b16 %v2541
      %v2686 = vunpack.c.l.b16 %v2542
      %v2687 = vunpack.c.l.b16 %v2543
      %v2688 = vunpack.c.l.b16 %v2544
      %v2689 = vunpack.c.l.b16 %v2545
      %v2690 = vunpack.c.l.b16 %v2546
      %v2691 = vunpack.c.l.b16 %v2547
      %v2692 = vunpack.c.l.b16 %v2548
      %v2693 = vunpack.c.l.b16 %v2549
      %v2694 = vunpack.c.l.b16 %v2550
      %v2695 = vunpack.c.l.b16 %v2551
      %v2696 = vunpack.c.l.b16 %v2552
      %v2697 = vunpack.c.l.b16 %v2553
      %v2698 = vunpack.c.l.b16 %v2554
      %v2699 = vunpack.c.l.b16 %v2555
      %v2700 = vunpack.c.l.b16 %v2556
      %v2701 = vpack.c.b16 %v2630, %v2629
      %v2702 = vpack.c.b16 %v2631, %v2631
      %v2703 = vpack.c.b16 %v2633, %v2632
      %v2704 = vpack.c.b16 %v2634, %v2634
      %v2705 = vpack.c.b16 %v2636, %v2635
      %v2706 = vpack.c.b16 %v2637, %v2637
      %v2707 = vpack.c.b16 %v2639, %v2638
      %v2708 = vpack.c.b16 %v2640, %v2640
      %v2709 = vpack.c.b16 %v2642, %v2641
      %v2710 = vpack.c.b16 %v2643, %v2643
      %v2711 = vpack.c.b16 %v2645, %v2644
      %v2712 = vpack.c.b16 %v2646, %v2646
      %v2713 = vpack.c.b16 %v2648, %v2647
      %v2714 = vpack.c.b16 %v2649, %v2649
      %v2715 = vpack.c.b16 %v2651, %v2650
      %v2716 = vpack.c.b16 %v2652, %v2652
      %v2717 = vpack.c.b16 %v2654, %v2653
      %v2718 = vpack.c.b16 %v2655, %v2655
      %v2719 = vpack.c.b16 %v2657, %v2656
      %v2720 = vpack.c.b16 %v2658, %v2658
      %v2721 = vpack.c.b16 %v2660, %v2659
      %v2722 = vpack.c.b16 %v2661, %v2661
      %v2723 = vpack.c.b16 %v2663, %v2662
      %v2724 = vpack.c.b16 %v2664, %v2664
      %v2725 = vpack.c.b16 %v2666, %v2665
      %v2726 = vpack.c.b16 %v2667, %v2667
      %v2727 = vpack.c.b16 %v2669, %v2668
      %v2728 = vpack.c.b16 %v2670, %v2670
      %v2729 = vpack.c.b16 %v2672, %v2671
      %v2730 = vpack.c.b16 %v2673, %v2673
      %v2731 = vpack.c.b16 %v2675, %v2674
      %v2732 = vpack.c.b16 %v2676, %v2676
      %v2733 = vpack.c.b16 %v2678, %v2677
      %v2734 = vpack.c.b16 %v2679, %v2679
      %v2735 = vpack.c.b16 %v2681, %v2680
      %v2736 = vpack.c.b16 %v2682, %v2682
      %v2737 = vpack.c.b16 %v2684, %v2683
      %v2738 = vpack.c.b16 %v2685, %v2685
      %v2739 = vpack.c.b16 %v2687, %v2686
      %v2740 = vpack.c.b16 %v2688, %v2688
      %v2741 = vpack.c.b16 %v2690, %v2689
      %v2742 = vpack.c.b16 %v2691, %v2691
      %v2743 = vpack.c.b16 %v2693, %v2692
      %v2744 = vpack.c.b16 %v2694, %v2694
      %v2745 = vpack.c.b16 %v2696, %v2695
      %v2746 = vpack.c.b16 %v2697, %v2697
      %v2747 = vpack.c.b16 %v2699, %v2698
      %v2748 = vpack.c.b16 %v2700, %v2700
      %vm2749 = vsmask.f32 5376
      %v2751 = vshrl.u32 %v2701, 16
      %v2753 = vrot.slane %v2751, 2
      %v2754 = vshll.u32 %v2701, 16
      %v2756 = vrot.slane %v2754, 3
      %v2757 = vor.u32 %v2753, %v2756
      %v2759 = vshrl.u32 %v2702, 16
      %v2761 = vrot.slane %v2759, 2
      %v2762 = vshll.u32 %v2702, 16
      %v2764 = vrot.slane %v2762, 3
      %v2765 = vor.u32 %v2761, %v2764
      %v2766 = vsel %vm2749, %v2757, %v2765
      %v2768 = vshrl.u32 %v2703, 16
      %v2770 = vrot.slane %v2768, 2
      %v2771 = vshll.u32 %v2703, 16
      %v2773 = vrot.slane %v2771, 3
      %v2774 = vor.u32 %v2770, %v2773
      %v2776 = vshrl.u32 %v2704, 16
      %v2778 = vrot.slane %v2776, 2
      %v2779 = vshll.u32 %v2704, 16
      %v2781 = vrot.slane %v2779, 3
      %v2782 = vor.u32 %v2778, %v2781
      %v2783 = vsel %vm2749, %v2774, %v2782
      %v2785 = vshrl.u32 %v2705, 16
      %v2787 = vrot.slane %v2785, 2
      %v2788 = vshll.u32 %v2705, 16
      %v2790 = vrot.slane %v2788, 3
      %v2791 = vor.u32 %v2787, %v2790
      %v2793 = vshrl.u32 %v2706, 16
      %v2795 = vrot.slane %v2793, 2
      %v2796 = vshll.u32 %v2706, 16
      %v2798 = vrot.slane %v2796, 3
      %v2799 = vor.u32 %v2795, %v2798
      %v2800 = vsel %vm2749, %v2791, %v2799
      %v2802 = vshrl.u32 %v2707, 16
      %v2804 = vrot.slane %v2802, 2
      %v2805 = vshll.u32 %v2707, 16
      %v2807 = vrot.slane %v2805, 3
      %v2808 = vor.u32 %v2804, %v2807
      %v2810 = vshrl.u32 %v2708, 16
      %v2812 = vrot.slane %v2810, 2
      %v2813 = vshll.u32 %v2708, 16
      %v2815 = vrot.slane %v2813, 3
      %v2816 = vor.u32 %v2812, %v2815
      %v2817 = vsel %vm2749, %v2808, %v2816
      %v2819 = vshrl.u32 %v2709, 16
      %v2821 = vrot.slane %v2819, 2
      %v2822 = vshll.u32 %v2709, 16
      %v2824 = vrot.slane %v2822, 3
      %v2825 = vor.u32 %v2821, %v2824
      %v2827 = vshrl.u32 %v2710, 16
      %v2829 = vrot.slane %v2827, 2
      %v2830 = vshll.u32 %v2710, 16
      %v2832 = vrot.slane %v2830, 3
      %v2833 = vor.u32 %v2829, %v2832
      %v2834 = vsel %vm2749, %v2825, %v2833
      %v2836 = vshrl.u32 %v2711, 16
      %v2838 = vrot.slane %v2836, 2
      %v2839 = vshll.u32 %v2711, 16
      %v2841 = vrot.slane %v2839, 3
      %v2842 = vor.u32 %v2838, %v2841
      %v2844 = vshrl.u32 %v2712, 16
      %v2846 = vrot.slane %v2844, 2
      %v2847 = vshll.u32 %v2712, 16
      %v2849 = vrot.slane %v2847, 3
      %v2850 = vor.u32 %v2846, %v2849
      %v2851 = vsel %vm2749, %v2842, %v2850
      %v2853 = vshrl.u32 %v2713, 16
      %v2855 = vrot.slane %v2853, 2
      %v2856 = vshll.u32 %v2713, 16
      %v2858 = vrot.slane %v2856, 3
      %v2859 = vor.u32 %v2855, %v2858
      %v2861 = vshrl.u32 %v2714, 16
      %v2863 = vrot.slane %v2861, 2
      %v2864 = vshll.u32 %v2714, 16
      %v2866 = vrot.slane %v2864, 3
      %v2867 = vor.u32 %v2863, %v2866
      %v2868 = vsel %vm2749, %v2859, %v2867
      %v2870 = vshrl.u32 %v2715, 16
      %v2872 = vrot.slane %v2870, 2
      %v2873 = vshll.u32 %v2715, 16
      %v2875 = vrot.slane %v2873, 3
      %v2876 = vor.u32 %v2872, %v2875
      %v2878 = vshrl.u32 %v2716, 16
      %v2880 = vrot.slane %v2878, 2
      %v2881 = vshll.u32 %v2716, 16
      %v2883 = vrot.slane %v2881, 3
      %v2884 = vor.u32 %v2880, %v2883
      %v2885 = vsel %vm2749, %v2876, %v2884
      %v2887 = vshrl.u32 %v2717, 16
      %v2889 = vrot.slane %v2887, 2
      %v2890 = vshll.u32 %v2717, 16
      %v2892 = vrot.slane %v2890, 3
      %v2893 = vor.u32 %v2889, %v2892
      %v2895 = vshrl.u32 %v2718, 16
      %v2897 = vrot.slane %v2895, 2
      %v2898 = vshll.u32 %v2718, 16
      %v2900 = vrot.slane %v2898, 3
      %v2901 = vor.u32 %v2897, %v2900
      %v2902 = vsel %vm2749, %v2893, %v2901
      %v2904 = vshrl.u32 %v2719, 16
      %v2906 = vrot.slane %v2904, 2
      %v2907 = vshll.u32 %v2719, 16
      %v2909 = vrot.slane %v2907, 3
      %v2910 = vor.u32 %v2906, %v2909
      %v2912 = vshrl.u32 %v2720, 16
      %v2914 = vrot.slane %v2912, 2
      %v2915 = vshll.u32 %v2720, 16
      %v2917 = vrot.slane %v2915, 3
      %v2918 = vor.u32 %v2914, %v2917
      %v2919 = vsel %vm2749, %v2910, %v2918
      %v2921 = vshrl.u32 %v2721, 16
      %v2923 = vrot.slane %v2921, 2
      %v2924 = vshll.u32 %v2721, 16
      %v2926 = vrot.slane %v2924, 3
      %v2927 = vor.u32 %v2923, %v2926
      %v2929 = vshrl.u32 %v2722, 16
      %v2931 = vrot.slane %v2929, 2
      %v2932 = vshll.u32 %v2722, 16
      %v2934 = vrot.slane %v2932, 3
      %v2935 = vor.u32 %v2931, %v2934
      %v2936 = vsel %vm2749, %v2927, %v2935
      %v2938 = vshrl.u32 %v2723, 16
      %v2940 = vrot.slane %v2938, 2
      %v2941 = vshll.u32 %v2723, 16
      %v2943 = vrot.slane %v2941, 3
      %v2944 = vor.u32 %v2940, %v2943
      %v2946 = vshrl.u32 %v2724, 16
      %v2948 = vrot.slane %v2946, 2
      %v2949 = vshll.u32 %v2724, 16
      %v2951 = vrot.slane %v2949, 3
      %v2952 = vor.u32 %v2948, %v2951
      %v2953 = vsel %vm2749, %v2944, %v2952
      %v2955 = vshrl.u32 %v2725, 16
      %v2957 = vrot.slane %v2955, 2
      %v2958 = vshll.u32 %v2725, 16
      %v2960 = vrot.slane %v2958, 3
      %v2961 = vor.u32 %v2957, %v2960
      %v2963 = vshrl.u32 %v2726, 16
      %v2965 = vrot.slane %v2963, 2
      %v2966 = vshll.u32 %v2726, 16
      %v2968 = vrot.slane %v2966, 3
      %v2969 = vor.u32 %v2965, %v2968
      %v2970 = vsel %vm2749, %v2961, %v2969
      %v2972 = vshrl.u32 %v2727, 16
      %v2974 = vrot.slane %v2972, 2
      %v2975 = vshll.u32 %v2727, 16
      %v2977 = vrot.slane %v2975, 3
      %v2978 = vor.u32 %v2974, %v2977
      %v2980 = vshrl.u32 %v2728, 16
      %v2982 = vrot.slane %v2980, 2
      %v2983 = vshll.u32 %v2728, 16
      %v2985 = vrot.slane %v2983, 3
      %v2986 = vor.u32 %v2982, %v2985
      %v2987 = vsel %vm2749, %v2978, %v2986
      %v2989 = vshrl.u32 %v2729, 16
      %v2991 = vrot.slane %v2989, 2
      %v2992 = vshll.u32 %v2729, 16
      %v2994 = vrot.slane %v2992, 3
      %v2995 = vor.u32 %v2991, %v2994
      %v2997 = vshrl.u32 %v2730, 16
      %v2999 = vrot.slane %v2997, 2
      %v3000 = vshll.u32 %v2730, 16
      %v3002 = vrot.slane %v3000, 3
      %v3003 = vor.u32 %v2999, %v3002
      %v3004 = vsel %vm2749, %v2995, %v3003
      %v3006 = vshrl.u32 %v2731, 16
      %v3008 = vrot.slane %v3006, 2
      %v3009 = vshll.u32 %v2731, 16
      %v3011 = vrot.slane %v3009, 3
      %v3012 = vor.u32 %v3008, %v3011
      %v3014 = vshrl.u32 %v2732, 16
      %v3016 = vrot.slane %v3014, 2
      %v3017 = vshll.u32 %v2732, 16
      %v3019 = vrot.slane %v3017, 3
      %v3020 = vor.u32 %v3016, %v3019
      %v3021 = vsel %vm2749, %v3012, %v3020
      %v3023 = vshrl.u32 %v2733, 16
      %v3025 = vrot.slane %v3023, 2
      %v3026 = vshll.u32 %v2733, 16
      %v3028 = vrot.slane %v3026, 3
      %v3029 = vor.u32 %v3025, %v3028
      %v3031 = vshrl.u32 %v2734, 16
      %v3033 = vrot.slane %v3031, 2
      %v3034 = vshll.u32 %v2734, 16
      %v3036 = vrot.slane %v3034, 3
      %v3037 = vor.u32 %v3033, %v3036
      %v3038 = vsel %vm2749, %v3029, %v3037
      %v3040 = vshrl.u32 %v2735, 16
      %v3042 = vrot.slane %v3040, 2
      %v3043 = vshll.u32 %v2735, 16
      %v3045 = vrot.slane %v3043, 3
      %v3046 = vor.u32 %v3042, %v3045
      %v3048 = vshrl.u32 %v2736, 16
      %v3050 = vrot.slane %v3048, 2
      %v3051 = vshll.u32 %v2736, 16
      %v3053 = vrot.slane %v3051, 3
      %v3054 = vor.u32 %v3050, %v3053
      %v3055 = vsel %vm2749, %v3046, %v3054
      %v3057 = vshrl.u32 %v2737, 16
      %v3059 = vrot.slane %v3057, 2
      %v3060 = vshll.u32 %v2737, 16
      %v3062 = vrot.slane %v3060, 3
      %v3063 = vor.u32 %v3059, %v3062
      %v3065 = vshrl.u32 %v2738, 16
      %v3067 = vrot.slane %v3065, 2
      %v3068 = vshll.u32 %v2738, 16
      %v3070 = vrot.slane %v3068, 3
      %v3071 = vor.u32 %v3067, %v3070
      %v3072 = vsel %vm2749, %v3063, %v3071
      %v3074 = vshrl.u32 %v2739, 16
      %v3076 = vrot.slane %v3074, 2
      %v3077 = vshll.u32 %v2739, 16
      %v3079 = vrot.slane %v3077, 3
      %v3080 = vor.u32 %v3076, %v3079
      %v3082 = vshrl.u32 %v2740, 16
      %v3084 = vrot.slane %v3082, 2
      %v3085 = vshll.u32 %v2740, 16
      %v3087 = vrot.slane %v3085, 3
      %v3088 = vor.u32 %v3084, %v3087
      %v3089 = vsel %vm2749, %v3080, %v3088
      %v3091 = vshrl.u32 %v2741, 16
      %v3093 = vrot.slane %v3091, 2
      %v3094 = vshll.u32 %v2741, 16
      %v3096 = vrot.slane %v3094, 3
      %v3097 = vor.u32 %v3093, %v3096
      %v3099 = vshrl.u32 %v2742, 16
      %v3101 = vrot.slane %v3099, 2
      %v3102 = vshll.u32 %v2742, 16
      %v3104 = vrot.slane %v3102, 3
      %v3105 = vor.u32 %v3101, %v3104
      %v3106 = vsel %vm2749, %v3097, %v3105
      %v3108 = vshrl.u32 %v2743, 16
      %v3110 = vrot.slane %v3108, 2
      %v3111 = vshll.u32 %v2743, 16
      %v3113 = vrot.slane %v3111, 3
      %v3114 = vor.u32 %v3110, %v3113
      %v3116 = vshrl.u32 %v2744, 16
      %v3118 = vrot.slane %v3116, 2
      %v3119 = vshll.u32 %v2744, 16
      %v3121 = vrot.slane %v3119, 3
      %v3122 = vor.u32 %v3118, %v3121
      %v3123 = vsel %vm2749, %v3114, %v3122
      %v3125 = vshrl.u32 %v2745, 16
      %v3127 = vrot.slane %v3125, 2
      %v3128 = vshll.u32 %v2745, 16
      %v3130 = vrot.slane %v3128, 3
      %v3131 = vor.u32 %v3127, %v3130
      %v3133 = vshrl.u32 %v2746, 16
      %v3135 = vrot.slane %v3133, 2
      %v3136 = vshll.u32 %v2746, 16
      %v3138 = vrot.slane %v3136, 3
      %v3139 = vor.u32 %v3135, %v3138
      %v3140 = vsel %vm2749, %v3131, %v3139
      %v3142 = vshrl.u32 %v2747, 16
      %v3144 = vrot.slane %v3142, 2
      %v3145 = vshll.u32 %v2747, 16
      %v3147 = vrot.slane %v3145, 3
      %v3148 = vor.u32 %v3144, %v3147
      %v3150 = vshrl.u32 %v2748, 16
      %v3152 = vrot.slane %v3150, 2
      %v3153 = vshll.u32 %v2748, 16
      %v3155 = vrot.slane %v3153, 3
      %v3156 = vor.u32 %v3152, %v3155
      %v3157 = vsel %vm2749, %v3148, %v3156
      %s3182 = scalar_lea.vmem [#allocation2], 960
      %3183 = vst.msk [vmem:[%s3182] sm:$0xff] %vm364, %v2766
      %3184 = vst.msk [vmem:[%s3182 + $0x8] sm:$0xff] %vm364, %v2783
      %3185 = vst.msk [vmem:[%s3182 + $0x10] sm:$0xff] %vm364, %v2800
      %3186 = vst.msk [vmem:[%s3182 + $0x18] sm:$0xff] %vm364, %v2817
      %3187 = vst.msk [vmem:[%s3182 + $0x20] sm:$0xff] %vm364, %v2834
      %3188 = vst.msk [vmem:[%s3182 + $0x28] sm:$0xff] %vm364, %v2851
      %3189 = vst.msk [vmem:[%s3182 + $0x30] sm:$0xff] %vm364, %v2868
      %3190 = vst.msk [vmem:[%s3182 + $0x38] sm:$0xff] %vm364, %v2885
      %3191 = vst.msk [vmem:[%s3182 + $0x40] sm:$0xff] %vm364, %v2902
      %3192 = vst.msk [vmem:[%s3182 + $0x48] sm:$0xff] %vm364, %v2919
      %3193 = vst.msk [vmem:[%s3182 + $0x50] sm:$0xff] %vm364, %v2936
      %3194 = vst.msk [vmem:[%s3182 + $0x58] sm:$0xff] %vm364, %v2953
      %3195 = vst.msk [vmem:[%s3182 + $0x60] sm:$0xff] %vm364, %v2970
      %3196 = vst.msk [vmem:[%s3182 + $0x68] sm:$0xff] %vm364, %v2987
      %3197 = vst.msk [vmem:[%s3182 + $0x70] sm:$0xff] %vm364, %v3004
      %3198 = vst.msk [vmem:[%s3182 + $0x78] sm:$0xff] %vm364, %v3021
      %3199 = vst.msk [vmem:[%s3182 + $0x80] sm:$0xff] %vm364, %v3038
      %3200 = vst.msk [vmem:[%s3182 + $0x88] sm:$0xff] %vm364, %v3055
      %3201 = vst.msk [vmem:[%s3182 + $0x90] sm:$0xff] %vm364, %v3072
      %3202 = vst.msk [vmem:[%s3182 + $0x98] sm:$0xff] %vm364, %v3089
      %3203 = vst.msk [vmem:[%s3182 + $0xa0] sm:$0xff] %vm364, %v3106
      %3204 = vst.msk [vmem:[%s3182 + $0xa8] sm:$0xff] %vm364, %v3123
      %3205 = vst.msk [vmem:[%s3182 + $0xb0] sm:$0xff] %vm364, %v3140
      %3206 = vst.msk [vmem:[%s3182 + $0xb8] sm:$0xff] %vm364, %v3157
      %v3207 = vld [vmem:[%s165] sm:$0x8]
      %v3208 = vld [vmem:[%s165 + $0x4] sm:$0xf]
      %v3209 = vld [vmem:[%s165 + $0x8] sm:$0x7]
      %v3210 = vld [vmem:[%s165 + $0xc] sm:$0x8]
      %v3211 = vld [vmem:[%s165 + $0x10] sm:$0xf]
      %v3212 = vld [vmem:[%s165 + $0x14] sm:$0x7]
      %v3213 = vld [vmem:[%s165 + $0x18] sm:$0x8]
      %v3214 = vld [vmem:[%s165 + $0x1c] sm:$0xf]
      %v3215 = vld [vmem:[%s165 + $0x20] sm:$0x7]
      %v3216 = vld [vmem:[%s165 + $0x24] sm:$0x8]
      %v3217 = vld [vmem:[%s165 + $0x28] sm:$0xf]
      %v3218 = vld [vmem:[%s165 + $0x2c] sm:$0x7]
      %v3219 = vld [vmem:[%s165 + $0x30] sm:$0x8]
      %v3220 = vld [vmem:[%s165 + $0x34] sm:$0xf]
      %v3221 = vld [vmem:[%s165 + $0x38] sm:$0x7]
      %v3222 = vld [vmem:[%s165 + $0x3c] sm:$0x8]
      %v3223 = vld [vmem:[%s165 + $0x40] sm:$0xf]
      %v3224 = vld [vmem:[%s165 + $0x44] sm:$0x7]
      %v3225 = vld [vmem:[%s165 + $0x48] sm:$0x8]
      %v3226 = vld [vmem:[%s165 + $0x4c] sm:$0xf]
      %v3227 = vld [vmem:[%s165 + $0x50] sm:$0x7]
      %v3228 = vld [vmem:[%s165 + $0x54] sm:$0x8]
      %v3229 = vld [vmem:[%s165 + $0x58] sm:$0xf]
      %v3230 = vld [vmem:[%s165 + $0x5c] sm:$0x7]
      %v3231 = vld [vmem:[%s165 + $0x60] sm:$0x8]
      %v3232 = vld [vmem:[%s165 + $0x64] sm:$0xf]
      %v3233 = vld [vmem:[%s165 + $0x68] sm:$0x7]
      %v3234 = vld [vmem:[%s165 + $0x6c] sm:$0x8]
      %v3235 = vld [vmem:[%s165 + $0x70] sm:$0xf]
      %v3236 = vld [vmem:[%s165 + $0x74] sm:$0x7]
      %v3237 = vld [vmem:[%s165 + $0x78] sm:$0x8]
      %v3238 = vld [vmem:[%s165 + $0x7c] sm:$0xf]
      %v3239 = vld [vmem:[%s165 + $0x80] sm:$0x7]
      %v3240 = vld [vmem:[%s165 + $0x84] sm:$0x8]
      %v3241 = vld [vmem:[%s165 + $0x88] sm:$0xf]
      %v3242 = vld [vmem:[%s165 + $0x8c] sm:$0x7]
      %v3243 = vld [vmem:[%s165 + $0x90] sm:$0x8]
      %v3244 = vld [vmem:[%s165 + $0x94] sm:$0xf]
      %v3245 = vld [vmem:[%s165 + $0x98] sm:$0x7]
      %v3246 = vld [vmem:[%s165 + $0x9c] sm:$0x8]
      %v3247 = vld [vmem:[%s165 + $0xa0] sm:$0xf]
      %v3248 = vld [vmem:[%s165 + $0xa4] sm:$0x7]
      %v3249 = vld [vmem:[%s165 + $0xa8] sm:$0x8]
      %v3250 = vld [vmem:[%s165 + $0xac] sm:$0xf]
      %v3251 = vld [vmem:[%s165 + $0xb0] sm:$0x7]
      %v3252 = vld [vmem:[%s165 + $0xb4] sm:$0x8]
      %v3253 = vld [vmem:[%s165 + $0xb8] sm:$0xf]
      %v3254 = vld [vmem:[%s165 + $0xbc] sm:$0x7]
      %v3255 = vld [vmem:[%s165 + $0xc0] sm:$0x8]
      %v3256 = vld [vmem:[%s165 + $0xc4] sm:$0xf]
      %v3257 = vld [vmem:[%s165 + $0xc8] sm:$0x7]
      %v3258 = vld [vmem:[%s165 + $0xcc] sm:$0x8]
      %v3259 = vld [vmem:[%s165 + $0xd0] sm:$0xf]
      %v3260 = vld [vmem:[%s165 + $0xd4] sm:$0x7]
      %v3261 = vld [vmem:[%s165 + $0xd8] sm:$0x8]
      %v3262 = vld [vmem:[%s165 + $0xdc] sm:$0xf]
      %v3263 = vld [vmem:[%s165 + $0xe0] sm:$0x7]
      %v3264 = vld [vmem:[%s165 + $0xe4] sm:$0x8]
      %v3265 = vld [vmem:[%s165 + $0xe8] sm:$0xf]
      %v3266 = vld [vmem:[%s165 + $0xec] sm:$0x7]
      %v3267 = vld [vmem:[%s165 + $0xf0] sm:$0x8]
      %v3268 = vld [vmem:[%s165 + $0xf4] sm:$0xf]
      %v3269 = vld [vmem:[%s165 + $0xf8] sm:$0x7]
      %v3270 = vld [vmem:[%s165 + $0xfc] sm:$0x8]
      %v3271 = vld [vmem:[%s165 + $0x100] sm:$0xf]
      %v3272 = vld [vmem:[%s165 + $0x104] sm:$0x7]
      %v3273 = vld [vmem:[%s165 + $0x108] sm:$0x8]
      %v3274 = vld [vmem:[%s165 + $0x10c] sm:$0xf]
      %v3275 = vld [vmem:[%s165 + $0x110] sm:$0x7]
      %v3276 = vld [vmem:[%s165 + $0x114] sm:$0x8]
      %v3277 = vld [vmem:[%s165 + $0x118] sm:$0xf]
      %v3278 = vld [vmem:[%s165 + $0x11c] sm:$0x7]
      %v3351 = vunpack.c.l.b16 %v3207
      %v3352 = vunpack.c.l.b16 %v3208
      %v3353 = vunpack.c.l.b16 %v3209
      %v3354 = vunpack.c.l.b16 %v3210
      %v3355 = vunpack.c.l.b16 %v3211
      %v3356 = vunpack.c.l.b16 %v3212
      %v3357 = vunpack.c.l.b16 %v3213
      %v3358 = vunpack.c.l.b16 %v3214
      %v3359 = vunpack.c.l.b16 %v3215
      %v3360 = vunpack.c.l.b16 %v3216
      %v3361 = vunpack.c.l.b16 %v3217
      %v3362 = vunpack.c.l.b16 %v3218
      %v3363 = vunpack.c.l.b16 %v3219
      %v3364 = vunpack.c.l.b16 %v3220
      %v3365 = vunpack.c.l.b16 %v3221
      %v3366 = vunpack.c.l.b16 %v3222
      %v3367 = vunpack.c.l.b16 %v3223
      %v3368 = vunpack.c.l.b16 %v3224
      %v3369 = vunpack.c.l.b16 %v3225
      %v3370 = vunpack.c.l.b16 %v3226
      %v3371 = vunpack.c.l.b16 %v3227
      %v3372 = vunpack.c.l.b16 %v3228
      %v3373 = vunpack.c.l.b16 %v3229
      %v3374 = vunpack.c.l.b16 %v3230
      %v3375 = vunpack.c.l.b16 %v3231
      %v3376 = vunpack.c.l.b16 %v3232
      %v3377 = vunpack.c.l.b16 %v3233
      %v3378 = vunpack.c.l.b16 %v3234
      %v3379 = vunpack.c.l.b16 %v3235
      %v3380 = vunpack.c.l.b16 %v3236
      %v3381 = vunpack.c.l.b16 %v3237
      %v3382 = vunpack.c.l.b16 %v3238
      %v3383 = vunpack.c.l.b16 %v3239
      %v3384 = vunpack.c.l.b16 %v3240
      %v3385 = vunpack.c.l.b16 %v3241
      %v3386 = vunpack.c.l.b16 %v3242
      %v3387 = vunpack.c.l.b16 %v3243
      %v3388 = vunpack.c.l.b16 %v3244
      %v3389 = vunpack.c.l.b16 %v3245
      %v3390 = vunpack.c.l.b16 %v3246
      %v3391 = vunpack.c.l.b16 %v3247
      %v3392 = vunpack.c.l.b16 %v3248
      %v3393 = vunpack.c.l.b16 %v3249
      %v3394 = vunpack.c.l.b16 %v3250
      %v3395 = vunpack.c.l.b16 %v3251
      %v3396 = vunpack.c.l.b16 %v3252
      %v3397 = vunpack.c.l.b16 %v3253
      %v3398 = vunpack.c.l.b16 %v3254
      %v3399 = vunpack.c.l.b16 %v3255
      %v3400 = vunpack.c.l.b16 %v3256
      %v3401 = vunpack.c.l.b16 %v3257
      %v3402 = vunpack.c.l.b16 %v3258
      %v3403 = vunpack.c.l.b16 %v3259
      %v3404 = vunpack.c.l.b16 %v3260
      %v3405 = vunpack.c.l.b16 %v3261
      %v3406 = vunpack.c.l.b16 %v3262
      %v3407 = vunpack.c.l.b16 %v3263
      %v3408 = vunpack.c.l.b16 %v3264
      %v3409 = vunpack.c.l.b16 %v3265
      %v3410 = vunpack.c.l.b16 %v3266
      %v3411 = vunpack.c.l.b16 %v3267
      %v3412 = vunpack.c.l.b16 %v3268
      %v3413 = vunpack.c.l.b16 %v3269
      %v3414 = vunpack.c.l.b16 %v3270
      %v3415 = vunpack.c.l.b16 %v3271
      %v3416 = vunpack.c.l.b16 %v3272
      %v3417 = vunpack.c.l.b16 %v3273
      %v3418 = vunpack.c.l.b16 %v3274
      %v3419 = vunpack.c.l.b16 %v3275
      %v3420 = vunpack.c.l.b16 %v3276
      %v3421 = vunpack.c.l.b16 %v3277
      %v3422 = vunpack.c.l.b16 %v3278
      %v3423 = vpack.c.b16 %v3352, %v3351
      %v3424 = vpack.c.b16 %v3353, %v3353
      %v3425 = vpack.c.b16 %v3355, %v3354
      %v3426 = vpack.c.b16 %v3356, %v3356
      %v3427 = vpack.c.b16 %v3358, %v3357
      %v3428 = vpack.c.b16 %v3359, %v3359
      %v3429 = vpack.c.b16 %v3361, %v3360
      %v3430 = vpack.c.b16 %v3362, %v3362
      %v3431 = vpack.c.b16 %v3364, %v3363
      %v3432 = vpack.c.b16 %v3365, %v3365
      %v3433 = vpack.c.b16 %v3367, %v3366
      %v3434 = vpack.c.b16 %v3368, %v3368
      %v3435 = vpack.c.b16 %v3370, %v3369
      %v3436 = vpack.c.b16 %v3371, %v3371
      %v3437 = vpack.c.b16 %v3373, %v3372
      %v3438 = vpack.c.b16 %v3374, %v3374
      %v3439 = vpack.c.b16 %v3376, %v3375
      %v3440 = vpack.c.b16 %v3377, %v3377
      %v3441 = vpack.c.b16 %v3379, %v3378
      %v3442 = vpack.c.b16 %v3380, %v3380
      %v3443 = vpack.c.b16 %v3382, %v3381
      %v3444 = vpack.c.b16 %v3383, %v3383
      %v3445 = vpack.c.b16 %v3385, %v3384
      %v3446 = vpack.c.b16 %v3386, %v3386
      %v3447 = vpack.c.b16 %v3388, %v3387
      %v3448 = vpack.c.b16 %v3389, %v3389
      %v3449 = vpack.c.b16 %v3391, %v3390
      %v3450 = vpack.c.b16 %v3392, %v3392
      %v3451 = vpack.c.b16 %v3394, %v3393
      %v3452 = vpack.c.b16 %v3395, %v3395
      %v3453 = vpack.c.b16 %v3397, %v3396
      %v3454 = vpack.c.b16 %v3398, %v3398
      %v3455 = vpack.c.b16 %v3400, %v3399
      %v3456 = vpack.c.b16 %v3401, %v3401
      %v3457 = vpack.c.b16 %v3403, %v3402
      %v3458 = vpack.c.b16 %v3404, %v3404
      %v3459 = vpack.c.b16 %v3406, %v3405
      %v3460 = vpack.c.b16 %v3407, %v3407
      %v3461 = vpack.c.b16 %v3409, %v3408
      %v3462 = vpack.c.b16 %v3410, %v3410
      %v3463 = vpack.c.b16 %v3412, %v3411
      %v3464 = vpack.c.b16 %v3413, %v3413
      %v3465 = vpack.c.b16 %v3415, %v3414
      %v3466 = vpack.c.b16 %v3416, %v3416
      %v3467 = vpack.c.b16 %v3418, %v3417
      %v3468 = vpack.c.b16 %v3419, %v3419
      %v3469 = vpack.c.b16 %v3421, %v3420
      %v3470 = vpack.c.b16 %v3422, %v3422
      %vm3471 = vcmask 1044480
      %v3472 = vrot.slane %v3423, 3
      %v3473 = vrot.slane %v3424, 3
      %v3474 = vsel %vm3471, %v3472, %v3473
      %v3475 = vrot.slane %v3425, 3
      %v3476 = vrot.slane %v3426, 3
      %v3477 = vsel %vm3471, %v3475, %v3476
      %v3478 = vrot.slane %v3427, 3
      %v3479 = vrot.slane %v3428, 3
      %v3480 = vsel %vm3471, %v3478, %v3479
      %v3481 = vrot.slane %v3429, 3
      %v3482 = vrot.slane %v3430, 3
      %v3483 = vsel %vm3471, %v3481, %v3482
      %v3484 = vrot.slane %v3431, 3
      %v3485 = vrot.slane %v3432, 3
      %v3486 = vsel %vm3471, %v3484, %v3485
      %v3487 = vrot.slane %v3433, 3
      %v3488 = vrot.slane %v3434, 3
      %v3489 = vsel %vm3471, %v3487, %v3488
      %v3490 = vrot.slane %v3435, 3
      %v3491 = vrot.slane %v3436, 3
      %v3492 = vsel %vm3471, %v3490, %v3491
      %v3493 = vrot.slane %v3437, 3
      %v3494 = vrot.slane %v3438, 3
      %v3495 = vsel %vm3471, %v3493, %v3494
      %v3496 = vrot.slane %v3439, 3
      %v3497 = vrot.slane %v3440, 3
      %v3498 = vsel %vm3471, %v3496, %v3497
      %v3499 = vrot.slane %v3441, 3
      %v3500 = vrot.slane %v3442, 3
      %v3501 = vsel %vm3471, %v3499, %v3500
      %v3502 = vrot.slane %v3443, 3
      %v3503 = vrot.slane %v3444, 3
      %v3504 = vsel %vm3471, %v3502, %v3503
      %v3505 = vrot.slane %v3445, 3
      %v3506 = vrot.slane %v3446, 3
      %v3507 = vsel %vm3471, %v3505, %v3506
      %v3508 = vrot.slane %v3447, 3
      %v3509 = vrot.slane %v3448, 3
      %v3510 = vsel %vm3471, %v3508, %v3509
      %v3511 = vrot.slane %v3449, 3
      %v3512 = vrot.slane %v3450, 3
      %v3513 = vsel %vm3471, %v3511, %v3512
      %v3514 = vrot.slane %v3451, 3
      %v3515 = vrot.slane %v3452, 3
      %v3516 = vsel %vm3471, %v3514, %v3515
      %v3517 = vrot.slane %v3453, 3
      %v3518 = vrot.slane %v3454, 3
      %v3519 = vsel %vm3471, %v3517, %v3518
      %v3520 = vrot.slane %v3455, 3
      %v3521 = vrot.slane %v3456, 3
      %v3522 = vsel %vm3471, %v3520, %v3521
      %v3523 = vrot.slane %v3457, 3
      %v3524 = vrot.slane %v3458, 3
      %v3525 = vsel %vm3471, %v3523, %v3524
      %v3526 = vrot.slane %v3459, 3
      %v3527 = vrot.slane %v3460, 3
      %v3528 = vsel %vm3471, %v3526, %v3527
      %v3529 = vrot.slane %v3461, 3
      %v3530 = vrot.slane %v3462, 3
      %v3531 = vsel %vm3471, %v3529, %v3530
      %v3532 = vrot.slane %v3463, 3
      %v3533 = vrot.slane %v3464, 3
      %v3534 = vsel %vm3471, %v3532, %v3533
      %v3535 = vrot.slane %v3465, 3
      %v3536 = vrot.slane %v3466, 3
      %v3537 = vsel %vm3471, %v3535, %v3536
      %v3538 = vrot.slane %v3467, 3
      %v3539 = vrot.slane %v3468, 3
      %v3540 = vsel %vm3471, %v3538, %v3539
      %v3541 = vrot.slane %v3469, 3
      %v3542 = vrot.slane %v3470, 3
      %v3543 = vsel %vm3471, %v3541, %v3542
      %s3568 = scalar_lea.vmem [#allocation2], 1152
      %3569 = vst.msk [vmem:[%s3568] sm:$0xff] %vm364, %v3474
      %3570 = vst.msk [vmem:[%s3568 + $0x8] sm:$0xff] %vm364, %v3477
      %3571 = vst.msk [vmem:[%s3568 + $0x10] sm:$0xff] %vm364, %v3480
      %3572 = vst.msk [vmem:[%s3568 + $0x18] sm:$0xff] %vm364, %v3483
      %3573 = vst.msk [vmem:[%s3568 + $0x20] sm:$0xff] %vm364, %v3486
      %3574 = vst.msk [vmem:[%s3568 + $0x28] sm:$0xff] %vm364, %v3489
      %3575 = vst.msk [vmem:[%s3568 + $0x30] sm:$0xff] %vm364, %v3492
      %3576 = vst.msk [vmem:[%s3568 + $0x38] sm:$0xff] %vm364, %v3495
      %3577 = vst.msk [vmem:[%s3568 + $0x40] sm:$0xff] %vm364, %v3498
      %3578 = vst.msk [vmem:[%s3568 + $0x48] sm:$0xff] %vm364, %v3501
      %3579 = vst.msk [vmem:[%s3568 + $0x50] sm:$0xff] %vm364, %v3504
      %3580 = vst.msk [vmem:[%s3568 + $0x58] sm:$0xff] %vm364, %v3507
      %3581 = vst.msk [vmem:[%s3568 + $0x60] sm:$0xff] %vm364, %v3510
      %3582 = vst.msk [vmem:[%s3568 + $0x68] sm:$0xff] %vm364, %v3513
      %3583 = vst.msk [vmem:[%s3568 + $0x70] sm:$0xff] %vm364, %v3516
      %3584 = vst.msk [vmem:[%s3568 + $0x78] sm:$0xff] %vm364, %v3519
      %3585 = vst.msk [vmem:[%s3568 + $0x80] sm:$0xff] %vm364, %v3522
      %3586 = vst.msk [vmem:[%s3568 + $0x88] sm:$0xff] %vm364, %v3525
      %3587 = vst.msk [vmem:[%s3568 + $0x90] sm:$0xff] %vm364, %v3528
      %3588 = vst.msk [vmem:[%s3568 + $0x98] sm:$0xff] %vm364, %v3531
      %3589 = vst.msk [vmem:[%s3568 + $0xa0] sm:$0xff] %vm364, %v3534
      %3590 = vst.msk [vmem:[%s3568 + $0xa8] sm:$0xff] %vm364, %v3537
      %3591 = vst.msk [vmem:[%s3568 + $0xb0] sm:$0xff] %vm364, %v3540
      %3592 = vst.msk [vmem:[%s3568 + $0xb8] sm:$0xff] %vm364, %v3543
      %v3593 = vld [vmem:[%s165] sm:$0x8]
      %v3594 = vld [vmem:[%s165 + $0x4] sm:$0xf]
      %v3595 = vld [vmem:[%s165 + $0x8] sm:$0xf]
      %v3596 = vld [vmem:[%s165 + $0xc] sm:$0x8]
      %v3597 = vld [vmem:[%s165 + $0x10] sm:$0xf]
      %v3598 = vld [vmem:[%s165 + $0x14] sm:$0xf]
      %v3599 = vld [vmem:[%s165 + $0x18] sm:$0x8]
      %v3600 = vld [vmem:[%s165 + $0x1c] sm:$0xf]
      %v3601 = vld [vmem:[%s165 + $0x20] sm:$0xf]
      %v3602 = vld [vmem:[%s165 + $0x24] sm:$0x8]
      %v3603 = vld [vmem:[%s165 + $0x28] sm:$0xf]
      %v3604 = vld [vmem:[%s165 + $0x2c] sm:$0xf]
      %v3605 = vld [vmem:[%s165 + $0x30] sm:$0x8]
      %v3606 = vld [vmem:[%s165 + $0x34] sm:$0xf]
      %v3607 = vld [vmem:[%s165 + $0x38] sm:$0xf]
      %v3608 = vld [vmem:[%s165 + $0x3c] sm:$0x8]
      %v3609 = vld [vmem:[%s165 + $0x40] sm:$0xf]
      %v3610 = vld [vmem:[%s165 + $0x44] sm:$0xf]
      %v3611 = vld [vmem:[%s165 + $0x48] sm:$0x8]
      %v3612 = vld [vmem:[%s165 + $0x4c] sm:$0xf]
      %v3613 = vld [vmem:[%s165 + $0x50] sm:$0xf]
      %v3614 = vld [vmem:[%s165 + $0x54] sm:$0x8]
      %v3615 = vld [vmem:[%s165 + $0x58] sm:$0xf]
      %v3616 = vld [vmem:[%s165 + $0x5c] sm:$0xf]
      %v3617 = vld [vmem:[%s165 + $0x60] sm:$0x8]
      %v3618 = vld [vmem:[%s165 + $0x64] sm:$0xf]
      %v3619 = vld [vmem:[%s165 + $0x68] sm:$0xf]
      %v3620 = vld [vmem:[%s165 + $0x6c] sm:$0x8]
      %v3621 = vld [vmem:[%s165 + $0x70] sm:$0xf]
      %v3622 = vld [vmem:[%s165 + $0x74] sm:$0xf]
      %v3623 = vld [vmem:[%s165 + $0x78] sm:$0x8]
      %v3624 = vld [vmem:[%s165 + $0x7c] sm:$0xf]
      %v3625 = vld [vmem:[%s165 + $0x80] sm:$0xf]
      %v3626 = vld [vmem:[%s165 + $0x84] sm:$0x8]
      %v3627 = vld [vmem:[%s165 + $0x88] sm:$0xf]
      %v3628 = vld [vmem:[%s165 + $0x8c] sm:$0xf]
      %v3629 = vld [vmem:[%s165 + $0x90] sm:$0x8]
      %v3630 = vld [vmem:[%s165 + $0x94] sm:$0xf]
      %v3631 = vld [vmem:[%s165 + $0x98] sm:$0xf]
      %v3632 = vld [vmem:[%s165 + $0x9c] sm:$0x8]
      %v3633 = vld [vmem:[%s165 + $0xa0] sm:$0xf]
      %v3634 = vld [vmem:[%s165 + $0xa4] sm:$0xf]
      %v3635 = vld [vmem:[%s165 + $0xa8] sm:$0x8]
      %v3636 = vld [vmem:[%s165 + $0xac] sm:$0xf]
      %v3637 = vld [vmem:[%s165 + $0xb0] sm:$0xf]
      %v3638 = vld [vmem:[%s165 + $0xb4] sm:$0x8]
      %v3639 = vld [vmem:[%s165 + $0xb8] sm:$0xf]
      %v3640 = vld [vmem:[%s165 + $0xbc] sm:$0xf]
      %v3641 = vld [vmem:[%s165 + $0xc0] sm:$0x8]
      %v3642 = vld [vmem:[%s165 + $0xc4] sm:$0xf]
      %v3643 = vld [vmem:[%s165 + $0xc8] sm:$0xf]
      %v3644 = vld [vmem:[%s165 + $0xcc] sm:$0x8]
      %v3645 = vld [vmem:[%s165 + $0xd0] sm:$0xf]
      %v3646 = vld [vmem:[%s165 + $0xd4] sm:$0xf]
      %v3647 = vld [vmem:[%s165 + $0xd8] sm:$0x8]
      %v3648 = vld [vmem:[%s165 + $0xdc] sm:$0xf]
      %v3649 = vld [vmem:[%s165 + $0xe0] sm:$0xf]
      %v3650 = vld [vmem:[%s165 + $0xe4] sm:$0x8]
      %v3651 = vld [vmem:[%s165 + $0xe8] sm:$0xf]
      %v3652 = vld [vmem:[%s165 + $0xec] sm:$0xf]
      %v3653 = vld [vmem:[%s165 + $0xf0] sm:$0x8]
      %v3654 = vld [vmem:[%s165 + $0xf4] sm:$0xf]
      %v3655 = vld [vmem:[%s165 + $0xf8] sm:$0xf]
      %v3656 = vld [vmem:[%s165 + $0xfc] sm:$0x8]
      %v3657 = vld [vmem:[%s165 + $0x100] sm:$0xf]
      %v3658 = vld [vmem:[%s165 + $0x104] sm:$0xf]
      %v3659 = vld [vmem:[%s165 + $0x108] sm:$0x8]
      %v3660 = vld [vmem:[%s165 + $0x10c] sm:$0xf]
      %v3661 = vld [vmem:[%s165 + $0x110] sm:$0xf]
      %v3662 = vld [vmem:[%s165 + $0x114] sm:$0x8]
      %v3663 = vld [vmem:[%s165 + $0x118] sm:$0xf]
      %v3664 = vld [vmem:[%s165 + $0x11c] sm:$0xf]
      %v3737 = vunpack.c.l.b16 %v3593
      %v3738 = vunpack.c.l.b16 %v3594
      %v3739 = vunpack.c.l.b16 %v3595
      %v3740 = vunpack.c.l.b16 %v3596
      %v3741 = vunpack.c.l.b16 %v3597
      %v3742 = vunpack.c.l.b16 %v3598
      %v3743 = vunpack.c.l.b16 %v3599
      %v3744 = vunpack.c.l.b16 %v3600
      %v3745 = vunpack.c.l.b16 %v3601
      %v3746 = vunpack.c.l.b16 %v3602
      %v3747 = vunpack.c.l.b16 %v3603
      %v3748 = vunpack.c.l.b16 %v3604
      %v3749 = vunpack.c.l.b16 %v3605
      %v3750 = vunpack.c.l.b16 %v3606
      %v3751 = vunpack.c.l.b16 %v3607
      %v3752 = vunpack.c.l.b16 %v3608
      %v3753 = vunpack.c.l.b16 %v3609
      %v3754 = vunpack.c.l.b16 %v3610
      %v3755 = vunpack.c.l.b16 %v3611
      %v3756 = vunpack.c.l.b16 %v3612
      %v3757 = vunpack.c.l.b16 %v3613
      %v3758 = vunpack.c.l.b16 %v3614
      %v3759 = vunpack.c.l.b16 %v3615
      %v3760 = vunpack.c.l.b16 %v3616
      %v3761 = vunpack.c.l.b16 %v3617
      %v3762 = vunpack.c.l.b16 %v3618
      %v3763 = vunpack.c.l.b16 %v3619
      %v3764 = vunpack.c.l.b16 %v3620
      %v3765 = vunpack.c.l.b16 %v3621
      %v3766 = vunpack.c.l.b16 %v3622
      %v3767 = vunpack.c.l.b16 %v3623
      %v3768 = vunpack.c.l.b16 %v3624
      %v3769 = vunpack.c.l.b16 %v3625
      %v3770 = vunpack.c.l.b16 %v3626
      %v3771 = vunpack.c.l.b16 %v3627
      %v3772 = vunpack.c.l.b16 %v3628
      %v3773 = vunpack.c.l.b16 %v3629
      %v3774 = vunpack.c.l.b16 %v3630
      %v3775 = vunpack.c.l.b16 %v3631
      %v3776 = vunpack.c.l.b16 %v3632
      %v3777 = vunpack.c.l.b16 %v3633
      %v3778 = vunpack.c.l.b16 %v3634
      %v3779 = vunpack.c.l.b16 %v3635
      %v3780 = vunpack.c.l.b16 %v3636
      %v3781 = vunpack.c.l.b16 %v3637
      %v3782 = vunpack.c.l.b16 %v3638
      %v3783 = vunpack.c.l.b16 %v3639
      %v3784 = vunpack.c.l.b16 %v3640
      %v3785 = vunpack.c.l.b16 %v3641
      %v3786 = vunpack.c.l.b16 %v3642
      %v3787 = vunpack.c.l.b16 %v3643
      %v3788 = vunpack.c.l.b16 %v3644
      %v3789 = vunpack.c.l.b16 %v3645
      %v3790 = vunpack.c.l.b16 %v3646
      %v3791 = vunpack.c.l.b16 %v3647
      %v3792 = vunpack.c.l.b16 %v3648
      %v3793 = vunpack.c.l.b16 %v3649
      %v3794 = vunpack.c.l.b16 %v3650
      %v3795 = vunpack.c.l.b16 %v3651
      %v3796 = vunpack.c.l.b16 %v3652
      %v3797 = vunpack.c.l.b16 %v3653
      %v3798 = vunpack.c.l.b16 %v3654
      %v3799 = vunpack.c.l.b16 %v3655
      %v3800 = vunpack.c.l.b16 %v3656
      %v3801 = vunpack.c.l.b16 %v3657
      %v3802 = vunpack.c.l.b16 %v3658
      %v3803 = vunpack.c.l.b16 %v3659
      %v3804 = vunpack.c.l.b16 %v3660
      %v3805 = vunpack.c.l.b16 %v3661
      %v3806 = vunpack.c.l.b16 %v3662
      %v3807 = vunpack.c.l.b16 %v3663
      %v3808 = vunpack.c.l.b16 %v3664
      %v3809 = vpack.c.b16 %v3738, %v3737
      %v3810 = vpack.c.b16 %v3739, %v3739
      %v3811 = vpack.c.b16 %v3741, %v3740
      %v3812 = vpack.c.b16 %v3742, %v3742
      %v3813 = vpack.c.b16 %v3744, %v3743
      %v3814 = vpack.c.b16 %v3745, %v3745
      %v3815 = vpack.c.b16 %v3747, %v3746
      %v3816 = vpack.c.b16 %v3748, %v3748
      %v3817 = vpack.c.b16 %v3750, %v3749
      %v3818 = vpack.c.b16 %v3751, %v3751
      %v3819 = vpack.c.b16 %v3753, %v3752
      %v3820 = vpack.c.b16 %v3754, %v3754
      %v3821 = vpack.c.b16 %v3756, %v3755
      %v3822 = vpack.c.b16 %v3757, %v3757
      %v3823 = vpack.c.b16 %v3759, %v3758
      %v3824 = vpack.c.b16 %v3760, %v3760
      %v3825 = vpack.c.b16 %v3762, %v3761
      %v3826 = vpack.c.b16 %v3763, %v3763
      %v3827 = vpack.c.b16 %v3765, %v3764
      %v3828 = vpack.c.b16 %v3766, %v3766
      %v3829 = vpack.c.b16 %v3768, %v3767
      %v3830 = vpack.c.b16 %v3769, %v3769
      %v3831 = vpack.c.b16 %v3771, %v3770
      %v3832 = vpack.c.b16 %v3772, %v3772
      %v3833 = vpack.c.b16 %v3774, %v3773
      %v3834 = vpack.c.b16 %v3775, %v3775
      %v3835 = vpack.c.b16 %v3777, %v3776
      %v3836 = vpack.c.b16 %v3778, %v3778
      %v3837 = vpack.c.b16 %v3780, %v3779
      %v3838 = vpack.c.b16 %v3781, %v3781
      %v3839 = vpack.c.b16 %v3783, %v3782
      %v3840 = vpack.c.b16 %v3784, %v3784
      %v3841 = vpack.c.b16 %v3786, %v3785
      %v3842 = vpack.c.b16 %v3787, %v3787
      %v3843 = vpack.c.b16 %v3789, %v3788
      %v3844 = vpack.c.b16 %v3790, %v3790
      %v3845 = vpack.c.b16 %v3792, %v3791
      %v3846 = vpack.c.b16 %v3793, %v3793
      %v3847 = vpack.c.b16 %v3795, %v3794
      %v3848 = vpack.c.b16 %v3796, %v3796
      %v3849 = vpack.c.b16 %v3798, %v3797
      %v3850 = vpack.c.b16 %v3799, %v3799
      %v3851 = vpack.c.b16 %v3801, %v3800
      %v3852 = vpack.c.b16 %v3802, %v3802
      %v3853 = vpack.c.b16 %v3804, %v3803
      %v3854 = vpack.c.b16 %v3805, %v3805
      %v3855 = vpack.c.b16 %v3807, %v3806
      %v3856 = vpack.c.b16 %v3808, %v3808
      %vm3857 = vsmask.f32 4352
      %v3859 = vshrl.u32 %v3809, 16
      %v3861 = vrot.slane %v3859, 3
      %v3862 = vshll.u32 %v3809, 16
      %v3864 = vrot.slane %v3862, 4
      %v3865 = vor.u32 %v3861, %v3864
      %v3867 = vshrl.u32 %v3810, 16
      %v3869 = vrot.slane %v3867, 3
      %v3870 = vshll.u32 %v3810, 16
      %v3872 = vrot.slane %v3870, 4
      %v3873 = vor.u32 %v3869, %v3872
      %v3874 = vsel %vm3857, %v3865, %v3873
      %v3876 = vshrl.u32 %v3811, 16
      %v3878 = vrot.slane %v3876, 3
      %v3879 = vshll.u32 %v3811, 16
      %v3881 = vrot.slane %v3879, 4
      %v3882 = vor.u32 %v3878, %v3881
      %v3884 = vshrl.u32 %v3812, 16
      %v3886 = vrot.slane %v3884, 3
      %v3887 = vshll.u32 %v3812, 16
      %v3889 = vrot.slane %v3887, 4
      %v3890 = vor.u32 %v3886, %v3889
      %v3891 = vsel %vm3857, %v3882, %v3890
      %v3893 = vshrl.u32 %v3813, 16
      %v3895 = vrot.slane %v3893, 3
      %v3896 = vshll.u32 %v3813, 16
      %v3898 = vrot.slane %v3896, 4
      %v3899 = vor.u32 %v3895, %v3898
      %v3901 = vshrl.u32 %v3814, 16
      %v3903 = vrot.slane %v3901, 3
      %v3904 = vshll.u32 %v3814, 16
      %v3906 = vrot.slane %v3904, 4
      %v3907 = vor.u32 %v3903, %v3906
      %v3908 = vsel %vm3857, %v3899, %v3907
      %v3910 = vshrl.u32 %v3815, 16
      %v3912 = vrot.slane %v3910, 3
      %v3913 = vshll.u32 %v3815, 16
      %v3915 = vrot.slane %v3913, 4
      %v3916 = vor.u32 %v3912, %v3915
      %v3918 = vshrl.u32 %v3816, 16
      %v3920 = vrot.slane %v3918, 3
      %v3921 = vshll.u32 %v3816, 16
      %v3923 = vrot.slane %v3921, 4
      %v3924 = vor.u32 %v3920, %v3923
      %v3925 = vsel %vm3857, %v3916, %v3924
      %v3927 = vshrl.u32 %v3817, 16
      %v3929 = vrot.slane %v3927, 3
      %v3930 = vshll.u32 %v3817, 16
      %v3932 = vrot.slane %v3930, 4
      %v3933 = vor.u32 %v3929, %v3932
      %v3935 = vshrl.u32 %v3818, 16
      %v3937 = vrot.slane %v3935, 3
      %v3938 = vshll.u32 %v3818, 16
      %v3940 = vrot.slane %v3938, 4
      %v3941 = vor.u32 %v3937, %v3940
      %v3942 = vsel %vm3857, %v3933, %v3941
      %v3944 = vshrl.u32 %v3819, 16
      %v3946 = vrot.slane %v3944, 3
      %v3947 = vshll.u32 %v3819, 16
      %v3949 = vrot.slane %v3947, 4
      %v3950 = vor.u32 %v3946, %v3949
      %v3952 = vshrl.u32 %v3820, 16
      %v3954 = vrot.slane %v3952, 3
      %v3955 = vshll.u32 %v3820, 16
      %v3957 = vrot.slane %v3955, 4
      %v3958 = vor.u32 %v3954, %v3957
      %v3959 = vsel %vm3857, %v3950, %v3958
      %v3961 = vshrl.u32 %v3821, 16
      %v3963 = vrot.slane %v3961, 3
      %v3964 = vshll.u32 %v3821, 16
      %v3966 = vrot.slane %v3964, 4
      %v3967 = vor.u32 %v3963, %v3966
      %v3969 = vshrl.u32 %v3822, 16
      %v3971 = vrot.slane %v3969, 3
      %v3972 = vshll.u32 %v3822, 16
      %v3974 = vrot.slane %v3972, 4
      %v3975 = vor.u32 %v3971, %v3974
      %v3976 = vsel %vm3857, %v3967, %v3975
      %v3978 = vshrl.u32 %v3823, 16
      %v3980 = vrot.slane %v3978, 3
      %v3981 = vshll.u32 %v3823, 16
      %v3983 = vrot.slane %v3981, 4
      %v3984 = vor.u32 %v3980, %v3983
      %v3986 = vshrl.u32 %v3824, 16
      %v3988 = vrot.slane %v3986, 3
      %v3989 = vshll.u32 %v3824, 16
      %v3991 = vrot.slane %v3989, 4
      %v3992 = vor.u32 %v3988, %v3991
      %v3993 = vsel %vm3857, %v3984, %v3992
      %v3995 = vshrl.u32 %v3825, 16
      %v3997 = vrot.slane %v3995, 3
      %v3998 = vshll.u32 %v3825, 16
      %v4000 = vrot.slane %v3998, 4
      %v4001 = vor.u32 %v3997, %v4000
      %v4003 = vshrl.u32 %v3826, 16
      %v4005 = vrot.slane %v4003, 3
      %v4006 = vshll.u32 %v3826, 16
      %v4008 = vrot.slane %v4006, 4
      %v4009 = vor.u32 %v4005, %v4008
      %v4010 = vsel %vm3857, %v4001, %v4009
      %v4012 = vshrl.u32 %v3827, 16
      %v4014 = vrot.slane %v4012, 3
      %v4015 = vshll.u32 %v3827, 16
      %v4017 = vrot.slane %v4015, 4
      %v4018 = vor.u32 %v4014, %v4017
      %v4020 = vshrl.u32 %v3828, 16
      %v4022 = vrot.slane %v4020, 3
      %v4023 = vshll.u32 %v3828, 16
      %v4025 = vrot.slane %v4023, 4
      %v4026 = vor.u32 %v4022, %v4025
      %v4027 = vsel %vm3857, %v4018, %v4026
      %v4029 = vshrl.u32 %v3829, 16
      %v4031 = vrot.slane %v4029, 3
      %v4032 = vshll.u32 %v3829, 16
      %v4034 = vrot.slane %v4032, 4
      %v4035 = vor.u32 %v4031, %v4034
      %v4037 = vshrl.u32 %v3830, 16
      %v4039 = vrot.slane %v4037, 3
      %v4040 = vshll.u32 %v3830, 16
      %v4042 = vrot.slane %v4040, 4
      %v4043 = vor.u32 %v4039, %v4042
      %v4044 = vsel %vm3857, %v4035, %v4043
      %v4046 = vshrl.u32 %v3831, 16
      %v4048 = vrot.slane %v4046, 3
      %v4049 = vshll.u32 %v3831, 16
      %v4051 = vrot.slane %v4049, 4
      %v4052 = vor.u32 %v4048, %v4051
      %v4054 = vshrl.u32 %v3832, 16
      %v4056 = vrot.slane %v4054, 3
      %v4057 = vshll.u32 %v3832, 16
      %v4059 = vrot.slane %v4057, 4
      %v4060 = vor.u32 %v4056, %v4059
      %v4061 = vsel %vm3857, %v4052, %v4060
      %v4063 = vshrl.u32 %v3833, 16
      %v4065 = vrot.slane %v4063, 3
      %v4066 = vshll.u32 %v3833, 16
      %v4068 = vrot.slane %v4066, 4
      %v4069 = vor.u32 %v4065, %v4068
      %v4071 = vshrl.u32 %v3834, 16
      %v4073 = vrot.slane %v4071, 3
      %v4074 = vshll.u32 %v3834, 16
      %v4076 = vrot.slane %v4074, 4
      %v4077 = vor.u32 %v4073, %v4076
      %v4078 = vsel %vm3857, %v4069, %v4077
      %v4080 = vshrl.u32 %v3835, 16
      %v4082 = vrot.slane %v4080, 3
      %v4083 = vshll.u32 %v3835, 16
      %v4085 = vrot.slane %v4083, 4
      %v4086 = vor.u32 %v4082, %v4085
      %v4088 = vshrl.u32 %v3836, 16
      %v4090 = vrot.slane %v4088, 3
      %v4091 = vshll.u32 %v3836, 16
      %v4093 = vrot.slane %v4091, 4
      %v4094 = vor.u32 %v4090, %v4093
      %v4095 = vsel %vm3857, %v4086, %v4094
      %v4097 = vshrl.u32 %v3837, 16
      %v4099 = vrot.slane %v4097, 3
      %v4100 = vshll.u32 %v3837, 16
      %v4102 = vrot.slane %v4100, 4
      %v4103 = vor.u32 %v4099, %v4102
      %v4105 = vshrl.u32 %v3838, 16
      %v4107 = vrot.slane %v4105, 3
      %v4108 = vshll.u32 %v3838, 16
      %v4110 = vrot.slane %v4108, 4
      %v4111 = vor.u32 %v4107, %v4110
      %v4112 = vsel %vm3857, %v4103, %v4111
      %v4114 = vshrl.u32 %v3839, 16
      %v4116 = vrot.slane %v4114, 3
      %v4117 = vshll.u32 %v3839, 16
      %v4119 = vrot.slane %v4117, 4
      %v4120 = vor.u32 %v4116, %v4119
      %v4122 = vshrl.u32 %v3840, 16
      %v4124 = vrot.slane %v4122, 3
      %v4125 = vshll.u32 %v3840, 16
      %v4127 = vrot.slane %v4125, 4
      %v4128 = vor.u32 %v4124, %v4127
      %v4129 = vsel %vm3857, %v4120, %v4128
      %v4131 = vshrl.u32 %v3841, 16
      %v4133 = vrot.slane %v4131, 3
      %v4134 = vshll.u32 %v3841, 16
      %v4136 = vrot.slane %v4134, 4
      %v4137 = vor.u32 %v4133, %v4136
      %v4139 = vshrl.u32 %v3842, 16
      %v4141 = vrot.slane %v4139, 3
      %v4142 = vshll.u32 %v3842, 16
      %v4144 = vrot.slane %v4142, 4
      %v4145 = vor.u32 %v4141, %v4144
      %v4146 = vsel %vm3857, %v4137, %v4145
      %v4148 = vshrl.u32 %v3843, 16
      %v4150 = vrot.slane %v4148, 3
      %v4151 = vshll.u32 %v3843, 16
      %v4153 = vrot.slane %v4151, 4
      %v4154 = vor.u32 %v4150, %v4153
      %v4156 = vshrl.u32 %v3844, 16
      %v4158 = vrot.slane %v4156, 3
      %v4159 = vshll.u32 %v3844, 16
      %v4161 = vrot.slane %v4159, 4
      %v4162 = vor.u32 %v4158, %v4161
      %v4163 = vsel %vm3857, %v4154, %v4162
      %v4165 = vshrl.u32 %v3845, 16
      %v4167 = vrot.slane %v4165, 3
      %v4168 = vshll.u32 %v3845, 16
      %v4170 = vrot.slane %v4168, 4
      %v4171 = vor.u32 %v4167, %v4170
      %v4173 = vshrl.u32 %v3846, 16
      %v4175 = vrot.slane %v4173, 3
      %v4176 = vshll.u32 %v3846, 16
      %v4178 = vrot.slane %v4176, 4
      %v4179 = vor.u32 %v4175, %v4178
      %v4180 = vsel %vm3857, %v4171, %v4179
      %v4182 = vshrl.u32 %v3847, 16
      %v4184 = vrot.slane %v4182, 3
      %v4185 = vshll.u32 %v3847, 16
      %v4187 = vrot.slane %v4185, 4
      %v4188 = vor.u32 %v4184, %v4187
      %v4190 = vshrl.u32 %v3848, 16
      %v4192 = vrot.slane %v4190, 3
      %v4193 = vshll.u32 %v3848, 16
      %v4195 = vrot.slane %v4193, 4
      %v4196 = vor.u32 %v4192, %v4195
      %v4197 = vsel %vm3857, %v4188, %v4196
      %v4199 = vshrl.u32 %v3849, 16
      %v4201 = vrot.slane %v4199, 3
      %v4202 = vshll.u32 %v3849, 16
      %v4204 = vrot.slane %v4202, 4
      %v4205 = vor.u32 %v4201, %v4204
      %v4207 = vshrl.u32 %v3850, 16
      %v4209 = vrot.slane %v4207, 3
      %v4210 = vshll.u32 %v3850, 16
      %v4212 = vrot.slane %v4210, 4
      %v4213 = vor.u32 %v4209, %v4212
      %v4214 = vsel %vm3857, %v4205, %v4213
      %v4216 = vshrl.u32 %v3851, 16
      %v4218 = vrot.slane %v4216, 3
      %v4219 = vshll.u32 %v3851, 16
      %v4221 = vrot.slane %v4219, 4
      %v4222 = vor.u32 %v4218, %v4221
      %v4224 = vshrl.u32 %v3852, 16
      %v4226 = vrot.slane %v4224, 3
      %v4227 = vshll.u32 %v3852, 16
      %v4229 = vrot.slane %v4227, 4
      %v4230 = vor.u32 %v4226, %v4229
      %v4231 = vsel %vm3857, %v4222, %v4230
      %v4233 = vshrl.u32 %v3853, 16
      %v4235 = vrot.slane %v4233, 3
      %v4236 = vshll.u32 %v3853, 16
      %v4238 = vrot.slane %v4236, 4
      %v4239 = vor.u32 %v4235, %v4238
      %v4241 = vshrl.u32 %v3854, 16
      %v4243 = vrot.slane %v4241, 3
      %v4244 = vshll.u32 %v3854, 16
      %v4246 = vrot.slane %v4244, 4
      %v4247 = vor.u32 %v4243, %v4246
      %v4248 = vsel %vm3857, %v4239, %v4247
      %v4250 = vshrl.u32 %v3855, 16
      %v4252 = vrot.slane %v4250, 3
      %v4253 = vshll.u32 %v3855, 16
      %v4255 = vrot.slane %v4253, 4
      %v4256 = vor.u32 %v4252, %v4255
      %v4258 = vshrl.u32 %v3856, 16
      %v4260 = vrot.slane %v4258, 3
      %v4261 = vshll.u32 %v3856, 16
      %v4263 = vrot.slane %v4261, 4
      %v4264 = vor.u32 %v4260, %v4263
      %v4265 = vsel %vm3857, %v4256, %v4264
      %s4290 = scalar_lea.vmem [#allocation2], 1344
      %4291 = vst.msk [vmem:[%s4290] sm:$0xff] %vm364, %v3874
      %4292 = vst.msk [vmem:[%s4290 + $0x8] sm:$0xff] %vm364, %v3891
      %4293 = vst.msk [vmem:[%s4290 + $0x10] sm:$0xff] %vm364, %v3908
      %4294 = vst.msk [vmem:[%s4290 + $0x18] sm:$0xff] %vm364, %v3925
      %4295 = vst.msk [vmem:[%s4290 + $0x20] sm:$0xff] %vm364, %v3942
      %4296 = vst.msk [vmem:[%s4290 + $0x28] sm:$0xff] %vm364, %v3959
      %4297 = vst.msk [vmem:[%s4290 + $0x30] sm:$0xff] %vm364, %v3976
      %4298 = vst.msk [vmem:[%s4290 + $0x38] sm:$0xff] %vm364, %v3993
      %4299 = vst.msk [vmem:[%s4290 + $0x40] sm:$0xff] %vm364, %v4010
      %4300 = vst.msk [vmem:[%s4290 + $0x48] sm:$0xff] %vm364, %v4027
      %4301 = vst.msk [vmem:[%s4290 + $0x50] sm:$0xff] %vm364, %v4044
      %4302 = vst.msk [vmem:[%s4290 + $0x58] sm:$0xff] %vm364, %v4061
      %4303 = vst.msk [vmem:[%s4290 + $0x60] sm:$0xff] %vm364, %v4078
      %4304 = vst.msk [vmem:[%s4290 + $0x68] sm:$0xff] %vm364, %v4095
      %4305 = vst.msk [vmem:[%s4290 + $0x70] sm:$0xff] %vm364, %v4112
      %4306 = vst.msk [vmem:[%s4290 + $0x78] sm:$0xff] %vm364, %v4129
      %4307 = vst.msk [vmem:[%s4290 + $0x80] sm:$0xff] %vm364, %v4146
      %4308 = vst.msk [vmem:[%s4290 + $0x88] sm:$0xff] %vm364, %v4163
      %4309 = vst.msk [vmem:[%s4290 + $0x90] sm:$0xff] %vm364, %v4180
      %4310 = vst.msk [vmem:[%s4290 + $0x98] sm:$0xff] %vm364, %v4197
      %4311 = vst.msk [vmem:[%s4290 + $0xa0] sm:$0xff] %vm364, %v4214
      %4312 = vst.msk [vmem:[%s4290 + $0xa8] sm:$0xff] %vm364, %v4231
      %4313 = vst.msk [vmem:[%s4290 + $0xb0] sm:$0xff] %vm364, %v4248
      %4314 = vst.msk [vmem:[%s4290 + $0xb8] sm:$0xff] %vm364, %v4265
      %v4315 = vld [vmem:[%s165 + $0x4] sm:$0xf]
      %v4316 = vld [vmem:[%s165 + $0x8] sm:$0xf]
      %v4317 = vld [vmem:[%s165 + $0x10] sm:$0xf]
      %v4318 = vld [vmem:[%s165 + $0x14] sm:$0xf]
      %v4319 = vld [vmem:[%s165 + $0x1c] sm:$0xf]
      %v4320 = vld [vmem:[%s165 + $0x20] sm:$0xf]
      %v4321 = vld [vmem:[%s165 + $0x28] sm:$0xf]
      %v4322 = vld [vmem:[%s165 + $0x2c] sm:$0xf]
      %v4323 = vld [vmem:[%s165 + $0x34] sm:$0xf]
      %v4324 = vld [vmem:[%s165 + $0x38] sm:$0xf]
      %v4325 = vld [vmem:[%s165 + $0x40] sm:$0xf]
      %v4326 = vld [vmem:[%s165 + $0x44] sm:$0xf]
      %v4327 = vld [vmem:[%s165 + $0x4c] sm:$0xf]
      %v4328 = vld [vmem:[%s165 + $0x50] sm:$0xf]
      %v4329 = vld [vmem:[%s165 + $0x58] sm:$0xf]
      %v4330 = vld [vmem:[%s165 + $0x5c] sm:$0xf]
      %v4331 = vld [vmem:[%s165 + $0x64] sm:$0xf]
      %v4332 = vld [vmem:[%s165 + $0x68] sm:$0xf]
      %v4333 = vld [vmem:[%s165 + $0x70] sm:$0xf]
      %v4334 = vld [vmem:[%s165 + $0x74] sm:$0xf]
      %v4335 = vld [vmem:[%s165 + $0x7c] sm:$0xf]
      %v4336 = vld [vmem:[%s165 + $0x80] sm:$0xf]
      %v4337 = vld [vmem:[%s165 + $0x88] sm:$0xf]
      %v4338 = vld [vmem:[%s165 + $0x8c] sm:$0xf]
      %v4339 = vld [vmem:[%s165 + $0x94] sm:$0xf]
      %v4340 = vld [vmem:[%s165 + $0x98] sm:$0xf]
      %v4341 = vld [vmem:[%s165 + $0xa0] sm:$0xf]
      %v4342 = vld [vmem:[%s165 + $0xa4] sm:$0xf]
      %v4343 = vld [vmem:[%s165 + $0xac] sm:$0xf]
      %v4344 = vld [vmem:[%s165 + $0xb0] sm:$0xf]
      %v4345 = vld [vmem:[%s165 + $0xb8] sm:$0xf]
      %v4346 = vld [vmem:[%s165 + $0xbc] sm:$0xf]
      %v4347 = vld [vmem:[%s165 + $0xc4] sm:$0xf]
      %v4348 = vld [vmem:[%s165 + $0xc8] sm:$0xf]
      %v4349 = vld [vmem:[%s165 + $0xd0] sm:$0xf]
      %v4350 = vld [vmem:[%s165 + $0xd4] sm:$0xf]
      %v4351 = vld [vmem:[%s165 + $0xdc] sm:$0xf]
      %v4352 = vld [vmem:[%s165 + $0xe0] sm:$0xf]
      %v4353 = vld [vmem:[%s165 + $0xe8] sm:$0xf]
      %v4354 = vld [vmem:[%s165 + $0xec] sm:$0xf]
      %v4355 = vld [vmem:[%s165 + $0xf4] sm:$0xf]
      %v4356 = vld [vmem:[%s165 + $0xf8] sm:$0xf]
      %v4357 = vld [vmem:[%s165 + $0x100] sm:$0xf]
      %v4358 = vld [vmem:[%s165 + $0x104] sm:$0xf]
      %v4359 = vld [vmem:[%s165 + $0x10c] sm:$0xf]
      %v4360 = vld [vmem:[%s165 + $0x110] sm:$0xf]
      %v4361 = vld [vmem:[%s165 + $0x118] sm:$0xf]
      %v4362 = vld [vmem:[%s165 + $0x11c] sm:$0xf]
      %v4411 = vunpack.c.l.b16 %v4315
      %v4412 = vunpack.c.l.b16 %v4316
      %v4413 = vunpack.c.l.b16 %v4317
      %v4414 = vunpack.c.l.b16 %v4318
      %v4415 = vunpack.c.l.b16 %v4319
      %v4416 = vunpack.c.l.b16 %v4320
      %v4417 = vunpack.c.l.b16 %v4321
      %v4418 = vunpack.c.l.b16 %v4322
      %v4419 = vunpack.c.l.b16 %v4323
      %v4420 = vunpack.c.l.b16 %v4324
      %v4421 = vunpack.c.l.b16 %v4325
      %v4422 = vunpack.c.l.b16 %v4326
      %v4423 = vunpack.c.l.b16 %v4327
      %v4424 = vunpack.c.l.b16 %v4328
      %v4425 = vunpack.c.l.b16 %v4329
      %v4426 = vunpack.c.l.b16 %v4330
      %v4427 = vunpack.c.l.b16 %v4331
      %v4428 = vunpack.c.l.b16 %v4332
      %v4429 = vunpack.c.l.b16 %v4333
      %v4430 = vunpack.c.l.b16 %v4334
      %v4431 = vunpack.c.l.b16 %v4335
      %v4432 = vunpack.c.l.b16 %v4336
      %v4433 = vunpack.c.l.b16 %v4337
      %v4434 = vunpack.c.l.b16 %v4338
      %v4435 = vunpack.c.l.b16 %v4339
      %v4436 = vunpack.c.l.b16 %v4340
      %v4437 = vunpack.c.l.b16 %v4341
      %v4438 = vunpack.c.l.b16 %v4342
      %v4439 = vunpack.c.l.b16 %v4343
      %v4440 = vunpack.c.l.b16 %v4344
      %v4441 = vunpack.c.l.b16 %v4345
      %v4442 = vunpack.c.l.b16 %v4346
      %v4443 = vunpack.c.l.b16 %v4347
      %v4444 = vunpack.c.l.b16 %v4348
      %v4445 = vunpack.c.l.b16 %v4349
      %v4446 = vunpack.c.l.b16 %v4350
      %v4447 = vunpack.c.l.b16 %v4351
      %v4448 = vunpack.c.l.b16 %v4352
      %v4449 = vunpack.c.l.b16 %v4353
      %v4450 = vunpack.c.l.b16 %v4354
      %v4451 = vunpack.c.l.b16 %v4355
      %v4452 = vunpack.c.l.b16 %v4356
      %v4453 = vunpack.c.l.b16 %v4357
      %v4454 = vunpack.c.l.b16 %v4358
      %v4455 = vunpack.c.l.b16 %v4359
      %v4456 = vunpack.c.l.b16 %v4360
      %v4457 = vunpack.c.l.b16 %v4361
      %v4458 = vunpack.c.l.b16 %v4362
      %v4459 = vpack.c.b16 %v4412, %v4411
      %v4460 = vpack.c.b16 %v4414, %v4413
      %v4461 = vpack.c.b16 %v4416, %v4415
      %v4462 = vpack.c.b16 %v4418, %v4417
      %v4463 = vpack.c.b16 %v4420, %v4419
      %v4464 = vpack.c.b16 %v4422, %v4421
      %v4465 = vpack.c.b16 %v4424, %v4423
      %v4466 = vpack.c.b16 %v4426, %v4425
      %v4467 = vpack.c.b16 %v4428, %v4427
      %v4468 = vpack.c.b16 %v4430, %v4429
      %v4469 = vpack.c.b16 %v4432, %v4431
      %v4470 = vpack.c.b16 %v4434, %v4433
      %v4471 = vpack.c.b16 %v4436, %v4435
      %v4472 = vpack.c.b16 %v4438, %v4437
      %v4473 = vpack.c.b16 %v4440, %v4439
      %v4474 = vpack.c.b16 %v4442, %v4441
      %v4475 = vpack.c.b16 %v4444, %v4443
      %v4476 = vpack.c.b16 %v4446, %v4445
      %v4477 = vpack.c.b16 %v4448, %v4447
      %v4478 = vpack.c.b16 %v4450, %v4449
      %v4479 = vpack.c.b16 %v4452, %v4451
      %v4480 = vpack.c.b16 %v4454, %v4453
      %v4481 = vpack.c.b16 %v4456, %v4455
      %v4482 = vpack.c.b16 %v4458, %v4457
      %s4507 = scalar_lea.vmem [#allocation2], 1536
      %4508 = vst.msk [vmem:[%s4507] sm:$0xff] %vm364, %v4459
      %4509 = vst.msk [vmem:[%s4507 + $0x8] sm:$0xff] %vm364, %v4460
      %4510 = vst.msk [vmem:[%s4507 + $0x10] sm:$0xff] %vm364, %v4461
      %4511 = vst.msk [vmem:[%s4507 + $0x18] sm:$0xff] %vm364, %v4462
      %4512 = vst.msk [vmem:[%s4507 + $0x20] sm:$0xff] %vm364, %v4463
      %4513 = vst.msk [vmem:[%s4507 + $0x28] sm:$0xff] %vm364, %v4464
      %4514 = vst.msk [vmem:[%s4507 + $0x30] sm:$0xff] %vm364, %v4465
      %4515 = vst.msk [vmem:[%s4507 + $0x38] sm:$0xff] %vm364, %v4466
      %4516 = vst.msk [vmem:[%s4507 + $0x40] sm:$0xff] %vm364, %v4467
      %4517 = vst.msk [vmem:[%s4507 + $0x48] sm:$0xff] %vm364, %v4468
      %4518 = vst.msk [vmem:[%s4507 + $0x50] sm:$0xff] %vm364, %v4469
      %4519 = vst.msk [vmem:[%s4507 + $0x58] sm:$0xff] %vm364, %v4470
      %4520 = vst.msk [vmem:[%s4507 + $0x60] sm:$0xff] %vm364, %v4471
      %4521 = vst.msk [vmem:[%s4507 + $0x68] sm:$0xff] %vm364, %v4472
      %4522 = vst.msk [vmem:[%s4507 + $0x70] sm:$0xff] %vm364, %v4473
      %4523 = vst.msk [vmem:[%s4507 + $0x78] sm:$0xff] %vm364, %v4474
      %4524 = vst.msk [vmem:[%s4507 + $0x80] sm:$0xff] %vm364, %v4475
      %4525 = vst.msk [vmem:[%s4507 + $0x88] sm:$0xff] %vm364, %v4476
      %4526 = vst.msk [vmem:[%s4507 + $0x90] sm:$0xff] %vm364, %v4477
      %4527 = vst.msk [vmem:[%s4507 + $0x98] sm:$0xff] %vm364, %v4478
      %4528 = vst.msk [vmem:[%s4507 + $0xa0] sm:$0xff] %vm364, %v4479
      %4529 = vst.msk [vmem:[%s4507 + $0xa8] sm:$0xff] %vm364, %v4480
      %4530 = vst.msk [vmem:[%s4507 + $0xb0] sm:$0xff] %vm364, %v4481
      %4531 = vst.msk [vmem:[%s4507 + $0xb8] sm:$0xff] %vm364, %v4482
      %s4532 = scalar_lea.vmem [#allocation2], 600
      %v4533 = vld [vmem:[%s4532] sm:$0xff]
      %v4534 = vld [vmem:[%s4532 + $0x8] sm:$0xff]
      %v4535 = vld [vmem:[%s4532 + $0x10] sm:$0xff]
      %v4536 = vld [vmem:[%s4532 + $0x18] sm:$0xff]
      %v4537 = vld [vmem:[%s4532 + $0x20] sm:$0xff]
      %v4538 = vld [vmem:[%s4532 + $0x28] sm:$0xff]
      %v4539 = vld [vmem:[%s4532 + $0x30] sm:$0xff]
      %v4540 = vld [vmem:[%s4532 + $0x38] sm:$0xff]
      %v4541 = vld [vmem:[%s4532 + $0x40] sm:$0xff]
      %v4542 = vld [vmem:[%s4532 + $0x48] sm:$0xff]
      %v4543 = vld [vmem:[%s4532 + $0x50] sm:$0xff]
      %v4544 = vld [vmem:[%s4532 + $0x58] sm:$0xff]
      %v4545 = vld [vmem:[%s4532 + $0x60] sm:$0xff]
      %v4546 = vld [vmem:[%s4532 + $0x68] sm:$0xff]
      %v4547 = vld [vmem:[%s4532 + $0x70] sm:$0xff]
      %v4548 = vld [vmem:[%s4532 + $0x78] sm:$0xff]
      %s4549 = scalar_lea.vmem [#allocation2], 792
      %v4550 = vld [vmem:[%s4549] sm:$0xff]
      %v4551 = vld [vmem:[%s4549 + $0x8] sm:$0xff]
      %v4552 = vld [vmem:[%s4549 + $0x10] sm:$0xff]
      %v4553 = vld [vmem:[%s4549 + $0x18] sm:$0xff]
      %v4554 = vld [vmem:[%s4549 + $0x20] sm:$0xff]
      %v4555 = vld [vmem:[%s4549 + $0x28] sm:$0xff]
      %v4556 = vld [vmem:[%s4549 + $0x30] sm:$0xff]
      %v4557 = vld [vmem:[%s4549 + $0x38] sm:$0xff]
      %v4558 = vld [vmem:[%s4549 + $0x40] sm:$0xff]
      %v4559 = vld [vmem:[%s4549 + $0x48] sm:$0xff]
      %v4560 = vld [vmem:[%s4549 + $0x50] sm:$0xff]
      %v4561 = vld [vmem:[%s4549 + $0x58] sm:$0xff]
      %v4562 = vld [vmem:[%s4549 + $0x60] sm:$0xff]
      %v4563 = vld [vmem:[%s4549 + $0x68] sm:$0xff]
      %v4564 = vld [vmem:[%s4549 + $0x70] sm:$0xff]
      %v4565 = vld [vmem:[%s4549 + $0x78] sm:$0xff]
      %s4566 = scalar_lea.vmem [#allocation2], 984
      %v4567 = vld [vmem:[%s4566] sm:$0xff]
      %v4568 = vld [vmem:[%s4566 + $0x8] sm:$0xff]
      %v4569 = vld [vmem:[%s4566 + $0x10] sm:$0xff]
      %v4570 = vld [vmem:[%s4566 + $0x18] sm:$0xff]
      %v4571 = vld [vmem:[%s4566 + $0x20] sm:$0xff]
      %v4572 = vld [vmem:[%s4566 + $0x28] sm:$0xff]
      %v4573 = vld [vmem:[%s4566 + $0x30] sm:$0xff]
      %v4574 = vld [vmem:[%s4566 + $0x38] sm:$0xff]
      %v4575 = vld [vmem:[%s4566 + $0x40] sm:$0xff]
      %v4576 = vld [vmem:[%s4566 + $0x48] sm:$0xff]
      %v4577 = vld [vmem:[%s4566 + $0x50] sm:$0xff]
      %v4578 = vld [vmem:[%s4566 + $0x58] sm:$0xff]
      %v4579 = vld [vmem:[%s4566 + $0x60] sm:$0xff]
      %v4580 = vld [vmem:[%s4566 + $0x68] sm:$0xff]
      %v4581 = vld [vmem:[%s4566 + $0x70] sm:$0xff]
      %v4582 = vld [vmem:[%s4566 + $0x78] sm:$0xff]
      %s4583 = scalar_lea.vmem [#allocation2], 608
      %v4584 = vld [vmem:[%s4583] sm:$0xff]
      %v4585 = vld [vmem:[%s4583 + $0x8] sm:$0xff]
      %v4586 = vld [vmem:[%s4583 + $0x10] sm:$0xff]
      %v4587 = vld [vmem:[%s4583 + $0x18] sm:$0xff]
      %v4588 = vld [vmem:[%s4583 + $0x20] sm:$0xff]
      %v4589 = vld [vmem:[%s4583 + $0x28] sm:$0xff]
      %v4590 = vld [vmem:[%s4583 + $0x30] sm:$0xff]
      %v4591 = vld [vmem:[%s4583 + $0x38] sm:$0xff]
      %v4592 = vld [vmem:[%s4583 + $0x40] sm:$0xff]
      %v4593 = vld [vmem:[%s4583 + $0x48] sm:$0xff]
      %v4594 = vld [vmem:[%s4583 + $0x50] sm:$0xff]
      %v4595 = vld [vmem:[%s4583 + $0x58] sm:$0xff]
      %v4596 = vld [vmem:[%s4583 + $0x60] sm:$0xff]
      %v4597 = vld [vmem:[%s4583 + $0x68] sm:$0xff]
      %v4598 = vld [vmem:[%s4583 + $0x70] sm:$0xff]
      %v4599 = vld [vmem:[%s4583 + $0x78] sm:$0xff]
      %4616 = vrot.lane.b32.xlu0 %v4550, 32
      %v4617 = vpop.permute.xlu0 %4616
      %4618 = vrot.lane.b32.xlu0 %v4551, 32
      %v4619 = vpop.permute.xlu0 %4618
      %4620 = vrot.lane.b32.xlu0 %v4552, 32
      %v4621 = vpop.permute.xlu0 %4620
      %4622 = vrot.lane.b32.xlu0 %v4553, 32
      %v4623 = vpop.permute.xlu0 %4622
      %4624 = vrot.lane.b32.xlu0 %v4554, 32
      %v4625 = vpop.permute.xlu0 %4624
      %4626 = vrot.lane.b32.xlu0 %v4555, 32
      %v4627 = vpop.permute.xlu0 %4626
      %4628 = vrot.lane.b32.xlu0 %v4556, 32
      %v4629 = vpop.permute.xlu0 %4628
      %4630 = vrot.lane.b32.xlu0 %v4557, 32
      %v4631 = vpop.permute.xlu0 %4630
      %4632 = vrot.lane.b32.xlu0 %v4558, 32
      %v4633 = vpop.permute.xlu0 %4632
      %4634 = vrot.lane.b32.xlu0 %v4559, 32
      %v4635 = vpop.permute.xlu0 %4634
      %4636 = vrot.lane.b32.xlu0 %v4560, 32
      %v4637 = vpop.permute.xlu0 %4636
      %4638 = vrot.lane.b32.xlu0 %v4561, 32
      %v4639 = vpop.permute.xlu0 %4638
      %4640 = vrot.lane.b32.xlu0 %v4562, 32
      %v4641 = vpop.permute.xlu0 %4640
      %4642 = vrot.lane.b32.xlu0 %v4563, 32
      %v4643 = vpop.permute.xlu0 %4642
      %4644 = vrot.lane.b32.xlu0 %v4564, 32
      %v4645 = vpop.permute.xlu0 %4644
      %4646 = vrot.lane.b32.xlu0 %v4565, 32
      %v4647 = vpop.permute.xlu0 %4646
      %4664 = vrot.lane.b32.xlu0 %v4567, 64
      %v4665 = vpop.permute.xlu0 %4664
      %4666 = vrot.lane.b32.xlu0 %v4568, 64
      %v4667 = vpop.permute.xlu0 %4666
      %4668 = vrot.lane.b32.xlu0 %v4569, 64
      %v4669 = vpop.permute.xlu0 %4668
      %4670 = vrot.lane.b32.xlu0 %v4570, 64
      %v4671 = vpop.permute.xlu0 %4670
      %4672 = vrot.lane.b32.xlu0 %v4571, 64
      %v4673 = vpop.permute.xlu0 %4672
      %4674 = vrot.lane.b32.xlu0 %v4572, 64
      %v4675 = vpop.permute.xlu0 %4674
      %4676 = vrot.lane.b32.xlu0 %v4573, 64
      %v4677 = vpop.permute.xlu0 %4676
      %4678 = vrot.lane.b32.xlu0 %v4574, 64
      %v4679 = vpop.permute.xlu0 %4678
      %4680 = vrot.lane.b32.xlu0 %v4575, 64
      %v4681 = vpop.permute.xlu0 %4680
      %4682 = vrot.lane.b32.xlu0 %v4576, 64
      %v4683 = vpop.permute.xlu0 %4682
      %4684 = vrot.lane.b32.xlu0 %v4577, 64
      %v4685 = vpop.permute.xlu0 %4684
      %4686 = vrot.lane.b32.xlu0 %v4578, 64
      %v4687 = vpop.permute.xlu0 %4686
      %4688 = vrot.lane.b32.xlu0 %v4579, 64
      %v4689 = vpop.permute.xlu0 %4688
      %4690 = vrot.lane.b32.xlu0 %v4580, 64
      %v4691 = vpop.permute.xlu0 %4690
      %4692 = vrot.lane.b32.xlu0 %v4581, 64
      %v4693 = vpop.permute.xlu0 %4692
      %4694 = vrot.lane.b32.xlu0 %v4582, 64
      %v4695 = vpop.permute.xlu0 %4694
      %4712 = vrot.lane.b32.xlu0 %v4584, 96
      %v4713 = vpop.permute.xlu0 %4712
      %4714 = vrot.lane.b32.xlu0 %v4585, 96
      %v4715 = vpop.permute.xlu0 %4714
      %4716 = vrot.lane.b32.xlu0 %v4586, 96
      %v4717 = vpop.permute.xlu0 %4716
      %4718 = vrot.lane.b32.xlu0 %v4587, 96
      %v4719 = vpop.permute.xlu0 %4718
      %4720 = vrot.lane.b32.xlu0 %v4588, 96
      %v4721 = vpop.permute.xlu0 %4720
      %4722 = vrot.lane.b32.xlu0 %v4589, 96
      %v4723 = vpop.permute.xlu0 %4722
      %4724 = vrot.lane.b32.xlu0 %v4590, 96
      %v4725 = vpop.permute.xlu0 %4724
      %4726 = vrot.lane.b32.xlu0 %v4591, 96
      %v4727 = vpop.permute.xlu0 %4726
      %4728 = vrot.lane.b32.xlu0 %v4592, 96
      %v4729 = vpop.permute.xlu0 %4728
      %4730 = vrot.lane.b32.xlu0 %v4593, 96
      %v4731 = vpop.permute.xlu0 %4730
      %4732 = vrot.lane.b32.xlu0 %v4594, 96
      %v4733 = vpop.permute.xlu0 %4732
      %4734 = vrot.lane.b32.xlu0 %v4595, 96
      %v4735 = vpop.permute.xlu0 %4734
      %4736 = vrot.lane.b32.xlu0 %v4596, 96
      %v4737 = vpop.permute.xlu0 %4736
      %4738 = vrot.lane.b32.xlu0 %v4597, 96
      %v4739 = vpop.permute.xlu0 %4738
      %4740 = vrot.lane.b32.xlu0 %v4598, 96
      %v4741 = vpop.permute.xlu0 %4740
      %4742 = vrot.lane.b32.xlu0 %v4599, 96
      %v4743 = vpop.permute.xlu0 %4742
      %v4746 = vsel %vm364, %v4533, %v4617
      %v4749 = vsel %vm364, %v4534, %v4619
      %v4752 = vsel %vm364, %v4535, %v4621
      %v4755 = vsel %vm364, %v4536, %v4623
      %v4758 = vsel %vm364, %v4537, %v4625
      %v4761 = vsel %vm364, %v4538, %v4627
      %v4764 = vsel %vm364, %v4539, %v4629
      %v4767 = vsel %vm364, %v4540, %v4631
      %v4770 = vsel %vm364, %v4541, %v4633
      %v4773 = vsel %vm364, %v4542, %v4635
      %v4776 = vsel %vm364, %v4543, %v4637
      %v4779 = vsel %vm364, %v4544, %v4639
      %v4782 = vsel %vm364, %v4545, %v4641
      %v4785 = vsel %vm364, %v4546, %v4643
      %v4788 = vsel %vm364, %v4547, %v4645
      %v4791 = vsel %vm364, %v4548, %v4647
      %vm4792 = vcmask 523264
      %v4794 = vsel %vm4792, %v4746, %v4665
      %v4796 = vsel %vm4792, %v4749, %v4667
      %v4798 = vsel %vm4792, %v4752, %v4669
      %v4800 = vsel %vm4792, %v4755, %v4671
      %v4802 = vsel %vm4792, %v4758, %v4673
      %v4804 = vsel %vm4792, %v4761, %v4675
      %v4806 = vsel %vm4792, %v4764, %v4677
      %v4808 = vsel %vm4792, %v4767, %v4679
      %v4810 = vsel %vm4792, %v4770, %v4681
      %v4812 = vsel %vm4792, %v4773, %v4683
      %v4814 = vsel %vm4792, %v4776, %v4685
      %v4816 = vsel %vm4792, %v4779, %v4687
      %v4818 = vsel %vm4792, %v4782, %v4689
      %v4820 = vsel %vm4792, %v4785, %v4691
      %v4822 = vsel %vm4792, %v4788, %v4693
      %v4824 = vsel %vm4792, %v4791, %v4695
      %vm4825 = vcmask 785408
      %v4827 = vsel %vm4825, %v4794, %v4713
      %v4830 = vsel %vm4825, %v4796, %v4715
      %v4833 = vsel %vm4825, %v4798, %v4717
      %v4836 = vsel %vm4825, %v4800, %v4719
      %v4839 = vsel %vm4825, %v4802, %v4721
      %v4842 = vsel %vm4825, %v4804, %v4723
      %v4845 = vsel %vm4825, %v4806, %v4725
      %v4848 = vsel %vm4825, %v4808, %v4727
      %v4851 = vsel %vm4825, %v4810, %v4729
      %v4854 = vsel %vm4825, %v4812, %v4731
      %v4857 = vsel %vm4825, %v4814, %v4733
      %v4860 = vsel %vm4825, %v4816, %v4735
      %v4863 = vsel %vm4825, %v4818, %v4737
      %v4866 = vsel %vm4825, %v4820, %v4739
      %v4869 = vsel %vm4825, %v4822, %v4741
      %v4872 = vsel %vm4825, %v4824, %v4743
      %4874 = vst [vmem:[#allocation3] sm:$0xff] %v4827
      %4875 = vst [vmem:[#allocation3 + $0x48] sm:$0xff] %v4830
      %4876 = vst [vmem:[#allocation3 + $0x90] sm:$0xff] %v4833
      %4877 = vst [vmem:[#allocation3 + $0xd8] sm:$0xff] %v4836
      %4878 = vst [vmem:[#allocation3 + $0x120] sm:$0xff] %v4839
      %4879 = vst [vmem:[#allocation3 + $0x168] sm:$0xff] %v4842
      %4880 = vst [vmem:[#allocation3 + $0x1b0] sm:$0xff] %v4845
      %4881 = vst [vmem:[#allocation3 + $0x1f8] sm:$0xff] %v4848
      %4882 = vst [vmem:[#allocation3 + $0x240] sm:$0xff] %v4851
      %4883 = vst [vmem:[#allocation3 + $0x288] sm:$0xff] %v4854
      %4884 = vst [vmem:[#allocation3 + $0x2d0] sm:$0xff] %v4857
      %4885 = vst [vmem:[#allocation3 + $0x318] sm:$0xff] %v4860
      %4886 = vst [vmem:[#allocation3 + $0x360] sm:$0xff] %v4863
      %4887 = vst [vmem:[#allocation3 + $0x3a8] sm:$0xff] %v4866
      %4888 = vst [vmem:[#allocation3 + $0x3f0] sm:$0xff] %v4869
      %4889 = vst [vmem:[#allocation3 + $0x438] sm:$0xff] %v4872
      %s4890 = scalar_lea.vmem [#allocation2], 800
      %v4891 = vld [vmem:[%s4890] sm:$0xff]
      %v4892 = vld [vmem:[%s4890 + $0x8] sm:$0xff]
      %v4893 = vld [vmem:[%s4890 + $0x10] sm:$0xff]
      %v4894 = vld [vmem:[%s4890 + $0x18] sm:$0xff]
      %v4895 = vld [vmem:[%s4890 + $0x20] sm:$0xff]
      %v4896 = vld [vmem:[%s4890 + $0x28] sm:$0xff]
      %v4897 = vld [vmem:[%s4890 + $0x30] sm:$0xff]
      %v4898 = vld [vmem:[%s4890 + $0x38] sm:$0xff]
      %v4899 = vld [vmem:[%s4890 + $0x40] sm:$0xff]
      %v4900 = vld [vmem:[%s4890 + $0x48] sm:$0xff]
      %v4901 = vld [vmem:[%s4890 + $0x50] sm:$0xff]
      %v4902 = vld [vmem:[%s4890 + $0x58] sm:$0xff]
      %v4903 = vld [vmem:[%s4890 + $0x60] sm:$0xff]
      %v4904 = vld [vmem:[%s4890 + $0x68] sm:$0xff]
      %v4905 = vld [vmem:[%s4890 + $0x70] sm:$0xff]
      %v4906 = vld [vmem:[%s4890 + $0x78] sm:$0xff]
      %s4907 = scalar_lea.vmem [#allocation2], 992
      %v4908 = vld [vmem:[%s4907] sm:$0xff]
      %v4909 = vld [vmem:[%s4907 + $0x8] sm:$0xff]
      %v4910 = vld [vmem:[%s4907 + $0x10] sm:$0xff]
      %v4911 = vld [vmem:[%s4907 + $0x18] sm:$0xff]
      %v4912 = vld [vmem:[%s4907 + $0x20] sm:$0xff]
      %v4913 = vld [vmem:[%s4907 + $0x28] sm:$0xff]
      %v4914 = vld [vmem:[%s4907 + $0x30] sm:$0xff]
      %v4915 = vld [vmem:[%s4907 + $0x38] sm:$0xff]
      %v4916 = vld [vmem:[%s4907 + $0x40] sm:$0xff]
      %v4917 = vld [vmem:[%s4907 + $0x48] sm:$0xff]
      %v4918 = vld [vmem:[%s4907 + $0x50] sm:$0xff]
      %v4919 = vld [vmem:[%s4907 + $0x58] sm:$0xff]
      %v4920 = vld [vmem:[%s4907 + $0x60] sm:$0xff]
      %v4921 = vld [vmem:[%s4907 + $0x68] sm:$0xff]
      %v4922 = vld [vmem:[%s4907 + $0x70] sm:$0xff]
      %v4923 = vld [vmem:[%s4907 + $0x78] sm:$0xff]
      %s4924 = scalar_lea.vmem [#allocation2], 616
      %v4925 = vld [vmem:[%s4924] sm:$0xff]
      %v4926 = vld [vmem:[%s4924 + $0x8] sm:$0xff]
      %v4927 = vld [vmem:[%s4924 + $0x10] sm:$0xff]
      %v4928 = vld [vmem:[%s4924 + $0x18] sm:$0xff]
      %v4929 = vld [vmem:[%s4924 + $0x20] sm:$0xff]
      %v4930 = vld [vmem:[%s4924 + $0x28] sm:$0xff]
      %v4931 = vld [vmem:[%s4924 + $0x30] sm:$0xff]
      %v4932 = vld [vmem:[%s4924 + $0x38] sm:$0xff]
      %v4933 = vld [vmem:[%s4924 + $0x40] sm:$0xff]
      %v4934 = vld [vmem:[%s4924 + $0x48] sm:$0xff]
      %v4935 = vld [vmem:[%s4924 + $0x50] sm:$0xff]
      %v4936 = vld [vmem:[%s4924 + $0x58] sm:$0xff]
      %v4937 = vld [vmem:[%s4924 + $0x60] sm:$0xff]
      %v4938 = vld [vmem:[%s4924 + $0x68] sm:$0xff]
      %v4939 = vld [vmem:[%s4924 + $0x70] sm:$0xff]
      %v4940 = vld [vmem:[%s4924 + $0x78] sm:$0xff]
      %s4941 = scalar_lea.vmem [#allocation2], 808
      %v4942 = vld [vmem:[%s4941] sm:$0xff]
      %v4943 = vld [vmem:[%s4941 + $0x8] sm:$0xff]
      %v4944 = vld [vmem:[%s4941 + $0x10] sm:$0xff]
      %v4945 = vld [vmem:[%s4941 + $0x18] sm:$0xff]
      %v4946 = vld [vmem:[%s4941 + $0x20] sm:$0xff]
      %v4947 = vld [vmem:[%s4941 + $0x28] sm:$0xff]
      %v4948 = vld [vmem:[%s4941 + $0x30] sm:$0xff]
      %v4949 = vld [vmem:[%s4941 + $0x38] sm:$0xff]
      %v4950 = vld [vmem:[%s4941 + $0x40] sm:$0xff]
      %v4951 = vld [vmem:[%s4941 + $0x48] sm:$0xff]
      %v4952 = vld [vmem:[%s4941 + $0x50] sm:$0xff]
      %v4953 = vld [vmem:[%s4941 + $0x58] sm:$0xff]
      %v4954 = vld [vmem:[%s4941 + $0x60] sm:$0xff]
      %v4955 = vld [vmem:[%s4941 + $0x68] sm:$0xff]
      %v4956 = vld [vmem:[%s4941 + $0x70] sm:$0xff]
      %v4957 = vld [vmem:[%s4941 + $0x78] sm:$0xff]
      %4974 = vrot.lane.b32.xlu0 %v4908, 32
      %v4975 = vpop.permute.xlu0 %4974
      %4976 = vrot.lane.b32.xlu0 %v4909, 32
      %v4977 = vpop.permute.xlu0 %4976
      %4978 = vrot.lane.b32.xlu0 %v4910, 32
      %v4979 = vpop.permute.xlu0 %4978
      %4980 = vrot.lane.b32.xlu0 %v4911, 32
      %v4981 = vpop.permute.xlu0 %4980
      %4982 = vrot.lane.b32.xlu0 %v4912, 32
      %v4983 = vpop.permute.xlu0 %4982
      %4984 = vrot.lane.b32.xlu0 %v4913, 32
      %v4985 = vpop.permute.xlu0 %4984
      %4986 = vrot.lane.b32.xlu0 %v4914, 32
      %v4987 = vpop.permute.xlu0 %4986
      %4988 = vrot.lane.b32.xlu0 %v4915, 32
      %v4989 = vpop.permute.xlu0 %4988
      %4990 = vrot.lane.b32.xlu0 %v4916, 32
      %v4991 = vpop.permute.xlu0 %4990
      %4992 = vrot.lane.b32.xlu0 %v4917, 32
      %v4993 = vpop.permute.xlu0 %4992
      %4994 = vrot.lane.b32.xlu0 %v4918, 32
      %v4995 = vpop.permute.xlu0 %4994
      %4996 = vrot.lane.b32.xlu0 %v4919, 32
      %v4997 = vpop.permute.xlu0 %4996
      %4998 = vrot.lane.b32.xlu0 %v4920, 32
      %v4999 = vpop.permute.xlu0 %4998
      %5000 = vrot.lane.b32.xlu0 %v4921, 32
      %v5001 = vpop.permute.xlu0 %5000
      %5002 = vrot.lane.b32.xlu0 %v4922, 32
      %v5003 = vpop.permute.xlu0 %5002
      %5004 = vrot.lane.b32.xlu0 %v4923, 32
      %v5005 = vpop.permute.xlu0 %5004
      %5022 = vrot.lane.b32.xlu0 %v4925, 64
      %v5023 = vpop.permute.xlu0 %5022
      %5024 = vrot.lane.b32.xlu0 %v4926, 64
      %v5025 = vpop.permute.xlu0 %5024
      %5026 = vrot.lane.b32.xlu0 %v4927, 64
      %v5027 = vpop.permute.xlu0 %5026
      %5028 = vrot.lane.b32.xlu0 %v4928, 64
      %v5029 = vpop.permute.xlu0 %5028
      %5030 = vrot.lane.b32.xlu0 %v4929, 64
      %v5031 = vpop.permute.xlu0 %5030
      %5032 = vrot.lane.b32.xlu0 %v4930, 64
      %v5033 = vpop.permute.xlu0 %5032
      %5034 = vrot.lane.b32.xlu0 %v4931, 64
      %v5035 = vpop.permute.xlu0 %5034
      %5036 = vrot.lane.b32.xlu0 %v4932, 64
      %v5037 = vpop.permute.xlu0 %5036
      %5038 = vrot.lane.b32.xlu0 %v4933, 64
      %v5039 = vpop.permute.xlu0 %5038
      %5040 = vrot.lane.b32.xlu0 %v4934, 64
      %v5041 = vpop.permute.xlu0 %5040
      %5042 = vrot.lane.b32.xlu0 %v4935, 64
      %v5043 = vpop.permute.xlu0 %5042
      %5044 = vrot.lane.b32.xlu0 %v4936, 64
      %v5045 = vpop.permute.xlu0 %5044
      %5046 = vrot.lane.b32.xlu0 %v4937, 64
      %v5047 = vpop.permute.xlu0 %5046
      %5048 = vrot.lane.b32.xlu0 %v4938, 64
      %v5049 = vpop.permute.xlu0 %5048
      %5050 = vrot.lane.b32.xlu0 %v4939, 64
      %v5051 = vpop.permute.xlu0 %5050
      %5052 = vrot.lane.b32.xlu0 %v4940, 64
      %v5053 = vpop.permute.xlu0 %5052
      %5070 = vrot.lane.b32.xlu0 %v4942, 96
      %v5071 = vpop.permute.xlu0 %5070
      %5072 = vrot.lane.b32.xlu0 %v4943, 96
      %v5073 = vpop.permute.xlu0 %5072
      %5074 = vrot.lane.b32.xlu0 %v4944, 96
      %v5075 = vpop.permute.xlu0 %5074
      %5076 = vrot.lane.b32.xlu0 %v4945, 96
      %v5077 = vpop.permute.xlu0 %5076
      %5078 = vrot.lane.b32.xlu0 %v4946, 96
      %v5079 = vpop.permute.xlu0 %5078
      %5080 = vrot.lane.b32.xlu0 %v4947, 96
      %v5081 = vpop.permute.xlu0 %5080
      %5082 = vrot.lane.b32.xlu0 %v4948, 96
      %v5083 = vpop.permute.xlu0 %5082
      %5084 = vrot.lane.b32.xlu0 %v4949, 96
      %v5085 = vpop.permute.xlu0 %5084
      %5086 = vrot.lane.b32.xlu0 %v4950, 96
      %v5087 = vpop.permute.xlu0 %5086
      %5088 = vrot.lane.b32.xlu0 %v4951, 96
      %v5089 = vpop.permute.xlu0 %5088
      %5090 = vrot.lane.b32.xlu0 %v4952, 96
      %v5091 = vpop.permute.xlu0 %5090
      %5092 = vrot.lane.b32.xlu0 %v4953, 96
      %v5093 = vpop.permute.xlu0 %5092
      %5094 = vrot.lane.b32.xlu0 %v4954, 96
      %v5095 = vpop.permute.xlu0 %5094
      %5096 = vrot.lane.b32.xlu0 %v4955, 96
      %v5097 = vpop.permute.xlu0 %5096
      %5098 = vrot.lane.b32.xlu0 %v4956, 96
      %v5099 = vpop.permute.xlu0 %5098
      %5100 = vrot.lane.b32.xlu0 %v4957, 96
      %v5101 = vpop.permute.xlu0 %5100
      %v5104 = vsel %vm364, %v4891, %v4975
      %v5107 = vsel %vm364, %v4892, %v4977
      %v5110 = vsel %vm364, %v4893, %v4979
      %v5113 = vsel %vm364, %v4894, %v4981
      %v5116 = vsel %vm364, %v4895, %v4983
      %v5119 = vsel %vm364, %v4896, %v4985
      %v5122 = vsel %vm364, %v4897, %v4987
      %v5125 = vsel %vm364, %v4898, %v4989
      %v5128 = vsel %vm364, %v4899, %v4991
      %v5131 = vsel %vm364, %v4900, %v4993
      %v5134 = vsel %vm364, %v4901, %v4995
      %v5137 = vsel %vm364, %v4902, %v4997
      %v5140 = vsel %vm364, %v4903, %v4999
      %v5143 = vsel %vm364, %v4904, %v5001
      %v5146 = vsel %vm364, %v4905, %v5003
      %v5149 = vsel %vm364, %v4906, %v5005
      %v5151 = vsel %vm4792, %v5104, %v5023
      %v5153 = vsel %vm4792, %v5107, %v5025
      %v5155 = vsel %vm4792, %v5110, %v5027
      %v5157 = vsel %vm4792, %v5113, %v5029
      %v5159 = vsel %vm4792, %v5116, %v5031
      %v5161 = vsel %vm4792, %v5119, %v5033
      %v5163 = vsel %vm4792, %v5122, %v5035
      %v5165 = vsel %vm4792, %v5125, %v5037
      %v5167 = vsel %vm4792, %v5128, %v5039
      %v5169 = vsel %vm4792, %v5131, %v5041
      %v5171 = vsel %vm4792, %v5134, %v5043
      %v5173 = vsel %vm4792, %v5137, %v5045
      %v5175 = vsel %vm4792, %v5140, %v5047
      %v5177 = vsel %vm4792, %v5143, %v5049
      %v5179 = vsel %vm4792, %v5146, %v5051
      %v5181 = vsel %vm4792, %v5149, %v5053
      %v5183 = vsel %vm4825, %v5151, %v5071
      %v5186 = vsel %vm4825, %v5153, %v5073
      %v5189 = vsel %vm4825, %v5155, %v5075
      %v5192 = vsel %vm4825, %v5157, %v5077
      %v5195 = vsel %vm4825, %v5159, %v5079
      %v5198 = vsel %vm4825, %v5161, %v5081
      %v5201 = vsel %vm4825, %v5163, %v5083
      %v5204 = vsel %vm4825, %v5165, %v5085
      %v5207 = vsel %vm4825, %v5167, %v5087
      %v5210 = vsel %vm4825, %v5169, %v5089
      %v5213 = vsel %vm4825, %v5171, %v5091
      %v5216 = vsel %vm4825, %v5173, %v5093
      %v5219 = vsel %vm4825, %v5175, %v5095
      %v5222 = vsel %vm4825, %v5177, %v5097
      %v5225 = vsel %vm4825, %v5179, %v5099
      %v5228 = vsel %vm4825, %v5181, %v5101
      %5230 = vst [vmem:[#allocation3 + $0x8] sm:$0xff] %v5183
      %5231 = vst [vmem:[#allocation3 + $0x50] sm:$0xff] %v5186
      %5232 = vst [vmem:[#allocation3 + $0x98] sm:$0xff] %v5189
      %5233 = vst [vmem:[#allocation3 + $0xe0] sm:$0xff] %v5192
      %5234 = vst [vmem:[#allocation3 + $0x128] sm:$0xff] %v5195
      %5235 = vst [vmem:[#allocation3 + $0x170] sm:$0xff] %v5198
      %5236 = vst [vmem:[#allocation3 + $0x1b8] sm:$0xff] %v5201
      %5237 = vst [vmem:[#allocation3 + $0x200] sm:$0xff] %v5204
      %5238 = vst [vmem:[#allocation3 + $0x248] sm:$0xff] %v5207
      %5239 = vst [vmem:[#allocation3 + $0x290] sm:$0xff] %v5210
      %5240 = vst [vmem:[#allocation3 + $0x2d8] sm:$0xff] %v5213
      %5241 = vst [vmem:[#allocation3 + $0x320] sm:$0xff] %v5216
      %5242 = vst [vmem:[#allocation3 + $0x368] sm:$0xff] %v5219
      %5243 = vst [vmem:[#allocation3 + $0x3b0] sm:$0xff] %v5222
      %5244 = vst [vmem:[#allocation3 + $0x3f8] sm:$0xff] %v5225
      %5245 = vst [vmem:[#allocation3 + $0x440] sm:$0xff] %v5228
      %s5246 = scalar_lea.vmem [#allocation2], 1000
      %v5247 = vld [vmem:[%s5246] sm:$0xff]
      %v5248 = vld [vmem:[%s5246 + $0x8] sm:$0xff]
      %v5249 = vld [vmem:[%s5246 + $0x10] sm:$0xff]
      %v5250 = vld [vmem:[%s5246 + $0x18] sm:$0xff]
      %v5251 = vld [vmem:[%s5246 + $0x20] sm:$0xff]
      %v5252 = vld [vmem:[%s5246 + $0x28] sm:$0xff]
      %v5253 = vld [vmem:[%s5246 + $0x30] sm:$0xff]
      %v5254 = vld [vmem:[%s5246 + $0x38] sm:$0xff]
      %v5255 = vld [vmem:[%s5246 + $0x40] sm:$0xff]
      %v5256 = vld [vmem:[%s5246 + $0x48] sm:$0xff]
      %v5257 = vld [vmem:[%s5246 + $0x50] sm:$0xff]
      %v5258 = vld [vmem:[%s5246 + $0x58] sm:$0xff]
      %v5259 = vld [vmem:[%s5246 + $0x60] sm:$0xff]
      %v5260 = vld [vmem:[%s5246 + $0x68] sm:$0xff]
      %v5261 = vld [vmem:[%s5246 + $0x70] sm:$0xff]
      %v5262 = vld [vmem:[%s5246 + $0x78] sm:$0xff]
      %s5263 = scalar_lea.vmem [#allocation2], 400
      %v5264 = vld [vmem:[%s5263] sm:$0xff]
      %v5265 = vld [vmem:[%s5263 + $0x8] sm:$0xff]
      %v5266 = vld [vmem:[%s5263 + $0x10] sm:$0xff]
      %v5267 = vld [vmem:[%s5263 + $0x18] sm:$0xff]
      %v5268 = vld [vmem:[%s5263 + $0x20] sm:$0xff]
      %v5269 = vld [vmem:[%s5263 + $0x28] sm:$0xff]
      %v5270 = vld [vmem:[%s5263 + $0x30] sm:$0xff]
      %v5271 = vld [vmem:[%s5263 + $0x38] sm:$0xff]
      %v5272 = vld [vmem:[%s5263 + $0x40] sm:$0xff]
      %v5273 = vld [vmem:[%s5263 + $0x48] sm:$0xff]
      %v5274 = vld [vmem:[%s5263 + $0x50] sm:$0xff]
      %v5275 = vld [vmem:[%s5263 + $0x58] sm:$0xff]
      %v5276 = vld [vmem:[%s5263 + $0x60] sm:$0xff]
      %v5277 = vld [vmem:[%s5263 + $0x68] sm:$0xff]
      %v5278 = vld [vmem:[%s5263 + $0x70] sm:$0xff]
      %v5279 = vld [vmem:[%s5263 + $0x78] sm:$0xff]
      %s5280 = scalar_lea.vmem [#allocation2], 784
      %v5281 = vld [vmem:[%s5280] sm:$0xff]
      %v5282 = vld [vmem:[%s5280 + $0x8] sm:$0xff]
      %v5283 = vld [vmem:[%s5280 + $0x10] sm:$0xff]
      %v5284 = vld [vmem:[%s5280 + $0x18] sm:$0xff]
      %v5285 = vld [vmem:[%s5280 + $0x20] sm:$0xff]
      %v5286 = vld [vmem:[%s5280 + $0x28] sm:$0xff]
      %v5287 = vld [vmem:[%s5280 + $0x30] sm:$0xff]
      %v5288 = vld [vmem:[%s5280 + $0x38] sm:$0xff]
      %v5289 = vld [vmem:[%s5280 + $0x40] sm:$0xff]
      %v5290 = vld [vmem:[%s5280 + $0x48] sm:$0xff]
      %v5291 = vld [vmem:[%s5280 + $0x50] sm:$0xff]
      %v5292 = vld [vmem:[%s5280 + $0x58] sm:$0xff]
      %v5293 = vld [vmem:[%s5280 + $0x60] sm:$0xff]
      %v5294 = vld [vmem:[%s5280 + $0x68] sm:$0xff]
      %v5295 = vld [vmem:[%s5280 + $0x70] sm:$0xff]
      %v5296 = vld [vmem:[%s5280 + $0x78] sm:$0xff]
      %s5297 = scalar_lea.vmem [#allocation2], 1168
      %v5298 = vld [vmem:[%s5297] sm:$0xff]
      %v5299 = vld [vmem:[%s5297 + $0x8] sm:$0xff]
      %v5300 = vld [vmem:[%s5297 + $0x10] sm:$0xff]
      %v5301 = vld [vmem:[%s5297 + $0x18] sm:$0xff]
      %v5302 = vld [vmem:[%s5297 + $0x20] sm:$0xff]
      %v5303 = vld [vmem:[%s5297 + $0x28] sm:$0xff]
      %v5304 = vld [vmem:[%s5297 + $0x30] sm:$0xff]
      %v5305 = vld [vmem:[%s5297 + $0x38] sm:$0xff]
      %v5306 = vld [vmem:[%s5297 + $0x40] sm:$0xff]
      %v5307 = vld [vmem:[%s5297 + $0x48] sm:$0xff]
      %v5308 = vld [vmem:[%s5297 + $0x50] sm:$0xff]
      %v5309 = vld [vmem:[%s5297 + $0x58] sm:$0xff]
      %v5310 = vld [vmem:[%s5297 + $0x60] sm:$0xff]
      %v5311 = vld [vmem:[%s5297 + $0x68] sm:$0xff]
      %v5312 = vld [vmem:[%s5297 + $0x70] sm:$0xff]
      %v5313 = vld [vmem:[%s5297 + $0x78] sm:$0xff]
      %5330 = vrot.lane.b32.xlu0 %v5264, 32
      %v5331 = vpop.permute.xlu0 %5330
      %5332 = vrot.lane.b32.xlu0 %v5265, 32
      %v5333 = vpop.permute.xlu0 %5332
      %5334 = vrot.lane.b32.xlu0 %v5266, 32
      %v5335 = vpop.permute.xlu0 %5334
      %5336 = vrot.lane.b32.xlu0 %v5267, 32
      %v5337 = vpop.permute.xlu0 %5336
      %5338 = vrot.lane.b32.xlu0 %v5268, 32
      %v5339 = vpop.permute.xlu0 %5338
      %5340 = vrot.lane.b32.xlu0 %v5269, 32
      %v5341 = vpop.permute.xlu0 %5340
      %5342 = vrot.lane.b32.xlu0 %v5270, 32
      %v5343 = vpop.permute.xlu0 %5342
      %5344 = vrot.lane.b32.xlu0 %v5271, 32
      %v5345 = vpop.permute.xlu0 %5344
      %5346 = vrot.lane.b32.xlu0 %v5272, 32
      %v5347 = vpop.permute.xlu0 %5346
      %5348 = vrot.lane.b32.xlu0 %v5273, 32
      %v5349 = vpop.permute.xlu0 %5348
      %5350 = vrot.lane.b32.xlu0 %v5274, 32
      %v5351 = vpop.permute.xlu0 %5350
      %5352 = vrot.lane.b32.xlu0 %v5275, 32
      %v5353 = vpop.permute.xlu0 %5352
      %5354 = vrot.lane.b32.xlu0 %v5276, 32
      %v5355 = vpop.permute.xlu0 %5354
      %5356 = vrot.lane.b32.xlu0 %v5277, 32
      %v5357 = vpop.permute.xlu0 %5356
      %5358 = vrot.lane.b32.xlu0 %v5278, 32
      %v5359 = vpop.permute.xlu0 %5358
      %5360 = vrot.lane.b32.xlu0 %v5279, 32
      %v5361 = vpop.permute.xlu0 %5360
      %5378 = vrot.lane.b32.xlu0 %v5281, 64
      %v5379 = vpop.permute.xlu0 %5378
      %5380 = vrot.lane.b32.xlu0 %v5282, 64
      %v5381 = vpop.permute.xlu0 %5380
      %5382 = vrot.lane.b32.xlu0 %v5283, 64
      %v5383 = vpop.permute.xlu0 %5382
      %5384 = vrot.lane.b32.xlu0 %v5284, 64
      %v5385 = vpop.permute.xlu0 %5384
      %5386 = vrot.lane.b32.xlu0 %v5285, 64
      %v5387 = vpop.permute.xlu0 %5386
      %5388 = vrot.lane.b32.xlu0 %v5286, 64
      %v5389 = vpop.permute.xlu0 %5388
      %5390 = vrot.lane.b32.xlu0 %v5287, 64
      %v5391 = vpop.permute.xlu0 %5390
      %5392 = vrot.lane.b32.xlu0 %v5288, 64
      %v5393 = vpop.permute.xlu0 %5392
      %5394 = vrot.lane.b32.xlu0 %v5289, 64
      %v5395 = vpop.permute.xlu0 %5394
      %5396 = vrot.lane.b32.xlu0 %v5290, 64
      %v5397 = vpop.permute.xlu0 %5396
      %5398 = vrot.lane.b32.xlu0 %v5291, 64
      %v5399 = vpop.permute.xlu0 %5398
      %5400 = vrot.lane.b32.xlu0 %v5292, 64
      %v5401 = vpop.permute.xlu0 %5400
      %5402 = vrot.lane.b32.xlu0 %v5293, 64
      %v5403 = vpop.permute.xlu0 %5402
      %5404 = vrot.lane.b32.xlu0 %v5294, 64
      %v5405 = vpop.permute.xlu0 %5404
      %5406 = vrot.lane.b32.xlu0 %v5295, 64
      %v5407 = vpop.permute.xlu0 %5406
      %5408 = vrot.lane.b32.xlu0 %v5296, 64
      %v5409 = vpop.permute.xlu0 %5408
      %5426 = vrot.lane.b32.xlu0 %v5298, 96
      %v5427 = vpop.permute.xlu0 %5426
      %5428 = vrot.lane.b32.xlu0 %v5299, 96
      %v5429 = vpop.permute.xlu0 %5428
      %5430 = vrot.lane.b32.xlu0 %v5300, 96
      %v5431 = vpop.permute.xlu0 %5430
      %5432 = vrot.lane.b32.xlu0 %v5301, 96
      %v5433 = vpop.permute.xlu0 %5432
      %5434 = vrot.lane.b32.xlu0 %v5302, 96
      %v5435 = vpop.permute.xlu0 %5434
      %5436 = vrot.lane.b32.xlu0 %v5303, 96
      %v5437 = vpop.permute.xlu0 %5436
      %5438 = vrot.lane.b32.xlu0 %v5304, 96
      %v5439 = vpop.permute.xlu0 %5438
      %5440 = vrot.lane.b32.xlu0 %v5305, 96
      %v5441 = vpop.permute.xlu0 %5440
      %5442 = vrot.lane.b32.xlu0 %v5306, 96
      %v5443 = vpop.permute.xlu0 %5442
      %5444 = vrot.lane.b32.xlu0 %v5307, 96
      %v5445 = vpop.permute.xlu0 %5444
      %5446 = vrot.lane.b32.xlu0 %v5308, 96
      %v5447 = vpop.permute.xlu0 %5446
      %5448 = vrot.lane.b32.xlu0 %v5309, 96
      %v5449 = vpop.permute.xlu0 %5448
      %5450 = vrot.lane.b32.xlu0 %v5310, 96
      %v5451 = vpop.permute.xlu0 %5450
      %5452 = vrot.lane.b32.xlu0 %v5311, 96
      %v5453 = vpop.permute.xlu0 %5452
      %5454 = vrot.lane.b32.xlu0 %v5312, 96
      %v5455 = vpop.permute.xlu0 %5454
      %5456 = vrot.lane.b32.xlu0 %v5313, 96
      %v5457 = vpop.permute.xlu0 %5456
      %v5460 = vsel %vm364, %v5247, %v5331
      %v5463 = vsel %vm364, %v5248, %v5333
      %v5466 = vsel %vm364, %v5249, %v5335
      %v5469 = vsel %vm364, %v5250, %v5337
      %v5472 = vsel %vm364, %v5251, %v5339
      %v5475 = vsel %vm364, %v5252, %v5341
      %v5478 = vsel %vm364, %v5253, %v5343
      %v5481 = vsel %vm364, %v5254, %v5345
      %v5484 = vsel %vm364, %v5255, %v5347
      %v5487 = vsel %vm364, %v5256, %v5349
      %v5490 = vsel %vm364, %v5257, %v5351
      %v5493 = vsel %vm364, %v5258, %v5353
      %v5496 = vsel %vm364, %v5259, %v5355
      %v5499 = vsel %vm364, %v5260, %v5357
      %v5502 = vsel %vm364, %v5261, %v5359
      %v5505 = vsel %vm364, %v5262, %v5361
      %v5507 = vsel %vm4792, %v5460, %v5379
      %v5509 = vsel %vm4792, %v5463, %v5381
      %v5511 = vsel %vm4792, %v5466, %v5383
      %v5513 = vsel %vm4792, %v5469, %v5385
      %v5515 = vsel %vm4792, %v5472, %v5387
      %v5517 = vsel %vm4792, %v5475, %v5389
      %v5519 = vsel %vm4792, %v5478, %v5391
      %v5521 = vsel %vm4792, %v5481, %v5393
      %v5523 = vsel %vm4792, %v5484, %v5395
      %v5525 = vsel %vm4792, %v5487, %v5397
      %v5527 = vsel %vm4792, %v5490, %v5399
      %v5529 = vsel %vm4792, %v5493, %v5401
      %v5531 = vsel %vm4792, %v5496, %v5403
      %v5533 = vsel %vm4792, %v5499, %v5405
      %v5535 = vsel %vm4792, %v5502, %v5407
      %v5537 = vsel %vm4792, %v5505, %v5409
      %v5539 = vsel %vm4825, %v5507, %v5427
      %v5542 = vsel %vm4825, %v5509, %v5429
      %v5545 = vsel %vm4825, %v5511, %v5431
      %v5548 = vsel %vm4825, %v5513, %v5433
      %v5551 = vsel %vm4825, %v5515, %v5435
      %v5554 = vsel %vm4825, %v5517, %v5437
      %v5557 = vsel %vm4825, %v5519, %v5439
      %v5560 = vsel %vm4825, %v5521, %v5441
      %v5563 = vsel %vm4825, %v5523, %v5443
      %v5566 = vsel %vm4825, %v5525, %v5445
      %v5569 = vsel %vm4825, %v5527, %v5447
      %v5572 = vsel %vm4825, %v5529, %v5449
      %v5575 = vsel %vm4825, %v5531, %v5451
      %v5578 = vsel %vm4825, %v5533, %v5453
      %v5581 = vsel %vm4825, %v5535, %v5455
      %v5584 = vsel %vm4825, %v5537, %v5457
      %5586 = vst [vmem:[#allocation3 + $0x10] sm:$0xff] %v5539
      %5587 = vst [vmem:[#allocation3 + $0x58] sm:$0xff] %v5542
      %5588 = vst [vmem:[#allocation3 + $0xa0] sm:$0xff] %v5545
      %5589 = vst [vmem:[#allocation3 + $0xe8] sm:$0xff] %v5548
      %5590 = vst [vmem:[#allocation3 + $0x130] sm:$0xff] %v5551
      %5591 = vst [vmem:[#allocation3 + $0x178] sm:$0xff] %v5554
      %5592 = vst [vmem:[#allocation3 + $0x1c0] sm:$0xff] %v5557
      %5593 = vst [vmem:[#allocation3 + $0x208] sm:$0xff] %v5560
      %5594 = vst [vmem:[#allocation3 + $0x250] sm:$0xff] %v5563
      %5595 = vst [vmem:[#allocation3 + $0x298] sm:$0xff] %v5566
      %5596 = vst [vmem:[#allocation3 + $0x2e0] sm:$0xff] %v5569
      %5597 = vst [vmem:[#allocation3 + $0x328] sm:$0xff] %v5572
      %5598 = vst [vmem:[#allocation3 + $0x370] sm:$0xff] %v5575
      %5599 = vst [vmem:[#allocation3 + $0x3b8] sm:$0xff] %v5578
      %5600 = vst [vmem:[#allocation3 + $0x400] sm:$0xff] %v5581
      %5601 = vst [vmem:[#allocation3 + $0x448] sm:$0xff] %v5584
      %s5602 = scalar_lea.vmem [#allocation2], 416
      %v5603 = vld [vmem:[%s5602] sm:$0xff]
      %v5604 = vld [vmem:[%s5602 + $0x8] sm:$0xff]
      %v5605 = vld [vmem:[%s5602 + $0x10] sm:$0xff]
      %v5606 = vld [vmem:[%s5602 + $0x18] sm:$0xff]
      %v5607 = vld [vmem:[%s5602 + $0x20] sm:$0xff]
      %v5608 = vld [vmem:[%s5602 + $0x28] sm:$0xff]
      %v5609 = vld [vmem:[%s5602 + $0x30] sm:$0xff]
      %v5610 = vld [vmem:[%s5602 + $0x38] sm:$0xff]
      %v5611 = vld [vmem:[%s5602 + $0x40] sm:$0xff]
      %v5612 = vld [vmem:[%s5602 + $0x48] sm:$0xff]
      %v5613 = vld [vmem:[%s5602 + $0x50] sm:$0xff]
      %v5614 = vld [vmem:[%s5602 + $0x58] sm:$0xff]
      %v5615 = vld [vmem:[%s5602 + $0x60] sm:$0xff]
      %v5616 = vld [vmem:[%s5602 + $0x68] sm:$0xff]
      %v5617 = vld [vmem:[%s5602 + $0x70] sm:$0xff]
      %v5618 = vld [vmem:[%s5602 + $0x78] sm:$0xff]
      %v5619 = vld [vmem:[%s4890] sm:$0xff]
      %v5620 = vld [vmem:[%s4890 + $0x8] sm:$0xff]
      %v5621 = vld [vmem:[%s4890 + $0x10] sm:$0xff]
      %v5622 = vld [vmem:[%s4890 + $0x18] sm:$0xff]
      %v5623 = vld [vmem:[%s4890 + $0x20] sm:$0xff]
      %v5624 = vld [vmem:[%s4890 + $0x28] sm:$0xff]
      %v5625 = vld [vmem:[%s4890 + $0x30] sm:$0xff]
      %v5626 = vld [vmem:[%s4890 + $0x38] sm:$0xff]
      %v5627 = vld [vmem:[%s4890 + $0x40] sm:$0xff]
      %v5628 = vld [vmem:[%s4890 + $0x48] sm:$0xff]
      %v5629 = vld [vmem:[%s4890 + $0x50] sm:$0xff]
      %v5630 = vld [vmem:[%s4890 + $0x58] sm:$0xff]
      %v5631 = vld [vmem:[%s4890 + $0x60] sm:$0xff]
      %v5632 = vld [vmem:[%s4890 + $0x68] sm:$0xff]
      %v5633 = vld [vmem:[%s4890 + $0x70] sm:$0xff]
      %v5634 = vld [vmem:[%s4890 + $0x78] sm:$0xff]
      %s5635 = scalar_lea.vmem [#allocation2], 1184
      %v5636 = vld [vmem:[%s5635] sm:$0xff]
      %v5637 = vld [vmem:[%s5635 + $0x8] sm:$0xff]
      %v5638 = vld [vmem:[%s5635 + $0x10] sm:$0xff]
      %v5639 = vld [vmem:[%s5635 + $0x18] sm:$0xff]
      %v5640 = vld [vmem:[%s5635 + $0x20] sm:$0xff]
      %v5641 = vld [vmem:[%s5635 + $0x28] sm:$0xff]
      %v5642 = vld [vmem:[%s5635 + $0x30] sm:$0xff]
      %v5643 = vld [vmem:[%s5635 + $0x38] sm:$0xff]
      %v5644 = vld [vmem:[%s5635 + $0x40] sm:$0xff]
      %v5645 = vld [vmem:[%s5635 + $0x48] sm:$0xff]
      %v5646 = vld [vmem:[%s5635 + $0x50] sm:$0xff]
      %v5647 = vld [vmem:[%s5635 + $0x58] sm:$0xff]
      %v5648 = vld [vmem:[%s5635 + $0x60] sm:$0xff]
      %v5649 = vld [vmem:[%s5635 + $0x68] sm:$0xff]
      %v5650 = vld [vmem:[%s5635 + $0x70] sm:$0xff]
      %v5651 = vld [vmem:[%s5635 + $0x78] sm:$0xff]
      %s5652 = scalar_lea.vmem [#allocation2], 432
      %v5653 = vld [vmem:[%s5652] sm:$0xff]
      %v5654 = vld [vmem:[%s5652 + $0x8] sm:$0xff]
      %v5655 = vld [vmem:[%s5652 + $0x10] sm:$0xff]
      %v5656 = vld [vmem:[%s5652 + $0x18] sm:$0xff]
      %v5657 = vld [vmem:[%s5652 + $0x20] sm:$0xff]
      %v5658 = vld [vmem:[%s5652 + $0x28] sm:$0xff]
      %v5659 = vld [vmem:[%s5652 + $0x30] sm:$0xff]
      %v5660 = vld [vmem:[%s5652 + $0x38] sm:$0xff]
      %v5661 = vld [vmem:[%s5652 + $0x40] sm:$0xff]
      %v5662 = vld [vmem:[%s5652 + $0x48] sm:$0xff]
      %v5663 = vld [vmem:[%s5652 + $0x50] sm:$0xff]
      %v5664 = vld [vmem:[%s5652 + $0x58] sm:$0xff]
      %v5665 = vld [vmem:[%s5652 + $0x60] sm:$0xff]
      %v5666 = vld [vmem:[%s5652 + $0x68] sm:$0xff]
      %v5667 = vld [vmem:[%s5652 + $0x70] sm:$0xff]
      %v5668 = vld [vmem:[%s5652 + $0x78] sm:$0xff]
      %5685 = vrot.lane.b32.xlu0 %v5619, 32
      %v5686 = vpop.permute.xlu0 %5685
      %5687 = vrot.lane.b32.xlu0 %v5620, 32
      %v5688 = vpop.permute.xlu0 %5687
      %5689 = vrot.lane.b32.xlu0 %v5621, 32
      %v5690 = vpop.permute.xlu0 %5689
      %5691 = vrot.lane.b32.xlu0 %v5622, 32
      %v5692 = vpop.permute.xlu0 %5691
      %5693 = vrot.lane.b32.xlu0 %v5623, 32
      %v5694 = vpop.permute.xlu0 %5693
      %5695 = vrot.lane.b32.xlu0 %v5624, 32
      %v5696 = vpop.permute.xlu0 %5695
      %5697 = vrot.lane.b32.xlu0 %v5625, 32
      %v5698 = vpop.permute.xlu0 %5697
      %5699 = vrot.lane.b32.xlu0 %v5626, 32
      %v5700 = vpop.permute.xlu0 %5699
      %5701 = vrot.lane.b32.xlu0 %v5627, 32
      %v5702 = vpop.permute.xlu0 %5701
      %5703 = vrot.lane.b32.xlu0 %v5628, 32
      %v5704 = vpop.permute.xlu0 %5703
      %5705 = vrot.lane.b32.xlu0 %v5629, 32
      %v5706 = vpop.permute.xlu0 %5705
      %5707 = vrot.lane.b32.xlu0 %v5630, 32
      %v5708 = vpop.permute.xlu0 %5707
      %5709 = vrot.lane.b32.xlu0 %v5631, 32
      %v5710 = vpop.permute.xlu0 %5709
      %5711 = vrot.lane.b32.xlu0 %v5632, 32
      %v5712 = vpop.permute.xlu0 %5711
      %5713 = vrot.lane.b32.xlu0 %v5633, 32
      %v5714 = vpop.permute.xlu0 %5713
      %5715 = vrot.lane.b32.xlu0 %v5634, 32
      %v5716 = vpop.permute.xlu0 %5715
      %5733 = vrot.lane.b32.xlu0 %v5636, 64
      %v5734 = vpop.permute.xlu0 %5733
      %5735 = vrot.lane.b32.xlu0 %v5637, 64
      %v5736 = vpop.permute.xlu0 %5735
      %5737 = vrot.lane.b32.xlu0 %v5638, 64
      %v5738 = vpop.permute.xlu0 %5737
      %5739 = vrot.lane.b32.xlu0 %v5639, 64
      %v5740 = vpop.permute.xlu0 %5739
      %5741 = vrot.lane.b32.xlu0 %v5640, 64
      %v5742 = vpop.permute.xlu0 %5741
      %5743 = vrot.lane.b32.xlu0 %v5641, 64
      %v5744 = vpop.permute.xlu0 %5743
      %5745 = vrot.lane.b32.xlu0 %v5642, 64
      %v5746 = vpop.permute.xlu0 %5745
      %5747 = vrot.lane.b32.xlu0 %v5643, 64
      %v5748 = vpop.permute.xlu0 %5747
      %5749 = vrot.lane.b32.xlu0 %v5644, 64
      %v5750 = vpop.permute.xlu0 %5749
      %5751 = vrot.lane.b32.xlu0 %v5645, 64
      %v5752 = vpop.permute.xlu0 %5751
      %5753 = vrot.lane.b32.xlu0 %v5646, 64
      %v5754 = vpop.permute.xlu0 %5753
      %5755 = vrot.lane.b32.xlu0 %v5647, 64
      %v5756 = vpop.permute.xlu0 %5755
      %5757 = vrot.lane.b32.xlu0 %v5648, 64
      %v5758 = vpop.permute.xlu0 %5757
      %5759 = vrot.lane.b32.xlu0 %v5649, 64
      %v5760 = vpop.permute.xlu0 %5759
      %5761 = vrot.lane.b32.xlu0 %v5650, 64
      %v5762 = vpop.permute.xlu0 %5761
      %5763 = vrot.lane.b32.xlu0 %v5651, 64
      %v5764 = vpop.permute.xlu0 %5763
      %5781 = vrot.lane.b32.xlu0 %v5653, 96
      %v5782 = vpop.permute.xlu0 %5781
      %5783 = vrot.lane.b32.xlu0 %v5654, 96
      %v5784 = vpop.permute.xlu0 %5783
      %5785 = vrot.lane.b32.xlu0 %v5655, 96
      %v5786 = vpop.permute.xlu0 %5785
      %5787 = vrot.lane.b32.xlu0 %v5656, 96
      %v5788 = vpop.permute.xlu0 %5787
      %5789 = vrot.lane.b32.xlu0 %v5657, 96
      %v5790 = vpop.permute.xlu0 %5789
      %5791 = vrot.lane.b32.xlu0 %v5658, 96
      %v5792 = vpop.permute.xlu0 %5791
      %5793 = vrot.lane.b32.xlu0 %v5659, 96
      %v5794 = vpop.permute.xlu0 %5793
      %5795 = vrot.lane.b32.xlu0 %v5660, 96
      %v5796 = vpop.permute.xlu0 %5795
      %5797 = vrot.lane.b32.xlu0 %v5661, 96
      %v5798 = vpop.permute.xlu0 %5797
      %5799 = vrot.lane.b32.xlu0 %v5662, 96
      %v5800 = vpop.permute.xlu0 %5799
      %5801 = vrot.lane.b32.xlu0 %v5663, 96
      %v5802 = vpop.permute.xlu0 %5801
      %5803 = vrot.lane.b32.xlu0 %v5664, 96
      %v5804 = vpop.permute.xlu0 %5803
      %5805 = vrot.lane.b32.xlu0 %v5665, 96
      %v5806 = vpop.permute.xlu0 %5805
      %5807 = vrot.lane.b32.xlu0 %v5666, 96
      %v5808 = vpop.permute.xlu0 %5807
      %5809 = vrot.lane.b32.xlu0 %v5667, 96
      %v5810 = vpop.permute.xlu0 %5809
      %5811 = vrot.lane.b32.xlu0 %v5668, 96
      %v5812 = vpop.permute.xlu0 %5811
      %v5815 = vsel %vm364, %v5603, %v5686
      %v5818 = vsel %vm364, %v5604, %v5688
      %v5821 = vsel %vm364, %v5605, %v5690
      %v5824 = vsel %vm364, %v5606, %v5692
      %v5827 = vsel %vm364, %v5607, %v5694
      %v5830 = vsel %vm364, %v5608, %v5696
      %v5833 = vsel %vm364, %v5609, %v5698
      %v5836 = vsel %vm364, %v5610, %v5700
      %v5839 = vsel %vm364, %v5611, %v5702
      %v5842 = vsel %vm364, %v5612, %v5704
      %v5845 = vsel %vm364, %v5613, %v5706
      %v5848 = vsel %vm364, %v5614, %v5708
      %v5851 = vsel %vm364, %v5615, %v5710
      %v5854 = vsel %vm364, %v5616, %v5712
      %v5857 = vsel %vm364, %v5617, %v5714
      %v5860 = vsel %vm364, %v5618, %v5716
      %v5862 = vsel %vm4792, %v5815, %v5734
      %v5864 = vsel %vm4792, %v5818, %v5736
      %v5866 = vsel %vm4792, %v5821, %v5738
      %v5868 = vsel %vm4792, %v5824, %v5740
      %v5870 = vsel %vm4792, %v5827, %v5742
      %v5872 = vsel %vm4792, %v5830, %v5744
      %v5874 = vsel %vm4792, %v5833, %v5746
      %v5876 = vsel %vm4792, %v5836, %v5748
      %v5878 = vsel %vm4792, %v5839, %v5750
      %v5880 = vsel %vm4792, %v5842, %v5752
      %v5882 = vsel %vm4792, %v5845, %v5754
      %v5884 = vsel %vm4792, %v5848, %v5756
      %v5886 = vsel %vm4792, %v5851, %v5758
      %v5888 = vsel %vm4792, %v5854, %v5760
      %v5890 = vsel %vm4792, %v5857, %v5762
      %v5892 = vsel %vm4792, %v5860, %v5764
      %v5894 = vsel %vm4825, %v5862, %v5782
      %v5897 = vsel %vm4825, %v5864, %v5784
      %v5900 = vsel %vm4825, %v5866, %v5786
      %v5903 = vsel %vm4825, %v5868, %v5788
      %v5906 = vsel %vm4825, %v5870, %v5790
      %v5909 = vsel %vm4825, %v5872, %v5792
      %v5912 = vsel %vm4825, %v5874, %v5794
      %v5915 = vsel %vm4825, %v5876, %v5796
      %v5918 = vsel %vm4825, %v5878, %v5798
      %v5921 = vsel %vm4825, %v5880, %v5800
      %v5924 = vsel %vm4825, %v5882, %v5802
      %v5927 = vsel %vm4825, %v5884, %v5804
      %v5930 = vsel %vm4825, %v5886, %v5806
      %v5933 = vsel %vm4825, %v5888, %v5808
      %v5936 = vsel %vm4825, %v5890, %v5810
      %v5939 = vsel %vm4825, %v5892, %v5812
      %5941 = vst [vmem:[#allocation3 + $0x18] sm:$0xff] %v5894
      %5942 = vst [vmem:[#allocation3 + $0x60] sm:$0xff] %v5897
      %5943 = vst [vmem:[#allocation3 + $0xa8] sm:$0xff] %v5900
      %5944 = vst [vmem:[#allocation3 + $0xf0] sm:$0xff] %v5903
      %5945 = vst [vmem:[#allocation3 + $0x138] sm:$0xff] %v5906
      %5946 = vst [vmem:[#allocation3 + $0x180] sm:$0xff] %v5909
      %5947 = vst [vmem:[#allocation3 + $0x1c8] sm:$0xff] %v5912
      %5948 = vst [vmem:[#allocation3 + $0x210] sm:$0xff] %v5915
      %5949 = vst [vmem:[#allocation3 + $0x258] sm:$0xff] %v5918
      %5950 = vst [vmem:[#allocation3 + $0x2a0] sm:$0xff] %v5921
      %5951 = vst [vmem:[#allocation3 + $0x2e8] sm:$0xff] %v5924
      %5952 = vst [vmem:[#allocation3 + $0x330] sm:$0xff] %v5927
      %5953 = vst [vmem:[#allocation3 + $0x378] sm:$0xff] %v5930
      %5954 = vst [vmem:[#allocation3 + $0x3c0] sm:$0xff] %v5933
      %5955 = vst [vmem:[#allocation3 + $0x408] sm:$0xff] %v5936
      %5956 = vst [vmem:[#allocation3 + $0x450] sm:$0xff] %v5939
      %s5957 = scalar_lea.vmem [#allocation2], 816
      %v5958 = vld [vmem:[%s5957] sm:$0xff]
      %v5959 = vld [vmem:[%s5957 + $0x8] sm:$0xff]
      %v5960 = vld [vmem:[%s5957 + $0x10] sm:$0xff]
      %v5961 = vld [vmem:[%s5957 + $0x18] sm:$0xff]
      %v5962 = vld [vmem:[%s5957 + $0x20] sm:$0xff]
      %v5963 = vld [vmem:[%s5957 + $0x28] sm:$0xff]
      %v5964 = vld [vmem:[%s5957 + $0x30] sm:$0xff]
      %v5965 = vld [vmem:[%s5957 + $0x38] sm:$0xff]
      %v5966 = vld [vmem:[%s5957 + $0x40] sm:$0xff]
      %v5967 = vld [vmem:[%s5957 + $0x48] sm:$0xff]
      %v5968 = vld [vmem:[%s5957 + $0x50] sm:$0xff]
      %v5969 = vld [vmem:[%s5957 + $0x58] sm:$0xff]
      %v5970 = vld [vmem:[%s5957 + $0x60] sm:$0xff]
      %v5971 = vld [vmem:[%s5957 + $0x68] sm:$0xff]
      %v5972 = vld [vmem:[%s5957 + $0x70] sm:$0xff]
      %v5973 = vld [vmem:[%s5957 + $0x78] sm:$0xff]
      %s5974 = scalar_lea.vmem [#allocation2], 1200
      %v5975 = vld [vmem:[%s5974] sm:$0xff]
      %v5976 = vld [vmem:[%s5974 + $0x8] sm:$0xff]
      %v5977 = vld [vmem:[%s5974 + $0x10] sm:$0xff]
      %v5978 = vld [vmem:[%s5974 + $0x18] sm:$0xff]
      %v5979 = vld [vmem:[%s5974 + $0x20] sm:$0xff]
      %v5980 = vld [vmem:[%s5974 + $0x28] sm:$0xff]
      %v5981 = vld [vmem:[%s5974 + $0x30] sm:$0xff]
      %v5982 = vld [vmem:[%s5974 + $0x38] sm:$0xff]
      %v5983 = vld [vmem:[%s5974 + $0x40] sm:$0xff]
      %v5984 = vld [vmem:[%s5974 + $0x48] sm:$0xff]
      %v5985 = vld [vmem:[%s5974 + $0x50] sm:$0xff]
      %v5986 = vld [vmem:[%s5974 + $0x58] sm:$0xff]
      %v5987 = vld [vmem:[%s5974 + $0x60] sm:$0xff]
      %v5988 = vld [vmem:[%s5974 + $0x68] sm:$0xff]
      %v5989 = vld [vmem:[%s5974 + $0x70] sm:$0xff]
      %v5990 = vld [vmem:[%s5974 + $0x78] sm:$0xff]
      %s5991 = scalar_lea.vmem [#allocation2], 200
      %v5992 = vld [vmem:[%s5991] sm:$0xff]
      %v5993 = vld [vmem:[%s5991 + $0x8] sm:$0xff]
      %v5994 = vld [vmem:[%s5991 + $0x10] sm:$0xff]
      %v5995 = vld [vmem:[%s5991 + $0x18] sm:$0xff]
      %v5996 = vld [vmem:[%s5991 + $0x20] sm:$0xff]
      %v5997 = vld [vmem:[%s5991 + $0x28] sm:$0xff]
      %v5998 = vld [vmem:[%s5991 + $0x30] sm:$0xff]
      %v5999 = vld [vmem:[%s5991 + $0x38] sm:$0xff]
      %v6000 = vld [vmem:[%s5991 + $0x40] sm:$0xff]
      %v6001 = vld [vmem:[%s5991 + $0x48] sm:$0xff]
      %v6002 = vld [vmem:[%s5991 + $0x50] sm:$0xff]
      %v6003 = vld [vmem:[%s5991 + $0x58] sm:$0xff]
      %v6004 = vld [vmem:[%s5991 + $0x60] sm:$0xff]
      %v6005 = vld [vmem:[%s5991 + $0x68] sm:$0xff]
      %v6006 = vld [vmem:[%s5991 + $0x70] sm:$0xff]
      %v6007 = vld [vmem:[%s5991 + $0x78] sm:$0xff]
      %s6008 = scalar_lea.vmem [#allocation2], 776
      %v6009 = vld [vmem:[%s6008] sm:$0xff]
      %v6010 = vld [vmem:[%s6008 + $0x8] sm:$0xff]
      %v6011 = vld [vmem:[%s6008 + $0x10] sm:$0xff]
      %v6012 = vld [vmem:[%s6008 + $0x18] sm:$0xff]
      %v6013 = vld [vmem:[%s6008 + $0x20] sm:$0xff]
      %v6014 = vld [vmem:[%s6008 + $0x28] sm:$0xff]
      %v6015 = vld [vmem:[%s6008 + $0x30] sm:$0xff]
      %v6016 = vld [vmem:[%s6008 + $0x38] sm:$0xff]
      %v6017 = vld [vmem:[%s6008 + $0x40] sm:$0xff]
      %v6018 = vld [vmem:[%s6008 + $0x48] sm:$0xff]
      %v6019 = vld [vmem:[%s6008 + $0x50] sm:$0xff]
      %v6020 = vld [vmem:[%s6008 + $0x58] sm:$0xff]
      %v6021 = vld [vmem:[%s6008 + $0x60] sm:$0xff]
      %v6022 = vld [vmem:[%s6008 + $0x68] sm:$0xff]
      %v6023 = vld [vmem:[%s6008 + $0x70] sm:$0xff]
      %v6024 = vld [vmem:[%s6008 + $0x78] sm:$0xff]
      %6041 = vrot.lane.b32.xlu0 %v5975, 32
      %v6042 = vpop.permute.xlu0 %6041
      %6043 = vrot.lane.b32.xlu0 %v5976, 32
      %v6044 = vpop.permute.xlu0 %6043
      %6045 = vrot.lane.b32.xlu0 %v5977, 32
      %v6046 = vpop.permute.xlu0 %6045
      %6047 = vrot.lane.b32.xlu0 %v5978, 32
      %v6048 = vpop.permute.xlu0 %6047
      %6049 = vrot.lane.b32.xlu0 %v5979, 32
      %v6050 = vpop.permute.xlu0 %6049
      %6051 = vrot.lane.b32.xlu0 %v5980, 32
      %v6052 = vpop.permute.xlu0 %6051
      %6053 = vrot.lane.b32.xlu0 %v5981, 32
      %v6054 = vpop.permute.xlu0 %6053
      %6055 = vrot.lane.b32.xlu0 %v5982, 32
      %v6056 = vpop.permute.xlu0 %6055
      %6057 = vrot.lane.b32.xlu0 %v5983, 32
      %v6058 = vpop.permute.xlu0 %6057
      %6059 = vrot.lane.b32.xlu0 %v5984, 32
      %v6060 = vpop.permute.xlu0 %6059
      %6061 = vrot.lane.b32.xlu0 %v5985, 32
      %v6062 = vpop.permute.xlu0 %6061
      %6063 = vrot.lane.b32.xlu0 %v5986, 32
      %v6064 = vpop.permute.xlu0 %6063
      %6065 = vrot.lane.b32.xlu0 %v5987, 32
      %v6066 = vpop.permute.xlu0 %6065
      %6067 = vrot.lane.b32.xlu0 %v5988, 32
      %v6068 = vpop.permute.xlu0 %6067
      %6069 = vrot.lane.b32.xlu0 %v5989, 32
      %v6070 = vpop.permute.xlu0 %6069
      %6071 = vrot.lane.b32.xlu0 %v5990, 32
      %v6072 = vpop.permute.xlu0 %6071
      %6089 = vrot.lane.b32.xlu0 %v5992, 64
      %v6090 = vpop.permute.xlu0 %6089
      %6091 = vrot.lane.b32.xlu0 %v5993, 64
      %v6092 = vpop.permute.xlu0 %6091
      %6093 = vrot.lane.b32.xlu0 %v5994, 64
      %v6094 = vpop.permute.xlu0 %6093
      %6095 = vrot.lane.b32.xlu0 %v5995, 64
      %v6096 = vpop.permute.xlu0 %6095
      %6097 = vrot.lane.b32.xlu0 %v5996, 64
      %v6098 = vpop.permute.xlu0 %6097
      %6099 = vrot.lane.b32.xlu0 %v5997, 64
      %v6100 = vpop.permute.xlu0 %6099
      %6101 = vrot.lane.b32.xlu0 %v5998, 64
      %v6102 = vpop.permute.xlu0 %6101
      %6103 = vrot.lane.b32.xlu0 %v5999, 64
      %v6104 = vpop.permute.xlu0 %6103
      %6105 = vrot.lane.b32.xlu0 %v6000, 64
      %v6106 = vpop.permute.xlu0 %6105
      %6107 = vrot.lane.b32.xlu0 %v6001, 64
      %v6108 = vpop.permute.xlu0 %6107
      %6109 = vrot.lane.b32.xlu0 %v6002, 64
      %v6110 = vpop.permute.xlu0 %6109
      %6111 = vrot.lane.b32.xlu0 %v6003, 64
      %v6112 = vpop.permute.xlu0 %6111
      %6113 = vrot.lane.b32.xlu0 %v6004, 64
      %v6114 = vpop.permute.xlu0 %6113
      %6115 = vrot.lane.b32.xlu0 %v6005, 64
      %v6116 = vpop.permute.xlu0 %6115
      %6117 = vrot.lane.b32.xlu0 %v6006, 64
      %v6118 = vpop.permute.xlu0 %6117
      %6119 = vrot.lane.b32.xlu0 %v6007, 64
      %v6120 = vpop.permute.xlu0 %6119
      %6137 = vrot.lane.b32.xlu0 %v6009, 96
      %v6138 = vpop.permute.xlu0 %6137
      %6139 = vrot.lane.b32.xlu0 %v6010, 96
      %v6140 = vpop.permute.xlu0 %6139
      %6141 = vrot.lane.b32.xlu0 %v6011, 96
      %v6142 = vpop.permute.xlu0 %6141
      %6143 = vrot.lane.b32.xlu0 %v6012, 96
      %v6144 = vpop.permute.xlu0 %6143
      %6145 = vrot.lane.b32.xlu0 %v6013, 96
      %v6146 = vpop.permute.xlu0 %6145
      %6147 = vrot.lane.b32.xlu0 %v6014, 96
      %v6148 = vpop.permute.xlu0 %6147
      %6149 = vrot.lane.b32.xlu0 %v6015, 96
      %v6150 = vpop.permute.xlu0 %6149
      %6151 = vrot.lane.b32.xlu0 %v6016, 96
      %v6152 = vpop.permute.xlu0 %6151
      %6153 = vrot.lane.b32.xlu0 %v6017, 96
      %v6154 = vpop.permute.xlu0 %6153
      %6155 = vrot.lane.b32.xlu0 %v6018, 96
      %v6156 = vpop.permute.xlu0 %6155
      %6157 = vrot.lane.b32.xlu0 %v6019, 96
      %v6158 = vpop.permute.xlu0 %6157
      %6159 = vrot.lane.b32.xlu0 %v6020, 96
      %v6160 = vpop.permute.xlu0 %6159
      %6161 = vrot.lane.b32.xlu0 %v6021, 96
      %v6162 = vpop.permute.xlu0 %6161
      %6163 = vrot.lane.b32.xlu0 %v6022, 96
      %v6164 = vpop.permute.xlu0 %6163
      %6165 = vrot.lane.b32.xlu0 %v6023, 96
      %v6166 = vpop.permute.xlu0 %6165
      %6167 = vrot.lane.b32.xlu0 %v6024, 96
      %v6168 = vpop.permute.xlu0 %6167
      %v6171 = vsel %vm364, %v5958, %v6042
      %v6174 = vsel %vm364, %v5959, %v6044
      %v6177 = vsel %vm364, %v5960, %v6046
      %v6180 = vsel %vm364, %v5961, %v6048
      %v6183 = vsel %vm364, %v5962, %v6050
      %v6186 = vsel %vm364, %v5963, %v6052
      %v6189 = vsel %vm364, %v5964, %v6054
      %v6192 = vsel %vm364, %v5965, %v6056
      %v6195 = vsel %vm364, %v5966, %v6058
      %v6198 = vsel %vm364, %v5967, %v6060
      %v6201 = vsel %vm364, %v5968, %v6062
      %v6204 = vsel %vm364, %v5969, %v6064
      %v6207 = vsel %vm364, %v5970, %v6066
      %v6210 = vsel %vm364, %v5971, %v6068
      %v6213 = vsel %vm364, %v5972, %v6070
      %v6216 = vsel %vm364, %v5973, %v6072
      %v6218 = vsel %vm4792, %v6171, %v6090
      %v6220 = vsel %vm4792, %v6174, %v6092
      %v6222 = vsel %vm4792, %v6177, %v6094
      %v6224 = vsel %vm4792, %v6180, %v6096
      %v6226 = vsel %vm4792, %v6183, %v6098
      %v6228 = vsel %vm4792, %v6186, %v6100
      %v6230 = vsel %vm4792, %v6189, %v6102
      %v6232 = vsel %vm4792, %v6192, %v6104
      %v6234 = vsel %vm4792, %v6195, %v6106
      %v6236 = vsel %vm4792, %v6198, %v6108
      %v6238 = vsel %vm4792, %v6201, %v6110
      %v6240 = vsel %vm4792, %v6204, %v6112
      %v6242 = vsel %vm4792, %v6207, %v6114
      %v6244 = vsel %vm4792, %v6210, %v6116
      %v6246 = vsel %vm4792, %v6213, %v6118
      %v6248 = vsel %vm4792, %v6216, %v6120
      %v6250 = vsel %vm4825, %v6218, %v6138
      %v6253 = vsel %vm4825, %v6220, %v6140
      %v6256 = vsel %vm4825, %v6222, %v6142
      %v6259 = vsel %vm4825, %v6224, %v6144
      %v6262 = vsel %vm4825, %v6226, %v6146
      %v6265 = vsel %vm4825, %v6228, %v6148
      %v6268 = vsel %vm4825, %v6230, %v6150
      %v6271 = vsel %vm4825, %v6232, %v6152
      %v6274 = vsel %vm4825, %v6234, %v6154
      %v6277 = vsel %vm4825, %v6236, %v6156
      %v6280 = vsel %vm4825, %v6238, %v6158
      %v6283 = vsel %vm4825, %v6240, %v6160
      %v6286 = vsel %vm4825, %v6242, %v6162
      %v6289 = vsel %vm4825, %v6244, %v6164
      %v6292 = vsel %vm4825, %v6246, %v6166
      %v6295 = vsel %vm4825, %v6248, %v6168
      %6297 = vst [vmem:[#allocation3 + $0x20] sm:$0xff] %v6250
      %6298 = vst [vmem:[#allocation3 + $0x68] sm:$0xff] %v6253
      %6299 = vst [vmem:[#allocation3 + $0xb0] sm:$0xff] %v6256
      %6300 = vst [vmem:[#allocation3 + $0xf8] sm:$0xff] %v6259
      %6301 = vst [vmem:[#allocation3 + $0x140] sm:$0xff] %v6262
      %6302 = vst [vmem:[#allocation3 + $0x188] sm:$0xff] %v6265
      %6303 = vst [vmem:[#allocation3 + $0x1d0] sm:$0xff] %v6268
      %6304 = vst [vmem:[#allocation3 + $0x218] sm:$0xff] %v6271
      %6305 = vst [vmem:[#allocation3 + $0x260] sm:$0xff] %v6274
      %6306 = vst [vmem:[#allocation3 + $0x2a8] sm:$0xff] %v6277
      %6307 = vst [vmem:[#allocation3 + $0x2f0] sm:$0xff] %v6280
      %6308 = vst [vmem:[#allocation3 + $0x338] sm:$0xff] %v6283
      %6309 = vst [vmem:[#allocation3 + $0x380] sm:$0xff] %v6286
      %6310 = vst [vmem:[#allocation3 + $0x3c8] sm:$0xff] %v6289
      %6311 = vst [vmem:[#allocation3 + $0x410] sm:$0xff] %v6292
      %6312 = vst [vmem:[#allocation3 + $0x458] sm:$0xff] %v6295
      %s6313 = scalar_lea.vmem [#allocation2], 1352
      %v6314 = vld [vmem:[%s6313] sm:$0xff]
      %v6315 = vld [vmem:[%s6313 + $0x8] sm:$0xff]
      %v6316 = vld [vmem:[%s6313 + $0x10] sm:$0xff]
      %v6317 = vld [vmem:[%s6313 + $0x18] sm:$0xff]
      %v6318 = vld [vmem:[%s6313 + $0x20] sm:$0xff]
      %v6319 = vld [vmem:[%s6313 + $0x28] sm:$0xff]
      %v6320 = vld [vmem:[%s6313 + $0x30] sm:$0xff]
      %v6321 = vld [vmem:[%s6313 + $0x38] sm:$0xff]
      %v6322 = vld [vmem:[%s6313 + $0x40] sm:$0xff]
      %v6323 = vld [vmem:[%s6313 + $0x48] sm:$0xff]
      %v6324 = vld [vmem:[%s6313 + $0x50] sm:$0xff]
      %v6325 = vld [vmem:[%s6313 + $0x58] sm:$0xff]
      %v6326 = vld [vmem:[%s6313 + $0x60] sm:$0xff]
      %v6327 = vld [vmem:[%s6313 + $0x68] sm:$0xff]
      %v6328 = vld [vmem:[%s6313 + $0x70] sm:$0xff]
      %v6329 = vld [vmem:[%s6313 + $0x78] sm:$0xff]
      %s6330 = scalar_lea.vmem [#allocation2], 224
      %v6331 = vld [vmem:[%s6330] sm:$0xff]
      %v6332 = vld [vmem:[%s6330 + $0x8] sm:$0xff]
      %v6333 = vld [vmem:[%s6330 + $0x10] sm:$0xff]
      %v6334 = vld [vmem:[%s6330 + $0x18] sm:$0xff]
      %v6335 = vld [vmem:[%s6330 + $0x20] sm:$0xff]
      %v6336 = vld [vmem:[%s6330 + $0x28] sm:$0xff]
      %v6337 = vld [vmem:[%s6330 + $0x30] sm:$0xff]
      %v6338 = vld [vmem:[%s6330 + $0x38] sm:$0xff]
      %v6339 = vld [vmem:[%s6330 + $0x40] sm:$0xff]
      %v6340 = vld [vmem:[%s6330 + $0x48] sm:$0xff]
      %v6341 = vld [vmem:[%s6330 + $0x50] sm:$0xff]
      %v6342 = vld [vmem:[%s6330 + $0x58] sm:$0xff]
      %v6343 = vld [vmem:[%s6330 + $0x60] sm:$0xff]
      %v6344 = vld [vmem:[%s6330 + $0x68] sm:$0xff]
      %v6345 = vld [vmem:[%s6330 + $0x70] sm:$0xff]
      %v6346 = vld [vmem:[%s6330 + $0x78] sm:$0xff]
      %v6347 = vld [vmem:[%s4890] sm:$0xff]
      %v6348 = vld [vmem:[%s4890 + $0x8] sm:$0xff]
      %v6349 = vld [vmem:[%s4890 + $0x10] sm:$0xff]
      %v6350 = vld [vmem:[%s4890 + $0x18] sm:$0xff]
      %v6351 = vld [vmem:[%s4890 + $0x20] sm:$0xff]
      %v6352 = vld [vmem:[%s4890 + $0x28] sm:$0xff]
      %v6353 = vld [vmem:[%s4890 + $0x30] sm:$0xff]
      %v6354 = vld [vmem:[%s4890 + $0x38] sm:$0xff]
      %v6355 = vld [vmem:[%s4890 + $0x40] sm:$0xff]
      %v6356 = vld [vmem:[%s4890 + $0x48] sm:$0xff]
      %v6357 = vld [vmem:[%s4890 + $0x50] sm:$0xff]
      %v6358 = vld [vmem:[%s4890 + $0x58] sm:$0xff]
      %v6359 = vld [vmem:[%s4890 + $0x60] sm:$0xff]
      %v6360 = vld [vmem:[%s4890 + $0x68] sm:$0xff]
      %v6361 = vld [vmem:[%s4890 + $0x70] sm:$0xff]
      %v6362 = vld [vmem:[%s4890 + $0x78] sm:$0xff]
      %s6363 = scalar_lea.vmem [#allocation2], 1376
      %v6364 = vld [vmem:[%s6363] sm:$0xff]
      %v6365 = vld [vmem:[%s6363 + $0x8] sm:$0xff]
      %v6366 = vld [vmem:[%s6363 + $0x10] sm:$0xff]
      %v6367 = vld [vmem:[%s6363 + $0x18] sm:$0xff]
      %v6368 = vld [vmem:[%s6363 + $0x20] sm:$0xff]
      %v6369 = vld [vmem:[%s6363 + $0x28] sm:$0xff]
      %v6370 = vld [vmem:[%s6363 + $0x30] sm:$0xff]
      %v6371 = vld [vmem:[%s6363 + $0x38] sm:$0xff]
      %v6372 = vld [vmem:[%s6363 + $0x40] sm:$0xff]
      %v6373 = vld [vmem:[%s6363 + $0x48] sm:$0xff]
      %v6374 = vld [vmem:[%s6363 + $0x50] sm:$0xff]
      %v6375 = vld [vmem:[%s6363 + $0x58] sm:$0xff]
      %v6376 = vld [vmem:[%s6363 + $0x60] sm:$0xff]
      %v6377 = vld [vmem:[%s6363 + $0x68] sm:$0xff]
      %v6378 = vld [vmem:[%s6363 + $0x70] sm:$0xff]
      %v6379 = vld [vmem:[%s6363 + $0x78] sm:$0xff]
      %6396 = vrot.lane.b32.xlu0 %v6331, 32
      %v6397 = vpop.permute.xlu0 %6396
      %6398 = vrot.lane.b32.xlu0 %v6332, 32
      %v6399 = vpop.permute.xlu0 %6398
      %6400 = vrot.lane.b32.xlu0 %v6333, 32
      %v6401 = vpop.permute.xlu0 %6400
      %6402 = vrot.lane.b32.xlu0 %v6334, 32
      %v6403 = vpop.permute.xlu0 %6402
      %6404 = vrot.lane.b32.xlu0 %v6335, 32
      %v6405 = vpop.permute.xlu0 %6404
      %6406 = vrot.lane.b32.xlu0 %v6336, 32
      %v6407 = vpop.permute.xlu0 %6406
      %6408 = vrot.lane.b32.xlu0 %v6337, 32
      %v6409 = vpop.permute.xlu0 %6408
      %6410 = vrot.lane.b32.xlu0 %v6338, 32
      %v6411 = vpop.permute.xlu0 %6410
      %6412 = vrot.lane.b32.xlu0 %v6339, 32
      %v6413 = vpop.permute.xlu0 %6412
      %6414 = vrot.lane.b32.xlu0 %v6340, 32
      %v6415 = vpop.permute.xlu0 %6414
      %6416 = vrot.lane.b32.xlu0 %v6341, 32
      %v6417 = vpop.permute.xlu0 %6416
      %6418 = vrot.lane.b32.xlu0 %v6342, 32
      %v6419 = vpop.permute.xlu0 %6418
      %6420 = vrot.lane.b32.xlu0 %v6343, 32
      %v6421 = vpop.permute.xlu0 %6420
      %6422 = vrot.lane.b32.xlu0 %v6344, 32
      %v6423 = vpop.permute.xlu0 %6422
      %6424 = vrot.lane.b32.xlu0 %v6345, 32
      %v6425 = vpop.permute.xlu0 %6424
      %6426 = vrot.lane.b32.xlu0 %v6346, 32
      %v6427 = vpop.permute.xlu0 %6426
      %6444 = vrot.lane.b32.xlu0 %v6347, 64
      %v6445 = vpop.permute.xlu0 %6444
      %6446 = vrot.lane.b32.xlu0 %v6348, 64
      %v6447 = vpop.permute.xlu0 %6446
      %6448 = vrot.lane.b32.xlu0 %v6349, 64
      %v6449 = vpop.permute.xlu0 %6448
      %6450 = vrot.lane.b32.xlu0 %v6350, 64
      %v6451 = vpop.permute.xlu0 %6450
      %6452 = vrot.lane.b32.xlu0 %v6351, 64
      %v6453 = vpop.permute.xlu0 %6452
      %6454 = vrot.lane.b32.xlu0 %v6352, 64
      %v6455 = vpop.permute.xlu0 %6454
      %6456 = vrot.lane.b32.xlu0 %v6353, 64
      %v6457 = vpop.permute.xlu0 %6456
      %6458 = vrot.lane.b32.xlu0 %v6354, 64
      %v6459 = vpop.permute.xlu0 %6458
      %6460 = vrot.lane.b32.xlu0 %v6355, 64
      %v6461 = vpop.permute.xlu0 %6460
      %6462 = vrot.lane.b32.xlu0 %v6356, 64
      %v6463 = vpop.permute.xlu0 %6462
      %6464 = vrot.lane.b32.xlu0 %v6357, 64
      %v6465 = vpop.permute.xlu0 %6464
      %6466 = vrot.lane.b32.xlu0 %v6358, 64
      %v6467 = vpop.permute.xlu0 %6466
      %6468 = vrot.lane.b32.xlu0 %v6359, 64
      %v6469 = vpop.permute.xlu0 %6468
      %6470 = vrot.lane.b32.xlu0 %v6360, 64
      %v6471 = vpop.permute.xlu0 %6470
      %6472 = vrot.lane.b32.xlu0 %v6361, 64
      %v6473 = vpop.permute.xlu0 %6472
      %6474 = vrot.lane.b32.xlu0 %v6362, 64
      %v6475 = vpop.permute.xlu0 %6474
      %6492 = vrot.lane.b32.xlu0 %v6364, 96
      %v6493 = vpop.permute.xlu0 %6492
      %6494 = vrot.lane.b32.xlu0 %v6365, 96
      %v6495 = vpop.permute.xlu0 %6494
      %6496 = vrot.lane.b32.xlu0 %v6366, 96
      %v6497 = vpop.permute.xlu0 %6496
      %6498 = vrot.lane.b32.xlu0 %v6367, 96
      %v6499 = vpop.permute.xlu0 %6498
      %6500 = vrot.lane.b32.xlu0 %v6368, 96
      %v6501 = vpop.permute.xlu0 %6500
      %6502 = vrot.lane.b32.xlu0 %v6369, 96
      %v6503 = vpop.permute.xlu0 %6502
      %6504 = vrot.lane.b32.xlu0 %v6370, 96
      %v6505 = vpop.permute.xlu0 %6504
      %6506 = vrot.lane.b32.xlu0 %v6371, 96
      %v6507 = vpop.permute.xlu0 %6506
      %6508 = vrot.lane.b32.xlu0 %v6372, 96
      %v6509 = vpop.permute.xlu0 %6508
      %6510 = vrot.lane.b32.xlu0 %v6373, 96
      %v6511 = vpop.permute.xlu0 %6510
      %6512 = vrot.lane.b32.xlu0 %v6374, 96
      %v6513 = vpop.permute.xlu0 %6512
      %6514 = vrot.lane.b32.xlu0 %v6375, 96
      %v6515 = vpop.permute.xlu0 %6514
      %6516 = vrot.lane.b32.xlu0 %v6376, 96
      %v6517 = vpop.permute.xlu0 %6516
      %6518 = vrot.lane.b32.xlu0 %v6377, 96
      %v6519 = vpop.permute.xlu0 %6518
      %6520 = vrot.lane.b32.xlu0 %v6378, 96
      %v6521 = vpop.permute.xlu0 %6520
      %6522 = vrot.lane.b32.xlu0 %v6379, 96
      %v6523 = vpop.permute.xlu0 %6522
      %v6526 = vsel %vm364, %v6314, %v6397
      %v6529 = vsel %vm364, %v6315, %v6399
      %v6532 = vsel %vm364, %v6316, %v6401
      %v6535 = vsel %vm364, %v6317, %v6403
      %v6538 = vsel %vm364, %v6318, %v6405
      %v6541 = vsel %vm364, %v6319, %v6407
      %v6544 = vsel %vm364, %v6320, %v6409
      %v6547 = vsel %vm364, %v6321, %v6411
      %v6550 = vsel %vm364, %v6322, %v6413
      %v6553 = vsel %vm364, %v6323, %v6415
      %v6556 = vsel %vm364, %v6324, %v6417
      %v6559 = vsel %vm364, %v6325, %v6419
      %v6562 = vsel %vm364, %v6326, %v6421
      %v6565 = vsel %vm364, %v6327, %v6423
      %v6568 = vsel %vm364, %v6328, %v6425
      %v6571 = vsel %vm364, %v6329, %v6427
      %v6573 = vsel %vm4792, %v6526, %v6445
      %v6575 = vsel %vm4792, %v6529, %v6447
      %v6577 = vsel %vm4792, %v6532, %v6449
      %v6579 = vsel %vm4792, %v6535, %v6451
      %v6581 = vsel %vm4792, %v6538, %v6453
      %v6583 = vsel %vm4792, %v6541, %v6455
      %v6585 = vsel %vm4792, %v6544, %v6457
      %v6587 = vsel %vm4792, %v6547, %v6459
      %v6589 = vsel %vm4792, %v6550, %v6461
      %v6591 = vsel %vm4792, %v6553, %v6463
      %v6593 = vsel %vm4792, %v6556, %v6465
      %v6595 = vsel %vm4792, %v6559, %v6467
      %v6597 = vsel %vm4792, %v6562, %v6469
      %v6599 = vsel %vm4792, %v6565, %v6471
      %v6601 = vsel %vm4792, %v6568, %v6473
      %v6603 = vsel %vm4792, %v6571, %v6475
      %v6605 = vsel %vm4825, %v6573, %v6493
      %v6608 = vsel %vm4825, %v6575, %v6495
      %v6611 = vsel %vm4825, %v6577, %v6497
      %v6614 = vsel %vm4825, %v6579, %v6499
      %v6617 = vsel %vm4825, %v6581, %v6501
      %v6620 = vsel %vm4825, %v6583, %v6503
      %v6623 = vsel %vm4825, %v6585, %v6505
      %v6626 = vsel %vm4825, %v6587, %v6507
      %v6629 = vsel %vm4825, %v6589, %v6509
      %v6632 = vsel %vm4825, %v6591, %v6511
      %v6635 = vsel %vm4825, %v6593, %v6513
      %v6638 = vsel %vm4825, %v6595, %v6515
      %v6641 = vsel %vm4825, %v6597, %v6517
      %v6644 = vsel %vm4825, %v6599, %v6519
      %v6647 = vsel %vm4825, %v6601, %v6521
      %v6650 = vsel %vm4825, %v6603, %v6523
      %6652 = vst [vmem:[#allocation3 + $0x28] sm:$0xff] %v6605
      %6653 = vst [vmem:[#allocation3 + $0x70] sm:$0xff] %v6608
      %6654 = vst [vmem:[#allocation3 + $0xb8] sm:$0xff] %v6611
      %6655 = vst [vmem:[#allocation3 + $0x100] sm:$0xff] %v6614
      %6656 = vst [vmem:[#allocation3 + $0x148] sm:$0xff] %v6617
      %6657 = vst [vmem:[#allocation3 + $0x190] sm:$0xff] %v6620
      %6658 = vst [vmem:[#allocation3 + $0x1d8] sm:$0xff] %v6623
      %6659 = vst [vmem:[#allocation3 + $0x220] sm:$0xff] %v6626
      %6660 = vst [vmem:[#allocation3 + $0x268] sm:$0xff] %v6629
      %6661 = vst [vmem:[#allocation3 + $0x2b0] sm:$0xff] %v6632
      %6662 = vst [vmem:[#allocation3 + $0x2f8] sm:$0xff] %v6635
      %6663 = vst [vmem:[#allocation3 + $0x340] sm:$0xff] %v6638
      %6664 = vst [vmem:[#allocation3 + $0x388] sm:$0xff] %v6641
      %6665 = vst [vmem:[#allocation3 + $0x3d0] sm:$0xff] %v6644
      %6666 = vst [vmem:[#allocation3 + $0x418] sm:$0xff] %v6647
      %6667 = vst [vmem:[#allocation3 + $0x460] sm:$0xff] %v6650
      %s6668 = scalar_lea.vmem [#allocation2], 248
      %v6669 = vld [vmem:[%s6668] sm:$0xff]
      %v6670 = vld [vmem:[%s6668 + $0x8] sm:$0xff]
      %v6671 = vld [vmem:[%s6668 + $0x10] sm:$0xff]
      %v6672 = vld [vmem:[%s6668 + $0x18] sm:$0xff]
      %v6673 = vld [vmem:[%s6668 + $0x20] sm:$0xff]
      %v6674 = vld [vmem:[%s6668 + $0x28] sm:$0xff]
      %v6675 = vld [vmem:[%s6668 + $0x30] sm:$0xff]
      %v6676 = vld [vmem:[%s6668 + $0x38] sm:$0xff]
      %v6677 = vld [vmem:[%s6668 + $0x40] sm:$0xff]
      %v6678 = vld [vmem:[%s6668 + $0x48] sm:$0xff]
      %v6679 = vld [vmem:[%s6668 + $0x50] sm:$0xff]
      %v6680 = vld [vmem:[%s6668 + $0x58] sm:$0xff]
      %v6681 = vld [vmem:[%s6668 + $0x60] sm:$0xff]
      %v6682 = vld [vmem:[%s6668 + $0x68] sm:$0xff]
      %v6683 = vld [vmem:[%s6668 + $0x70] sm:$0xff]
      %v6684 = vld [vmem:[%s6668 + $0x78] sm:$0xff]
      %s6685 = scalar_lea.vmem [#allocation2], 824
      %v6686 = vld [vmem:[%s6685] sm:$0xff]
      %v6687 = vld [vmem:[%s6685 + $0x8] sm:$0xff]
      %v6688 = vld [vmem:[%s6685 + $0x10] sm:$0xff]
      %v6689 = vld [vmem:[%s6685 + $0x18] sm:$0xff]
      %v6690 = vld [vmem:[%s6685 + $0x20] sm:$0xff]
      %v6691 = vld [vmem:[%s6685 + $0x28] sm:$0xff]
      %v6692 = vld [vmem:[%s6685 + $0x30] sm:$0xff]
      %v6693 = vld [vmem:[%s6685 + $0x38] sm:$0xff]
      %v6694 = vld [vmem:[%s6685 + $0x40] sm:$0xff]
      %v6695 = vld [vmem:[%s6685 + $0x48] sm:$0xff]
      %v6696 = vld [vmem:[%s6685 + $0x50] sm:$0xff]
      %v6697 = vld [vmem:[%s6685 + $0x58] sm:$0xff]
      %v6698 = vld [vmem:[%s6685 + $0x60] sm:$0xff]
      %v6699 = vld [vmem:[%s6685 + $0x68] sm:$0xff]
      %v6700 = vld [vmem:[%s6685 + $0x70] sm:$0xff]
      %v6701 = vld [vmem:[%s6685 + $0x78] sm:$0xff]
      %s6702 = scalar_lea.vmem [#allocation2], 1400
      %v6703 = vld [vmem:[%s6702] sm:$0xff]
      %v6704 = vld [vmem:[%s6702 + $0x8] sm:$0xff]
      %v6705 = vld [vmem:[%s6702 + $0x10] sm:$0xff]
      %v6706 = vld [vmem:[%s6702 + $0x18] sm:$0xff]
      %v6707 = vld [vmem:[%s6702 + $0x20] sm:$0xff]
      %v6708 = vld [vmem:[%s6702 + $0x28] sm:$0xff]
      %v6709 = vld [vmem:[%s6702 + $0x30] sm:$0xff]
      %v6710 = vld [vmem:[%s6702 + $0x38] sm:$0xff]
      %v6711 = vld [vmem:[%s6702 + $0x40] sm:$0xff]
      %v6712 = vld [vmem:[%s6702 + $0x48] sm:$0xff]
      %v6713 = vld [vmem:[%s6702 + $0x50] sm:$0xff]
      %v6714 = vld [vmem:[%s6702 + $0x58] sm:$0xff]
      %v6715 = vld [vmem:[%s6702 + $0x60] sm:$0xff]
      %v6716 = vld [vmem:[%s6702 + $0x68] sm:$0xff]
      %v6717 = vld [vmem:[%s6702 + $0x70] sm:$0xff]
      %v6718 = vld [vmem:[%s6702 + $0x78] sm:$0xff]
      %v6719 = vld [vmem:[#allocation2] sm:$0xff]
      %v6720 = vld [vmem:[#allocation2 + $0x8] sm:$0xff]
      %v6721 = vld [vmem:[#allocation2 + $0x10] sm:$0xff]
      %v6722 = vld [vmem:[#allocation2 + $0x18] sm:$0xff]
      %v6723 = vld [vmem:[#allocation2 + $0x20] sm:$0xff]
      %v6724 = vld [vmem:[#allocation2 + $0x28] sm:$0xff]
      %v6725 = vld [vmem:[#allocation2 + $0x30] sm:$0xff]
      %v6726 = vld [vmem:[#allocation2 + $0x38] sm:$0xff]
      %v6727 = vld [vmem:[#allocation2 + $0x40] sm:$0xff]
      %v6728 = vld [vmem:[#allocation2 + $0x48] sm:$0xff]
      %v6729 = vld [vmem:[#allocation2 + $0x50] sm:$0xff]
      %v6730 = vld [vmem:[#allocation2 + $0x58] sm:$0xff]
      %v6731 = vld [vmem:[#allocation2 + $0x60] sm:$0xff]
      %v6732 = vld [vmem:[#allocation2 + $0x68] sm:$0xff]
      %v6733 = vld [vmem:[#allocation2 + $0x70] sm:$0xff]
      %v6734 = vld [vmem:[#allocation2 + $0x78] sm:$0xff]
      %6751 = vrot.lane.b32.xlu0 %v6686, 32
      %v6752 = vpop.permute.xlu0 %6751
      %6753 = vrot.lane.b32.xlu0 %v6687, 32
      %v6754 = vpop.permute.xlu0 %6753
      %6755 = vrot.lane.b32.xlu0 %v6688, 32
      %v6756 = vpop.permute.xlu0 %6755
      %6757 = vrot.lane.b32.xlu0 %v6689, 32
      %v6758 = vpop.permute.xlu0 %6757
      %6759 = vrot.lane.b32.xlu0 %v6690, 32
      %v6760 = vpop.permute.xlu0 %6759
      %6761 = vrot.lane.b32.xlu0 %v6691, 32
      %v6762 = vpop.permute.xlu0 %6761
      %6763 = vrot.lane.b32.xlu0 %v6692, 32
      %v6764 = vpop.permute.xlu0 %6763
      %6765 = vrot.lane.b32.xlu0 %v6693, 32
      %v6766 = vpop.permute.xlu0 %6765
      %6767 = vrot.lane.b32.xlu0 %v6694, 32
      %v6768 = vpop.permute.xlu0 %6767
      %6769 = vrot.lane.b32.xlu0 %v6695, 32
      %v6770 = vpop.permute.xlu0 %6769
      %6771 = vrot.lane.b32.xlu0 %v6696, 32
      %v6772 = vpop.permute.xlu0 %6771
      %6773 = vrot.lane.b32.xlu0 %v6697, 32
      %v6774 = vpop.permute.xlu0 %6773
      %6775 = vrot.lane.b32.xlu0 %v6698, 32
      %v6776 = vpop.permute.xlu0 %6775
      %6777 = vrot.lane.b32.xlu0 %v6699, 32
      %v6778 = vpop.permute.xlu0 %6777
      %6779 = vrot.lane.b32.xlu0 %v6700, 32
      %v6780 = vpop.permute.xlu0 %6779
      %6781 = vrot.lane.b32.xlu0 %v6701, 32
      %v6782 = vpop.permute.xlu0 %6781
      %6799 = vrot.lane.b32.xlu0 %v6703, 64
      %v6800 = vpop.permute.xlu0 %6799
      %6801 = vrot.lane.b32.xlu0 %v6704, 64
      %v6802 = vpop.permute.xlu0 %6801
      %6803 = vrot.lane.b32.xlu0 %v6705, 64
      %v6804 = vpop.permute.xlu0 %6803
      %6805 = vrot.lane.b32.xlu0 %v6706, 64
      %v6806 = vpop.permute.xlu0 %6805
      %6807 = vrot.lane.b32.xlu0 %v6707, 64
      %v6808 = vpop.permute.xlu0 %6807
      %6809 = vrot.lane.b32.xlu0 %v6708, 64
      %v6810 = vpop.permute.xlu0 %6809
      %6811 = vrot.lane.b32.xlu0 %v6709, 64
      %v6812 = vpop.permute.xlu0 %6811
      %6813 = vrot.lane.b32.xlu0 %v6710, 64
      %v6814 = vpop.permute.xlu0 %6813
      %6815 = vrot.lane.b32.xlu0 %v6711, 64
      %v6816 = vpop.permute.xlu0 %6815
      %6817 = vrot.lane.b32.xlu0 %v6712, 64
      %v6818 = vpop.permute.xlu0 %6817
      %6819 = vrot.lane.b32.xlu0 %v6713, 64
      %v6820 = vpop.permute.xlu0 %6819
      %6821 = vrot.lane.b32.xlu0 %v6714, 64
      %v6822 = vpop.permute.xlu0 %6821
      %6823 = vrot.lane.b32.xlu0 %v6715, 64
      %v6824 = vpop.permute.xlu0 %6823
      %6825 = vrot.lane.b32.xlu0 %v6716, 64
      %v6826 = vpop.permute.xlu0 %6825
      %6827 = vrot.lane.b32.xlu0 %v6717, 64
      %v6828 = vpop.permute.xlu0 %6827
      %6829 = vrot.lane.b32.xlu0 %v6718, 64
      %v6830 = vpop.permute.xlu0 %6829
      %6847 = vrot.lane.b32.xlu0 %v6719, 96
      %v6848 = vpop.permute.xlu0 %6847
      %6849 = vrot.lane.b32.xlu0 %v6720, 96
      %v6850 = vpop.permute.xlu0 %6849
      %6851 = vrot.lane.b32.xlu0 %v6721, 96
      %v6852 = vpop.permute.xlu0 %6851
      %6853 = vrot.lane.b32.xlu0 %v6722, 96
      %v6854 = vpop.permute.xlu0 %6853
      %6855 = vrot.lane.b32.xlu0 %v6723, 96
      %v6856 = vpop.permute.xlu0 %6855
      %6857 = vrot.lane.b32.xlu0 %v6724, 96
      %v6858 = vpop.permute.xlu0 %6857
      %6859 = vrot.lane.b32.xlu0 %v6725, 96
      %v6860 = vpop.permute.xlu0 %6859
      %6861 = vrot.lane.b32.xlu0 %v6726, 96
      %v6862 = vpop.permute.xlu0 %6861
      %6863 = vrot.lane.b32.xlu0 %v6727, 96
      %v6864 = vpop.permute.xlu0 %6863
      %6865 = vrot.lane.b32.xlu0 %v6728, 96
      %v6866 = vpop.permute.xlu0 %6865
      %6867 = vrot.lane.b32.xlu0 %v6729, 96
      %v6868 = vpop.permute.xlu0 %6867
      %6869 = vrot.lane.b32.xlu0 %v6730, 96
      %v6870 = vpop.permute.xlu0 %6869
      %6871 = vrot.lane.b32.xlu0 %v6731, 96
      %v6872 = vpop.permute.xlu0 %6871
      %6873 = vrot.lane.b32.xlu0 %v6732, 96
      %v6874 = vpop.permute.xlu0 %6873
      %6875 = vrot.lane.b32.xlu0 %v6733, 96
      %v6876 = vpop.permute.xlu0 %6875
      %6877 = vrot.lane.b32.xlu0 %v6734, 96
      %v6878 = vpop.permute.xlu0 %6877
      %v6881 = vsel %vm364, %v6669, %v6752
      %v6884 = vsel %vm364, %v6670, %v6754
      %v6887 = vsel %vm364, %v6671, %v6756
      %v6890 = vsel %vm364, %v6672, %v6758
      %v6893 = vsel %vm364, %v6673, %v6760
      %v6896 = vsel %vm364, %v6674, %v6762
      %v6899 = vsel %vm364, %v6675, %v6764
      %v6902 = vsel %vm364, %v6676, %v6766
      %v6905 = vsel %vm364, %v6677, %v6768
      %v6908 = vsel %vm364, %v6678, %v6770
      %v6911 = vsel %vm364, %v6679, %v6772
      %v6914 = vsel %vm364, %v6680, %v6774
      %v6917 = vsel %vm364, %v6681, %v6776
      %v6920 = vsel %vm364, %v6682, %v6778
      %v6923 = vsel %vm364, %v6683, %v6780
      %v6926 = vsel %vm364, %v6684, %v6782
      %v6928 = vsel %vm4792, %v6881, %v6800
      %v6930 = vsel %vm4792, %v6884, %v6802
      %v6932 = vsel %vm4792, %v6887, %v6804
      %v6934 = vsel %vm4792, %v6890, %v6806
      %v6936 = vsel %vm4792, %v6893, %v6808
      %v6938 = vsel %vm4792, %v6896, %v6810
      %v6940 = vsel %vm4792, %v6899, %v6812
      %v6942 = vsel %vm4792, %v6902, %v6814
      %v6944 = vsel %vm4792, %v6905, %v6816
      %v6946 = vsel %vm4792, %v6908, %v6818
      %v6948 = vsel %vm4792, %v6911, %v6820
      %v6950 = vsel %vm4792, %v6914, %v6822
      %v6952 = vsel %vm4792, %v6917, %v6824
      %v6954 = vsel %vm4792, %v6920, %v6826
      %v6956 = vsel %vm4792, %v6923, %v6828
      %v6958 = vsel %vm4792, %v6926, %v6830
      %v6960 = vsel %vm4825, %v6928, %v6848
      %v6963 = vsel %vm4825, %v6930, %v6850
      %v6966 = vsel %vm4825, %v6932, %v6852
      %v6969 = vsel %vm4825, %v6934, %v6854
      %v6972 = vsel %vm4825, %v6936, %v6856
      %v6975 = vsel %vm4825, %v6938, %v6858
      %v6978 = vsel %vm4825, %v6940, %v6860
      %v6981 = vsel %vm4825, %v6942, %v6862
      %v6984 = vsel %vm4825, %v6944, %v6864
      %v6987 = vsel %vm4825, %v6946, %v6866
      %v6990 = vsel %vm4825, %v6948, %v6868
      %v6993 = vsel %vm4825, %v6950, %v6870
      %v6996 = vsel %vm4825, %v6952, %v6872
      %v6999 = vsel %vm4825, %v6954, %v6874
      %v7002 = vsel %vm4825, %v6956, %v6876
      %v7005 = vsel %vm4825, %v6958, %v6878
      %7007 = vst [vmem:[#allocation3 + $0x30] sm:$0xff] %v6960
      %7008 = vst [vmem:[#allocation3 + $0x78] sm:$0xff] %v6963
      %7009 = vst [vmem:[#allocation3 + $0xc0] sm:$0xff] %v6966
      %7010 = vst [vmem:[#allocation3 + $0x108] sm:$0xff] %v6969
      %7011 = vst [vmem:[#allocation3 + $0x150] sm:$0xff] %v6972
      %7012 = vst [vmem:[#allocation3 + $0x198] sm:$0xff] %v6975
      %7013 = vst [vmem:[#allocation3 + $0x1e0] sm:$0xff] %v6978
      %7014 = vst [vmem:[#allocation3 + $0x228] sm:$0xff] %v6981
      %7015 = vst [vmem:[#allocation3 + $0x270] sm:$0xff] %v6984
      %7016 = vst [vmem:[#allocation3 + $0x2b8] sm:$0xff] %v6987
      %7017 = vst [vmem:[#allocation3 + $0x300] sm:$0xff] %v6990
      %7018 = vst [vmem:[#allocation3 + $0x348] sm:$0xff] %v6993
      %7019 = vst [vmem:[#allocation3 + $0x390] sm:$0xff] %v6996
      %7020 = vst [vmem:[#allocation3 + $0x3d8] sm:$0xff] %v6999
      %7021 = vst [vmem:[#allocation3 + $0x420] sm:$0xff] %v7002
      %7022 = vst [vmem:[#allocation3 + $0x468] sm:$0xff] %v7005
      %v7023 = vld [vmem:[%s2460] sm:$0xff]
      %v7024 = vld [vmem:[%s2460 + $0x8] sm:$0xff]
      %v7025 = vld [vmem:[%s2460 + $0x10] sm:$0xff]
      %v7026 = vld [vmem:[%s2460 + $0x18] sm:$0xff]
      %v7027 = vld [vmem:[%s2460 + $0x20] sm:$0xff]
      %v7028 = vld [vmem:[%s2460 + $0x28] sm:$0xff]
      %v7029 = vld [vmem:[%s2460 + $0x30] sm:$0xff]
      %v7030 = vld [vmem:[%s2460 + $0x38] sm:$0xff]
      %v7031 = vld [vmem:[%s2460 + $0x40] sm:$0xff]
      %v7032 = vld [vmem:[%s2460 + $0x48] sm:$0xff]
      %v7033 = vld [vmem:[%s2460 + $0x50] sm:$0xff]
      %v7034 = vld [vmem:[%s2460 + $0x58] sm:$0xff]
      %v7035 = vld [vmem:[%s2460 + $0x60] sm:$0xff]
      %v7036 = vld [vmem:[%s2460 + $0x68] sm:$0xff]
      %v7037 = vld [vmem:[%s2460 + $0x70] sm:$0xff]
      %v7038 = vld [vmem:[%s2460 + $0x78] sm:$0xff]
      %v7039 = vld [vmem:[%s4507] sm:$0xff]
      %v7040 = vld [vmem:[%s4507 + $0x8] sm:$0xff]
      %v7041 = vld [vmem:[%s4507 + $0x10] sm:$0xff]
      %v7042 = vld [vmem:[%s4507 + $0x18] sm:$0xff]
      %v7043 = vld [vmem:[%s4507 + $0x20] sm:$0xff]
      %v7044 = vld [vmem:[%s4507 + $0x28] sm:$0xff]
      %v7045 = vld [vmem:[%s4507 + $0x30] sm:$0xff]
      %v7046 = vld [vmem:[%s4507 + $0x38] sm:$0xff]
      %v7047 = vld [vmem:[%s4507 + $0x40] sm:$0xff]
      %v7048 = vld [vmem:[%s4507 + $0x48] sm:$0xff]
      %v7049 = vld [vmem:[%s4507 + $0x50] sm:$0xff]
      %v7050 = vld [vmem:[%s4507 + $0x58] sm:$0xff]
      %v7051 = vld [vmem:[%s4507 + $0x60] sm:$0xff]
      %v7052 = vld [vmem:[%s4507 + $0x68] sm:$0xff]
      %v7053 = vld [vmem:[%s4507 + $0x70] sm:$0xff]
      %v7054 = vld [vmem:[%s4507 + $0x78] sm:$0xff]
      %s7055 = scalar_lea.vmem [#allocation2], 32
      %v7056 = vld [vmem:[%s7055] sm:$0xff]
      %v7057 = vld [vmem:[%s7055 + $0x8] sm:$0xff]
      %v7058 = vld [vmem:[%s7055 + $0x10] sm:$0xff]
      %v7059 = vld [vmem:[%s7055 + $0x18] sm:$0xff]
      %v7060 = vld [vmem:[%s7055 + $0x20] sm:$0xff]
      %v7061 = vld [vmem:[%s7055 + $0x28] sm:$0xff]
      %v7062 = vld [vmem:[%s7055 + $0x30] sm:$0xff]
      %v7063 = vld [vmem:[%s7055 + $0x38] sm:$0xff]
      %v7064 = vld [vmem:[%s7055 + $0x40] sm:$0xff]
      %v7065 = vld [vmem:[%s7055 + $0x48] sm:$0xff]
      %v7066 = vld [vmem:[%s7055 + $0x50] sm:$0xff]
      %v7067 = vld [vmem:[%s7055 + $0x58] sm:$0xff]
      %v7068 = vld [vmem:[%s7055 + $0x60] sm:$0xff]
      %v7069 = vld [vmem:[%s7055 + $0x68] sm:$0xff]
      %v7070 = vld [vmem:[%s7055 + $0x70] sm:$0xff]
      %v7071 = vld [vmem:[%s7055 + $0x78] sm:$0xff]
      %v7072 = vld [vmem:[%s4890] sm:$0xff]
      %v7073 = vld [vmem:[%s4890 + $0x8] sm:$0xff]
      %v7074 = vld [vmem:[%s4890 + $0x10] sm:$0xff]
      %v7075 = vld [vmem:[%s4890 + $0x18] sm:$0xff]
      %v7076 = vld [vmem:[%s4890 + $0x20] sm:$0xff]
      %v7077 = vld [vmem:[%s4890 + $0x28] sm:$0xff]
      %v7078 = vld [vmem:[%s4890 + $0x30] sm:$0xff]
      %v7079 = vld [vmem:[%s4890 + $0x38] sm:$0xff]
      %v7080 = vld [vmem:[%s4890 + $0x40] sm:$0xff]
      %v7081 = vld [vmem:[%s4890 + $0x48] sm:$0xff]
      %v7082 = vld [vmem:[%s4890 + $0x50] sm:$0xff]
      %v7083 = vld [vmem:[%s4890 + $0x58] sm:$0xff]
      %v7084 = vld [vmem:[%s4890 + $0x60] sm:$0xff]
      %v7085 = vld [vmem:[%s4890 + $0x68] sm:$0xff]
      %v7086 = vld [vmem:[%s4890 + $0x70] sm:$0xff]
      %v7087 = vld [vmem:[%s4890 + $0x78] sm:$0xff]
      %7104 = vrot.lane.b32.xlu0 %v7039, 32
      %v7105 = vpop.permute.xlu0 %7104
      %7106 = vrot.lane.b32.xlu0 %v7040, 32
      %v7107 = vpop.permute.xlu0 %7106
      %7108 = vrot.lane.b32.xlu0 %v7041, 32
      %v7109 = vpop.permute.xlu0 %7108
      %7110 = vrot.lane.b32.xlu0 %v7042, 32
      %v7111 = vpop.permute.xlu0 %7110
      %7112 = vrot.lane.b32.xlu0 %v7043, 32
      %v7113 = vpop.permute.xlu0 %7112
      %7114 = vrot.lane.b32.xlu0 %v7044, 32
      %v7115 = vpop.permute.xlu0 %7114
      %7116 = vrot.lane.b32.xlu0 %v7045, 32
      %v7117 = vpop.permute.xlu0 %7116
      %7118 = vrot.lane.b32.xlu0 %v7046, 32
      %v7119 = vpop.permute.xlu0 %7118
      %7120 = vrot.lane.b32.xlu0 %v7047, 32
      %v7121 = vpop.permute.xlu0 %7120
      %7122 = vrot.lane.b32.xlu0 %v7048, 32
      %v7123 = vpop.permute.xlu0 %7122
      %7124 = vrot.lane.b32.xlu0 %v7049, 32
      %v7125 = vpop.permute.xlu0 %7124
      %7126 = vrot.lane.b32.xlu0 %v7050, 32
      %v7127 = vpop.permute.xlu0 %7126
      %7128 = vrot.lane.b32.xlu0 %v7051, 32
      %v7129 = vpop.permute.xlu0 %7128
      %7130 = vrot.lane.b32.xlu0 %v7052, 32
      %v7131 = vpop.permute.xlu0 %7130
      %7132 = vrot.lane.b32.xlu0 %v7053, 32
      %v7133 = vpop.permute.xlu0 %7132
      %7134 = vrot.lane.b32.xlu0 %v7054, 32
      %v7135 = vpop.permute.xlu0 %7134
      %7152 = vrot.lane.b32.xlu0 %v7056, 64
      %v7153 = vpop.permute.xlu0 %7152
      %7154 = vrot.lane.b32.xlu0 %v7057, 64
      %v7155 = vpop.permute.xlu0 %7154
      %7156 = vrot.lane.b32.xlu0 %v7058, 64
      %v7157 = vpop.permute.xlu0 %7156
      %7158 = vrot.lane.b32.xlu0 %v7059, 64
      %v7159 = vpop.permute.xlu0 %7158
      %7160 = vrot.lane.b32.xlu0 %v7060, 64
      %v7161 = vpop.permute.xlu0 %7160
      %7162 = vrot.lane.b32.xlu0 %v7061, 64
      %v7163 = vpop.permute.xlu0 %7162
      %7164 = vrot.lane.b32.xlu0 %v7062, 64
      %v7165 = vpop.permute.xlu0 %7164
      %7166 = vrot.lane.b32.xlu0 %v7063, 64
      %v7167 = vpop.permute.xlu0 %7166
      %7168 = vrot.lane.b32.xlu0 %v7064, 64
      %v7169 = vpop.permute.xlu0 %7168
      %7170 = vrot.lane.b32.xlu0 %v7065, 64
      %v7171 = vpop.permute.xlu0 %7170
      %7172 = vrot.lane.b32.xlu0 %v7066, 64
      %v7173 = vpop.permute.xlu0 %7172
      %7174 = vrot.lane.b32.xlu0 %v7067, 64
      %v7175 = vpop.permute.xlu0 %7174
      %7176 = vrot.lane.b32.xlu0 %v7068, 64
      %v7177 = vpop.permute.xlu0 %7176
      %7178 = vrot.lane.b32.xlu0 %v7069, 64
      %v7179 = vpop.permute.xlu0 %7178
      %7180 = vrot.lane.b32.xlu0 %v7070, 64
      %v7181 = vpop.permute.xlu0 %7180
      %7182 = vrot.lane.b32.xlu0 %v7071, 64
      %v7183 = vpop.permute.xlu0 %7182
      %7200 = vrot.lane.b32.xlu0 %v7072, 96
      %v7201 = vpop.permute.xlu0 %7200
      %7202 = vrot.lane.b32.xlu0 %v7073, 96
      %v7203 = vpop.permute.xlu0 %7202
      %7204 = vrot.lane.b32.xlu0 %v7074, 96
      %v7205 = vpop.permute.xlu0 %7204
      %7206 = vrot.lane.b32.xlu0 %v7075, 96
      %v7207 = vpop.permute.xlu0 %7206
      %7208 = vrot.lane.b32.xlu0 %v7076, 96
      %v7209 = vpop.permute.xlu0 %7208
      %7210 = vrot.lane.b32.xlu0 %v7077, 96
      %v7211 = vpop.permute.xlu0 %7210
      %7212 = vrot.lane.b32.xlu0 %v7078, 96
      %v7213 = vpop.permute.xlu0 %7212
      %7214 = vrot.lane.b32.xlu0 %v7079, 96
      %v7215 = vpop.permute.xlu0 %7214
      %7216 = vrot.lane.b32.xlu0 %v7080, 96
      %v7217 = vpop.permute.xlu0 %7216
      %7218 = vrot.lane.b32.xlu0 %v7081, 96
      %v7219 = vpop.permute.xlu0 %7218
      %7220 = vrot.lane.b32.xlu0 %v7082, 96
      %v7221 = vpop.permute.xlu0 %7220
      %7222 = vrot.lane.b32.xlu0 %v7083, 96
      %v7223 = vpop.permute.xlu0 %7222
      %7224 = vrot.lane.b32.xlu0 %v7084, 96
      %v7225 = vpop.permute.xlu0 %7224
      %7226 = vrot.lane.b32.xlu0 %v7085, 96
      %v7227 = vpop.permute.xlu0 %7226
      %7228 = vrot.lane.b32.xlu0 %v7086, 96
      %v7229 = vpop.permute.xlu0 %7228
      %7230 = vrot.lane.b32.xlu0 %v7087, 96
      %v7231 = vpop.permute.xlu0 %7230
      %v7234 = vsel %vm364, %v7023, %v7105
      %v7237 = vsel %vm364, %v7024, %v7107
      %v7240 = vsel %vm364, %v7025, %v7109
      %v7243 = vsel %vm364, %v7026, %v7111
      %v7246 = vsel %vm364, %v7027, %v7113
      %v7249 = vsel %vm364, %v7028, %v7115
      %v7252 = vsel %vm364, %v7029, %v7117
      %v7255 = vsel %vm364, %v7030, %v7119
      %v7258 = vsel %vm364, %v7031, %v7121
      %v7261 = vsel %vm364, %v7032, %v7123
      %v7264 = vsel %vm364, %v7033, %v7125
      %v7267 = vsel %vm364, %v7034, %v7127
      %v7270 = vsel %vm364, %v7035, %v7129
      %v7273 = vsel %vm364, %v7036, %v7131
      %v7276 = vsel %vm364, %v7037, %v7133
      %v7279 = vsel %vm364, %v7038, %v7135
      %v7281 = vsel %vm4792, %v7234, %v7153
      %v7283 = vsel %vm4792, %v7237, %v7155
      %v7285 = vsel %vm4792, %v7240, %v7157
      %v7287 = vsel %vm4792, %v7243, %v7159
      %v7289 = vsel %vm4792, %v7246, %v7161
      %v7291 = vsel %vm4792, %v7249, %v7163
      %v7293 = vsel %vm4792, %v7252, %v7165
      %v7295 = vsel %vm4792, %v7255, %v7167
      %v7297 = vsel %vm4792, %v7258, %v7169
      %v7299 = vsel %vm4792, %v7261, %v7171
      %v7301 = vsel %vm4792, %v7264, %v7173
      %v7303 = vsel %vm4792, %v7267, %v7175
      %v7305 = vsel %vm4792, %v7270, %v7177
      %v7307 = vsel %vm4792, %v7273, %v7179
      %v7309 = vsel %vm4792, %v7276, %v7181
      %v7311 = vsel %vm4792, %v7279, %v7183
      %v7313 = vsel %vm4825, %v7281, %v7201
      %v7316 = vsel %vm4825, %v7283, %v7203
      %v7319 = vsel %vm4825, %v7285, %v7205
      %v7322 = vsel %vm4825, %v7287, %v7207
      %v7325 = vsel %vm4825, %v7289, %v7209
      %v7328 = vsel %vm4825, %v7291, %v7211
      %v7331 = vsel %vm4825, %v7293, %v7213
      %v7334 = vsel %vm4825, %v7295, %v7215
      %v7337 = vsel %vm4825, %v7297, %v7217
      %v7340 = vsel %vm4825, %v7299, %v7219
      %v7343 = vsel %vm4825, %v7301, %v7221
      %v7346 = vsel %vm4825, %v7303, %v7223
      %v7349 = vsel %vm4825, %v7305, %v7225
      %v7352 = vsel %vm4825, %v7307, %v7227
      %v7355 = vsel %vm4825, %v7309, %v7229
      %v7358 = vsel %vm4825, %v7311, %v7231
      %7360 = vst [vmem:[#allocation3 + $0x38] sm:$0xff] %v7313
      %7361 = vst [vmem:[#allocation3 + $0x80] sm:$0xff] %v7316
      %7362 = vst [vmem:[#allocation3 + $0xc8] sm:$0xff] %v7319
      %7363 = vst [vmem:[#allocation3 + $0x110] sm:$0xff] %v7322
      %7364 = vst [vmem:[#allocation3 + $0x158] sm:$0xff] %v7325
      %7365 = vst [vmem:[#allocation3 + $0x1a0] sm:$0xff] %v7328
      %7366 = vst [vmem:[#allocation3 + $0x1e8] sm:$0xff] %v7331
      %7367 = vst [vmem:[#allocation3 + $0x230] sm:$0xff] %v7334
      %7368 = vst [vmem:[#allocation3 + $0x278] sm:$0xff] %v7337
      %7369 = vst [vmem:[#allocation3 + $0x2c0] sm:$0xff] %v7340
      %7370 = vst [vmem:[#allocation3 + $0x308] sm:$0xff] %v7343
      %7371 = vst [vmem:[#allocation3 + $0x350] sm:$0xff] %v7346
      %7372 = vst [vmem:[#allocation3 + $0x398] sm:$0xff] %v7349
      %7373 = vst [vmem:[#allocation3 + $0x3e0] sm:$0xff] %v7352
      %7374 = vst [vmem:[#allocation3 + $0x428] sm:$0xff] %v7355
      %7375 = vst [vmem:[#allocation3 + $0x470] sm:$0xff] %v7358
      %s7376 = scalar_lea.vmem [#allocation2], 1568
      %v7377 = vld [vmem:[%s7376] sm:$0xff]
      %v7378 = vld [vmem:[%s7376 + $0x8] sm:$0xff]
      %v7379 = vld [vmem:[%s7376 + $0x10] sm:$0xff]
      %v7380 = vld [vmem:[%s7376 + $0x18] sm:$0xff]
      %v7381 = vld [vmem:[%s7376 + $0x20] sm:$0xff]
      %v7382 = vld [vmem:[%s7376 + $0x28] sm:$0xff]
      %v7383 = vld [vmem:[%s7376 + $0x30] sm:$0xff]
      %v7384 = vld [vmem:[%s7376 + $0x38] sm:$0xff]
      %v7385 = vld [vmem:[%s7376 + $0x40] sm:$0xff]
      %v7386 = vld [vmem:[%s7376 + $0x48] sm:$0xff]
      %v7387 = vld [vmem:[%s7376 + $0x50] sm:$0xff]
      %v7388 = vld [vmem:[%s7376 + $0x58] sm:$0xff]
      %v7389 = vld [vmem:[%s7376 + $0x60] sm:$0xff]
      %v7390 = vld [vmem:[%s7376 + $0x68] sm:$0xff]
      %v7391 = vld [vmem:[%s7376 + $0x70] sm:$0xff]
      %v7392 = vld [vmem:[%s7376 + $0x78] sm:$0xff]
      %s7393 = scalar_lea.vmem [#allocation2], 64
      %v7394 = vld [vmem:[%s7393] sm:$0xff]
      %v7395 = vld [vmem:[%s7393 + $0x8] sm:$0xff]
      %v7396 = vld [vmem:[%s7393 + $0x10] sm:$0xff]
      %v7397 = vld [vmem:[%s7393 + $0x18] sm:$0xff]
      %v7398 = vld [vmem:[%s7393 + $0x20] sm:$0xff]
      %v7399 = vld [vmem:[%s7393 + $0x28] sm:$0xff]
      %v7400 = vld [vmem:[%s7393 + $0x30] sm:$0xff]
      %v7401 = vld [vmem:[%s7393 + $0x38] sm:$0xff]
      %v7402 = vld [vmem:[%s7393 + $0x40] sm:$0xff]
      %v7403 = vld [vmem:[%s7393 + $0x48] sm:$0xff]
      %v7404 = vld [vmem:[%s7393 + $0x50] sm:$0xff]
      %v7405 = vld [vmem:[%s7393 + $0x58] sm:$0xff]
      %v7406 = vld [vmem:[%s7393 + $0x60] sm:$0xff]
      %v7407 = vld [vmem:[%s7393 + $0x68] sm:$0xff]
      %v7408 = vld [vmem:[%s7393 + $0x70] sm:$0xff]
      %v7409 = vld [vmem:[%s7393 + $0x78] sm:$0xff]
      %s7410 = scalar_lea.vmem [#allocation2], 832
      %v7411 = vld [vmem:[%s7410] sm:$0xff]
      %v7412 = vld [vmem:[%s7410 + $0x8] sm:$0xff]
      %v7413 = vld [vmem:[%s7410 + $0x10] sm:$0xff]
      %v7414 = vld [vmem:[%s7410 + $0x18] sm:$0xff]
      %v7415 = vld [vmem:[%s7410 + $0x20] sm:$0xff]
      %v7416 = vld [vmem:[%s7410 + $0x28] sm:$0xff]
      %v7417 = vld [vmem:[%s7410 + $0x30] sm:$0xff]
      %v7418 = vld [vmem:[%s7410 + $0x38] sm:$0xff]
      %v7419 = vld [vmem:[%s7410 + $0x40] sm:$0xff]
      %v7420 = vld [vmem:[%s7410 + $0x48] sm:$0xff]
      %v7421 = vld [vmem:[%s7410 + $0x50] sm:$0xff]
      %v7422 = vld [vmem:[%s7410 + $0x58] sm:$0xff]
      %v7423 = vld [vmem:[%s7410 + $0x60] sm:$0xff]
      %v7424 = vld [vmem:[%s7410 + $0x68] sm:$0xff]
      %v7425 = vld [vmem:[%s7410 + $0x70] sm:$0xff]
      %v7426 = vld [vmem:[%s7410 + $0x78] sm:$0xff]
      %s7427 = scalar_lea.vmem [#allocation2], 1600
      %v7428 = vld [vmem:[%s7427] sm:$0xff]
      %v7429 = vld [vmem:[%s7427 + $0x8] sm:$0xff]
      %v7430 = vld [vmem:[%s7427 + $0x10] sm:$0xff]
      %v7431 = vld [vmem:[%s7427 + $0x18] sm:$0xff]
      %v7432 = vld [vmem:[%s7427 + $0x20] sm:$0xff]
      %v7433 = vld [vmem:[%s7427 + $0x28] sm:$0xff]
      %v7434 = vld [vmem:[%s7427 + $0x30] sm:$0xff]
      %v7435 = vld [vmem:[%s7427 + $0x38] sm:$0xff]
      %v7436 = vld [vmem:[%s7427 + $0x40] sm:$0xff]
      %v7437 = vld [vmem:[%s7427 + $0x48] sm:$0xff]
      %v7438 = vld [vmem:[%s7427 + $0x50] sm:$0xff]
      %v7439 = vld [vmem:[%s7427 + $0x58] sm:$0xff]
      %v7440 = vld [vmem:[%s7427 + $0x60] sm:$0xff]
      %v7441 = vld [vmem:[%s7427 + $0x68] sm:$0xff]
      %v7442 = vld [vmem:[%s7427 + $0x70] sm:$0xff]
      %v7443 = vld [vmem:[%s7427 + $0x78] sm:$0xff]
      %7460 = vrot.lane.b32.xlu0 %v7394, 32
      %v7461 = vpop.permute.xlu0 %7460
      %7462 = vrot.lane.b32.xlu0 %v7395, 32
      %v7463 = vpop.permute.xlu0 %7462
      %7464 = vrot.lane.b32.xlu0 %v7396, 32
      %v7465 = vpop.permute.xlu0 %7464
      %7466 = vrot.lane.b32.xlu0 %v7397, 32
      %v7467 = vpop.permute.xlu0 %7466
      %7468 = vrot.lane.b32.xlu0 %v7398, 32
      %v7469 = vpop.permute.xlu0 %7468
      %7470 = vrot.lane.b32.xlu0 %v7399, 32
      %v7471 = vpop.permute.xlu0 %7470
      %7472 = vrot.lane.b32.xlu0 %v7400, 32
      %v7473 = vpop.permute.xlu0 %7472
      %7474 = vrot.lane.b32.xlu0 %v7401, 32
      %v7475 = vpop.permute.xlu0 %7474
      %7476 = vrot.lane.b32.xlu0 %v7402, 32
      %v7477 = vpop.permute.xlu0 %7476
      %7478 = vrot.lane.b32.xlu0 %v7403, 32
      %v7479 = vpop.permute.xlu0 %7478
      %7480 = vrot.lane.b32.xlu0 %v7404, 32
      %v7481 = vpop.permute.xlu0 %7480
      %7482 = vrot.lane.b32.xlu0 %v7405, 32
      %v7483 = vpop.permute.xlu0 %7482
      %7484 = vrot.lane.b32.xlu0 %v7406, 32
      %v7485 = vpop.permute.xlu0 %7484
      %7486 = vrot.lane.b32.xlu0 %v7407, 32
      %v7487 = vpop.permute.xlu0 %7486
      %7488 = vrot.lane.b32.xlu0 %v7408, 32
      %v7489 = vpop.permute.xlu0 %7488
      %7490 = vrot.lane.b32.xlu0 %v7409, 32
      %v7491 = vpop.permute.xlu0 %7490
      %7508 = vrot.lane.b32.xlu0 %v7411, 64
      %v7509 = vpop.permute.xlu0 %7508
      %7510 = vrot.lane.b32.xlu0 %v7412, 64
      %v7511 = vpop.permute.xlu0 %7510
      %7512 = vrot.lane.b32.xlu0 %v7413, 64
      %v7513 = vpop.permute.xlu0 %7512
      %7514 = vrot.lane.b32.xlu0 %v7414, 64
      %v7515 = vpop.permute.xlu0 %7514
      %7516 = vrot.lane.b32.xlu0 %v7415, 64
      %v7517 = vpop.permute.xlu0 %7516
      %7518 = vrot.lane.b32.xlu0 %v7416, 64
      %v7519 = vpop.permute.xlu0 %7518
      %7520 = vrot.lane.b32.xlu0 %v7417, 64
      %v7521 = vpop.permute.xlu0 %7520
      %7522 = vrot.lane.b32.xlu0 %v7418, 64
      %v7523 = vpop.permute.xlu0 %7522
      %7524 = vrot.lane.b32.xlu0 %v7419, 64
      %v7525 = vpop.permute.xlu0 %7524
      %7526 = vrot.lane.b32.xlu0 %v7420, 64
      %v7527 = vpop.permute.xlu0 %7526
      %7528 = vrot.lane.b32.xlu0 %v7421, 64
      %v7529 = vpop.permute.xlu0 %7528
      %7530 = vrot.lane.b32.xlu0 %v7422, 64
      %v7531 = vpop.permute.xlu0 %7530
      %7532 = vrot.lane.b32.xlu0 %v7423, 64
      %v7533 = vpop.permute.xlu0 %7532
      %7534 = vrot.lane.b32.xlu0 %v7424, 64
      %v7535 = vpop.permute.xlu0 %7534
      %7536 = vrot.lane.b32.xlu0 %v7425, 64
      %v7537 = vpop.permute.xlu0 %7536
      %7538 = vrot.lane.b32.xlu0 %v7426, 64
      %v7539 = vpop.permute.xlu0 %7538
      %7556 = vrot.lane.b32.xlu0 %v7428, 96
      %v7557 = vpop.permute.xlu0 %7556
      %7558 = vrot.lane.b32.xlu0 %v7429, 96
      %v7559 = vpop.permute.xlu0 %7558
      %7560 = vrot.lane.b32.xlu0 %v7430, 96
      %v7561 = vpop.permute.xlu0 %7560
      %7562 = vrot.lane.b32.xlu0 %v7431, 96
      %v7563 = vpop.permute.xlu0 %7562
      %7564 = vrot.lane.b32.xlu0 %v7432, 96
      %v7565 = vpop.permute.xlu0 %7564
      %7566 = vrot.lane.b32.xlu0 %v7433, 96
      %v7567 = vpop.permute.xlu0 %7566
      %7568 = vrot.lane.b32.xlu0 %v7434, 96
      %v7569 = vpop.permute.xlu0 %7568
      %7570 = vrot.lane.b32.xlu0 %v7435, 96
      %v7571 = vpop.permute.xlu0 %7570
      %7572 = vrot.lane.b32.xlu0 %v7436, 96
      %v7573 = vpop.permute.xlu0 %7572
      %7574 = vrot.lane.b32.xlu0 %v7437, 96
      %v7575 = vpop.permute.xlu0 %7574
      %7576 = vrot.lane.b32.xlu0 %v7438, 96
      %v7577 = vpop.permute.xlu0 %7576
      %7578 = vrot.lane.b32.xlu0 %v7439, 96
      %v7579 = vpop.permute.xlu0 %7578
      %7580 = vrot.lane.b32.xlu0 %v7440, 96
      %v7581 = vpop.permute.xlu0 %7580
      %7582 = vrot.lane.b32.xlu0 %v7441, 96
      %v7583 = vpop.permute.xlu0 %7582
      %7584 = vrot.lane.b32.xlu0 %v7442, 96
      %v7585 = vpop.permute.xlu0 %7584
      %7586 = vrot.lane.b32.xlu0 %v7443, 96
      %v7587 = vpop.permute.xlu0 %7586
      %v7590 = vsel %vm364, %v7377, %v7461
      %v7593 = vsel %vm364, %v7378, %v7463
      %v7596 = vsel %vm364, %v7379, %v7465
      %v7599 = vsel %vm364, %v7380, %v7467
      %v7602 = vsel %vm364, %v7381, %v7469
      %v7605 = vsel %vm364, %v7382, %v7471
      %v7608 = vsel %vm364, %v7383, %v7473
      %v7611 = vsel %vm364, %v7384, %v7475
      %v7614 = vsel %vm364, %v7385, %v7477
      %v7617 = vsel %vm364, %v7386, %v7479
      %v7620 = vsel %vm364, %v7387, %v7481
      %v7623 = vsel %vm364, %v7388, %v7483
      %v7626 = vsel %vm364, %v7389, %v7485
      %v7629 = vsel %vm364, %v7390, %v7487
      %v7632 = vsel %vm364, %v7391, %v7489
      %v7635 = vsel %vm364, %v7392, %v7491
      %v7637 = vsel %vm4792, %v7590, %v7509
      %v7639 = vsel %vm4792, %v7593, %v7511
      %v7641 = vsel %vm4792, %v7596, %v7513
      %v7643 = vsel %vm4792, %v7599, %v7515
      %v7645 = vsel %vm4792, %v7602, %v7517
      %v7647 = vsel %vm4792, %v7605, %v7519
      %v7649 = vsel %vm4792, %v7608, %v7521
      %v7651 = vsel %vm4792, %v7611, %v7523
      %v7653 = vsel %vm4792, %v7614, %v7525
      %v7655 = vsel %vm4792, %v7617, %v7527
      %v7657 = vsel %vm4792, %v7620, %v7529
      %v7659 = vsel %vm4792, %v7623, %v7531
      %v7661 = vsel %vm4792, %v7626, %v7533
      %v7663 = vsel %vm4792, %v7629, %v7535
      %v7665 = vsel %vm4792, %v7632, %v7537
      %v7667 = vsel %vm4792, %v7635, %v7539
      %v7669 = vsel %vm4825, %v7637, %v7557
      %v7672 = vsel %vm4825, %v7639, %v7559
      %v7675 = vsel %vm4825, %v7641, %v7561
      %v7678 = vsel %vm4825, %v7643, %v7563
      %v7681 = vsel %vm4825, %v7645, %v7565
      %v7684 = vsel %vm4825, %v7647, %v7567
      %v7687 = vsel %vm4825, %v7649, %v7569
      %v7690 = vsel %vm4825, %v7651, %v7571
      %v7693 = vsel %vm4825, %v7653, %v7573
      %v7696 = vsel %vm4825, %v7655, %v7575
      %v7699 = vsel %vm4825, %v7657, %v7577
      %v7702 = vsel %vm4825, %v7659, %v7579
      %v7705 = vsel %vm4825, %v7661, %v7581
      %v7708 = vsel %vm4825, %v7663, %v7583
      %v7711 = vsel %vm4825, %v7665, %v7585
      %v7714 = vsel %vm4825, %v7667, %v7587
      %7716 = vst [vmem:[#allocation3 + $0x40] sm:$0xff] %v7669
      %7717 = vst [vmem:[#allocation3 + $0x88] sm:$0xff] %v7672
      %7718 = vst [vmem:[#allocation3 + $0xd0] sm:$0xff] %v7675
      %7719 = vst [vmem:[#allocation3 + $0x118] sm:$0xff] %v7678
      %7720 = vst [vmem:[#allocation3 + $0x160] sm:$0xff] %v7681
      %7721 = vst [vmem:[#allocation3 + $0x1a8] sm:$0xff] %v7684
      %7722 = vst [vmem:[#allocation3 + $0x1f0] sm:$0xff] %v7687
      %7723 = vst [vmem:[#allocation3 + $0x238] sm:$0xff] %v7690
      %7724 = vst [vmem:[#allocation3 + $0x280] sm:$0xff] %v7693
      %7725 = vst [vmem:[#allocation3 + $0x2c8] sm:$0xff] %v7696
      %7726 = vst [vmem:[#allocation3 + $0x310] sm:$0xff] %v7699
      %7727 = vst [vmem:[#allocation3 + $0x358] sm:$0xff] %v7702
      %7728 = vst [vmem:[#allocation3 + $0x3a0] sm:$0xff] %v7705
      %7729 = vst [vmem:[#allocation3 + $0x3e8] sm:$0xff] %v7708
      %7730 = vst [vmem:[#allocation3 + $0x430] sm:$0xff] %v7711
      %7731 = vst [vmem:[#allocation3 + $0x478] sm:$0xff] %v7714
      %v7732 = vld [vmem:[#allocation3] sm:$0xff]
      %v7733 = vld [vmem:[#allocation3 + $0x8] sm:$0xff]
      %v7734 = vld [vmem:[#allocation3 + $0x10] sm:$0xff]
      %v7735 = vld [vmem:[#allocation3 + $0x18] sm:$0xff]
      %v7736 = vld [vmem:[#allocation3 + $0x20] sm:$0xff]
      %v7737 = vld [vmem:[#allocation3 + $0x28] sm:$0xff]
      %v7738 = vld [vmem:[#allocation3 + $0x30] sm:$0xff]
      %v7739 = vld [vmem:[#allocation3 + $0x38] sm:$0xff]
      %v7740 = vld [vmem:[#allocation3 + $0x40] sm:$0xff]
      %v7741 = vld [vmem:[#allocation3 + $0x48] sm:$0xff]
      %v7742 = vld [vmem:[#allocation3 + $0x50] sm:$0xff]
      %v7743 = vld [vmem:[#allocation3 + $0x58] sm:$0xff]
      %v7744 = vld [vmem:[#allocation3 + $0x60] sm:$0xff]
      %v7745 = vld [vmem:[#allocation3 + $0x68] sm:$0xff]
      %v7746 = vld [vmem:[#allocation3 + $0x70] sm:$0xff]
      %v7747 = vld [vmem:[#allocation3 + $0x78] sm:$0xff]
      %v7748 = vld [vmem:[#allocation3 + $0x80] sm:$0xff]
      %v7749 = vld [vmem:[#allocation3 + $0x88] sm:$0xff]
      %v7750 = vld [vmem:[#allocation3 + $0x90] sm:$0xff]
      %v7751 = vld [vmem:[#allocation3 + $0x98] sm:$0xff]
      %v7752 = vld [vmem:[#allocation3 + $0xa0] sm:$0xff]
      %v7753 = vld [vmem:[#allocation3 + $0xa8] sm:$0xff]
      %v7754 = vld [vmem:[#allocation3 + $0xb0] sm:$0xff]
      %v7755 = vld [vmem:[#allocation3 + $0xb8] sm:$0xff]
      %v7756 = vld [vmem:[#allocation3 + $0xc0] sm:$0xff]
      %v7757 = vld [vmem:[#allocation3 + $0xc8] sm:$0xff]
      %v7758 = vld [vmem:[#allocation3 + $0xd0] sm:$0xff]
      %v7759 = vld [vmem:[#allocation3 + $0xd8] sm:$0xff]
      %v7760 = vld [vmem:[#allocation3 + $0xe0] sm:$0xff]
      %v7761 = vld [vmem:[#allocation3 + $0xe8] sm:$0xff]
      %v7762 = vld [vmem:[#allocation3 + $0xf0] sm:$0xff]
      %v7763 = vld [vmem:[#allocation3 + $0xf8] sm:$0xff]
      %v7764 = vld [vmem:[#allocation3 + $0x100] sm:$0xff]
      %v7765 = vld [vmem:[#allocation3 + $0x108] sm:$0xff]
      %v7766 = vld [vmem:[#allocation3 + $0x110] sm:$0xff]
      %v7767 = vld [vmem:[#allocation3 + $0x118] sm:$0xff]
      %v7768 = vld [vmem:[#allocation3 + $0x120] sm:$0xff]
      %v7769 = vld [vmem:[#allocation3 + $0x128] sm:$0xff]
      %v7770 = vld [vmem:[#allocation3 + $0x130] sm:$0xff]
      %v7771 = vld [vmem:[#allocation3 + $0x138] sm:$0xff]
      %v7772 = vld [vmem:[#allocation3 + $0x140] sm:$0xff]
      %v7773 = vld [vmem:[#allocation3 + $0x148] sm:$0xff]
      %v7774 = vld [vmem:[#allocation3 + $0x150] sm:$0xff]
      %v7775 = vld [vmem:[#allocation3 + $0x158] sm:$0xff]
      %v7776 = vld [vmem:[#allocation3 + $0x160] sm:$0xff]
      %v7777 = vld [vmem:[#allocation3 + $0x168] sm:$0xff]
      %v7778 = vld [vmem:[#allocation3 + $0x170] sm:$0xff]
      %v7779 = vld [vmem:[#allocation3 + $0x178] sm:$0xff]
      %v7780 = vld [vmem:[#allocation3 + $0x180] sm:$0xff]
      %v7781 = vld [vmem:[#allocation3 + $0x188] sm:$0xff]
      %v7782 = vld [vmem:[#allocation3 + $0x190] sm:$0xff]
      %v7783 = vld [vmem:[#allocation3 + $0x198] sm:$0xff]
      %v7784 = vld [vmem:[#allocation3 + $0x1a0] sm:$0xff]
      %v7785 = vld [vmem:[#allocation3 + $0x1a8] sm:$0xff]
      %v7786 = vld [vmem:[#allocation3 + $0x1b0] sm:$0xff]
      %v7787 = vld [vmem:[#allocation3 + $0x1b8] sm:$0xff]
      %v7788 = vld [vmem:[#allocation3 + $0x1c0] sm:$0xff]
      %v7789 = vld [vmem:[#allocation3 + $0x1c8] sm:$0xff]
      %v7790 = vld [vmem:[#allocation3 + $0x1d0] sm:$0xff]
      %v7791 = vld [vmem:[#allocation3 + $0x1d8] sm:$0xff]
      %v7792 = vld [vmem:[#allocation3 + $0x1e0] sm:$0xff]
      %v7793 = vld [vmem:[#allocation3 + $0x1e8] sm:$0xff]
      %v7794 = vld [vmem:[#allocation3 + $0x1f0] sm:$0xff]
      %v7795 = vld [vmem:[#allocation3 + $0x1f8] sm:$0xff]
      %v7796 = vld [vmem:[#allocation3 + $0x200] sm:$0xff]
      %v7797 = vld [vmem:[#allocation3 + $0x208] sm:$0xff]
      %v7798 = vld [vmem:[#allocation3 + $0x210] sm:$0xff]
      %v7799 = vld [vmem:[#allocation3 + $0x218] sm:$0xff]
      %v7800 = vld [vmem:[#allocation3 + $0x220] sm:$0xff]
      %v7801 = vld [vmem:[#allocation3 + $0x228] sm:$0xff]
      %v7802 = vld [vmem:[#allocation3 + $0x230] sm:$0xff]
      %v7803 = vld [vmem:[#allocation3 + $0x238] sm:$0xff]
      %v7804 = vld [vmem:[#allocation3 + $0x240] sm:$0xff]
      %v7805 = vld [vmem:[#allocation3 + $0x248] sm:$0xff]
      %v7806 = vld [vmem:[#allocation3 + $0x250] sm:$0xff]
      %v7807 = vld [vmem:[#allocation3 + $0x258] sm:$0xff]
      %v7808 = vld [vmem:[#allocation3 + $0x260] sm:$0xff]
      %v7809 = vld [vmem:[#allocation3 + $0x268] sm:$0xff]
      %v7810 = vld [vmem:[#allocation3 + $0x270] sm:$0xff]
      %v7811 = vld [vmem:[#allocation3 + $0x278] sm:$0xff]
      %v7812 = vld [vmem:[#allocation3 + $0x280] sm:$0xff]
      %v7813 = vld [vmem:[#allocation3 + $0x288] sm:$0xff]
      %v7814 = vld [vmem:[#allocation3 + $0x290] sm:$0xff]
      %v7815 = vld [vmem:[#allocation3 + $0x298] sm:$0xff]
      %v7816 = vld [vmem:[#allocation3 + $0x2a0] sm:$0xff]
      %v7817 = vld [vmem:[#allocation3 + $0x2a8] sm:$0xff]
      %v7818 = vld [vmem:[#allocation3 + $0x2b0] sm:$0xff]
      %v7819 = vld [vmem:[#allocation3 + $0x2b8] sm:$0xff]
      %v7820 = vld [vmem:[#allocation3 + $0x2c0] sm:$0xff]
      %v7821 = vld [vmem:[#allocation3 + $0x2c8] sm:$0xff]
      %v7822 = vld [vmem:[#allocation3 + $0x2d0] sm:$0xff]
      %v7823 = vld [vmem:[#allocation3 + $0x2d8] sm:$0xff]
      %v7824 = vld [vmem:[#allocation3 + $0x2e0] sm:$0xff]
      %v7825 = vld [vmem:[#allocation3 + $0x2e8] sm:$0xff]
      %v7826 = vld [vmem:[#allocation3 + $0x2f0] sm:$0xff]
      %v7827 = vld [vmem:[#allocation3 + $0x2f8] sm:$0xff]
      %v7828 = vld [vmem:[#allocation3 + $0x300] sm:$0xff]
      %v7829 = vld [vmem:[#allocation3 + $0x308] sm:$0xff]
      %v7830 = vld [vmem:[#allocation3 + $0x310] sm:$0xff]
      %v7831 = vld [vmem:[#allocation3 + $0x318] sm:$0xff]
      %v7832 = vld [vmem:[#allocation3 + $0x320] sm:$0xff]
      %v7833 = vld [vmem:[#allocation3 + $0x328] sm:$0xff]
      %v7834 = vld [vmem:[#allocation3 + $0x330] sm:$0xff]
      %v7835 = vld [vmem:[#allocation3 + $0x338] sm:$0xff]
      %v7836 = vld [vmem:[#allocation3 + $0x340] sm:$0xff]
      %v7837 = vld [vmem:[#allocation3 + $0x348] sm:$0xff]
      %v7838 = vld [vmem:[#allocation3 + $0x350] sm:$0xff]
      %v7839 = vld [vmem:[#allocation3 + $0x358] sm:$0xff]
      %v7840 = vld [vmem:[#allocation3 + $0x360] sm:$0xff]
      %v7841 = vld [vmem:[#allocation3 + $0x368] sm:$0xff]
      %v7842 = vld [vmem:[#allocation3 + $0x370] sm:$0xff]
      %v7843 = vld [vmem:[#allocation3 + $0x378] sm:$0xff]
      %v7844 = vld [vmem:[#allocation3 + $0x380] sm:$0xff]
      %v7845 = vld [vmem:[#allocation3 + $0x388] sm:$0xff]
      %v7846 = vld [vmem:[#allocation3 + $0x390] sm:$0xff]
      %v7847 = vld [vmem:[#allocation3 + $0x398] sm:$0xff]
      %v7848 = vld [vmem:[#allocation3 + $0x3a0] sm:$0xff]
      %v7849 = vld [vmem:[#allocation3 + $0x3a8] sm:$0xff]
      %v7850 = vld [vmem:[#allocation3 + $0x3b0] sm:$0xff]
      %v7851 = vld [vmem:[#allocation3 + $0x3b8] sm:$0xff]
      %v7852 = vld [vmem:[#allocation3 + $0x3c0] sm:$0xff]
      %v7853 = vld [vmem:[#allocation3 + $0x3c8] sm:$0xff]
      %v7854 = vld [vmem:[#allocation3 + $0x3d0] sm:$0xff]
      %v7855 = vld [vmem:[#allocation3 + $0x3d8] sm:$0xff]
      %v7856 = vld [vmem:[#allocation3 + $0x3e0] sm:$0xff]
      %v7857 = vld [vmem:[#allocation3 + $0x3e8] sm:$0xff]
      %v7858 = vld [vmem:[#allocation3 + $0x3f0] sm:$0xff]
      %v7859 = vld [vmem:[#allocation3 + $0x3f8] sm:$0xff]
      %v7860 = vld [vmem:[#allocation3 + $0x400] sm:$0xff]
      %v7861 = vld [vmem:[#allocation3 + $0x408] sm:$0xff]
      %v7862 = vld [vmem:[#allocation3 + $0x410] sm:$0xff]
      %v7863 = vld [vmem:[#allocation3 + $0x418] sm:$0xff]
      %v7864 = vld [vmem:[#allocation3 + $0x420] sm:$0xff]
      %v7865 = vld [vmem:[#allocation3 + $0x428] sm:$0xff]
      %v7866 = vld [vmem:[#allocation3 + $0x430] sm:$0xff]
      %v7867 = vld [vmem:[#allocation3 + $0x438] sm:$0xff]
      %v7868 = vld [vmem:[#allocation3 + $0x440] sm:$0xff]
      %v7869 = vld [vmem:[#allocation3 + $0x448] sm:$0xff]
      %v7870 = vld [vmem:[#allocation3 + $0x450] sm:$0xff]
      %v7871 = vld [vmem:[#allocation3 + $0x458] sm:$0xff]
      %v7872 = vld [vmem:[#allocation3 + $0x460] sm:$0xff]
      %v7873 = vld [vmem:[#allocation3 + $0x468] sm:$0xff]
      %v7874 = vld [vmem:[#allocation3 + $0x470] sm:$0xff]
      %v7875 = vld [vmem:[#allocation3 + $0x478] sm:$0xff]
      %v7876 = vld [vmem:[%s1] sm:$0xf]
      %v7877 = vld [vmem:[%s1 + $0x4] sm:$0xf]
      %v7878 = vld [vmem:[%s1 + $0x8] sm:$0xf]
      %v7879 = vld [vmem:[%s1 + $0xc] sm:$0xf]
      %v7880 = vld [vmem:[%s1 + $0x10] sm:$0xf]
      %v7881 = vld [vmem:[%s1 + $0x14] sm:$0xf]
      %v7882 = vld [vmem:[%s1 + $0x18] sm:$0xf]
      %v7883 = vld [vmem:[%s1 + $0x1c] sm:$0xf]
      %v7884 = vld [vmem:[%s1 + $0x20] sm:$0xf]
      %v7885 = vld [vmem:[%s1 + $0x24] sm:$0xf]
      %v7886 = vld [vmem:[%s1 + $0x28] sm:$0xf]
      %v7887 = vld [vmem:[%s1 + $0x2c] sm:$0xf]
      %v7888 = vld [vmem:[%s1 + $0x30] sm:$0xf]
      %v7889 = vld [vmem:[%s1 + $0x34] sm:$0xf]
      %v7890 = vld [vmem:[%s1 + $0x38] sm:$0xf]
      %v7891 = vld [vmem:[%s1 + $0x3c] sm:$0xf]
      %v7892 = vld [vmem:[%s1 + $0x40] sm:$0xf]
      %v7893 = vld [vmem:[%s1 + $0x44] sm:$0xf]
      %v7894 = vld [vmem:[%s1 + $0x48] sm:$0xf]
      %v7895 = vld [vmem:[%s1 + $0x4c] sm:$0xf]
      %v7896 = vld [vmem:[%s1 + $0x50] sm:$0xf]
      %v7897 = vld [vmem:[%s1 + $0x54] sm:$0xf]
      %v7898 = vld [vmem:[%s1 + $0x58] sm:$0xf]
      %v7899 = vld [vmem:[%s1 + $0x5c] sm:$0xf]
      %v7900 = vld [vmem:[%s1 + $0x60] sm:$0xf]
      %v7901 = vld [vmem:[%s1 + $0x64] sm:$0xf]
      %v7902 = vld [vmem:[%s1 + $0x68] sm:$0xf]
      %v7903 = vld [vmem:[%s1 + $0x6c] sm:$0xf]
      %v7904 = vld [vmem:[%s1 + $0x70] sm:$0xf]
      %v7905 = vld [vmem:[%s1 + $0x74] sm:$0xf]
      %v7906 = vld [vmem:[%s1 + $0x78] sm:$0xf]
      %v7907 = vld [vmem:[%s1 + $0x7c] sm:$0xf]
      %v7908 = vld [vmem:[%s1 + $0x80] sm:$0xf]
      %v7909 = vld [vmem:[%s1 + $0x84] sm:$0xf]
      %v7910 = vld [vmem:[%s1 + $0x88] sm:$0xf]
      %v7911 = vld [vmem:[%s1 + $0x8c] sm:$0xf]
      %v7912 = vld [vmem:[%s1 + $0x90] sm:$0xf]
      %v7913 = vld [vmem:[%s1 + $0x94] sm:$0xf]
      %v7914 = vld [vmem:[%s1 + $0x98] sm:$0xf]
      %v7915 = vld [vmem:[%s1 + $0x9c] sm:$0xf]
      %v7916 = vld [vmem:[%s1 + $0xa0] sm:$0xf]
      %v7917 = vld [vmem:[%s1 + $0xa4] sm:$0xf]
      %v7918 = vld [vmem:[%s1 + $0xa8] sm:$0xf]
      %v7919 = vld [vmem:[%s1 + $0xac] sm:$0xf]
      %v7920 = vld [vmem:[%s1 + $0xb0] sm:$0xf]
      %v7921 = vld [vmem:[%s1 + $0xb4] sm:$0xf]
      %v7922 = vld [vmem:[%s1 + $0xb8] sm:$0xf]
      %v7923 = vld [vmem:[%s1 + $0xbc] sm:$0xf]
      %v7924 = vld [vmem:[%s1 + $0xc0] sm:$0xf]
      %v7925 = vld [vmem:[%s1 + $0xc4] sm:$0xf]
      %v7926 = vld [vmem:[%s1 + $0xc8] sm:$0xf]
      %v7927 = vld [vmem:[%s1 + $0xcc] sm:$0xf]
      %v7928 = vld [vmem:[%s1 + $0xd0] sm:$0xf]
      %v7929 = vld [vmem:[%s1 + $0xd4] sm:$0xf]
      %v7930 = vld [vmem:[%s1 + $0xd8] sm:$0xf]
      %v7931 = vld [vmem:[%s1 + $0xdc] sm:$0xf]
      %v7932 = vld [vmem:[%s1 + $0xe0] sm:$0xf]
      %v7933 = vld [vmem:[%s1 + $0xe4] sm:$0xf]
      %v7934 = vld [vmem:[%s1 + $0xe8] sm:$0xf]
      %v7935 = vld [vmem:[%s1 + $0xec] sm:$0xf]
      %v7936 = vld [vmem:[%s1 + $0xf0] sm:$0xf]
      %v7937 = vld [vmem:[%s1 + $0xf4] sm:$0xf]
      %v7938 = vld [vmem:[%s1 + $0xf8] sm:$0xf]
      %v7939 = vld [vmem:[%s1 + $0xfc] sm:$0xf]
      %v7940 = vld [vmem:[%s1 + $0x100] sm:$0xf]
      %v7941 = vld [vmem:[%s1 + $0x104] sm:$0xf]
      %v7942 = vld [vmem:[%s1 + $0x108] sm:$0xf]
      %v7943 = vld [vmem:[%s1 + $0x10c] sm:$0xf]
      %v7944 = vld [vmem:[%s1 + $0x110] sm:$0xf]
      %v7945 = vld [vmem:[%s1 + $0x114] sm:$0xf]
      %v7946 = vld [vmem:[%s1 + $0x118] sm:$0xf]
      %v7947 = vld [vmem:[%s1 + $0x11c] sm:$0xf]
      %v7948 = vld [vmem:[%s1 + $0x120] sm:$0xf]
      %v7949 = vld [vmem:[%s1 + $0x124] sm:$0xf]
      %v7950 = vld [vmem:[%s1 + $0x128] sm:$0xf]
      %v7951 = vld [vmem:[%s1 + $0x12c] sm:$0xf]
      %v7952 = vld [vmem:[%s1 + $0x130] sm:$0xf]
      %v7953 = vld [vmem:[%s1 + $0x134] sm:$0xf]
      %v7954 = vld [vmem:[%s1 + $0x138] sm:$0xf]
      %v7955 = vld [vmem:[%s1 + $0x13c] sm:$0xf]
      %v7956 = vld [vmem:[%s1 + $0x140] sm:$0xf]
      %v7957 = vld [vmem:[%s1 + $0x144] sm:$0xf]
      %v7958 = vld [vmem:[%s1 + $0x148] sm:$0xf]
      %v7959 = vld [vmem:[%s1 + $0x14c] sm:$0xf]
      %v7960 = vld [vmem:[%s1 + $0x150] sm:$0xf]
      %v7961 = vld [vmem:[%s1 + $0x154] sm:$0xf]
      %v7962 = vld [vmem:[%s1 + $0x158] sm:$0xf]
      %v7963 = vld [vmem:[%s1 + $0x15c] sm:$0xf]
      %v7964 = vld [vmem:[%s1 + $0x160] sm:$0xf]
      %v7965 = vld [vmem:[%s1 + $0x164] sm:$0xf]
      %v7966 = vld [vmem:[%s1 + $0x168] sm:$0xf]
      %v7967 = vld [vmem:[%s1 + $0x16c] sm:$0xf]
      %v7968 = vld [vmem:[%s1 + $0x170] sm:$0xf]
      %v7969 = vld [vmem:[%s1 + $0x174] sm:$0xf]
      %v7970 = vld [vmem:[%s1 + $0x178] sm:$0xf]
      %v7971 = vld [vmem:[%s1 + $0x17c] sm:$0xf]
      %v7972 = vld [vmem:[%s1 + $0x180] sm:$0xf]
      %v7973 = vld [vmem:[%s1 + $0x184] sm:$0xf]
      %v7974 = vld [vmem:[%s1 + $0x188] sm:$0xf]
      %v7975 = vld [vmem:[%s1 + $0x18c] sm:$0xf]
      %v7976 = vld [vmem:[%s1 + $0x190] sm:$0xf]
      %v7977 = vld [vmem:[%s1 + $0x194] sm:$0xf]
      %v7978 = vld [vmem:[%s1 + $0x198] sm:$0xf]
      %v7979 = vld [vmem:[%s1 + $0x19c] sm:$0xf]
      %v7980 = vld [vmem:[%s1 + $0x1a0] sm:$0xf]
      %v7981 = vld [vmem:[%s1 + $0x1a4] sm:$0xf]
      %v7982 = vld [vmem:[%s1 + $0x1a8] sm:$0xf]
      %v7983 = vld [vmem:[%s1 + $0x1ac] sm:$0xf]
      %v7984 = vld [vmem:[%s1 + $0x1b0] sm:$0xf]
      %v7985 = vld [vmem:[%s1 + $0x1b4] sm:$0xf]
      %v7986 = vld [vmem:[%s1 + $0x1b8] sm:$0xf]
      %v7987 = vld [vmem:[%s1 + $0x1bc] sm:$0xf]
      %v7988 = vld [vmem:[%s1 + $0x1c0] sm:$0xf]
      %v7989 = vld [vmem:[%s1 + $0x1c4] sm:$0xf]
      %v7990 = vld [vmem:[%s1 + $0x1c8] sm:$0xf]
      %v7991 = vld [vmem:[%s1 + $0x1cc] sm:$0xf]
      %v7992 = vld [vmem:[%s1 + $0x1d0] sm:$0xf]
      %v7993 = vld [vmem:[%s1 + $0x1d4] sm:$0xf]
      %v7994 = vld [vmem:[%s1 + $0x1d8] sm:$0xf]
      %v7995 = vld [vmem:[%s1 + $0x1dc] sm:$0xf]
      %v7996 = vld [vmem:[%s1 + $0x1e0] sm:$0xf]
      %v7997 = vld [vmem:[%s1 + $0x1e4] sm:$0xf]
      %v7998 = vld [vmem:[%s1 + $0x1e8] sm:$0xf]
      %v7999 = vld [vmem:[%s1 + $0x1ec] sm:$0xf]
      %v8000 = vld [vmem:[%s1 + $0x1f0] sm:$0xf]
      %v8001 = vld [vmem:[%s1 + $0x1f4] sm:$0xf]
      %v8002 = vld [vmem:[%s1 + $0x1f8] sm:$0xf]
      %v8003 = vld [vmem:[%s1 + $0x1fc] sm:$0xf]
      %v8004 = vld [vmem:[%s1 + $0x200] sm:$0xf]
      %v8005 = vld [vmem:[%s1 + $0x204] sm:$0xf]
      %v8006 = vld [vmem:[%s1 + $0x208] sm:$0xf]
      %v8007 = vld [vmem:[%s1 + $0x20c] sm:$0xf]
      %v8008 = vld [vmem:[%s1 + $0x210] sm:$0xf]
      %v8009 = vld [vmem:[%s1 + $0x214] sm:$0xf]
      %v8010 = vld [vmem:[%s1 + $0x218] sm:$0xf]
      %v8011 = vld [vmem:[%s1 + $0x21c] sm:$0xf]
      %v8012 = vld [vmem:[%s1 + $0x220] sm:$0xf]
      %v8013 = vld [vmem:[%s1 + $0x224] sm:$0xf]
      %v8014 = vld [vmem:[%s1 + $0x228] sm:$0xf]
      %v8015 = vld [vmem:[%s1 + $0x22c] sm:$0xf]
      %v8016 = vld [vmem:[%s1 + $0x230] sm:$0xf]
      %v8017 = vld [vmem:[%s1 + $0x234] sm:$0xf]
      %v8018 = vld [vmem:[%s1 + $0x238] sm:$0xf]
      %v8019 = vld [vmem:[%s1 + $0x23c] sm:$0xf]
      %v8020 = vld [vmem:[%s2] sm:$0x1]
      %v8022 = vlaneseq
      %v8023 = vshrl.u32 %v8022, 7
      %v8024 = vsub.s32 0, %v8023
      %v8025 = vrot.slane %v8020, %v8024
      %v8171 = vunpack.c.l.b16 %v7876
      %v8172 = vunpack.c.l.b16 %v7877
      %v8173 = vunpack.c.l.b16 %v7878
      %v8174 = vunpack.c.l.b16 %v7879
      %v8175 = vunpack.c.l.b16 %v7880
      %v8176 = vunpack.c.l.b16 %v7881
      %v8177 = vunpack.c.l.b16 %v7882
      %v8178 = vunpack.c.l.b16 %v7883
      %v8179 = vunpack.c.l.b16 %v7884
      %v8180 = vunpack.c.l.b16 %v7885
      %v8181 = vunpack.c.l.b16 %v7886
      %v8182 = vunpack.c.l.b16 %v7887
      %v8183 = vunpack.c.l.b16 %v7888
      %v8184 = vunpack.c.l.b16 %v7889
      %v8185 = vunpack.c.l.b16 %v7890
      %v8186 = vunpack.c.l.b16 %v7891
      %v8187 = vunpack.c.l.b16 %v7892
      %v8188 = vunpack.c.l.b16 %v7893
      %v8189 = vunpack.c.l.b16 %v7894
      %v8190 = vunpack.c.l.b16 %v7895
      %v8191 = vunpack.c.l.b16 %v7896
      %v8192 = vunpack.c.l.b16 %v7897
      %v8193 = vunpack.c.l.b16 %v7898
      %v8194 = vunpack.c.l.b16 %v7899
      %v8195 = vunpack.c.l.b16 %v7900
      %v8196 = vunpack.c.l.b16 %v7901
      %v8197 = vunpack.c.l.b16 %v7902
      %v8198 = vunpack.c.l.b16 %v7903
      %v8199 = vunpack.c.l.b16 %v7904
      %v8200 = vunpack.c.l.b16 %v7905
      %v8201 = vunpack.c.l.b16 %v7906
      %v8202 = vunpack.c.l.b16 %v7907
      %v8203 = vunpack.c.l.b16 %v7908
      %v8204 = vunpack.c.l.b16 %v7909
      %v8205 = vunpack.c.l.b16 %v7910
      %v8206 = vunpack.c.l.b16 %v7911
      %v8207 = vunpack.c.l.b16 %v7912
      %v8208 = vunpack.c.l.b16 %v7913
      %v8209 = vunpack.c.l.b16 %v7914
      %v8210 = vunpack.c.l.b16 %v7915
      %v8211 = vunpack.c.l.b16 %v7916
      %v8212 = vunpack.c.l.b16 %v7917
      %v8213 = vunpack.c.l.b16 %v7918
      %v8214 = vunpack.c.l.b16 %v7919
      %v8215 = vunpack.c.l.b16 %v7920
      %v8216 = vunpack.c.l.b16 %v7921
      %v8217 = vunpack.c.l.b16 %v7922
      %v8218 = vunpack.c.l.b16 %v7923
      %v8219 = vunpack.c.l.b16 %v7924
      %v8220 = vunpack.c.l.b16 %v7925
      %v8221 = vunpack.c.l.b16 %v7926
      %v8222 = vunpack.c.l.b16 %v7927
      %v8223 = vunpack.c.l.b16 %v7928
      %v8224 = vunpack.c.l.b16 %v7929
      %v8225 = vunpack.c.l.b16 %v7930
      %v8226 = vunpack.c.l.b16 %v7931
      %v8227 = vunpack.c.l.b16 %v7932
      %v8228 = vunpack.c.l.b16 %v7933
      %v8229 = vunpack.c.l.b16 %v7934
      %v8230 = vunpack.c.l.b16 %v7935
      %v8231 = vunpack.c.l.b16 %v7936
      %v8232 = vunpack.c.l.b16 %v7937
      %v8233 = vunpack.c.l.b16 %v7938
      %v8234 = vunpack.c.l.b16 %v7939
      %v8235 = vunpack.c.l.b16 %v7940
      %v8236 = vunpack.c.l.b16 %v7941
      %v8237 = vunpack.c.l.b16 %v7942
      %v8238 = vunpack.c.l.b16 %v7943
      %v8239 = vunpack.c.l.b16 %v7944
      %v8240 = vunpack.c.l.b16 %v7945
      %v8241 = vunpack.c.l.b16 %v7946
      %v8242 = vunpack.c.l.b16 %v7947
      %v8243 = vunpack.c.l.b16 %v7948
      %v8244 = vunpack.c.l.b16 %v7949
      %v8245 = vunpack.c.l.b16 %v7950
      %v8246 = vunpack.c.l.b16 %v7951
      %v8247 = vunpack.c.l.b16 %v7952
      %v8248 = vunpack.c.l.b16 %v7953
      %v8249 = vunpack.c.l.b16 %v7954
      %v8250 = vunpack.c.l.b16 %v7955
      %v8251 = vunpack.c.l.b16 %v7956
      %v8252 = vunpack.c.l.b16 %v7957
      %v8253 = vunpack.c.l.b16 %v7958
      %v8254 = vunpack.c.l.b16 %v7959
      %v8255 = vunpack.c.l.b16 %v7960
      %v8256 = vunpack.c.l.b16 %v7961
      %v8257 = vunpack.c.l.b16 %v7962
      %v8258 = vunpack.c.l.b16 %v7963
      %v8259 = vunpack.c.l.b16 %v7964
      %v8260 = vunpack.c.l.b16 %v7965
      %v8261 = vunpack.c.l.b16 %v7966
      %v8262 = vunpack.c.l.b16 %v7967
      %v8263 = vunpack.c.l.b16 %v7968
      %v8264 = vunpack.c.l.b16 %v7969
      %v8265 = vunpack.c.l.b16 %v7970
      %v8266 = vunpack.c.l.b16 %v7971
      %v8267 = vunpack.c.l.b16 %v7972
      %v8268 = vunpack.c.l.b16 %v7973
      %v8269 = vunpack.c.l.b16 %v7974
      %v8270 = vunpack.c.l.b16 %v7975
      %v8271 = vunpack.c.l.b16 %v7976
      %v8272 = vunpack.c.l.b16 %v7977
      %v8273 = vunpack.c.l.b16 %v7978
      %v8274 = vunpack.c.l.b16 %v7979
      %v8275 = vunpack.c.l.b16 %v7980
      %v8276 = vunpack.c.l.b16 %v7981
      %v8277 = vunpack.c.l.b16 %v7982
      %v8278 = vunpack.c.l.b16 %v7983
      %v8279 = vunpack.c.l.b16 %v7984
      %v8280 = vunpack.c.l.b16 %v7985
      %v8281 = vunpack.c.l.b16 %v7986
      %v8282 = vunpack.c.l.b16 %v7987
      %v8283 = vunpack.c.l.b16 %v7988
      %v8284 = vunpack.c.l.b16 %v7989
      %v8285 = vunpack.c.l.b16 %v7990
      %v8286 = vunpack.c.l.b16 %v7991
      %v8287 = vunpack.c.l.b16 %v7992
      %v8288 = vunpack.c.l.b16 %v7993
      %v8289 = vunpack.c.l.b16 %v7994
      %v8290 = vunpack.c.l.b16 %v7995
      %v8291 = vunpack.c.l.b16 %v7996
      %v8292 = vunpack.c.l.b16 %v7997
      %v8293 = vunpack.c.l.b16 %v7998
      %v8294 = vunpack.c.l.b16 %v7999
      %v8295 = vunpack.c.l.b16 %v8000
      %v8296 = vunpack.c.l.b16 %v8001
      %v8297 = vunpack.c.l.b16 %v8002
      %v8298 = vunpack.c.l.b16 %v8003
      %v8299 = vunpack.c.l.b16 %v8004
      %v8300 = vunpack.c.l.b16 %v8005
      %v8301 = vunpack.c.l.b16 %v8006
      %v8302 = vunpack.c.l.b16 %v8007
      %v8303 = vunpack.c.l.b16 %v8008
      %v8304 = vunpack.c.l.b16 %v8009
      %v8305 = vunpack.c.l.b16 %v8010
      %v8306 = vunpack.c.l.b16 %v8011
      %v8307 = vunpack.c.l.b16 %v8012
      %v8308 = vunpack.c.l.b16 %v8013
      %v8309 = vunpack.c.l.b16 %v8014
      %v8310 = vunpack.c.l.b16 %v8015
      %v8311 = vunpack.c.l.b16 %v8016
      %v8312 = vunpack.c.l.b16 %v8017
      %v8313 = vunpack.c.l.b16 %v8018
      %v8314 = vunpack.c.l.b16 %v8019
      %v8315 = vpack.c.b16 %v8172, %v8171
      %v8316 = vpack.c.b16 %v8174, %v8173
      %v8317 = vpack.c.b16 %v8176, %v8175
      %v8318 = vpack.c.b16 %v8178, %v8177
      %v8319 = vpack.c.b16 %v8180, %v8179
      %v8320 = vpack.c.b16 %v8182, %v8181
      %v8321 = vpack.c.b16 %v8184, %v8183
      %v8322 = vpack.c.b16 %v8186, %v8185
      %v8323 = vpack.c.b16 %v8188, %v8187
      %v8324 = vpack.c.b16 %v8190, %v8189
      %v8325 = vpack.c.b16 %v8192, %v8191
      %v8326 = vpack.c.b16 %v8194, %v8193
      %v8327 = vpack.c.b16 %v8196, %v8195
      %v8328 = vpack.c.b16 %v8198, %v8197
      %v8329 = vpack.c.b16 %v8200, %v8199
      %v8330 = vpack.c.b16 %v8202, %v8201
      %v8331 = vpack.c.b16 %v8204, %v8203
      %v8332 = vpack.c.b16 %v8206, %v8205
      %v8333 = vpack.c.b16 %v8208, %v8207
      %v8334 = vpack.c.b16 %v8210, %v8209
      %v8335 = vpack.c.b16 %v8212, %v8211
      %v8336 = vpack.c.b16 %v8214, %v8213
      %v8337 = vpack.c.b16 %v8216, %v8215
      %v8338 = vpack.c.b16 %v8218, %v8217
      %v8339 = vpack.c.b16 %v8220, %v8219
      %v8340 = vpack.c.b16 %v8222, %v8221
      %v8341 = vpack.c.b16 %v8224, %v8223
      %v8342 = vpack.c.b16 %v8226, %v8225
      %v8343 = vpack.c.b16 %v8228, %v8227
      %v8344 = vpack.c.b16 %v8230, %v8229
      %v8345 = vpack.c.b16 %v8232, %v8231
      %v8346 = vpack.c.b16 %v8234, %v8233
      %v8347 = vpack.c.b16 %v8236, %v8235
      %v8348 = vpack.c.b16 %v8238, %v8237
      %v8349 = vpack.c.b16 %v8240, %v8239
      %v8350 = vpack.c.b16 %v8242, %v8241
      %v8351 = vpack.c.b16 %v8244, %v8243
      %v8352 = vpack.c.b16 %v8246, %v8245
      %v8353 = vpack.c.b16 %v8248, %v8247
      %v8354 = vpack.c.b16 %v8250, %v8249
      %v8355 = vpack.c.b16 %v8252, %v8251
      %v8356 = vpack.c.b16 %v8254, %v8253
      %v8357 = vpack.c.b16 %v8256, %v8255
      %v8358 = vpack.c.b16 %v8258, %v8257
      %v8359 = vpack.c.b16 %v8260, %v8259
      %v8360 = vpack.c.b16 %v8262, %v8261
      %v8361 = vpack.c.b16 %v8264, %v8263
      %v8362 = vpack.c.b16 %v8266, %v8265
      %v8363 = vpack.c.b16 %v8268, %v8267
      %v8364 = vpack.c.b16 %v8270, %v8269
      %v8365 = vpack.c.b16 %v8272, %v8271
      %v8366 = vpack.c.b16 %v8274, %v8273
      %v8367 = vpack.c.b16 %v8276, %v8275
      %v8368 = vpack.c.b16 %v8278, %v8277
      %v8369 = vpack.c.b16 %v8280, %v8279
      %v8370 = vpack.c.b16 %v8282, %v8281
      %v8371 = vpack.c.b16 %v8284, %v8283
      %v8372 = vpack.c.b16 %v8286, %v8285
      %v8373 = vpack.c.b16 %v8288, %v8287
      %v8374 = vpack.c.b16 %v8290, %v8289
      %v8375 = vpack.c.b16 %v8292, %v8291
      %v8376 = vpack.c.b16 %v8294, %v8293
      %v8377 = vpack.c.b16 %v8296, %v8295
      %v8378 = vpack.c.b16 %v8298, %v8297
      %v8379 = vpack.c.b16 %v8300, %v8299
      %v8380 = vpack.c.b16 %v8302, %v8301
      %v8381 = vpack.c.b16 %v8304, %v8303
      %v8382 = vpack.c.b16 %v8306, %v8305
      %v8383 = vpack.c.b16 %v8308, %v8307
      %v8384 = vpack.c.b16 %v8310, %v8309
      %v8385 = vpack.c.b16 %v8312, %v8311
      %v8386 = vpack.c.b16 %v8314, %v8313
      %8459 = vmatprep.subr.bf16.mxu0 0
      %8460 = vmatpush1.bf16.msra.mxu0 %v8315
      %8461 = vmatprep.subr.bf16.mxu0 0
      %8462 = vmatpush1.bf16.msra.mxu0 %v8316
      %8463 = vmatprep.subr.bf16.mxu0 0
      %8464 = vmatpush1.bf16.msra.mxu0 %v8317
      %8465 = vmatprep.subr.bf16.mxu0 0
      %8466 = vmatpush1.bf16.msra.mxu0 %v8318
      %8467 = vmatprep.subr.bf16.mxu0 0
      %8468 = vmatpush1.bf16.msra.mxu0 %v8319
      %8469 = vmatprep.subr.bf16.mxu0 0
      %8470 = vmatpush1.bf16.msra.mxu0 %v8320
      %8471 = vmatprep.subr.bf16.mxu0 0
      %8472 = vmatpush1.bf16.msra.mxu0 %v8321
      %8473 = vmatprep.subr.bf16.mxu0 0
      %8474 = vmatpush1.bf16.msra.mxu0 %v8322
      %8475 = vmatprep.subr.bf16.mxu0 0
      %8476 = vmatpush1.bf16.msra.mxu0 %v8323
      %8477 = vmatprep.subr.bf16.mxu0 0
      %8478 = vmatpush1.bf16.msra.mxu0 %v8324
      %8479 = vmatprep.subr.bf16.mxu0 0
      %8480 = vmatpush1.bf16.msra.mxu0 %v8325
      %8481 = vmatprep.subr.bf16.mxu0 0
      %8482 = vmatpush1.bf16.msra.mxu0 %v8326
      %8483 = vmatprep.subr.bf16.mxu0 0
      %8484 = vmatpush1.bf16.msra.mxu0 %v8327
      %8485 = vmatprep.subr.bf16.mxu0 0
      %8486 = vmatpush1.bf16.msra.mxu0 %v8328
      %8487 = vmatprep.subr.bf16.mxu0 0
      %8488 = vmatpush1.bf16.msra.mxu0 %v8329
      %8489 = vmatprep.subr.bf16.mxu0 0
      %8490 = vmatpush1.bf16.msra.mxu0 %v8330
      %8491 = vmatprep.mubr.bf16.mxu0 %v7733
      %8492 = vmatmul.mubr.bf16.gmra.mrb[0].mxu0 %v7732
      %v8493 = vpop.f32.mrb[0].mxu0
      %v8494 = vadd.f32 %v8025, %v8493
      %v8495 = vpop.f32.mrb[0].mxu0
      %v8496 = vpop.f32.mrb[0].mxu0
      %v8497 = vadd.f32 %v8025, %v8496
      %v8498 = vpop.f32.mrb[0].mxu0
      %8499 = vmatprep.mubr.bf16.mxu0 %v7742
      %8500 = vmatmul.mubr.bf16.gmra.mrb[0].mxu0 %v7741
      %v8501 = vpop.f32.mrb[0].mxu0
      %v8502 = vadd.f32 %v8025, %v8501
      %v8503 = vpop.f32.mrb[0].mxu0
      %v8504 = vpop.f32.mrb[0].mxu0
      %v8505 = vadd.f32 %v8025, %v8504
      %v8506 = vpop.f32.mrb[0].mxu0
      %8507 = vmatprep.mubr.bf16.mxu0 %v7751
      %8508 = vmatmul.mubr.bf16.gmra.mrb[0].mxu0 %v7750
      %v8509 = vpop.f32.mrb[0].mxu0
      %v8510 = vadd.f32 %v8025, %v8509
      %v8511 = vpop.f32.mrb[0].mxu0
      %v8512 = vpop.f32.mrb[0].mxu0
      %v8513 = vadd.f32 %v8025, %v8512
      %v8514 = vpop.f32.mrb[0].mxu0
      %8515 = vmatprep.mubr.bf16.mxu0 %v7760
      %8516 = vmatmul.mubr.bf16.gmra.mrb[0].mxu0 %v7759
      %v8517 = vpop.f32.mrb[0].mxu0
      %v8518 = vadd.f32 %v8025, %v8517
      %v8519 = vpop.f32.mrb[0].mxu0
      %v8520 = vpop.f32.mrb[0].mxu0
      %v8521 = vadd.f32 %v8025, %v8520
      %v8522 = vpop.f32.mrb[0].mxu0
      %8523 = vmatprep.mubr.bf16.mxu0 %v7769
      %8524 = vmatmul.mubr.bf16.gmra.mrb[0].mxu0 %v7768
      %v8525 = vpop.f32.mrb[0].mxu0
      %v8526 = vadd.f32 %v8025, %v8525
      %v8527 = vpop.f32.mrb[0].mxu0
      %v8528 = vpop.f32.mrb[0].mxu0
      %v8529 = vadd.f32 %v8025, %v8528
      %v8530 = vpop.f32.mrb[0].mxu0
      %8531 = vmatprep.mubr.bf16.mxu0 %v7778
      %8532 = vmatmul.mubr.bf16.gmra.mrb[0].mxu0 %v7777
      %v8533 = vpop.f32.mrb[0].mxu0
      %v8534 = vadd.f32 %v8025, %v8533
      %v8535 = vpop.f32.mrb[0].mxu0
      %v8536 = vpop.f32.mrb[0].mxu0
      %v8537 = vadd.f32 %v8025, %v8536
      %v8538 = vpop.f32.mrb[0].mxu0
      %8539 = vmatprep.mubr.bf16.mxu0 %v7787
      %8540 = vmatmul.mubr.bf16.gmra.mrb[0].mxu0 %v7786
      %v8541 = vpop.f32.mrb[0].mxu0
      %v8542 = vadd.f32 %v8025, %v8541
      %v8543 = vpop.f32.mrb[0].mxu0
      %v8544 = vpop.f32.mrb[0].mxu0
      %v8545 = vadd.f32 %v8025, %v8544
      %v8546 = vpop.f32.mrb[0].mxu0
      %8547 = vmatprep.mubr.bf16.mxu0 %v7796
      %8548 = vmatmul.mubr.bf16.gmra.mrb[0].mxu0 %v7795
      %v8549 = vpop.f32.mrb[0].mxu0
      %v8550 = vadd.f32 %v8025, %v8549
      %v8551 = vpop.f32.mrb[0].mxu0
      %v8552 = vpop.f32.mrb[0].mxu0
      %v8553 = vadd.f32 %v8025, %v8552
      %v8554 = vpop.f32.mrb[0].mxu0
      %8555 = vmatprep.mubr.bf16.mxu0 %v7805
      %8556 = vmatmul.mubr.bf16.gmra.mrb[0].mxu0 %v7804
      %v8557 = vpop.f32.mrb[0].mxu0
      %v8558 = vadd.f32 %v8025, %v8557
      %v8559 = vpop.f32.mrb[0].mxu0
      %v8560 = vpop.f32.mrb[0].mxu0
      %v8561 = vadd.f32 %v8025, %v8560
      %v8562 = vpop.f32.mrb[0].mxu0
      %8563 = vmatprep.mubr.bf16.mxu0 %v7814
      %8564 = vmatmul.mubr.bf16.gmra.mrb[0].mxu0 %v7813
      %v8565 = vpop.f32.mrb[0].mxu0
      %v8566 = vadd.f32 %v8025, %v8565
      %v8567 = vpop.f32.mrb[0].mxu0
      %v8568 = vpop.f32.mrb[0].mxu0
      %v8569 = vadd.f32 %v8025, %v8568
      %v8570 = vpop.f32.mrb[0].mxu0
      %8571 = vmatprep.mubr.bf16.mxu0 %v7823
      %8572 = vmatmul.mubr.bf16.gmra.mrb[0].mxu0 %v7822
      %v8573 = vpop.f32.mrb[0].mxu0
      %v8574 = vadd.f32 %v8025, %v8573
      %v8575 = vpop.f32.mrb[0].mxu0
      %v8576 = vpop.f32.mrb[0].mxu0
      %v8577 = vadd.f32 %v8025, %v8576
      %v8578 = vpop.f32.mrb[0].mxu0
      %8579 = vmatprep.mubr.bf16.mxu0 %v7832
      %8580 = vmatmul.mubr.bf16.gmra.mrb[0].mxu0 %v7831
      %v8581 = vpop.f32.mrb[0].mxu0
      %v8582 = vadd.f32 %v8025, %v8581
      %v8583 = vpop.f32.mrb[0].mxu0
      %v8584 = vpop.f32.mrb[0].mxu0
      %v8585 = vadd.f32 %v8025, %v8584
      %v8586 = vpop.f32.mrb[0].mxu0
      %8587 = vmatprep.mubr.bf16.mxu0 %v7841
      %8588 = vmatmul.mubr.bf16.gmra.mrb[0].mxu0 %v7840
      %v8589 = vpop.f32.mrb[0].mxu0
      %v8590 = vadd.f32 %v8025, %v8589
      %v8591 = vpop.f32.mrb[0].mxu0
      %v8592 = vpop.f32.mrb[0].mxu0
      %v8593 = vadd.f32 %v8025, %v8592
      %v8594 = vpop.f32.mrb[0].mxu0
      %8595 = vmatprep.mubr.bf16.mxu0 %v7850
      %8596 = vmatmul.mubr.bf16.gmra.mrb[0].mxu0 %v7849
      %v8597 = vpop.f32.mrb[0].mxu0
      %v8598 = vadd.f32 %v8025, %v8597
      %v8599 = vpop.f32.mrb[0].mxu0
      %v8600 = vpop.f32.mrb[0].mxu0
      %v8601 = vadd.f32 %v8025, %v8600
      %v8602 = vpop.f32.mrb[0].mxu0
      %8603 = vmatprep.mubr.bf16.mxu0 %v7859
      %8604 = vmatmul.mubr.bf16.gmra.mrb[0].mxu0 %v7858
      %v8605 = vpop.f32.mrb[0].mxu0
      %v8606 = vadd.f32 %v8025, %v8605
      %v8607 = vpop.f32.mrb[0].mxu0
      %v8608 = vpop.f32.mrb[0].mxu0
      %v8609 = vadd.f32 %v8025, %v8608
      %v8610 = vpop.f32.mrb[0].mxu0
      %8611 = vmatprep.mubr.bf16.mxu0 %v7868
      %8612 = vmatmul.mubr.bf16.gmra.mrb[0].mxu0 %v7867
      %v8613 = vpop.f32.mrb[0].mxu0
      %v8614 = vadd.f32 %v8025, %v8613
      %v8615 = vpop.f32.mrb[0].mxu0
      %v8616 = vpop.f32.mrb[0].mxu0
      %v8617 = vadd.f32 %v8025, %v8616
      %v8618 = vpop.f32.mrb[0].mxu0
      %8619 = vdwg.mxu0
      %8620 = vmatprep.subr.bf16.mxu0 0
      %8621 = vmatpush1.bf16.msra.mxu0 %v8331
      %8622 = vmatprep.subr.bf16.mxu0 0
      %8623 = vmatpush1.bf16.msra.mxu0 %v8332
      %8624 = vmatprep.subr.bf16.mxu0 0
      %8625 = vmatpush1.bf16.msra.mxu0 %v8333
      %8626 = vmatprep.subr.bf16.mxu0 0
      %8627 = vmatpush1.bf16.msra.mxu0 %v8334
      %8628 = vmatprep.subr.bf16.mxu0 0
      %8629 = vmatpush1.bf16.msra.mxu0 %v8335
      %8630 = vmatprep.subr.bf16.mxu0 0
      %8631 = vmatpush1.bf16.msra.mxu0 %v8336
      %8632 = vmatprep.subr.bf16.mxu0 0
      %8633 = vmatpush1.bf16.msra.mxu0 %v8337
      %8634 = vmatprep.subr.bf16.mxu0 0
      %8635 = vmatpush1.bf16.msra.mxu0 %v8338
      %8636 = vmatprep.subr.bf16.mxu0 0
      %8637 = vmatpush1.bf16.msra.mxu0 %v8339
      %8638 = vmatprep.subr.bf16.mxu0 0
      %8639 = vmatpush1.bf16.msra.mxu0 %v8340
      %8640 = vmatprep.subr.bf16.mxu0 0
      %8641 = vmatpush1.bf16.msra.mxu0 %v8341
      %8642 = vmatprep.subr.bf16.mxu0 0
      %8643 = vmatpush1.bf16.msra.mxu0 %v8342
      %8644 = vmatprep.subr.bf16.mxu0 0
      %8645 = vmatpush1.bf16.msra.mxu0 %v8343
      %8646 = vmatprep.subr.bf16.mxu0 0
      %8647 = vmatpush1.bf16.msra.mxu0 %v8344
      %8648 = vmatprep.subr.bf16.mxu0 0
      %8649 = vmatpush1.bf16.msra.mxu0 %v8345
      %8650 = vmatprep.subr.bf16.mxu0 0
      %8651 = vmatpush1.bf16.msra.mxu0 %v8346
      %8652 = vmatprep.mubr.bf16.mxu0 %v7735
      %8653 = vmatmul.mubr.bf16.gmra.mrb[0].mxu0 %v7734
      %v8654 = vpop.f32.mrb[0].mxu0
      %v8655 = vadd.f32 %v8494, %v8654
      %v8656 = vpop.f32.mrb[0].mxu0
      %v8657 = vpop.f32.mrb[0].mxu0
      %v8658 = vadd.f32 %v8497, %v8657
      %v8659 = vpop.f32.mrb[0].mxu0
      %8660 = vmatprep.mubr.bf16.mxu0 %v7744
      %8661 = vmatmul.mubr.bf16.gmra.mrb[0].mxu0 %v7743
      %v8662 = vpop.f32.mrb[0].mxu0
      %v8663 = vadd.f32 %v8502, %v8662
      %v8664 = vpop.f32.mrb[0].mxu0
      %v8665 = vpop.f32.mrb[0].mxu0
      %v8666 = vadd.f32 %v8505, %v8665
      %v8667 = vpop.f32.mrb[0].mxu0
      %8668 = vmatprep.mubr.bf16.mxu0 %v7753
      %8669 = vmatmul.mubr.bf16.gmra.mrb[0].mxu0 %v7752
      %v8670 = vpop.f32.mrb[0].mxu0
      %v8671 = vadd.f32 %v8510, %v8670
      %v8672 = vpop.f32.mrb[0].mxu0
      %v8673 = vpop.f32.mrb[0].mxu0
      %v8674 = vadd.f32 %v8513, %v8673
      %v8675 = vpop.f32.mrb[0].mxu0
      %8676 = vmatprep.mubr.bf16.mxu0 %v7762
      %8677 = vmatmul.mubr.bf16.gmra.mrb[0].mxu0 %v7761
      %v8678 = vpop.f32.mrb[0].mxu0
      %v8679 = vadd.f32 %v8518, %v8678
      %v8680 = vpop.f32.mrb[0].mxu0
      %v8681 = vpop.f32.mrb[0].mxu0
      %v8682 = vadd.f32 %v8521, %v8681
      %v8683 = vpop.f32.mrb[0].mxu0
      %8684 = vmatprep.mubr.bf16.mxu0 %v7771
      %8685 = vmatmul.mubr.bf16.gmra.mrb[0].mxu0 %v7770
      %v8686 = vpop.f32.mrb[0].mxu0
      %v8687 = vadd.f32 %v8526, %v8686
      %v8688 = vpop.f32.mrb[0].mxu0
      %v8689 = vpop.f32.mrb[0].mxu0
      %v8690 = vadd.f32 %v8529, %v8689
      %v8691 = vpop.f32.mrb[0].mxu0
      %8692 = vmatprep.mubr.bf16.mxu0 %v7780
      %8693 = vmatmul.mubr.bf16.gmra.mrb[0].mxu0 %v7779
      %v8694 = vpop.f32.mrb[0].mxu0
      %v8695 = vadd.f32 %v8534, %v8694
      %v8696 = vpop.f32.mrb[0].mxu0
      %v8697 = vpop.f32.mrb[0].mxu0
      %v8698 = vadd.f32 %v8537, %v8697
      %v8699 = vpop.f32.mrb[0].mxu0
      %8700 = vmatprep.mubr.bf16.mxu0 %v7789
      %8701 = vmatmul.mubr.bf16.gmra.mrb[0].mxu0 %v7788
      %v8702 = vpop.f32.mrb[0].mxu0
      %v8703 = vadd.f32 %v8542, %v8702
      %v8704 = vpop.f32.mrb[0].mxu0
      %v8705 = vpop.f32.mrb[0].mxu0
      %v8706 = vadd.f32 %v8545, %v8705
      %v8707 = vpop.f32.mrb[0].mxu0
      %8708 = vmatprep.mubr.bf16.mxu0 %v7798
      %8709 = vmatmul.mubr.bf16.gmra.mrb[0].mxu0 %v7797
      %v8710 = vpop.f32.mrb[0].mxu0
      %v8711 = vadd.f32 %v8550, %v8710
      %v8712 = vpop.f32.mrb[0].mxu0
      %v8713 = vpop.f32.mrb[0].mxu0
      %v8714 = vadd.f32 %v8553, %v8713
      %v8715 = vpop.f32.mrb[0].mxu0
      %8716 = vmatprep.mubr.bf16.mxu0 %v7807
      %8717 = vmatmul.mubr.bf16.gmra.mrb[0].mxu0 %v7806
      %v8718 = vpop.f32.mrb[0].mxu0
      %v8719 = vadd.f32 %v8558, %v8718
      %v8720 = vpop.f32.mrb[0].mxu0
      %v8721 = vpop.f32.mrb[0].mxu0
      %v8722 = vadd.f32 %v8561, %v8721
      %v8723 = vpop.f32.mrb[0].mxu0
      %8724 = vmatprep.mubr.bf16.mxu0 %v7816
      %8725 = vmatmul.mubr.bf16.gmra.mrb[0].mxu0 %v7815
      %v8726 = vpop.f32.mrb[0].mxu0
      %v8727 = vadd.f32 %v8566, %v8726
      %v8728 = vpop.f32.mrb[0].mxu0
      %v8729 = vpop.f32.mrb[0].mxu0
      %v8730 = vadd.f32 %v8569, %v8729
      %v8731 = vpop.f32.mrb[0].mxu0
      %8732 = vmatprep.mubr.bf16.mxu0 %v7825
      %8733 = vmatmul.mubr.bf16.gmra.mrb[0].mxu0 %v7824
      %v8734 = vpop.f32.mrb[0].mxu0
      %v8735 = vadd.f32 %v8574, %v8734
      %v8736 = vpop.f32.mrb[0].mxu0
      %v8737 = vpop.f32.mrb[0].mxu0
      %v8738 = vadd.f32 %v8577, %v8737
      %v8739 = vpop.f32.mrb[0].mxu0
      %8740 = vmatprep.mubr.bf16.mxu0 %v7834
      %8741 = vmatmul.mubr.bf16.gmra.mrb[0].mxu0 %v7833
      %v8742 = vpop.f32.mrb[0].mxu0
      %v8743 = vadd.f32 %v8582, %v8742
      %v8744 = vpop.f32.mrb[0].mxu0
      %v8745 = vpop.f32.mrb[0].mxu0
      %v8746 = vadd.f32 %v8585, %v8745
      %v8747 = vpop.f32.mrb[0].mxu0
      %8748 = vmatprep.mubr.bf16.mxu0 %v7843
      %8749 = vmatmul.mubr.bf16.gmra.mrb[0].mxu0 %v7842
      %v8750 = vpop.f32.mrb[0].mxu0
      %v8751 = vadd.f32 %v8590, %v8750
      %v8752 = vpop.f32.mrb[0].mxu0
      %v8753 = vpop.f32.mrb[0].mxu0
      %v8754 = vadd.f32 %v8593, %v8753
      %v8755 = vpop.f32.mrb[0].mxu0
      %8756 = vmatprep.mubr.bf16.mxu0 %v7852
      %8757 = vmatmul.mubr.bf16.gmra.mrb[0].mxu0 %v7851
      %v8758 = vpop.f32.mrb[0].mxu0
      %v8759 = vadd.f32 %v8598, %v8758
      %v8760 = vpop.f32.mrb[0].mxu0
      %v8761 = vpop.f32.mrb[0].mxu0
      %v8762 = vadd.f32 %v8601, %v8761
      %v8763 = vpop.f32.mrb[0].mxu0
      %8764 = vmatprep.mubr.bf16.mxu0 %v7861
      %8765 = vmatmul.mubr.bf16.gmra.mrb[0].mxu0 %v7860
      %v8766 = vpop.f32.mrb[0].mxu0
      %v8767 = vadd.f32 %v8606, %v8766
      %v8768 = vpop.f32.mrb[0].mxu0
      %v8769 = vpop.f32.mrb[0].mxu0
      %v8770 = vadd.f32 %v8609, %v8769
      %v8771 = vpop.f32.mrb[0].mxu0
      %8772 = vmatprep.mubr.bf16.mxu0 %v7870
      %8773 = vmatmul.mubr.bf16.gmra.mrb[0].mxu0 %v7869
      %v8774 = vpop.f32.mrb[0].mxu0
      %v8775 = vadd.f32 %v8614, %v8774
      %v8776 = vpop.f32.mrb[0].mxu0
      %v8777 = vpop.f32.mrb[0].mxu0
      %v8778 = vadd.f32 %v8617, %v8777
      %v8779 = vpop.f32.mrb[0].mxu0
      %8780 = vdwg.mxu0
      %8781 = vmatprep.subr.bf16.mxu0 0
      %8782 = vmatpush1.bf16.msra.mxu0 %v8347
      %8783 = vmatprep.subr.bf16.mxu0 0
      %8784 = vmatpush1.bf16.msra.mxu0 %v8348
      %8785 = vmatprep.subr.bf16.mxu0 0
      %8786 = vmatpush1.bf16.msra.mxu0 %v8349
      %8787 = vmatprep.subr.bf16.mxu0 0
      %8788 = vmatpush1.bf16.msra.mxu0 %v8350
      %8789 = vmatprep.subr.bf16.mxu0 0
      %8790 = vmatpush1.bf16.msra.mxu0 %v8351
      %8791 = vmatprep.subr.bf16.mxu0 0
      %8792 = vmatpush1.bf16.msra.mxu0 %v8352
      %8793 = vmatprep.subr.bf16.mxu0 0
      %8794 = vmatpush1.bf16.msra.mxu0 %v8353
      %8795 = vmatprep.subr.bf16.mxu0 0
      %8796 = vmatpush1.bf16.msra.mxu0 %v8354
      %8797 = vmatprep.subr.bf16.mxu0 0
      %8798 = vmatpush1.bf16.msra.mxu0 %v8355
      %8799 = vmatprep.subr.bf16.mxu0 0
      %8800 = vmatpush1.bf16.msra.mxu0 %v8356
      %8801 = vmatprep.subr.bf16.mxu0 0
      %8802 = vmatpush1.bf16.msra.mxu0 %v8357
      %8803 = vmatprep.subr.bf16.mxu0 0
      %8804 = vmatpush1.bf16.msra.mxu0 %v8358
      %8805 = vmatprep.subr.bf16.mxu0 0
      %8806 = vmatpush1.bf16.msra.mxu0 %v8359
      %8807 = vmatprep.subr.bf16.mxu0 0
      %8808 = vmatpush1.bf16.msra.mxu0 %v8360
      %8809 = vmatprep.subr.bf16.mxu0 0
      %8810 = vmatpush1.bf16.msra.mxu0 %v8361
      %8811 = vmatprep.subr.bf16.mxu0 0
      %8812 = vmatpush1.bf16.msra.mxu0 %v8362
      %8813 = vmatprep.mubr.bf16.mxu0 %v7737
      %8814 = vmatmul.mubr.bf16.gmra.mrb[0].mxu0 %v7736
      %v8815 = vpop.f32.mrb[0].mxu0
      %v8816 = vadd.f32 %v8655, %v8815
      %v8817 = vpop.f32.mrb[0].mxu0
      %v8818 = vpop.f32.mrb[0].mxu0
      %v8819 = vadd.f32 %v8658, %v8818
      %v8820 = vpop.f32.mrb[0].mxu0
      %8821 = vmatprep.mubr.bf16.mxu0 %v7746
      %8822 = vmatmul.mubr.bf16.gmra.mrb[0].mxu0 %v7745
      %v8823 = vpop.f32.mrb[0].mxu0
      %v8824 = vadd.f32 %v8663, %v8823
      %v8825 = vpop.f32.mrb[0].mxu0
      %v8826 = vpop.f32.mrb[0].mxu0
      %v8827 = vadd.f32 %v8666, %v8826
      %v8828 = vpop.f32.mrb[0].mxu0
      %8829 = vmatprep.mubr.bf16.mxu0 %v7755
      %8830 = vmatmul.mubr.bf16.gmra.mrb[0].mxu0 %v7754
      %v8831 = vpop.f32.mrb[0].mxu0
      %v8832 = vadd.f32 %v8671, %v8831
      %v8833 = vpop.f32.mrb[0].mxu0
      %v8834 = vpop.f32.mrb[0].mxu0
      %v8835 = vadd.f32 %v8674, %v8834
      %v8836 = vpop.f32.mrb[0].mxu0
      %8837 = vmatprep.mubr.bf16.mxu0 %v7764
      %8838 = vmatmul.mubr.bf16.gmra.mrb[0].mxu0 %v7763
      %v8839 = vpop.f32.mrb[0].mxu0
      %v8840 = vadd.f32 %v8679, %v8839
      %v8841 = vpop.f32.mrb[0].mxu0
      %v8842 = vpop.f32.mrb[0].mxu0
      %v8843 = vadd.f32 %v8682, %v8842
      %v8844 = vpop.f32.mrb[0].mxu0
      %8845 = vmatprep.mubr.bf16.mxu0 %v7773
      %8846 = vmatmul.mubr.bf16.gmra.mrb[0].mxu0 %v7772
      %v8847 = vpop.f32.mrb[0].mxu0
      %v8848 = vadd.f32 %v8687, %v8847
      %v8849 = vpop.f32.mrb[0].mxu0
      %v8850 = vpop.f32.mrb[0].mxu0
      %v8851 = vadd.f32 %v8690, %v8850
      %v8852 = vpop.f32.mrb[0].mxu0
      %8853 = vmatprep.mubr.bf16.mxu0 %v7782
      %8854 = vmatmul.mubr.bf16.gmra.mrb[0].mxu0 %v7781
      %v8855 = vpop.f32.mrb[0].mxu0
      %v8856 = vadd.f32 %v8695, %v8855
      %v8857 = vpop.f32.mrb[0].mxu0
      %v8858 = vpop.f32.mrb[0].mxu0
      %v8859 = vadd.f32 %v8698, %v8858
      %v8860 = vpop.f32.mrb[0].mxu0
      %8861 = vmatprep.mubr.bf16.mxu0 %v7791
      %8862 = vmatmul.mubr.bf16.gmra.mrb[0].mxu0 %v7790
      %v8863 = vpop.f32.mrb[0].mxu0
      %v8864 = vadd.f32 %v8703, %v8863
      %v8865 = vpop.f32.mrb[0].mxu0
      %v8866 = vpop.f32.mrb[0].mxu0
      %v8867 = vadd.f32 %v8706, %v8866
      %v8868 = vpop.f32.mrb[0].mxu0
      %8869 = vmatprep.mubr.bf16.mxu0 %v7800
      %8870 = vmatmul.mubr.bf16.gmra.mrb[0].mxu0 %v7799
      %v8871 = vpop.f32.mrb[0].mxu0
      %v8872 = vadd.f32 %v8711, %v8871
      %v8873 = vpop.f32.mrb[0].mxu0
      %v8874 = vpop.f32.mrb[0].mxu0
      %v8875 = vadd.f32 %v8714, %v8874
      %v8876 = vpop.f32.mrb[0].mxu0
      %8877 = vmatprep.mubr.bf16.mxu0 %v7809
      %8878 = vmatmul.mubr.bf16.gmra.mrb[0].mxu0 %v7808
      %v8879 = vpop.f32.mrb[0].mxu0
      %v8880 = vadd.f32 %v8719, %v8879
      %v8881 = vpop.f32.mrb[0].mxu0
      %v8882 = vpop.f32.mrb[0].mxu0
      %v8883 = vadd.f32 %v8722, %v8882
      %v8884 = vpop.f32.mrb[0].mxu0
      %8885 = vmatprep.mubr.bf16.mxu0 %v7818
      %8886 = vmatmul.mubr.bf16.gmra.mrb[0].mxu0 %v7817
      %v8887 = vpop.f32.mrb[0].mxu0
      %v8888 = vadd.f32 %v8727, %v8887
      %v8889 = vpop.f32.mrb[0].mxu0
      %v8890 = vpop.f32.mrb[0].mxu0
      %v8891 = vadd.f32 %v8730, %v8890
      %v8892 = vpop.f32.mrb[0].mxu0
      %8893 = vmatprep.mubr.bf16.mxu0 %v7827
      %8894 = vmatmul.mubr.bf16.gmra.mrb[0].mxu0 %v7826
      %v8895 = vpop.f32.mrb[0].mxu0
      %v8896 = vadd.f32 %v8735, %v8895
      %v8897 = vpop.f32.mrb[0].mxu0
      %v8898 = vpop.f32.mrb[0].mxu0
      %v8899 = vadd.f32 %v8738, %v8898
      %v8900 = vpop.f32.mrb[0].mxu0
      %8901 = vmatprep.mubr.bf16.mxu0 %v7836
      %8902 = vmatmul.mubr.bf16.gmra.mrb[0].mxu0 %v7835
      %v8903 = vpop.f32.mrb[0].mxu0
      %v8904 = vadd.f32 %v8743, %v8903
      %v8905 = vpop.f32.mrb[0].mxu0
      %v8906 = vpop.f32.mrb[0].mxu0
      %v8907 = vadd.f32 %v8746, %v8906
      %v8908 = vpop.f32.mrb[0].mxu0
      %8909 = vmatprep.mubr.bf16.mxu0 %v7845
      %8910 = vmatmul.mubr.bf16.gmra.mrb[0].mxu0 %v7844
      %v8911 = vpop.f32.mrb[0].mxu0
      %v8912 = vadd.f32 %v8751, %v8911
      %v8913 = vpop.f32.mrb[0].mxu0
      %v8914 = vpop.f32.mrb[0].mxu0
      %v8915 = vadd.f32 %v8754, %v8914
      %v8916 = vpop.f32.mrb[0].mxu0
      %8917 = vmatprep.mubr.bf16.mxu0 %v7854
      %8918 = vmatmul.mubr.bf16.gmra.mrb[0].mxu0 %v7853
      %v8919 = vpop.f32.mrb[0].mxu0
      %v8920 = vadd.f32 %v8759, %v8919
      %v8921 = vpop.f32.mrb[0].mxu0
      %v8922 = vpop.f32.mrb[0].mxu0
      %v8923 = vadd.f32 %v8762, %v8922
      %v8924 = vpop.f32.mrb[0].mxu0
      %8925 = vmatprep.mubr.bf16.mxu0 %v7863
      %8926 = vmatmul.mubr.bf16.gmra.mrb[0].mxu0 %v7862
      %v8927 = vpop.f32.mrb[0].mxu0
      %v8928 = vadd.f32 %v8767, %v8927
      %v8929 = vpop.f32.mrb[0].mxu0
      %v8930 = vpop.f32.mrb[0].mxu0
      %v8931 = vadd.f32 %v8770, %v8930
      %v8932 = vpop.f32.mrb[0].mxu0
      %8933 = vmatprep.mubr.bf16.mxu0 %v7872
      %8934 = vmatmul.mubr.bf16.gmra.mrb[0].mxu0 %v7871
      %v8935 = vpop.f32.mrb[0].mxu0
      %v8936 = vadd.f32 %v8775, %v8935
      %v8937 = vpop.f32.mrb[0].mxu0
      %v8938 = vpop.f32.mrb[0].mxu0
      %v8939 = vadd.f32 %v8778, %v8938
      %v8940 = vpop.f32.mrb[0].mxu0
      %8941 = vdwg.mxu0
      %8942 = vmatprep.subr.bf16.mxu0 0
      %8943 = vmatpush1.bf16.msra.mxu0 %v8363
      %8944 = vmatprep.subr.bf16.mxu0 0
      %8945 = vmatpush1.bf16.msra.mxu0 %v8364
      %8946 = vmatprep.subr.bf16.mxu0 0
      %8947 = vmatpush1.bf16.msra.mxu0 %v8365
      %8948 = vmatprep.subr.bf16.mxu0 0
      %8949 = vmatpush1.bf16.msra.mxu0 %v8366
      %8950 = vmatprep.subr.bf16.mxu0 0
      %8951 = vmatpush1.bf16.msra.mxu0 %v8367
      %8952 = vmatprep.subr.bf16.mxu0 0
      %8953 = vmatpush1.bf16.msra.mxu0 %v8368
      %8954 = vmatprep.subr.bf16.mxu0 0
      %8955 = vmatpush1.bf16.msra.mxu0 %v8369
      %8956 = vmatprep.subr.bf16.mxu0 0
      %8957 = vmatpush1.bf16.msra.mxu0 %v8370
      %8958 = vmatprep.subr.bf16.mxu0 0
      %8959 = vmatpush1.bf16.msra.mxu0 %v8371
      %8960 = vmatprep.subr.bf16.mxu0 0
      %8961 = vmatpush1.bf16.msra.mxu0 %v8372
      %8962 = vmatprep.subr.bf16.mxu0 0
      %8963 = vmatpush1.bf16.msra.mxu0 %v8373
      %8964 = vmatprep.subr.bf16.mxu0 0
      %8965 = vmatpush1.bf16.msra.mxu0 %v8374
      %8966 = vmatprep.subr.bf16.mxu0 0
      %8967 = vmatpush1.bf16.msra.mxu0 %v8375
      %8968 = vmatprep.subr.bf16.mxu0 0
      %8969 = vmatpush1.bf16.msra.mxu0 %v8376
      %8970 = vmatprep.subr.bf16.mxu0 0
      %8971 = vmatpush1.bf16.msra.mxu0 %v8377
      %8972 = vmatprep.subr.bf16.mxu0 0
      %8973 = vmatpush1.bf16.msra.mxu0 %v8378
      %8974 = vmatprep.mubr.bf16.mxu0 %v7739
      %8975 = vmatmul.mubr.bf16.gmra.mrb[0].mxu0 %v7738
      %v8976 = vpop.f32.mrb[0].mxu0
      %v8977 = vadd.f32 %v8816, %v8976
      %v8978 = vpop.f32.mrb[0].mxu0
      %v8979 = vpop.f32.mrb[0].mxu0
      %v8980 = vadd.f32 %v8819, %v8979
      %v8981 = vpop.f32.mrb[0].mxu0
      %8982 = vmatprep.mubr.bf16.mxu0 %v7748
      %8983 = vmatmul.mubr.bf16.gmra.mrb[0].mxu0 %v7747
      %v8984 = vpop.f32.mrb[0].mxu0
      %v8985 = vadd.f32 %v8824, %v8984
      %v8986 = vpop.f32.mrb[0].mxu0
      %v8987 = vpop.f32.mrb[0].mxu0
      %v8988 = vadd.f32 %v8827, %v8987
      %v8989 = vpop.f32.mrb[0].mxu0
      %8990 = vmatprep.mubr.bf16.mxu0 %v7757
      %8991 = vmatmul.mubr.bf16.gmra.mrb[0].mxu0 %v7756
      %v8992 = vpop.f32.mrb[0].mxu0
      %v8993 = vadd.f32 %v8832, %v8992
      %v8994 = vpop.f32.mrb[0].mxu0
      %v8995 = vpop.f32.mrb[0].mxu0
      %v8996 = vadd.f32 %v8835, %v8995
      %v8997 = vpop.f32.mrb[0].mxu0
      %8998 = vmatprep.mubr.bf16.mxu0 %v7766
      %8999 = vmatmul.mubr.bf16.gmra.mrb[0].mxu0 %v7765
      %v9000 = vpop.f32.mrb[0].mxu0
      %v9001 = vadd.f32 %v8840, %v9000
      %v9002 = vpop.f32.mrb[0].mxu0
      %v9003 = vpop.f32.mrb[0].mxu0
      %v9004 = vadd.f32 %v8843, %v9003
      %v9005 = vpop.f32.mrb[0].mxu0
      %9006 = vmatprep.mubr.bf16.mxu0 %v7775
      %9007 = vmatmul.mubr.bf16.gmra.mrb[0].mxu0 %v7774
      %v9008 = vpop.f32.mrb[0].mxu0
      %v9009 = vadd.f32 %v8848, %v9008
      %v9010 = vpop.f32.mrb[0].mxu0
      %v9011 = vpop.f32.mrb[0].mxu0
      %v9012 = vadd.f32 %v8851, %v9011
      %v9013 = vpop.f32.mrb[0].mxu0
      %9014 = vmatprep.mubr.bf16.mxu0 %v7784
      %9015 = vmatmul.mubr.bf16.gmra.mrb[0].mxu0 %v7783
      %v9016 = vpop.f32.mrb[0].mxu0
      %v9017 = vadd.f32 %v8856, %v9016
      %v9018 = vpop.f32.mrb[0].mxu0
      %v9019 = vpop.f32.mrb[0].mxu0
      %v9020 = vadd.f32 %v8859, %v9019
      %v9021 = vpop.f32.mrb[0].mxu0
      %9022 = vmatprep.mubr.bf16.mxu0 %v7793
      %9023 = vmatmul.mubr.bf16.gmra.mrb[0].mxu0 %v7792
      %v9024 = vpop.f32.mrb[0].mxu0
      %v9025 = vadd.f32 %v8864, %v9024
      %v9026 = vpop.f32.mrb[0].mxu0
      %v9027 = vpop.f32.mrb[0].mxu0
      %v9028 = vadd.f32 %v8867, %v9027
      %v9029 = vpop.f32.mrb[0].mxu0
      %9030 = vmatprep.mubr.bf16.mxu0 %v7802
      %9031 = vmatmul.mubr.bf16.gmra.mrb[0].mxu0 %v7801
      %v9032 = vpop.f32.mrb[0].mxu0
      %v9033 = vadd.f32 %v8872, %v9032
      %v9034 = vpop.f32.mrb[0].mxu0
      %v9035 = vpop.f32.mrb[0].mxu0
      %v9036 = vadd.f32 %v8875, %v9035
      %v9037 = vpop.f32.mrb[0].mxu0
      %9038 = vmatprep.mubr.bf16.mxu0 %v7811
      %9039 = vmatmul.mubr.bf16.gmra.mrb[0].mxu0 %v7810
      %v9040 = vpop.f32.mrb[0].mxu0
      %v9041 = vadd.f32 %v8880, %v9040
      %v9042 = vpop.f32.mrb[0].mxu0
      %v9043 = vpop.f32.mrb[0].mxu0
      %v9044 = vadd.f32 %v8883, %v9043
      %v9045 = vpop.f32.mrb[0].mxu0
      %9046 = vmatprep.mubr.bf16.mxu0 %v7820
      %9047 = vmatmul.mubr.bf16.gmra.mrb[0].mxu0 %v7819
      %v9048 = vpop.f32.mrb[0].mxu0
      %v9049 = vadd.f32 %v8888, %v9048
      %v9050 = vpop.f32.mrb[0].mxu0
      %v9051 = vpop.f32.mrb[0].mxu0
      %v9052 = vadd.f32 %v8891, %v9051
      %v9053 = vpop.f32.mrb[0].mxu0
      %9054 = vmatprep.mubr.bf16.mxu0 %v7829
      %9055 = vmatmul.mubr.bf16.gmra.mrb[0].mxu0 %v7828
      %v9056 = vpop.f32.mrb[0].mxu0
      %v9057 = vadd.f32 %v8896, %v9056
      %v9058 = vpop.f32.mrb[0].mxu0
      %v9059 = vpop.f32.mrb[0].mxu0
      %v9060 = vadd.f32 %v8899, %v9059
      %v9061 = vpop.f32.mrb[0].mxu0
      %9062 = vmatprep.mubr.bf16.mxu0 %v7838
      %9063 = vmatmul.mubr.bf16.gmra.mrb[0].mxu0 %v7837
      %v9064 = vpop.f32.mrb[0].mxu0
      %v9065 = vadd.f32 %v8904, %v9064
      %v9066 = vpop.f32.mrb[0].mxu0
      %v9067 = vpop.f32.mrb[0].mxu0
      %v9068 = vadd.f32 %v8907, %v9067
      %v9069 = vpop.f32.mrb[0].mxu0
      %9070 = vmatprep.mubr.bf16.mxu0 %v7847
      %9071 = vmatmul.mubr.bf16.gmra.mrb[0].mxu0 %v7846
      %v9072 = vpop.f32.mrb[0].mxu0
      %v9073 = vadd.f32 %v8912, %v9072
      %v9074 = vpop.f32.mrb[0].mxu0
      %v9075 = vpop.f32.mrb[0].mxu0
      %v9076 = vadd.f32 %v8915, %v9075
      %v9077 = vpop.f32.mrb[0].mxu0
      %9078 = vmatprep.mubr.bf16.mxu0 %v7856
      %9079 = vmatmul.mubr.bf16.gmra.mrb[0].mxu0 %v7855
      %v9080 = vpop.f32.mrb[0].mxu0
      %v9081 = vadd.f32 %v8920, %v9080
      %v9082 = vpop.f32.mrb[0].mxu0
      %v9083 = vpop.f32.mrb[0].mxu0
      %v9084 = vadd.f32 %v8923, %v9083
      %v9085 = vpop.f32.mrb[0].mxu0
      %9086 = vmatprep.mubr.bf16.mxu0 %v7865
      %9087 = vmatmul.mubr.bf16.gmra.mrb[0].mxu0 %v7864
      %v9088 = vpop.f32.mrb[0].mxu0
      %v9089 = vadd.f32 %v8928, %v9088
      %v9090 = vpop.f32.mrb[0].mxu0
      %v9091 = vpop.f32.mrb[0].mxu0
      %v9092 = vadd.f32 %v8931, %v9091
      %v9093 = vpop.f32.mrb[0].mxu0
      %9094 = vmatprep.mubr.bf16.mxu0 %v7874
      %9095 = vmatmul.mubr.bf16.gmra.mrb[0].mxu0 %v7873
      %v9096 = vpop.f32.mrb[0].mxu0
      %v9097 = vadd.f32 %v8936, %v9096
      %v9098 = vpop.f32.mrb[0].mxu0
      %v9099 = vpop.f32.mrb[0].mxu0
      %v9100 = vadd.f32 %v8939, %v9099
      %v9101 = vpop.f32.mrb[0].mxu0
      %9102 = vdwg.mxu0
      %9103 = vmatprep.subr.bf16.mxu0 0
      %9104 = vmatpush1.bf16.msra.mxu0 %v8379
      %9105 = vmatprep.subr.bf16.mxu0 0
      %9106 = vmatpush1.bf16.msra.mxu0 %v8380
      %9107 = vmatprep.subr.bf16.mxu0 0
      %9108 = vmatpush1.bf16.msra.mxu0 %v8381
      %9109 = vmatprep.subr.bf16.mxu0 0
      %9110 = vmatpush1.bf16.msra.mxu0 %v8382
      %9111 = vmatprep.subr.bf16.mxu0 0
      %9112 = vmatpush1.bf16.msra.mxu0 %v8383
      %9113 = vmatprep.subr.bf16.mxu0 0
      %9114 = vmatpush1.bf16.msra.mxu0 %v8384
      %9115 = vmatprep.subr.bf16.mxu0 0
      %9116 = vmatpush1.bf16.msra.mxu0 %v8385
      %9117 = vmatprep.subr.bf16.mxu0 0
      %9118 = vmatpush1.bf16.msra.mxu0 %v8386
      %9119 = vmatprep.subr.bf16.mxu0 0
      %9120 = vmatpush1.bf16.msra.mxu0 0
      %9121 = vmatprep.subr.bf16.mxu0 0
      %9122 = vmatpush1.bf16.msra.mxu0 0
      %9123 = vmatprep.subr.bf16.mxu0 0
      %9124 = vmatpush1.bf16.msra.mxu0 0
      %9125 = vmatprep.subr.bf16.mxu0 0
      %9126 = vmatpush1.bf16.msra.mxu0 0
      %9127 = vmatprep.subr.bf16.mxu0 0
      %9128 = vmatpush1.bf16.msra.mxu0 0
      %9129 = vmatprep.subr.bf16.mxu0 0
      %9130 = vmatpush1.bf16.msra.mxu0 0
      %9131 = vmatprep.subr.bf16.mxu0 0
      %9132 = vmatpush1.bf16.msra.mxu0 0
      %9133 = vmatprep.subr.bf16.mxu0 0
      %9134 = vmatpush1.bf16.msra.mxu0 0
      %9135 = vmatprep.mubr.bf16.mxu0 0
      %9136 = vmatmul.mubr.bf16.gmra.mrb[0].mxu0 %v7740
      %v9137 = vpop.f32.mrb[0].mxu0
      %v9138 = vadd.f32 %v8977, %v9137
      %v9139 = vpop.f32.mrb[0].mxu0
      %v9140 = vpop.f32.mrb[0].mxu0
      %v9141 = vadd.f32 %v8980, %v9140
      %v9142 = vpop.f32.mrb[0].mxu0
      %9143 = vmatprep.mubr.bf16.mxu0 0
      %9144 = vmatmul.mubr.bf16.gmra.mrb[0].mxu0 %v7749
      %v9145 = vpop.f32.mrb[0].mxu0
      %v9146 = vadd.f32 %v8985, %v9145
      %v9147 = vpop.f32.mrb[0].mxu0
      %v9148 = vpop.f32.mrb[0].mxu0
      %v9149 = vadd.f32 %v8988, %v9148
      %v9150 = vpop.f32.mrb[0].mxu0
      %9151 = vmatprep.mubr.bf16.mxu0 0
      %9152 = vmatmul.mubr.bf16.gmra.mrb[0].mxu0 %v7758
      %v9153 = vpop.f32.mrb[0].mxu0
      %v9154 = vadd.f32 %v8993, %v9153
      %v9155 = vpop.f32.mrb[0].mxu0
      %v9156 = vpop.f32.mrb[0].mxu0
      %v9157 = vadd.f32 %v8996, %v9156
      %v9158 = vpop.f32.mrb[0].mxu0
      %9159 = vmatprep.mubr.bf16.mxu0 0
      %9160 = vmatmul.mubr.bf16.gmra.mrb[0].mxu0 %v7767
      %v9161 = vpop.f32.mrb[0].mxu0
      %v9162 = vadd.f32 %v9001, %v9161
      %v9163 = vpop.f32.mrb[0].mxu0
      %v9164 = vpop.f32.mrb[0].mxu0
      %v9165 = vadd.f32 %v9004, %v9164
      %v9166 = vpop.f32.mrb[0].mxu0
      %9167 = vmatprep.mubr.bf16.mxu0 0
      %9168 = vmatmul.mubr.bf16.gmra.mrb[0].mxu0 %v7776
      %v9169 = vpop.f32.mrb[0].mxu0
      %v9170 = vadd.f32 %v9009, %v9169
      %v9171 = vpop.f32.mrb[0].mxu0
      %v9172 = vpop.f32.mrb[0].mxu0
      %v9173 = vadd.f32 %v9012, %v9172
      %v9174 = vpop.f32.mrb[0].mxu0
      %9175 = vmatprep.mubr.bf16.mxu0 0
      %9176 = vmatmul.mubr.bf16.gmra.mrb[0].mxu0 %v7785
      %v9177 = vpop.f32.mrb[0].mxu0
      %v9178 = vadd.f32 %v9017, %v9177
      %v9179 = vpop.f32.mrb[0].mxu0
      %v9180 = vpop.f32.mrb[0].mxu0
      %v9181 = vadd.f32 %v9020, %v9180
      %v9182 = vpop.f32.mrb[0].mxu0
      %9183 = vmatprep.mubr.bf16.mxu0 0
      %9184 = vmatmul.mubr.bf16.gmra.mrb[0].mxu0 %v7794
      %v9185 = vpop.f32.mrb[0].mxu0
      %v9186 = vadd.f32 %v9025, %v9185
      %v9187 = vpop.f32.mrb[0].mxu0
      %v9188 = vpop.f32.mrb[0].mxu0
      %v9189 = vadd.f32 %v9028, %v9188
      %v9190 = vpop.f32.mrb[0].mxu0
      %9191 = vmatprep.mubr.bf16.mxu0 0
      %9192 = vmatmul.mubr.bf16.gmra.mrb[0].mxu0 %v7803
      %v9193 = vpop.f32.mrb[0].mxu0
      %v9194 = vadd.f32 %v9033, %v9193
      %v9195 = vpop.f32.mrb[0].mxu0
      %v9196 = vpop.f32.mrb[0].mxu0
      %v9197 = vadd.f32 %v9036, %v9196
      %v9198 = vpop.f32.mrb[0].mxu0
      %9199 = vmatprep.mubr.bf16.mxu0 0
      %9200 = vmatmul.mubr.bf16.gmra.mrb[0].mxu0 %v7812
      %v9201 = vpop.f32.mrb[0].mxu0
      %v9202 = vadd.f32 %v9041, %v9201
      %v9203 = vpop.f32.mrb[0].mxu0
      %v9204 = vpop.f32.mrb[0].mxu0
      %v9205 = vadd.f32 %v9044, %v9204
      %v9206 = vpop.f32.mrb[0].mxu0
      %9207 = vmatprep.mubr.bf16.mxu0 0
      %9208 = vmatmul.mubr.bf16.gmra.mrb[0].mxu0 %v7821
      %v9209 = vpop.f32.mrb[0].mxu0
      %v9210 = vadd.f32 %v9049, %v9209
      %v9211 = vpop.f32.mrb[0].mxu0
      %v9212 = vpop.f32.mrb[0].mxu0
      %v9213 = vadd.f32 %v9052, %v9212
      %v9214 = vpop.f32.mrb[0].mxu0
      %9215 = vmatprep.mubr.bf16.mxu0 0
      %9216 = vmatmul.mubr.bf16.gmra.mrb[0].mxu0 %v7830
      %v9217 = vpop.f32.mrb[0].mxu0
      %v9218 = vadd.f32 %v9057, %v9217
      %v9219 = vpop.f32.mrb[0].mxu0
      %v9220 = vpop.f32.mrb[0].mxu0
      %v9221 = vadd.f32 %v9060, %v9220
      %v9222 = vpop.f32.mrb[0].mxu0
      %9223 = vmatprep.mubr.bf16.mxu0 0
      %9224 = vmatmul.mubr.bf16.gmra.mrb[0].mxu0 %v7839
      %v9225 = vpop.f32.mrb[0].mxu0
      %v9226 = vadd.f32 %v9065, %v9225
      %v9227 = vpop.f32.mrb[0].mxu0
      %v9228 = vpop.f32.mrb[0].mxu0
      %v9229 = vadd.f32 %v9068, %v9228
      %v9230 = vpop.f32.mrb[0].mxu0
      %9231 = vmatprep.mubr.bf16.mxu0 0
      %9232 = vmatmul.mubr.bf16.gmra.mrb[0].mxu0 %v7848
      %v9233 = vpop.f32.mrb[0].mxu0
      %v9234 = vadd.f32 %v9073, %v9233
      %v9235 = vpop.f32.mrb[0].mxu0
      %v9236 = vpop.f32.mrb[0].mxu0
      %v9237 = vadd.f32 %v9076, %v9236
      %v9238 = vpop.f32.mrb[0].mxu0
      %9239 = vmatprep.mubr.bf16.mxu0 0
      %9240 = vmatmul.mubr.bf16.gmra.mrb[0].mxu0 %v7857
      %v9241 = vpop.f32.mrb[0].mxu0
      %v9242 = vadd.f32 %v9081, %v9241
      %v9243 = vpop.f32.mrb[0].mxu0
      %v9244 = vpop.f32.mrb[0].mxu0
      %v9245 = vadd.f32 %v9084, %v9244
      %v9246 = vpop.f32.mrb[0].mxu0
      %9247 = vmatprep.mubr.bf16.mxu0 0
      %9248 = vmatmul.mubr.bf16.gmra.mrb[0].mxu0 %v7866
      %v9249 = vpop.f32.mrb[0].mxu0
      %v9250 = vadd.f32 %v9089, %v9249
      %v9251 = vpop.f32.mrb[0].mxu0
      %v9252 = vpop.f32.mrb[0].mxu0
      %v9253 = vadd.f32 %v9092, %v9252
      %v9254 = vpop.f32.mrb[0].mxu0
      %9255 = vmatprep.mubr.bf16.mxu0 0
      %9256 = vmatmul.mubr.bf16.gmra.mrb[0].mxu0 %v7875
      %v9257 = vpop.f32.mrb[0].mxu0
      %v9258 = vadd.f32 %v9097, %v9257
      %v9259 = vpop.f32.mrb[0].mxu0
      %v9260 = vpop.f32.mrb[0].mxu0
      %v9261 = vadd.f32 %v9100, %v9260
      %v9262 = vpop.f32.mrb[0].mxu0
      %9263 = vdwg.mxu0
      %v9264 = vmax.f32 %v9138, 0.0
      %v9265 = vmax.f32 %v9141, 0.0
      %v9266 = vmax.f32 %v9146, 0.0
      %v9267 = vmax.f32 %v9149, 0.0
      %v9268 = vmax.f32 %v9154, 0.0
      %v9269 = vmax.f32 %v9157, 0.0
      %v9270 = vmax.f32 %v9162, 0.0
      %v9271 = vmax.f32 %v9165, 0.0
      %v9272 = vmax.f32 %v9170, 0.0
      %v9273 = vmax.f32 %v9173, 0.0
      %v9274 = vmax.f32 %v9178, 0.0
      %v9275 = vmax.f32 %v9181, 0.0
      %v9276 = vmax.f32 %v9186, 0.0
      %v9277 = vmax.f32 %v9189, 0.0
      %v9278 = vmax.f32 %v9194, 0.0
      %v9279 = vmax.f32 %v9197, 0.0
      %v9280 = vmax.f32 %v9202, 0.0
      %v9281 = vmax.f32 %v9205, 0.0
      %v9282 = vmax.f32 %v9210, 0.0
      %v9283 = vmax.f32 %v9213, 0.0
      %v9284 = vmax.f32 %v9218, 0.0
      %v9285 = vmax.f32 %v9221, 0.0
      %v9286 = vmax.f32 %v9226, 0.0
      %v9287 = vmax.f32 %v9229, 0.0
      %v9288 = vmax.f32 %v9234, 0.0
      %v9289 = vmax.f32 %v9237, 0.0
      %v9290 = vmax.f32 %v9242, 0.0
      %v9291 = vmax.f32 %v9245, 0.0
      %v9292 = vmax.f32 %v9250, 0.0
      %v9293 = vmax.f32 %v9253, 0.0
      %v9294 = vmax.f32 %v9258, 0.0
      %v9295 = vmax.f32 %v9261, 0.0
      %v9296 = vpack.c.bf16 %v9265, %v9264
      %v9297 = vpack.c.bf16 %v9267, %v9266
      %v9298 = vpack.c.bf16 %v9269, %v9268
      %v9299 = vpack.c.bf16 %v9271, %v9270
      %v9300 = vpack.c.bf16 %v9273, %v9272
      %v9301 = vpack.c.bf16 %v9275, %v9274
      %v9302 = vpack.c.bf16 %v9277, %v9276
      %v9303 = vpack.c.bf16 %v9279, %v9278
      %v9304 = vpack.c.bf16 %v9281, %v9280
      %v9305 = vpack.c.bf16 %v9283, %v9282
      %v9306 = vpack.c.bf16 %v9285, %v9284
      %v9307 = vpack.c.bf16 %v9287, %v9286
      %v9308 = vpack.c.bf16 %v9289, %v9288
      %v9309 = vpack.c.bf16 %v9291, %v9290
      %v9310 = vpack.c.bf16 %v9293, %v9292
      %v9311 = vpack.c.bf16 %v9295, %v9294
      %v9328 = vunpack.c.l.b16 %v9296
      %v9329 = vunpack.c.h.b16 %v9296
      %v9330 = vunpack.c.l.b16 %v9297
      %v9331 = vunpack.c.h.b16 %v9297
      %v9332 = vunpack.c.l.b16 %v9298
      %v9333 = vunpack.c.h.b16 %v9298
      %v9334 = vunpack.c.l.b16 %v9299
      %v9335 = vunpack.c.h.b16 %v9299
      %v9336 = vunpack.c.l.b16 %v9300
      %v9337 = vunpack.c.h.b16 %v9300
      %v9338 = vunpack.c.l.b16 %v9301
      %v9339 = vunpack.c.h.b16 %v9301
      %v9340 = vunpack.c.l.b16 %v9302
      %v9341 = vunpack.c.h.b16 %v9302
      %v9342 = vunpack.c.l.b16 %v9303
      %v9343 = vunpack.c.h.b16 %v9303
      %v9344 = vunpack.c.l.b16 %v9304
      %v9345 = vunpack.c.h.b16 %v9304
      %v9346 = vunpack.c.l.b16 %v9305
      %v9347 = vunpack.c.h.b16 %v9305
      %v9348 = vunpack.c.l.b16 %v9306
      %v9349 = vunpack.c.h.b16 %v9306
      %v9350 = vunpack.c.l.b16 %v9307
      %v9351 = vunpack.c.h.b16 %v9307
      %v9352 = vunpack.c.l.b16 %v9308
      %v9353 = vunpack.c.h.b16 %v9308
      %v9354 = vunpack.c.l.b16 %v9309
      %v9355 = vunpack.c.h.b16 %v9309
      %v9356 = vunpack.c.l.b16 %v9310
      %v9357 = vunpack.c.h.b16 %v9310
      %v9358 = vunpack.c.l.b16 %v9311
      %v9359 = vunpack.c.h.b16 %v9311
      %v9360 = vpack.c.b16 %v9328, %v9328
      %v9361 = vpack.c.b16 %v9329, %v9329
      %v9362 = vpack.c.b16 %v9330, %v9330
      %v9363 = vpack.c.b16 %v9331, %v9331
      %v9364 = vpack.c.b16 %v9332, %v9332
      %v9365 = vpack.c.b16 %v9333, %v9333
      %v9366 = vpack.c.b16 %v9334, %v9334
      %v9367 = vpack.c.b16 %v9335, %v9335
      %v9368 = vpack.c.b16 %v9336, %v9336
      %v9369 = vpack.c.b16 %v9337, %v9337
      %v9370 = vpack.c.b16 %v9338, %v9338
      %v9371 = vpack.c.b16 %v9339, %v9339
      %v9372 = vpack.c.b16 %v9340, %v9340
      %v9373 = vpack.c.b16 %v9341, %v9341
      %v9374 = vpack.c.b16 %v9342, %v9342
      %v9375 = vpack.c.b16 %v9343, %v9343
      %v9376 = vpack.c.b16 %v9344, %v9344
      %v9377 = vpack.c.b16 %v9345, %v9345
      %v9378 = vpack.c.b16 %v9346, %v9346
      %v9379 = vpack.c.b16 %v9347, %v9347
      %v9380 = vpack.c.b16 %v9348, %v9348
      %v9381 = vpack.c.b16 %v9349, %v9349
      %v9382 = vpack.c.b16 %v9350, %v9350
      %v9383 = vpack.c.b16 %v9351, %v9351
      %v9384 = vpack.c.b16 %v9352, %v9352
      %v9385 = vpack.c.b16 %v9353, %v9353
      %v9386 = vpack.c.b16 %v9354, %v9354
      %v9387 = vpack.c.b16 %v9355, %v9355
      %v9388 = vpack.c.b16 %v9356, %v9356
      %v9389 = vpack.c.b16 %v9357, %v9357
      %v9390 = vpack.c.b16 %v9358, %v9358
      %v9391 = vpack.c.b16 %v9359, %v9359
      %9424 = vst [vmem:[%s170] sm:$0xf] %v9360
      %9425 = vst [vmem:[%s170 + $0x4] sm:$0xf] %v9361
      %9426 = vst [vmem:[%s170 + $0x8] sm:$0xf] %v9362
      %9427 = vst [vmem:[%s170 + $0xc] sm:$0xf] %v9363
      %9428 = vst [vmem:[%s170 + $0x10] sm:$0xf] %v9364
      %9429 = vst [vmem:[%s170 + $0x14] sm:$0xf] %v9365
      %9430 = vst [vmem:[%s170 + $0x18] sm:$0xf] %v9366
      %9431 = vst [vmem:[%s170 + $0x1c] sm:$0xf] %v9367
      %9432 = vst [vmem:[%s170 + $0x20] sm:$0xf] %v9368
      %9433 = vst [vmem:[%s170 + $0x24] sm:$0xf] %v9369
      %9434 = vst [vmem:[%s170 + $0x28] sm:$0xf] %v9370
      %9435 = vst [vmem:[%s170 + $0x2c] sm:$0xf] %v9371
      %9436 = vst [vmem:[%s170 + $0x30] sm:$0xf] %v9372
      %9437 = vst [vmem:[%s170 + $0x34] sm:$0xf] %v9373
      %9438 = vst [vmem:[%s170 + $0x38] sm:$0xf] %v9374
      %9439 = vst [vmem:[%s170 + $0x3c] sm:$0xf] %v9375
      %9440 = vst [vmem:[%s170 + $0x40] sm:$0xf] %v9376
      %9441 = vst [vmem:[%s170 + $0x44] sm:$0xf] %v9377
      %9442 = vst [vmem:[%s170 + $0x48] sm:$0xf] %v9378
      %9443 = vst [vmem:[%s170 + $0x4c] sm:$0xf] %v9379
      %9444 = vst [vmem:[%s170 + $0x50] sm:$0xf] %v9380
      %9445 = vst [vmem:[%s170 + $0x54] sm:$0xf] %v9381
      %9446 = vst [vmem:[%s170 + $0x58] sm:$0xf] %v9382
      %9447 = vst [vmem:[%s170 + $0x5c] sm:$0xf] %v9383
      %9448 = vst [vmem:[%s170 + $0x60] sm:$0xf] %v9384
      %9449 = vst [vmem:[%s170 + $0x64] sm:$0xf] %v9385
      %9450 = vst [vmem:[%s170 + $0x68] sm:$0xf] %v9386
      %9451 = vst [vmem:[%s170 + $0x6c] sm:$0xf] %v9387
      %9452 = vst [vmem:[%s170 + $0x70] sm:$0xf] %v9388
      %9453 = vst [vmem:[%s170 + $0x74] sm:$0xf] %v9389
      %9454 = vst [vmem:[%s170 + $0x78] sm:$0xf] %v9390
      %9455 = vst [vmem:[%s170 + $0x7c] sm:$0xf] %v9391
      %p9456 = scmp.lt.s32.totalorder %s14, 1
      %s9457 = scalar_select %p9456, %s14, 1
      %s9458 = smul.addr %s9457, 32
      %s9459 = smul.addr %s9458, 4
      %s9460 = scalar_lea.vmem %s3, %s9459
      // Predicated region
      $region33: #{aspp_forward.1} parent=31 // pred_check
        %p9461 = pneg %p100
      $region34: #{aspp_forward.1} parent=31 // pred_check_branch
        %9463 = sbr.rel (%p9461) target = $region36
      $region35: #{aspp_forward.1} parent=31 // pred_region
        _
      $region36: #{aspp_forward.1} parent=31 // pred_fallthru
        _
    $region32: #{aspp_forward.1} parent=5 // pred_fallthru
      _
    %p9464 = scmp.le.s32.totalorder 2, %s9
    // Predicated region
    $region37: #{aspp_forward.1} parent=5 // pred_check
      %p9465 = pneg %p9464
    $region38: #{aspp_forward.1} parent=5 // pred_check_branch
      %9467 = sbr.rel (%p9465) target = $region40
    $region39: #{aspp_forward.1} parent=5 // pred_region
      %s9468 = ssub.s32 %s9, 2
      // Predicated region
      $region41: #{aspp_forward.1} parent=39 // pred_check
        %p9469 = pneg %p106
      $region42: #{aspp_forward.1} parent=39 // pred_check_branch
        %9471 = sbr.rel (%p9469) target = $region44
      $region43: #{aspp_forward.1} parent=39 // pred_region
        %p9472 = scmp.lt.s32.totalorder %s15, 1
        %s9473 = scalar_select %p9472, %s15, 1
        %s9474 = smul.addr %s9473, 32
        %s9475 = smul.addr %s9474, 4
        %s9476 = scalar_lea.vmem %s3, %s9475
      $region44: #{aspp_forward.1} parent=39 // pred_fallthru
        _
    $region40: #{aspp_forward.1} parent=5 // pred_fallthru
      _
  $region6: #{aspp_forward.1} parent=0 // loop_footer
    %s13 = sadd.s32 1, %s9
  $region7: #{aspp_forward.1} parent=0 // loop_footer_branch
    %8 = sbr.rel target = $region3
  $region8: #{aspp_forward.1} parent=0 // loop_exit
    _

</llo_original>
